<compile_context>
chip_gen: v7x
topology: tpu7x:2x2x1
jax: 0.10.0
libtpu: 0.0.40
codegen_flags: <defaults>
</compile_context>

<pallas_src>
import functools

import jax
import jax.numpy as jnp
from jax import lax
from jax.experimental import pallas as pl
from jax.experimental.pallas import tpu as pltpu


# ----------------------------------------------------------------------------
# Host-side constant helpers (tiny, folded at trace time)
# ----------------------------------------------------------------------------
def _nearest_up2_matrix(h, w, bb, dtype):
    """(bb*h*w, bb*4*h*w) block-diagonal 0/1 selection matrix G such that
    (y @ G)[:, (b, q)] = y[:, (b, src(q))] — exact nearest-neighbour x2."""
    q = jnp.arange(4 * h * w)
    r, c = q // (2 * w), q % (2 * w)
    src = (r // 2) * w + (c // 2)
    g0 = (jnp.arange(h * w)[:, None] == src[None, :]).astype(dtype)
    return jnp.kron(jnp.eye(bb, dtype=dtype), g0)


def _edge_masks(h, w, bb, dtype=jnp.float32):
    """(4, bb*h*w): row 0 = has left neighbour, 1 = has right neighbour,
    2 = has a row above, 3 = has a row below — all within the SAME image,
    so they double as batch-boundary guards when images are lane-packed."""
    p = jnp.arange(bb * h * w) % (h * w)
    c, r = p % w, p // w
    return jnp.stack([c > 0, c < w - 1, r > 0, r < h - 1]).astype(dtype)


# ----------------------------------------------------------------------------
# Fused decoder kernel
# ----------------------------------------------------------------------------
def _make_decoder_kernel(wid1, wid2, wid3, matmul_dtype):
    """wid1/2/3: per-image spatial width where conv_31 / conv_32 / conv_33 run."""

    def mm(a, b):
        return jnp.dot(a.astype(matmul_dtype), b.astype(matmul_dtype),
                       preferred_element_type=jnp.float32)

    def conv3x3(a_f32, wk_ref, b_ref, m_ref, width):
        # a_f32: (Cin, N) f32 activation; wk_ref: (3*Cout, 3*Cin) stacked
        # weights (row blocks = ky taps, col blocks = kx taps) in matmul_dtype;
        # b_ref: (Cout, 1) f32 bias; m_ref: (4, N) f32 edge masks.
        cin, n = a_f32.shape
        cout = wk_ref.shape[0] // 3
        a = a_f32.astype(matmul_dtype)                 # single operand cast
        zc = jnp.zeros((cin, 1), a.dtype)
        ml = m_ref[0:1, :].astype(a.dtype)
        mr = m_ref[1:2, :].astype(a.dtype)
        a_m1 = jnp.concatenate([zc, a[:, :n - 1]], axis=1) * ml    # kx = 0
        a_p1 = jnp.concatenate([a[:, 1:], zc], axis=1) * mr        # kx = 2
        acat = jnp.concatenate([a_m1, a, a_p1], axis=0)            # (3Cin, N)
        # one MXU push for all 9 taps
        z = jnp.dot(wk_ref[...], acat, preferred_element_type=jnp.float32)
        z0, z1, z2 = z[:cout], z[cout:2 * cout], z[2 * cout:]
        # shift the (Cout, N) ky outputs by +/-W instead of the (3Cin, N) input
        zr = jnp.zeros((cout, width), jnp.float32)
        up = jnp.concatenate([zr, z0[:, :n - width]], axis=1) * m_ref[2:3, :]
        dn = jnp.concatenate([z2[:, width:], zr], axis=1) * m_ref[3:4, :]
        return up + z1 + dn + b_ref[...]

    def kernel(x_ref, f2_ref, f3_ref, f4_ref, f5_ref,        # activations
               g5_ref, g4_ref, g3_ref,                       # upsample matrices
               m31_ref, m32_ref, m33_ref,                    # 3x3 edge masks
               w1_ref, b1_ref, w31_ref, b31_ref,             # stage 1
               w2_ref, b2_ref, w32_ref, b32_ref,             # stage 2
               w3_ref, b3_ref, w33_ref, b33_ref,             # stage 3
               w4_ref, b4_ref, w6_ref, b6_ref,               # tail
               out_ref, outp_ref):
        # ---- stage 1: conv1 (pre-upsample) -> x2 up -> +f4 -> conv_31 ----
        t = mm(w1_ref[...], f5_ref[0]) + b1_ref[...]
        t = mm(t, g5_ref[...])
        t = conv3x3(t + f4_ref[0], w31_ref, b31_ref, m31_ref, wid1)
        # ---- stage 2: conv2 (pre-upsample) -> x2 up -> +f3 -> conv_32 ----
        t = mm(w2_ref[...], t) + b2_ref[...]
        t = mm(t, g4_ref[...])
        t = conv3x3(t + f3_ref[0], w32_ref, b32_ref, m32_ref, wid2)
        # ---- stage 3: conv3 (pre-upsample) -> x2 up -> +f2 -> conv_33 ----
        t = mm(w3_ref[...], t) + b3_ref[...]
        t = mm(t, g3_ref[...])
        t = conv3x3(t + f2_ref[0], w33_ref, b33_ref, m33_ref, wid3)
        # ---- tail: conv4 (MXU), then conv6 (3->3) + tanh on the VPU (f32) ----
        out_p = mm(w4_ref[...], t) + b4_ref[...]                   # (3, N)
        xin = x_ref[0] + out_p
        w6 = w6_ref[...]
        pre = (b6_ref[...]
               + w6[:, 0:1] * xin[0:1, :]
               + w6[:, 1:2] * xin[1:2, :]
               + w6[:, 2:3] * xin[2:3, :])
        out_ref[0] = jnp.tanh(pre)
        outp_ref[0] = out_p

    return kernel


# ----------------------------------------------------------------------------
# Public forward (PyTorch NCHW convention at the boundary)
# ----------------------------------------------------------------------------
def _pick_batch_block(b):
    for cand in (8, 4, 2):
        if b % cand == 0:
            return cand
    return 1


def feature_decoder_full(kp, x, f1, f2, f3, f4, f5, *,
                         matmul_dtype=jnp.bfloat16, batch_block=None):
    del f1  # unused by the reference forward
    B, _, H, W = x.shape
    bb = batch_block or _pick_batch_block(B)
    assert B % bb == 0
    nb = B // bb

    def pack(t):   # (B,C,H,W) -> (nb, C, bb*H*W); columns ordered (b, h, w)
        c = t.shape[1]
        return (t.reshape(nb, bb, c, -1).transpose(0, 2, 1, 3)
                 .reshape(nb, c, -1).astype(jnp.float32))

    xf, f2f, f3f, f4f, f5f = (pack(t) for t in (x, f2, f3, f4, f5))

    g5 = _nearest_up2_matrix(f5.shape[2], f5.shape[3], bb, matmul_dtype)
    g4 = _nearest_up2_matrix(f4.shape[2], f4.shape[3], bb, matmul_dtype)
    g3 = _nearest_up2_matrix(f3.shape[2], f3.shape[3], bb, matmul_dtype)
    m31 = _edge_masks(f4.shape[2], f4.shape[3], bb)
    m32 = _edge_masks(f3.shape[2], f3.shape[3], bb)
    m33 = _edge_masks(f2.shape[2], f2.shape[3], bb)

    w1, b1 = kp["conv1"]
    w2, b2 = kp["conv2"]
    w3, b3 = kp["conv3"]
    w4, b4 = kp["conv4"]
    w6, b6 = kp["conv6"]
    w31, b31 = kp["conv_31"]
    w32, b32 = kp["conv_32"]
    w33, b33 = kp["conv_33"]

    inputs = (xf, f2f, f3f, f4f, f5f,
              g5, g4, g3, m31, m32, m33,
              w1, b1, w31, b31, w2, b2, w32, b32, w3, b3, w33, b33,
              w4, b4, w6, b6)

    def batched(arr):   # one batch-block per grid step
        return pl.BlockSpec((1,) + tuple(arr.shape[1:]), lambda g: (g, 0, 0))

    def shared(arr):    # constant block index -> stays resident in VMEM
        nd = arr.ndim
        return pl.BlockSpec(tuple(arr.shape), lambda g, _nd=nd: (0,) * _nd)

    in_specs = [batched(a) for a in inputs[:5]] + [shared(a) for a in inputs[5:]]

    npix = bb * H * W
    kernel = _make_decoder_kernel(f4.shape[3], f3.shape[3], f2.shape[3],
                                  matmul_dtype)
    out, out_p = pl.pallas_call(
        kernel,
        grid=(nb,),
        in_specs=in_specs,
        out_specs=(pl.BlockSpec((1, 3, npix), lambda g: (g, 0, 0)),
                   pl.BlockSpec((1, 3, npix), lambda g: (g, 0, 0))),
        out_shape=(jax.ShapeDtypeStruct((nb, 3, npix), jnp.float32),
                   jax.ShapeDtypeStruct((nb, 3, npix), jnp.float32)),
        compiler_params=pltpu.CompilerParams(
            dimension_semantics=("parallel",),     # megacore: split batch blocks
            vmem_limit_bytes=32 * 1024 * 1024),    # safe on v5e/v6e/v7x
    )(*inputs)

    def unpack(t):      # (nb, 3, bb*H*W) -> (B, 3, H, W)
        return (t.reshape(nb, 3, bb, H, W).transpose(0, 2, 1, 3, 4)
                 .reshape(B, 3, H, W))

    return unpack(out), unpack(out_p)


# ----------------------------------------------------------------------------
# Parameters (deterministic, PyTorch Conv2d-style uniform init)
# ----------------------------------------------------------------------------
_CONV_DEFS = {
    "conv1":   (256, 512, 1),
    "conv2":   (128, 256, 1),
    "conv3":   (64, 128, 1),
    "conv4":   (3, 64, 1),
    "conv5":   (3, 64, 1),     # unused in forward, kept for parity
    "conv6":   (3, 3, 1),
    "conv_31": (256, 256, 3),
    "conv_32": (128, 128, 3),
    "conv_33": (64, 64, 3),
    "conv_34": (3, 3, 3),      # unused in forward, kept for parity
}


def init_params(key):
    params = {}
    for name, (cout, cin, k) in _CONV_DEFS.items():
        key, kw, kb = jax.random.split(key, 3)
        bound = 1.0 / float(cin * k * k) ** 0.5
        w = jax.random.uniform(kw, (cout, cin, k, k), jnp.float32, -bound, bound)
        b = jax.random.uniform(kb, (cout,), jnp.float32, -bound, bound)
        params[name] = (w, b)
    return params


def kernel_params(params, matmul_dtype=jnp.bfloat16):
    """PyTorch OIHW weights -> kernel layouts.

    1x1 convs -> (Cout, Cin); 3x3 convs -> stacked (3*Cout, 3*Cin) with
    [ky*Cout + o, kx*Cin + i] = w[o, i, ky, kx]; biases -> (Cout, 1) f32.
    MXU weights are stored in `matmul_dtype` (conv6 stays f32: it runs on VPU).
    """
    kp = {}
    for name, (w, b) in params.items():
        cout, cin, k, _ = w.shape
        if k == 1:
            wk = w.reshape(cout, cin)
        else:
            wk = jnp.transpose(w, (2, 0, 3, 1)).reshape(k * cout, k * cin)
        wk = wk.astype(jnp.float32 if name == "conv6" else matmul_dtype)
        kp[name] = (wk, b.reshape(cout, 1).astype(jnp.float32))
    return kp


# ----------------------------------------------------------------------------
# Pure-JAX reference (NCHW, lax.conv) for the correctness check
# ----------------------------------------------------------------------------
def reference_forward(params, x, f1, f2, f3, f4, f5):
    del f1

    def conv(t, name, pad):
        w, b = params[name]
        y = lax.conv_general_dilated(
            t, w, (1, 1), [(pad, pad), (pad, pad)],
            dimension_numbers=("NCHW", "OIHW", "NCHW"))
        return y + b.reshape(1, -1, 1, 1)

    up2 = lambda t: jnp.repeat(jnp.repeat(t, 2, axis=2), 2, axis=3)

    out = conv(up2(f5), "conv1", 0)
    out = conv(out + f4, "conv_31", 1)
    out = conv(up2(out), "conv2", 0)
    out = conv(out + f3, "conv_32", 1)
    out = conv(up2(out), "conv3", 0)
    out = conv(out + f2, "conv_33", 1)
    out_ = conv(out, "conv4", 0)
    out = conv(x + out_, "conv6", 0)
    return jnp.tanh(out), out_


# ----------------------------------------------------------------------------
if __name__ == "__main__":
    key = jax.random.PRNGKey(0)
    key, *ks = jax.random.split(key, 8)

    B = 2
    # f5 is the smallest-resolution feature map; each decode stage doubles H, W.
    f5 = jax.random.normal(ks[0], (B, 512, 2, 2), jnp.float32)
    f4 = jax.random.normal(ks[1], (B, 256, 4, 4), jnp.float32)
    f3 = jax.random.normal(ks[2], (B, 128, 8, 8), jnp.float32)
    f2 = jax.random.normal(ks[3], (B, 64, 16, 16), jnp.float32)
    f1 = jax.random.normal(ks[4], (B, 64, 32, 32), jnp.float32)   # unused
    x = jax.random.normal(ks[5], (B, 3, 16, 16), jnp.float32)

    params = init_params(ks[6])
    ref_out, ref_out_ = reference_forward(params, x, f1, f2, f3, f4, f5)

    # Default fast path: bf16 MXU operands, f32 accumulation / elementwise.
    kpbf = kernel_params(params)                       # bf16 by default
    fwdbf = jax.jit(functools.partial(feature_decoder_full, kpbf))
    outb, outb_ = fwdbf(x, f1, f2, f3, f4, f5)
    jax.block_until_ready((outb, outb_))
    assert outb.shape == (B, 3, 16, 16) and outb_.shape == (B, 3, 16, 16)
    assert jnp.allclose(outb, ref_out, atol=5e-2, rtol=5e-2)
    assert jnp.allclose(outb_, ref_out_, atol=5e-2, rtol=5e-2)

    # f32-operand path: tight parity with the f32 reference.
    kp32 = kernel_params(params, jnp.float32)
    fwd32 = jax.jit(functools.partial(feature_decoder_full, kp32,
                                      matmul_dtype=jnp.float32))
    out, out_ = fwd32(x, f1, f2, f3, f4, f5)
    jax.block_until_ready((out, out_))
    assert jnp.allclose(out, ref_out, atol=2e-3, rtol=2e-3)
    assert jnp.allclose(out_, ref_out_, atol=2e-3, rtol=2e-3)

    print("KERNEL_OK")
</pallas_src>

<mosaic_0001>
module attributes {stable_mosaic.version = 11 : i64} {
  func.func @kernel(%arg0: i32, %arg1: memref<1x3x512xf32, #tpu.memory_space<vmem>>, %arg2: memref<1x64x512xf32, #tpu.memory_space<vmem>>, %arg3: memref<1x128x128xf32, #tpu.memory_space<vmem>>, %arg4: memref<1x256x32xf32, #tpu.memory_space<vmem>>, %arg5: memref<1x512x8xf32, #tpu.memory_space<vmem>>, %arg6: memref<8x32xbf16, #tpu.memory_space<vmem>>, %arg7: memref<32x128xbf16, #tpu.memory_space<vmem>>, %arg8: memref<128x512xbf16, #tpu.memory_space<vmem>>, %arg9: memref<4x32xf32, #tpu.memory_space<vmem>>, %arg10: memref<4x128xf32, #tpu.memory_space<vmem>>, %arg11: memref<4x512xf32, #tpu.memory_space<vmem>>, %arg12: memref<256x512xbf16, #tpu.memory_space<vmem>>, %arg13: memref<256x1xf32, #tpu.memory_space<vmem>>, %arg14: memref<768x768xbf16, #tpu.memory_space<vmem>>, %arg15: memref<256x1xf32, #tpu.memory_space<vmem>>, %arg16: memref<128x256xbf16, #tpu.memory_space<vmem>>, %arg17: memref<128x1xf32, #tpu.memory_space<vmem>>, %arg18: memref<384x384xbf16, #tpu.memory_space<vmem>>, %arg19: memref<128x1xf32, #tpu.memory_space<vmem>>, %arg20: memref<64x128xbf16, #tpu.memory_space<vmem>>, %arg21: memref<64x1xf32, #tpu.memory_space<vmem>>, %arg22: memref<192x192xbf16, #tpu.memory_space<vmem>>, %arg23: memref<64x1xf32, #tpu.memory_space<vmem>>, %arg24: memref<3x64xbf16, #tpu.memory_space<vmem>>, %arg25: memref<3x1xf32, #tpu.memory_space<vmem>>, %arg26: memref<3x3xf32, #tpu.memory_space<vmem>>, %arg27: memref<3x1xf32, #tpu.memory_space<vmem>>, %arg28: memref<1x3x512xf32, #tpu.memory_space<vmem>>, %arg29: memref<1x3x512xf32, #tpu.memory_space<vmem>>) attributes {dimension_semantics = [#tpu.dimension_semantics<parallel>], iteration_bounds = array<i64: 1>, scalar_prefetch = 0 : i64, scratch_operands = 0 : i64, tpu.core_type = #tpu.core_type<tc>, window_params = [{transform_indices = @transform_0, window_bounds = array<i64: 1, 3, 512>}, {transform_indices = @transform_1, window_bounds = array<i64: 1, 64, 512>}, {transform_indices = @transform_2, window_bounds = array<i64: 1, 128, 128>}, {transform_indices = @transform_3, window_bounds = array<i64: 1, 256, 32>}, {transform_indices = @transform_4, window_bounds = array<i64: 1, 512, 8>}, {pipeline_mode = #tpu.pipeline_mode<synchronous>, transform_indices = @transform_5, window_bounds = array<i64: 8, 32>}, {pipeline_mode = #tpu.pipeline_mode<synchronous>, transform_indices = @transform_6, window_bounds = array<i64: 32, 128>}, {pipeline_mode = #tpu.pipeline_mode<synchronous>, transform_indices = @transform_7, window_bounds = array<i64: 128, 512>}, {pipeline_mode = #tpu.pipeline_mode<synchronous>, transform_indices = @transform_8, window_bounds = array<i64: 4, 32>}, {pipeline_mode = #tpu.pipeline_mode<synchronous>, transform_indices = @transform_9, window_bounds = array<i64: 4, 128>}, {pipeline_mode = #tpu.pipeline_mode<synchronous>, transform_indices = @transform_10, window_bounds = array<i64: 4, 512>}, {pipeline_mode = #tpu.pipeline_mode<synchronous>, transform_indices = @transform_11, window_bounds = array<i64: 256, 512>}, {pipeline_mode = #tpu.pipeline_mode<synchronous>, transform_indices = @transform_12, window_bounds = array<i64: 256, 1>}, {pipeline_mode = #tpu.pipeline_mode<synchronous>, transform_indices = @transform_13, window_bounds = array<i64: 768, 768>}, {pipeline_mode = #tpu.pipeline_mode<synchronous>, transform_indices = @transform_14, window_bounds = array<i64: 256, 1>}, {pipeline_mode = #tpu.pipeline_mode<synchronous>, transform_indices = @transform_15, window_bounds = array<i64: 128, 256>}, {pipeline_mode = #tpu.pipeline_mode<synchronous>, transform_indices = @transform_16, window_bounds = array<i64: 128, 1>}, {pipeline_mode = #tpu.pipeline_mode<synchronous>, transform_indices = @transform_17, window_bounds = array<i64: 384, 384>}, {pipeline_mode = #tpu.pipeline_mode<synchronous>, transform_indices = @transform_18, window_bounds = array<i64: 128, 1>}, {pipeline_mode = #tpu.pipeline_mode<synchronous>, transform_indices = @transform_19, window_bounds = array<i64: 64, 128>}, {pipeline_mode = #tpu.pipeline_mode<synchronous>, transform_indices = @transform_20, window_bounds = array<i64: 64, 1>}, {pipeline_mode = #tpu.pipeline_mode<synchronous>, transform_indices = @transform_21, window_bounds = array<i64: 192, 192>}, {pipeline_mode = #tpu.pipeline_mode<synchronous>, transform_indices = @transform_22, window_bounds = array<i64: 64, 1>}, {pipeline_mode = #tpu.pipeline_mode<synchronous>, transform_indices = @transform_23, window_bounds = array<i64: 3, 64>}, {pipeline_mode = #tpu.pipeline_mode<synchronous>, transform_indices = @transform_24, window_bounds = array<i64: 3, 1>}, {pipeline_mode = #tpu.pipeline_mode<synchronous>, transform_indices = @transform_25, window_bounds = array<i64: 3, 3>}, {pipeline_mode = #tpu.pipeline_mode<synchronous>, transform_indices = @transform_26, window_bounds = array<i64: 3, 1>}, {transform_indices = @transform_27, window_bounds = array<i64: 1, 3, 512>}, {transform_indices = @transform_28, window_bounds = array<i64: 1, 3, 512>}]} {
    %c0 = arith.constant 0 : index
    %c0_0 = arith.constant 0 : index
    %0 = vector.load %arg12[%c0, %c0_0] : memref<256x512xbf16, #tpu.memory_space<vmem>>, vector<256x512xbf16>
    %c0_1 = arith.constant 0 : index
    %c0_2 = arith.constant 0 : index
    %c0_3 = arith.constant 0 : index
    %1 = vector.load %arg5[%c0_1, %c0_2, %c0_3] : memref<1x512x8xf32, #tpu.memory_space<vmem>>, vector<1x512x8xf32>
    %2 = vector.shape_cast %1 : vector<1x512x8xf32> to vector<512x8xf32>
    %3 = arith.truncf %2 : vector<512x8xf32> to vector<512x8xbf16>
    %cst = arith.constant dense<0.000000e+00> : vector<256x8xf32>
    %4 = tpu.matmul %0, %3, %cst {dimension_numbers = #tpu.dot_dimension_numbers<[1], [0], [0], [1], [0, 0, 1, 1], [], []>} : vector<256x512xbf16>, vector<512x8xbf16>, vector<256x8xf32> -> vector<256x8xf32>
    %c0_4 = arith.constant 0 : index
    %c0_5 = arith.constant 0 : index
    %5 = vector.load %arg13[%c0_4, %c0_5] : memref<256x1xf32, #tpu.memory_space<vmem>>, vector<256x1xf32>
    %6 = vector.broadcast %5 : vector<256x1xf32> to vector<256x8xf32>
    %7 = arith.addf %4, %6 : vector<256x8xf32>
    %c0_6 = arith.constant 0 : index
    %c0_7 = arith.constant 0 : index
    %8 = vector.load %arg6[%c0_6, %c0_7] : memref<8x32xbf16, #tpu.memory_space<vmem>>, vector<8x32xbf16>
    %9 = arith.truncf %7 : vector<256x8xf32> to vector<256x8xbf16>
    %cst_8 = arith.constant dense<0.000000e+00> : vector<256x32xf32>
    %10 = tpu.matmul %9, %8, %cst_8 {dimension_numbers = #tpu.dot_dimension_numbers<[1], [0], [0], [1], [0, 0, 1, 1], [], []>} : vector<256x8xbf16>, vector<8x32xbf16>, vector<256x32xf32> -> vector<256x32xf32>
    %c0_9 = arith.constant 0 : index
    %c0_10 = arith.constant 0 : index
    %c0_11 = arith.constant 0 : index
    %11 = vector.load %arg4[%c0_9, %c0_10, %c0_11] : memref<1x256x32xf32, #tpu.memory_space<vmem>>, vector<1x256x32xf32>
    %12 = vector.shape_cast %11 : vector<1x256x32xf32> to vector<256x32xf32>
    %13 = arith.addf %10, %12 : vector<256x32xf32>
    %14 = arith.truncf %13 : vector<256x32xf32> to vector<256x32xbf16>
    %cst_12 = arith.constant 0.000000e+00 : bf16
    %15 = vector.broadcast %cst_12 : bf16 to vector<256x1xbf16>
    %c0_13 = arith.constant 0 : index
    %c0_14 = arith.constant 0 : index
    %16 = vector.load %arg9[%c0_13, %c0_14] : memref<4x32xf32, #tpu.memory_space<vmem>>, vector<1x32xf32>
    %17 = arith.truncf %16 : vector<1x32xf32> to vector<1x32xbf16>
    %c1 = arith.constant 1 : index
    %c0_15 = arith.constant 0 : index
    %18 = vector.load %arg9[%c1, %c0_15] : memref<4x32xf32, #tpu.memory_space<vmem>>, vector<1x32xf32>
    %19 = arith.truncf %18 : vector<1x32xf32> to vector<1x32xbf16>
    %20 = vector.extract_strided_slice %14 {offsets = [0, 0], sizes = [256, 31], strides = [1, 1]} : vector<256x32xbf16> to vector<256x31xbf16>
    %21 = tpu.concatenate %15, %20 in 1 : vector<256x1xbf16>, vector<256x31xbf16> -> vector<256x32xbf16>
    %22 = vector.broadcast %17 : vector<1x32xbf16> to vector<256x32xbf16>
    %23 = arith.mulf %21, %22 : vector<256x32xbf16>
    %24 = vector.extract_strided_slice %14 {offsets = [0, 1], sizes = [256, 31], strides = [1, 1]} : vector<256x32xbf16> to vector<256x31xbf16>
    %25 = tpu.concatenate %24, %15 in 1 : vector<256x31xbf16>, vector<256x1xbf16> -> vector<256x32xbf16>
    %26 = vector.broadcast %19 : vector<1x32xbf16> to vector<256x32xbf16>
    %27 = arith.mulf %25, %26 : vector<256x32xbf16>
    %28 = tpu.concatenate %23, %14, %27 in 0 : vector<256x32xbf16>, vector<256x32xbf16>, vector<256x32xbf16> -> vector<768x32xbf16>
    %c0_16 = arith.constant 0 : index
    %c0_17 = arith.constant 0 : index
    %29 = vector.load %arg14[%c0_16, %c0_17] : memref<768x768xbf16, #tpu.memory_space<vmem>>, vector<768x768xbf16>
    %cst_18 = arith.constant dense<0.000000e+00> : vector<768x32xf32>
    %30 = tpu.matmul %29, %28, %cst_18 {dimension_numbers = #tpu.dot_dimension_numbers<[1], [0], [0], [1], [0, 0, 1, 1], [], []>} : vector<768x768xbf16>, vector<768x32xbf16>, vector<768x32xf32> -> vector<768x32xf32>
    %31 = vector.extract_strided_slice %30 {offsets = [0, 0], sizes = [256, 32], strides = [1, 1]} : vector<768x32xf32> to vector<256x32xf32>
    %32 = vector.extract_strided_slice %30 {offsets = [256, 0], sizes = [256, 32], strides = [1, 1]} : vector<768x32xf32> to vector<256x32xf32>
    %33 = vector.extract_strided_slice %30 {offsets = [512, 0], sizes = [256, 32], strides = [1, 1]} : vector<768x32xf32> to vector<256x32xf32>
    %cst_19 = arith.constant 0.000000e+00 : f32
    %34 = vector.broadcast %cst_19 : f32 to vector<256x4xf32>
    %35 = vector.extract_strided_slice %31 {offsets = [0, 0], sizes = [256, 28], strides = [1, 1]} : vector<256x32xf32> to vector<256x28xf32>
    %36 = tpu.concatenate %34, %35 in 1 : vector<256x4xf32>, vector<256x28xf32> -> vector<256x32xf32>
    %c2 = arith.constant 2 : index
    %c0_20 = arith.constant 0 : index
    %37 = vector.load %arg9[%c2, %c0_20] : memref<4x32xf32, #tpu.memory_space<vmem>>, vector<1x32xf32>
    %38 = vector.broadcast %37 : vector<1x32xf32> to vector<256x32xf32>
    %39 = arith.mulf %36, %38 : vector<256x32xf32>
    %40 = vector.extract_strided_slice %33 {offsets = [0, 4], sizes = [256, 28], strides = [1, 1]} : vector<256x32xf32> to vector<256x28xf32>
    %41 = tpu.concatenate %40, %34 in 1 : vector<256x28xf32>, vector<256x4xf32> -> vector<256x32xf32>
    %c3 = arith.constant 3 : index
    %c0_21 = arith.constant 0 : index
    %42 = vector.load %arg9[%c3, %c0_21] : memref<4x32xf32, #tpu.memory_space<vmem>>, vector<1x32xf32>
    %43 = vector.broadcast %42 : vector<1x32xf32> to vector<256x32xf32>
    %44 = arith.mulf %41, %43 : vector<256x32xf32>
    %45 = arith.addf %39, %32 : vector<256x32xf32>
    %46 = arith.addf %45, %44 : vector<256x32xf32>
    %c0_22 = arith.constant 0 : index
    %c0_23 = arith.constant 0 : index
    %47 = vector.load %arg15[%c0_22, %c0_23] : memref<256x1xf32, #tpu.memory_space<vmem>>, vector<256x1xf32>
    %48 = vector.broadcast %47 : vector<256x1xf32> to vector<256x32xf32>
    %49 = arith.addf %46, %48 : vector<256x32xf32>
    %c0_24 = arith.constant 0 : index
    %c0_25 = arith.constant 0 : index
    %50 = vector.load %arg16[%c0_24, %c0_25] : memref<128x256xbf16, #tpu.memory_space<vmem>>, vector<128x256xbf16>
    %51 = arith.truncf %49 : vector<256x32xf32> to vector<256x32xbf16>
    %cst_26 = arith.constant dense<0.000000e+00> : vector<128x32xf32>
    %52 = tpu.matmul %50, %51, %cst_26 {dimension_numbers = #tpu.dot_dimension_numbers<[1], [0], [0], [1], [0, 0, 1, 1], [], []>} : vector<128x256xbf16>, vector<256x32xbf16>, vector<128x32xf32> -> vector<128x32xf32>
    %c0_27 = arith.constant 0 : index
    %c0_28 = arith.constant 0 : index
    %53 = vector.load %arg17[%c0_27, %c0_28] : memref<128x1xf32, #tpu.memory_space<vmem>>, vector<128x1xf32>
    %54 = vector.broadcast %53 : vector<128x1xf32> to vector<128x32xf32>
    %55 = arith.addf %52, %54 : vector<128x32xf32>
    %c0_29 = arith.constant 0 : index
    %c0_30 = arith.constant 0 : index
    %56 = vector.load %arg7[%c0_29, %c0_30] : memref<32x128xbf16, #tpu.memory_space<vmem>>, vector<32x128xbf16>
    %57 = arith.truncf %55 : vector<128x32xf32> to vector<128x32xbf16>
    %cst_31 = arith.constant dense<0.000000e+00> : vector<128x128xf32>
    %58 = tpu.matmul %57, %56, %cst_31 {dimension_numbers = #tpu.dot_dimension_numbers<[1], [0], [0], [1], [0, 0, 1, 1], [], []>} : vector<128x32xbf16>, vector<32x128xbf16>, vector<128x128xf32> -> vector<128x128xf32>
    %c0_32 = arith.constant 0 : index
    %c0_33 = arith.constant 0 : index
    %c0_34 = arith.constant 0 : index
    %59 = vector.load %arg3[%c0_32, %c0_33, %c0_34] : memref<1x128x128xf32, #tpu.memory_space<vmem>>, vector<1x128x128xf32>
    %60 = vector.shape_cast %59 : vector<1x128x128xf32> to vector<128x128xf32>
    %61 = arith.addf %58, %60 : vector<128x128xf32>
    %62 = arith.truncf %61 : vector<128x128xf32> to vector<128x128xbf16>
    %cst_35 = arith.constant 0.000000e+00 : bf16
    %63 = vector.broadcast %cst_35 : bf16 to vector<128x1xbf16>
    %c0_36 = arith.constant 0 : index
    %c0_37 = arith.constant 0 : index
    %64 = vector.load %arg10[%c0_36, %c0_37] : memref<4x128xf32, #tpu.memory_space<vmem>>, vector<1x128xf32>
    %65 = arith.truncf %64 : vector<1x128xf32> to vector<1x128xbf16>
    %c1_38 = arith.constant 1 : index
    %c0_39 = arith.constant 0 : index
    %66 = vector.load %arg10[%c1_38, %c0_39] : memref<4x128xf32, #tpu.memory_space<vmem>>, vector<1x128xf32>
    %67 = arith.truncf %66 : vector<1x128xf32> to vector<1x128xbf16>
    %68 = vector.extract_strided_slice %62 {offsets = [0, 0], sizes = [128, 127], strides = [1, 1]} : vector<128x128xbf16> to vector<128x127xbf16>
    %69 = tpu.concatenate %63, %68 in 1 : vector<128x1xbf16>, vector<128x127xbf16> -> vector<128x128xbf16>
    %70 = vector.broadcast %65 : vector<1x128xbf16> to vector<128x128xbf16>
    %71 = arith.mulf %69, %70 : vector<128x128xbf16>
    %72 = vector.extract_strided_slice %62 {offsets = [0, 1], sizes = [128, 127], strides = [1, 1]} : vector<128x128xbf16> to vector<128x127xbf16>
    %73 = tpu.concatenate %72, %63 in 1 : vector<128x127xbf16>, vector<128x1xbf16> -> vector<128x128xbf16>
    %74 = vector.broadcast %67 : vector<1x128xbf16> to vector<128x128xbf16>
    %75 = arith.mulf %73, %74 : vector<128x128xbf16>
    %76 = tpu.concatenate %71, %62, %75 in 0 : vector<128x128xbf16>, vector<128x128xbf16>, vector<128x128xbf16> -> vector<384x128xbf16>
    %c0_40 = arith.constant 0 : index
    %c0_41 = arith.constant 0 : index
    %77 = vector.load %arg18[%c0_40, %c0_41] : memref<384x384xbf16, #tpu.memory_space<vmem>>, vector<384x384xbf16>
    %cst_42 = arith.constant dense<0.000000e+00> : vector<384x128xf32>
    %78 = tpu.matmul %77, %76, %cst_42 {dimension_numbers = #tpu.dot_dimension_numbers<[1], [0], [0], [1], [0, 0, 1, 1], [], []>} : vector<384x384xbf16>, vector<384x128xbf16>, vector<384x128xf32> -> vector<384x128xf32>
    %79 = vector.extract_strided_slice %78 {offsets = [0, 0], sizes = [128, 128], strides = [1, 1]} : vector<384x128xf32> to vector<128x128xf32>
    %80 = vector.extract_strided_slice %78 {offsets = [128, 0], sizes = [128, 128], strides = [1, 1]} : vector<384x128xf32> to vector<128x128xf32>
    %81 = vector.extract_strided_slice %78 {offsets = [256, 0], sizes = [128, 128], strides = [1, 1]} : vector<384x128xf32> to vector<128x128xf32>
    %cst_43 = arith.constant 0.000000e+00 : f32
    %82 = vector.broadcast %cst_43 : f32 to vector<128x8xf32>
    %83 = vector.extract_strided_slice %79 {offsets = [0, 0], sizes = [128, 120], strides = [1, 1]} : vector<128x128xf32> to vector<128x120xf32>
    %84 = tpu.concatenate %82, %83 in 1 : vector<128x8xf32>, vector<128x120xf32> -> vector<128x128xf32>
    %c2_44 = arith.constant 2 : index
    %c0_45 = arith.constant 0 : index
    %85 = vector.load %arg10[%c2_44, %c0_45] : memref<4x128xf32, #tpu.memory_space<vmem>>, vector<1x128xf32>
    %86 = vector.broadcast %85 : vector<1x128xf32> to vector<128x128xf32>
    %87 = arith.mulf %84, %86 : vector<128x128xf32>
    %88 = vector.extract_strided_slice %81 {offsets = [0, 8], sizes = [128, 120], strides = [1, 1]} : vector<128x128xf32> to vector<128x120xf32>
    %89 = tpu.concatenate %88, %82 in 1 : vector<128x120xf32>, vector<128x8xf32> -> vector<128x128xf32>
    %c3_46 = arith.constant 3 : index
    %c0_47 = arith.constant 0 : index
    %90 = vector.load %arg10[%c3_46, %c0_47] : memref<4x128xf32, #tpu.memory_space<vmem>>, vector<1x128xf32>
    %91 = vector.broadcast %90 : vector<1x128xf32> to vector<128x128xf32>
    %92 = arith.mulf %89, %91 : vector<128x128xf32>
    %93 = arith.addf %87, %80 : vector<128x128xf32>
    %94 = arith.addf %93, %92 : vector<128x128xf32>
    %c0_48 = arith.constant 0 : index
    %c0_49 = arith.constant 0 : index
    %95 = vector.load %arg19[%c0_48, %c0_49] : memref<128x1xf32, #tpu.memory_space<vmem>>, vector<128x1xf32>
    %96 = vector.broadcast %95 : vector<128x1xf32> to vector<128x128xf32>
    %97 = arith.addf %94, %96 : vector<128x128xf32>
    %c0_50 = arith.constant 0 : index
    %c0_51 = arith.constant 0 : index
    %98 = vector.load %arg20[%c0_50, %c0_51] : memref<64x128xbf16, #tpu.memory_space<vmem>>, vector<64x128xbf16>
    %99 = arith.truncf %97 : vector<128x128xf32> to vector<128x128xbf16>
    %cst_52 = arith.constant dense<0.000000e+00> : vector<64x128xf32>
    %100 = tpu.matmul %98, %99, %cst_52 {dimension_numbers = #tpu.dot_dimension_numbers<[1], [0], [0], [1], [0, 0, 1, 1], [], []>} : vector<64x128xbf16>, vector<128x128xbf16>, vector<64x128xf32> -> vector<64x128xf32>
    %c0_53 = arith.constant 0 : index
    %c0_54 = arith.constant 0 : index
    %101 = vector.load %arg21[%c0_53, %c0_54] : memref<64x1xf32, #tpu.memory_space<vmem>>, vector<64x1xf32>
    %102 = vector.broadcast %101 : vector<64x1xf32> to vector<64x128xf32>
    %103 = arith.addf %100, %102 : vector<64x128xf32>
    %c0_55 = arith.constant 0 : index
    %c0_56 = arith.constant 0 : index
    %104 = vector.load %arg8[%c0_55, %c0_56] : memref<128x512xbf16, #tpu.memory_space<vmem>>, vector<128x512xbf16>
    %105 = arith.truncf %103 : vector<64x128xf32> to vector<64x128xbf16>
    %cst_57 = arith.constant dense<0.000000e+00> : vector<64x512xf32>
    %106 = tpu.matmul %105, %104, %cst_57 {dimension_numbers = #tpu.dot_dimension_numbers<[1], [0], [0], [1], [0, 0, 1, 1], [], []>} : vector<64x128xbf16>, vector<128x512xbf16>, vector<64x512xf32> -> vector<64x512xf32>
    %c0_58 = arith.constant 0 : index
    %c0_59 = arith.constant 0 : index
    %c0_60 = arith.constant 0 : index
    %107 = vector.load %arg2[%c0_58, %c0_59, %c0_60] : memref<1x64x512xf32, #tpu.memory_space<vmem>>, vector<1x64x512xf32>
    %108 = vector.shape_cast %107 : vector<1x64x512xf32> to vector<64x512xf32>
    %109 = arith.addf %106, %108 : vector<64x512xf32>
    %110 = arith.truncf %109 : vector<64x512xf32> to vector<64x512xbf16>
    %cst_61 = arith.constant 0.000000e+00 : bf16
    %111 = vector.broadcast %cst_61 : bf16 to vector<64x1xbf16>
    %c0_62 = arith.constant 0 : index
    %c0_63 = arith.constant 0 : index
    %112 = vector.load %arg11[%c0_62, %c0_63] : memref<4x512xf32, #tpu.memory_space<vmem>>, vector<1x512xf32>
    %113 = arith.truncf %112 : vector<1x512xf32> to vector<1x512xbf16>
    %c1_64 = arith.constant 1 : index
    %c0_65 = arith.constant 0 : index
    %114 = vector.load %arg11[%c1_64, %c0_65] : memref<4x512xf32, #tpu.memory_space<vmem>>, vector<1x512xf32>
    %115 = arith.truncf %114 : vector<1x512xf32> to vector<1x512xbf16>
    %116 = vector.extract_strided_slice %110 {offsets = [0, 0], sizes = [64, 511], strides = [1, 1]} : vector<64x512xbf16> to vector<64x511xbf16>
    %117 = tpu.concatenate %111, %116 in 1 : vector<64x1xbf16>, vector<64x511xbf16> -> vector<64x512xbf16>
    %118 = vector.broadcast %113 : vector<1x512xbf16> to vector<64x512xbf16>
    %119 = arith.mulf %117, %118 : vector<64x512xbf16>
    %120 = vector.extract_strided_slice %110 {offsets = [0, 1], sizes = [64, 511], strides = [1, 1]} : vector<64x512xbf16> to vector<64x511xbf16>
    %121 = tpu.concatenate %120, %111 in 1 : vector<64x511xbf16>, vector<64x1xbf16> -> vector<64x512xbf16>
    %122 = vector.broadcast %115 : vector<1x512xbf16> to vector<64x512xbf16>
    %123 = arith.mulf %121, %122 : vector<64x512xbf16>
    %124 = tpu.concatenate %119, %110, %123 in 0 : vector<64x512xbf16>, vector<64x512xbf16>, vector<64x512xbf16> -> vector<192x512xbf16>
    %c0_66 = arith.constant 0 : index
    %c0_67 = arith.constant 0 : index
    %125 = vector.load %arg22[%c0_66, %c0_67] : memref<192x192xbf16, #tpu.memory_space<vmem>>, vector<192x192xbf16>
    %cst_68 = arith.constant dense<0.000000e+00> : vector<192x512xf32>
    %126 = tpu.matmul %125, %124, %cst_68 {dimension_numbers = #tpu.dot_dimension_numbers<[1], [0], [0], [1], [0, 0, 1, 1], [], []>} : vector<192x192xbf16>, vector<192x512xbf16>, vector<192x512xf32> -> vector<192x512xf32>
    %127 = vector.extract_strided_slice %126 {offsets = [0, 0], sizes = [64, 512], strides = [1, 1]} : vector<192x512xf32> to vector<64x512xf32>
    %128 = vector.extract_strided_slice %126 {offsets = [64, 0], sizes = [64, 512], strides = [1, 1]} : vector<192x512xf32> to vector<64x512xf32>
    %129 = vector.extract_strided_slice %126 {offsets = [128, 0], sizes = [64, 512], strides = [1, 1]} : vector<192x512xf32> to vector<64x512xf32>
    %cst_69 = arith.constant 0.000000e+00 : f32
    %130 = vector.broadcast %cst_69 : f32 to vector<64x16xf32>
    %131 = vector.extract_strided_slice %127 {offsets = [0, 0], sizes = [64, 496], strides = [1, 1]} : vector<64x512xf32> to vector<64x496xf32>
    %132 = tpu.concatenate %130, %131 in 1 : vector<64x16xf32>, vector<64x496xf32> -> vector<64x512xf32>
    %c2_70 = arith.constant 2 : index
    %c0_71 = arith.constant 0 : index
    %133 = vector.load %arg11[%c2_70, %c0_71] : memref<4x512xf32, #tpu.memory_space<vmem>>, vector<1x512xf32>
    %134 = vector.broadcast %133 : vector<1x512xf32> to vector<64x512xf32>
    %135 = arith.mulf %132, %134 : vector<64x512xf32>
    %136 = vector.extract_strided_slice %129 {offsets = [0, 16], sizes = [64, 496], strides = [1, 1]} : vector<64x512xf32> to vector<64x496xf32>
    %137 = tpu.concatenate %136, %130 in 1 : vector<64x496xf32>, vector<64x16xf32> -> vector<64x512xf32>
    %c3_72 = arith.constant 3 : index
    %c0_73 = arith.constant 0 : index
    %138 = vector.load %arg11[%c3_72, %c0_73] : memref<4x512xf32, #tpu.memory_space<vmem>>, vector<1x512xf32>
    %139 = vector.broadcast %138 : vector<1x512xf32> to vector<64x512xf32>
    %140 = arith.mulf %137, %139 : vector<64x512xf32>
    %141 = arith.addf %135, %128 : vector<64x512xf32>
    %142 = arith.addf %141, %140 : vector<64x512xf32>
    %c0_74 = arith.constant 0 : index
    %c0_75 = arith.constant 0 : index
    %143 = vector.load %arg23[%c0_74, %c0_75] : memref<64x1xf32, #tpu.memory_space<vmem>>, vector<64x1xf32>
    %144 = vector.broadcast %143 : vector<64x1xf32> to vector<64x512xf32>
    %145 = arith.addf %142, %144 : vector<64x512xf32>
    %c0_76 = arith.constant 0 : index
    %c0_77 = arith.constant 0 : index
    %146 = vector.load %arg24[%c0_76, %c0_77] : memref<3x64xbf16, #tpu.memory_space<vmem>>, vector<3x64xbf16>
    %147 = arith.truncf %145 : vector<64x512xf32> to vector<64x512xbf16>
    %cst_78 = arith.constant dense<0.000000e+00> : vector<3x512xf32>
    %148 = tpu.matmul %146, %147, %cst_78 {dimension_numbers = #tpu.dot_dimension_numbers<[1], [0], [0], [1], [0, 0, 1, 1], [], []>} : vector<3x64xbf16>, vector<64x512xbf16>, vector<3x512xf32> -> vector<3x512xf32>
    %c0_79 = arith.constant 0 : index
    %c0_80 = arith.constant 0 : index
    %149 = vector.load %arg25[%c0_79, %c0_80] : memref<3x1xf32, #tpu.memory_space<vmem>>, vector<3x1xf32>
    %150 = vector.broadcast %149 : vector<3x1xf32> to vector<3x512xf32>
    %151 = arith.addf %148, %150 : vector<3x512xf32>
    %c0_81 = arith.constant 0 : index
    %c0_82 = arith.constant 0 : index
    %c0_83 = arith.constant 0 : index
    %152 = vector.load %arg1[%c0_81, %c0_82, %c0_83] : memref<1x3x512xf32, #tpu.memory_space<vmem>>, vector<1x3x512xf32>
    %153 = vector.shape_cast %152 : vector<1x3x512xf32> to vector<3x512xf32>
    %154 = arith.addf %153, %151 : vector<3x512xf32>
    %c0_84 = arith.constant 0 : index
    %c0_85 = arith.constant 0 : index
    %155 = vector.load %arg26[%c0_84, %c0_85] : memref<3x3xf32, #tpu.memory_space<vmem>>, vector<3x3xf32>
    %c0_86 = arith.constant 0 : index
    %c0_87 = arith.constant 0 : index
    %156 = vector.load %arg27[%c0_86, %c0_87] : memref<3x1xf32, #tpu.memory_space<vmem>>, vector<3x1xf32>
    %157 = vector.extract_strided_slice %155 {offsets = [0, 0], sizes = [3, 1], strides = [1, 1]} : vector<3x3xf32> to vector<3x1xf32>
    %158 = vector.extract_strided_slice %154 {offsets = [0, 0], sizes = [1, 512], strides = [1, 1]} : vector<3x512xf32> to vector<1x512xf32>
    %159 = vector.broadcast %157 : vector<3x1xf32> to vector<3x512xf32>
    %160 = vector.broadcast %158 : vector<1x512xf32> to vector<3x512xf32>
    %161 = arith.mulf %159, %160 : vector<3x512xf32>
    %162 = vector.broadcast %156 : vector<3x1xf32> to vector<3x512xf32>
    %163 = arith.addf %162, %161 : vector<3x512xf32>
    %164 = vector.extract_strided_slice %155 {offsets = [0, 1], sizes = [3, 1], strides = [1, 1]} : vector<3x3xf32> to vector<3x1xf32>
    %165 = vector.extract_strided_slice %154 {offsets = [1, 0], sizes = [1, 512], strides = [1, 1]} : vector<3x512xf32> to vector<1x512xf32>
    %166 = vector.broadcast %164 : vector<3x1xf32> to vector<3x512xf32>
    %167 = vector.broadcast %165 : vector<1x512xf32> to vector<3x512xf32>
    %168 = arith.mulf %166, %167 : vector<3x512xf32>
    %169 = arith.addf %163, %168 : vector<3x512xf32>
    %170 = vector.extract_strided_slice %155 {offsets = [0, 2], sizes = [3, 1], strides = [1, 1]} : vector<3x3xf32> to vector<3x1xf32>
    %171 = vector.extract_strided_slice %154 {offsets = [2, 0], sizes = [1, 512], strides = [1, 1]} : vector<3x512xf32> to vector<1x512xf32>
    %172 = vector.broadcast %170 : vector<3x1xf32> to vector<3x512xf32>
    %173 = vector.broadcast %171 : vector<1x512xf32> to vector<3x512xf32>
    %174 = arith.mulf %172, %173 : vector<3x512xf32>
    %175 = arith.addf %169, %174 : vector<3x512xf32>
    %176 = math.tanh %175 : vector<3x512xf32>
    %c0_88 = arith.constant 0 : index
    %c0_89 = arith.constant 0 : index
    %c0_90 = arith.constant 0 : index
    %177 = vector.load %arg28[%c0_88, %c0_89, %c0_90] : memref<1x3x512xf32, #tpu.memory_space<vmem>>, vector<1x3x512xf32>
    %178 = vector.shape_cast %177 : vector<1x3x512xf32> to vector<3x512xf32>
    %179 = vector.shape_cast %176 : vector<3x512xf32> to vector<1x3x512xf32>
    tpu.vector_store %arg28[%c0_88, %c0_89, %c0_90], %179 {strides = array<i32>} : memref<1x3x512xf32, #tpu.memory_space<vmem>>, vector<1x3x512xf32>,
    %c0_91 = arith.constant 0 : index
    %c0_92 = arith.constant 0 : index
    %c0_93 = arith.constant 0 : index
    %180 = vector.load %arg29[%c0_91, %c0_92, %c0_93] : memref<1x3x512xf32, #tpu.memory_space<vmem>>, vector<1x3x512xf32>
    %181 = vector.shape_cast %180 : vector<1x3x512xf32> to vector<3x512xf32>
    %182 = vector.shape_cast %151 : vector<3x512xf32> to vector<1x3x512xf32>
    tpu.vector_store %arg29[%c0_91, %c0_92, %c0_93], %182 {strides = array<i32>} : memref<1x3x512xf32, #tpu.memory_space<vmem>>, vector<1x3x512xf32>,
    return
  }
  func.func @transform_0(%arg0: i32) -> (i32, i32, i32) {
    %c0_i32 = arith.constant 0 : i32
    %c0_i32_0 = arith.constant 0 : i32
    %c0_i32_1 = arith.constant 0 : i32
    return %arg0, %c0_i32, %c0_i32_0 : i32, i32, i32
  }
  func.func @transform_1(%arg0: i32) -> (i32, i32, i32) {
    %c0_i32 = arith.constant 0 : i32
    %c0_i32_0 = arith.constant 0 : i32
    %c0_i32_1 = arith.constant 0 : i32
    return %arg0, %c0_i32, %c0_i32_0 : i32, i32, i32
  }
  func.func @transform_2(%arg0: i32) -> (i32, i32, i32) {
    %c0_i32 = arith.constant 0 : i32
    %c0_i32_0 = arith.constant 0 : i32
    %c0_i32_1 = arith.constant 0 : i32
    return %arg0, %c0_i32, %c0_i32_0 : i32, i32, i32
  }
  func.func @transform_3(%arg0: i32) -> (i32, i32, i32) {
    %c0_i32 = arith.constant 0 : i32
    %c0_i32_0 = arith.constant 0 : i32
    %c0_i32_1 = arith.constant 0 : i32
    return %arg0, %c0_i32, %c0_i32_0 : i32, i32, i32
  }
  func.func @transform_4(%arg0: i32) -> (i32, i32, i32) {
    %c0_i32 = arith.constant 0 : i32
    %c0_i32_0 = arith.constant 0 : i32
    %c0_i32_1 = arith.constant 0 : i32
    return %arg0, %c0_i32, %c0_i32_0 : i32, i32, i32
  }
  func.func @transform_5(%arg0: i32) -> (i32, i32) {
    %c0_i32 = arith.constant 0 : i32
    %c0_i32_0 = arith.constant 0 : i32
    %c0_i32_1 = arith.constant 0 : i32
    return %c0_i32, %c0_i32_0 : i32, i32
  }
  func.func @transform_6(%arg0: i32) -> (i32, i32) {
    %c0_i32 = arith.constant 0 : i32
    %c0_i32_0 = arith.constant 0 : i32
    %c0_i32_1 = arith.constant 0 : i32
    return %c0_i32, %c0_i32_0 : i32, i32
  }
  func.func @transform_7(%arg0: i32) -> (i32, i32) {
    %c0_i32 = arith.constant 0 : i32
    %c0_i32_0 = arith.constant 0 : i32
    %c0_i32_1 = arith.constant 0 : i32
    return %c0_i32, %c0_i32_0 : i32, i32
  }
  func.func @transform_8(%arg0: i32) -> (i32, i32) {
    %c0_i32 = arith.constant 0 : i32
    %c0_i32_0 = arith.constant 0 : i32
    %c0_i32_1 = arith.constant 0 : i32
    return %c0_i32, %c0_i32_0 : i32, i32
  }
  func.func @transform_9(%arg0: i32) -> (i32, i32) {
    %c0_i32 = arith.constant 0 : i32
    %c0_i32_0 = arith.constant 0 : i32
    %c0_i32_1 = arith.constant 0 : i32
    return %c0_i32, %c0_i32_0 : i32, i32
  }
  func.func @transform_10(%arg0: i32) -> (i32, i32) {
    %c0_i32 = arith.constant 0 : i32
    %c0_i32_0 = arith.constant 0 : i32
    %c0_i32_1 = arith.constant 0 : i32
    return %c0_i32, %c0_i32_0 : i32, i32
  }
  func.func @transform_11(%arg0: i32) -> (i32, i32) {
    %c0_i32 = arith.constant 0 : i32
    %c0_i32_0 = arith.constant 0 : i32
    %c0_i32_1 = arith.constant 0 : i32
    return %c0_i32, %c0_i32_0 : i32, i32
  }
  func.func @transform_12(%arg0: i32) -> (i32, i32) {
    %c0_i32 = arith.constant 0 : i32
    %c0_i32_0 = arith.constant 0 : i32
    %c0_i32_1 = arith.constant 0 : i32
    return %c0_i32, %c0_i32_0 : i32, i32
  }
  func.func @transform_13(%arg0: i32) -> (i32, i32) {
    %c0_i32 = arith.constant 0 : i32
    %c0_i32_0 = arith.constant 0 : i32
    %c0_i32_1 = arith.constant 0 : i32
    return %c0_i32, %c0_i32_0 : i32, i32
  }
  func.func @transform_14(%arg0: i32) -> (i32, i32) {
    %c0_i32 = arith.constant 0 : i32
    %c0_i32_0 = arith.constant 0 : i32
    %c0_i32_1 = arith.constant 0 : i32
    return %c0_i32, %c0_i32_0 : i32, i32
  }
  func.func @transform_15(%arg0: i32) -> (i32, i32) {
    %c0_i32 = arith.constant 0 : i32
    %c0_i32_0 = arith.constant 0 : i32
    %c0_i32_1 = arith.constant 0 : i32
    return %c0_i32, %c0_i32_0 : i32, i32
  }
  func.func @transform_16(%arg0: i32) -> (i32, i32) {
    %c0_i32 = arith.constant 0 : i32
    %c0_i32_0 = arith.constant 0 : i32
    %c0_i32_1 = arith.constant 0 : i32
    return %c0_i32, %c0_i32_0 : i32, i32
  }
  func.func @transform_17(%arg0: i32) -> (i32, i32) {
    %c0_i32 = arith.constant 0 : i32
    %c0_i32_0 = arith.constant 0 : i32
    %c0_i32_1 = arith.constant 0 : i32
    return %c0_i32, %c0_i32_0 : i32, i32
  }
  func.func @transform_18(%arg0: i32) -> (i32, i32) {
    %c0_i32 = arith.constant 0 : i32
    %c0_i32_0 = arith.constant 0 : i32
    %c0_i32_1 = arith.constant 0 : i32
    return %c0_i32, %c0_i32_0 : i32, i32
  }
  func.func @transform_19(%arg0: i32) -> (i32, i32) {
    %c0_i32 = arith.constant 0 : i32
    %c0_i32_0 = arith.constant 0 : i32
    %c0_i32_1 = arith.constant 0 : i32
    return %c0_i32, %c0_i32_0 : i32, i32
  }
  func.func @transform_20(%arg0: i32) -> (i32, i32) {
    %c0_i32 = arith.constant 0 : i32
    %c0_i32_0 = arith.constant 0 : i32
    %c0_i32_1 = arith.constant 0 : i32
    return %c0_i32, %c0_i32_0 : i32, i32
  }
  func.func @transform_21(%arg0: i32) -> (i32, i32) {
    %c0_i32 = arith.constant 0 : i32
    %c0_i32_0 = arith.constant 0 : i32
    %c0_i32_1 = arith.constant 0 : i32
    return %c0_i32, %c0_i32_0 : i32, i32
  }
  func.func @transform_22(%arg0: i32) -> (i32, i32) {
    %c0_i32 = arith.constant 0 : i32
    %c0_i32_0 = arith.constant 0 : i32
    %c0_i32_1 = arith.constant 0 : i32
    return %c0_i32, %c0_i32_0 : i32, i32
  }
  func.func @transform_23(%arg0: i32) -> (i32, i32) {
    %c0_i32 = arith.constant 0 : i32
    %c0_i32_0 = arith.constant 0 : i32
    %c0_i32_1 = arith.constant 0 : i32
    return %c0_i32, %c0_i32_0 : i32, i32
  }
  func.func @transform_24(%arg0: i32) -> (i32, i32) {
    %c0_i32 = arith.constant 0 : i32
    %c0_i32_0 = arith.constant 0 : i32
    %c0_i32_1 = arith.constant 0 : i32
    return %c0_i32, %c0_i32_0 : i32, i32
  }
  func.func @transform_25(%arg0: i32) -> (i32, i32) {
    %c0_i32 = arith.constant 0 : i32
    %c0_i32_0 = arith.constant 0 : i32
    %c0_i32_1 = arith.constant 0 : i32
    return %c0_i32, %c0_i32_0 : i32, i32
  }
  func.func @transform_26(%arg0: i32) -> (i32, i32) {
    %c0_i32 = arith.constant 0 : i32
    %c0_i32_0 = arith.constant 0 : i32
    %c0_i32_1 = arith.constant 0 : i32
    return %c0_i32, %c0_i32_0 : i32, i32
  }
  func.func @transform_27(%arg0: i32) -> (i32, i32, i32) {
    %c0_i32 = arith.constant 0 : i32
    %c0_i32_0 = arith.constant 0 : i32
    %c0_i32_1 = arith.constant 0 : i32
    return %arg0, %c0_i32, %c0_i32_0 : i32, i32, i32
  }
  func.func @transform_28(%arg0: i32) -> (i32, i32, i32) {
    %c0_i32 = arith.constant 0 : i32
    %c0_i32_0 = arith.constant 0 : i32
    %c0_i32_1 = arith.constant 0 : i32
    return %arg0, %c0_i32, %c0_i32_0 : i32, i32, i32
  }
}

</mosaic_0001>

<llo_original>
// kernel: feature_decoder_full.1
$region0: #{feature_decoder_full.1}
  #allocation0 [shape = 'u32[]', space=smem, size = 0x4, offset = 0x4, fixed_abs, tag = 'smem constant byte address 0x4 - core index']
  #allocation1 [shape = 'u32[144,128]{1,0:T(1,128)}', space=vmem, size = 0x12000, scoped, tag = 'internal scratch']
  %s0 = inlined_call_operand.vmem [shape: f32[1,3,512], index: 0, kind: input, shape index: {}]
  %s1 = inlined_call_operand.vmem [shape: f32[1,64,512], index: 1, kind: input, shape index: {}]
  %s2 = inlined_call_operand.vmem [shape: f32[1,128,128], index: 2, kind: input, shape index: {}]
  %s3 = inlined_call_operand.vmem [shape: f32[1,256,32], index: 3, kind: input, shape index: {}]
  %s4 = inlined_call_operand.vmem [shape: f32[1,512,8], index: 4, kind: input, shape index: {}]
  %s5 = inlined_call_operand.vmem [shape: bf16[8,32], index: 5, kind: input, shape index: {}]
  %s6 = inlined_call_operand.vmem [shape: bf16[32,128], index: 6, kind: input, shape index: {}]
  %s7 = inlined_call_operand.vmem [shape: bf16[128,512], index: 7, kind: input, shape index: {}]
  %s8 = inlined_call_operand.vmem [shape: f32[4,32], index: 8, kind: input, shape index: {}]
  %s9 = inlined_call_operand.vmem [shape: f32[4,128], index: 9, kind: input, shape index: {}]
  %s10 = inlined_call_operand.vmem [shape: f32[4,512], index: 10, kind: input, shape index: {}]
  %s11 = inlined_call_operand.vmem [shape: bf16[256,512], index: 11, kind: input, shape index: {}]
  %s12 = inlined_call_operand.vmem [shape: f32[256,1], index: 12, kind: input, shape index: {}]
  %s13 = inlined_call_operand.vmem [shape: bf16[768,768], index: 13, kind: input, shape index: {}]
  %s14 = inlined_call_operand.vmem [shape: f32[256,1], index: 14, kind: input, shape index: {}]
  %s15 = inlined_call_operand.vmem [shape: bf16[128,256], index: 15, kind: input, shape index: {}]
  %s16 = inlined_call_operand.vmem [shape: f32[128,1], index: 16, kind: input, shape index: {}]
  %s17 = inlined_call_operand.vmem [shape: bf16[384,384], index: 17, kind: input, shape index: {}]
  %s18 = inlined_call_operand.vmem [shape: f32[128,1], index: 18, kind: input, shape index: {}]
  %s19 = inlined_call_operand.vmem [shape: bf16[64,128], index: 19, kind: input, shape index: {}]
  %s20 = inlined_call_operand.vmem [shape: f32[64,1], index: 20, kind: input, shape index: {}]
  %s21 = inlined_call_operand.vmem [shape: bf16[192,192], index: 21, kind: input, shape index: {}]
  %s22 = inlined_call_operand.vmem [shape: f32[64,1], index: 22, kind: input, shape index: {}]
  %s23 = inlined_call_operand.vmem [shape: bf16[3,64], index: 23, kind: input, shape index: {}]
  %s24 = inlined_call_operand.vmem [shape: f32[3,1], index: 24, kind: input, shape index: {}]
  %s25 = inlined_call_operand.vmem [shape: f32[3,3], index: 25, kind: input, shape index: {}]
  %s26 = inlined_call_operand.vmem [shape: f32[3,1], index: 26, kind: input, shape index: {}]
  %s27 = inlined_call_operand.vmem [shape: f32[1,3,512], index: 27, kind: output, shape index: {0}]
  %s28 = inlined_call_operand.vmem [shape: f32[1,3,512], index: 28, kind: output, shape index: {1}]
  %29 = xla_tuple %s27, %s28
  %s30 = sld [smem:[#allocation0]]
  $region126: #{feature_decoder_full.1} parent=0
    _
  %s32 = ssub.s32 1, %s30
  %s33 = scalar_select 0, %s32, %s30
  // Predicated region
  $region2: #{feature_decoder_full.1} parent=0 // pred_check
    _
  $region3: #{feature_decoder_full.1} parent=0 // pred_check_branch
    %35 = sbr.rel (0) target = $region5
  $region4: #{feature_decoder_full.1} parent=0 // pred_region
    _
  $region5: #{feature_decoder_full.1} parent=0 // pred_fallthru
    _
  // Predicated region
  $region6: #{feature_decoder_full.1} parent=0 // pred_check
    _
  $region7: #{feature_decoder_full.1} parent=0 // pred_check_branch
    %37 = sbr.rel (0) target = $region9
  $region8: #{feature_decoder_full.1} parent=0 // pred_region
    _
  $region9: #{feature_decoder_full.1} parent=0 // pred_fallthru
    _
  // Predicated region
  $region10: #{feature_decoder_full.1} parent=0 // pred_check
    _
  $region11: #{feature_decoder_full.1} parent=0 // pred_check_branch
    %39 = sbr.rel (0) target = $region13
  $region12: #{feature_decoder_full.1} parent=0 // pred_region
    _
  $region13: #{feature_decoder_full.1} parent=0 // pred_fallthru
    _
  // Predicated region
  $region14: #{feature_decoder_full.1} parent=0 // pred_check
    _
  $region15: #{feature_decoder_full.1} parent=0 // pred_check_branch
    %41 = sbr.rel (0) target = $region17
  $region16: #{feature_decoder_full.1} parent=0 // pred_region
    _
  $region17: #{feature_decoder_full.1} parent=0 // pred_fallthru
    _
  // Predicated region
  $region18: #{feature_decoder_full.1} parent=0 // pred_check
    _
  $region19: #{feature_decoder_full.1} parent=0 // pred_check_branch
    %43 = sbr.rel (0) target = $region21
  $region20: #{feature_decoder_full.1} parent=0 // pred_region
    _
  $region21: #{feature_decoder_full.1} parent=0 // pred_fallthru
    _
  // Predicated region
  $region22: #{feature_decoder_full.1} parent=0 // pred_check
    _
  $region23: #{feature_decoder_full.1} parent=0 // pred_check_branch
    %45 = sbr.rel (0) target = $region25
  $region24: #{feature_decoder_full.1} parent=0 // pred_region
    _
  $region25: #{feature_decoder_full.1} parent=0 // pred_fallthru
    _
  // Predicated region
  $region26: #{feature_decoder_full.1} parent=0 // pred_check
    _
  $region27: #{feature_decoder_full.1} parent=0 // pred_check_branch
    %47 = sbr.rel (0) target = $region29
  $region28: #{feature_decoder_full.1} parent=0 // pred_region
    _
  $region29: #{feature_decoder_full.1} parent=0 // pred_fallthru
    _
  // Predicated region
  $region30: #{feature_decoder_full.1} parent=0 // pred_check
    _
  $region31: #{feature_decoder_full.1} parent=0 // pred_check_branch
    %49 = sbr.rel (0) target = $region33
  $region32: #{feature_decoder_full.1} parent=0 // pred_region
    _
  $region33: #{feature_decoder_full.1} parent=0 // pred_fallthru
    _
  // Predicated region
  $region34: #{feature_decoder_full.1} parent=0 // pred_check
    _
  $region35: #{feature_decoder_full.1} parent=0 // pred_check_branch
    %51 = sbr.rel (0) target = $region37
  $region36: #{feature_decoder_full.1} parent=0 // pred_region
    _
  $region37: #{feature_decoder_full.1} parent=0 // pred_fallthru
    _
  // Predicated region
  $region38: #{feature_decoder_full.1} parent=0 // pred_check
    _
  $region39: #{feature_decoder_full.1} parent=0 // pred_check_branch
    %53 = sbr.rel (0) target = $region41
  $region40: #{feature_decoder_full.1} parent=0 // pred_region
    _
  $region41: #{feature_decoder_full.1} parent=0 // pred_fallthru
    _
  // Predicated region
  $region42: #{feature_decoder_full.1} parent=0 // pred_check
    _
  $region43: #{feature_decoder_full.1} parent=0 // pred_check_branch
    %55 = sbr.rel (0) target = $region45
  $region44: #{feature_decoder_full.1} parent=0 // pred_region
    _
  $region45: #{feature_decoder_full.1} parent=0 // pred_fallthru
    _
  // Predicated region
  $region46: #{feature_decoder_full.1} parent=0 // pred_check
    _
  $region47: #{feature_decoder_full.1} parent=0 // pred_check_branch
    %57 = sbr.rel (0) target = $region49
  $region48: #{feature_decoder_full.1} parent=0 // pred_region
    _
  $region49: #{feature_decoder_full.1} parent=0 // pred_fallthru
    _
  // Predicated region
  $region50: #{feature_decoder_full.1} parent=0 // pred_check
    _
  $region51: #{feature_decoder_full.1} parent=0 // pred_check_branch
    %59 = sbr.rel (0) target = $region53
  $region52: #{feature_decoder_full.1} parent=0 // pred_region
    _
  $region53: #{feature_decoder_full.1} parent=0 // pred_fallthru
    _
  // Predicated region
  $region54: #{feature_decoder_full.1} parent=0 // pred_check
    _
  $region55: #{feature_decoder_full.1} parent=0 // pred_check_branch
    %61 = sbr.rel (0) target = $region57
  $region56: #{feature_decoder_full.1} parent=0 // pred_region
    _
  $region57: #{feature_decoder_full.1} parent=0 // pred_fallthru
    _
  // Predicated region
  $region58: #{feature_decoder_full.1} parent=0 // pred_check
    _
  $region59: #{feature_decoder_full.1} parent=0 // pred_check_branch
    %63 = sbr.rel (0) target = $region61
  $region60: #{feature_decoder_full.1} parent=0 // pred_region
    _
  $region61: #{feature_decoder_full.1} parent=0 // pred_fallthru
    _
  // Predicated region
  $region62: #{feature_decoder_full.1} parent=0 // pred_check
    _
  $region63: #{feature_decoder_full.1} parent=0 // pred_check_branch
    %65 = sbr.rel (0) target = $region65
  $region64: #{feature_decoder_full.1} parent=0 // pred_region
    _
  $region65: #{feature_decoder_full.1} parent=0 // pred_fallthru
    _
  // Predicated region
  $region66: #{feature_decoder_full.1} parent=0 // pred_check
    _
  $region67: #{feature_decoder_full.1} parent=0 // pred_check_branch
    %67 = sbr.rel (0) target = $region69
  $region68: #{feature_decoder_full.1} parent=0 // pred_region
    _
  $region69: #{feature_decoder_full.1} parent=0 // pred_fallthru
    _
  // Predicated region
  $region70: #{feature_decoder_full.1} parent=0 // pred_check
    _
  $region71: #{feature_decoder_full.1} parent=0 // pred_check_branch
    %69 = sbr.rel (0) target = $region73
  $region72: #{feature_decoder_full.1} parent=0 // pred_region
    _
  $region73: #{feature_decoder_full.1} parent=0 // pred_fallthru
    _
  // Predicated region
  $region74: #{feature_decoder_full.1} parent=0 // pred_check
    _
  $region75: #{feature_decoder_full.1} parent=0 // pred_check_branch
    %71 = sbr.rel (0) target = $region77
  $region76: #{feature_decoder_full.1} parent=0 // pred_region
    _
  $region77: #{feature_decoder_full.1} parent=0 // pred_fallthru
    _
  // Predicated region
  $region78: #{feature_decoder_full.1} parent=0 // pred_check
    _
  $region79: #{feature_decoder_full.1} parent=0 // pred_check_branch
    %73 = sbr.rel (0) target = $region81
  $region80: #{feature_decoder_full.1} parent=0 // pred_region
    _
  $region81: #{feature_decoder_full.1} parent=0 // pred_fallthru
    _
  // Predicated region
  $region82: #{feature_decoder_full.1} parent=0 // pred_check
    _
  $region83: #{feature_decoder_full.1} parent=0 // pred_check_branch
    %75 = sbr.rel (0) target = $region85
  $region84: #{feature_decoder_full.1} parent=0 // pred_region
    _
  $region85: #{feature_decoder_full.1} parent=0 // pred_fallthru
    _
  // Predicated region
  $region86: #{feature_decoder_full.1} parent=0 // pred_check
    _
  $region87: #{feature_decoder_full.1} parent=0 // pred_check_branch
    %77 = sbr.rel (0) target = $region89
  $region88: #{feature_decoder_full.1} parent=0 // pred_region
    _
  $region89: #{feature_decoder_full.1} parent=0 // pred_fallthru
    _
  // Predicated region
  $region90: #{feature_decoder_full.1} parent=0 // pred_check
    _
  $region91: #{feature_decoder_full.1} parent=0 // pred_check_branch
    %79 = sbr.rel (0) target = $region93
  $region92: #{feature_decoder_full.1} parent=0 // pred_region
    _
  $region93: #{feature_decoder_full.1} parent=0 // pred_fallthru
    _
  // Predicated region
  $region94: #{feature_decoder_full.1} parent=0 // pred_check
    _
  $region95: #{feature_decoder_full.1} parent=0 // pred_check_branch
    %81 = sbr.rel (0) target = $region97
  $region96: #{feature_decoder_full.1} parent=0 // pred_region
    _
  $region97: #{feature_decoder_full.1} parent=0 // pred_fallthru
    _
  // Predicated region
  $region98: #{feature_decoder_full.1} parent=0 // pred_check
    _
  $region99: #{feature_decoder_full.1} parent=0 // pred_check_branch
    %83 = sbr.rel (0) target = $region101
  $region100: #{feature_decoder_full.1} parent=0 // pred_region
    _
  $region101: #{feature_decoder_full.1} parent=0 // pred_fallthru
    _
  // Predicated region
  $region102: #{feature_decoder_full.1} parent=0 // pred_check
    _
  $region103: #{feature_decoder_full.1} parent=0 // pred_check_branch
    %85 = sbr.rel (0) target = $region105
  $region104: #{feature_decoder_full.1} parent=0 // pred_region
    _
  $region105: #{feature_decoder_full.1} parent=0 // pred_fallthru
    _
  // Predicated region
  $region106: #{feature_decoder_full.1} parent=0 // pred_check
    _
  $region107: #{feature_decoder_full.1} parent=0 // pred_check_branch
    %87 = sbr.rel (0) target = $region109
  $region108: #{feature_decoder_full.1} parent=0 // pred_region
    _
  $region109: #{feature_decoder_full.1} parent=0 // pred_fallthru
    _
  %v89 = vld [vmem:[%s11] sm:$0xff]
  %v90 = vld [vmem:[%s11 + $0x8] sm:$0xff]
  %v91 = vld [vmem:[%s11 + $0x10] sm:$0xff]
  %v92 = vld [vmem:[%s11 + $0x18] sm:$0xff]
  %v93 = vld [vmem:[%s11 + $0x20] sm:$0xff]
  %v94 = vld [vmem:[%s11 + $0x28] sm:$0xff]
  %v95 = vld [vmem:[%s11 + $0x30] sm:$0xff]
  %v96 = vld [vmem:[%s11 + $0x38] sm:$0xff]
  %v97 = vld [vmem:[%s11 + $0x40] sm:$0xff]
  %v98 = vld [vmem:[%s11 + $0x48] sm:$0xff]
  %v99 = vld [vmem:[%s11 + $0x50] sm:$0xff]
  %v100 = vld [vmem:[%s11 + $0x58] sm:$0xff]
  %v101 = vld [vmem:[%s11 + $0x60] sm:$0xff]
  %v102 = vld [vmem:[%s11 + $0x68] sm:$0xff]
  %v103 = vld [vmem:[%s11 + $0x70] sm:$0xff]
  %v104 = vld [vmem:[%s11 + $0x78] sm:$0xff]
  %v105 = vld [vmem:[%s11 + $0x80] sm:$0xff]
  %v106 = vld [vmem:[%s11 + $0x88] sm:$0xff]
  %v107 = vld [vmem:[%s11 + $0x90] sm:$0xff]
  %v108 = vld [vmem:[%s11 + $0x98] sm:$0xff]
  %v109 = vld [vmem:[%s11 + $0xa0] sm:$0xff]
  %v110 = vld [vmem:[%s11 + $0xa8] sm:$0xff]
  %v111 = vld [vmem:[%s11 + $0xb0] sm:$0xff]
  %v112 = vld [vmem:[%s11 + $0xb8] sm:$0xff]
  %v113 = vld [vmem:[%s11 + $0xc0] sm:$0xff]
  %v114 = vld [vmem:[%s11 + $0xc8] sm:$0xff]
  %v115 = vld [vmem:[%s11 + $0xd0] sm:$0xff]
  %v116 = vld [vmem:[%s11 + $0xd8] sm:$0xff]
  %v117 = vld [vmem:[%s11 + $0xe0] sm:$0xff]
  %v118 = vld [vmem:[%s11 + $0xe8] sm:$0xff]
  %v119 = vld [vmem:[%s11 + $0xf0] sm:$0xff]
  %v120 = vld [vmem:[%s11 + $0xf8] sm:$0xff]
  %v121 = vld [vmem:[%s11 + $0x100] sm:$0xff]
  %v122 = vld [vmem:[%s11 + $0x108] sm:$0xff]
  %v123 = vld [vmem:[%s11 + $0x110] sm:$0xff]
  %v124 = vld [vmem:[%s11 + $0x118] sm:$0xff]
  %v125 = vld [vmem:[%s11 + $0x120] sm:$0xff]
  %v126 = vld [vmem:[%s11 + $0x128] sm:$0xff]
  %v127 = vld [vmem:[%s11 + $0x130] sm:$0xff]
  %v128 = vld [vmem:[%s11 + $0x138] sm:$0xff]
  %v129 = vld [vmem:[%s11 + $0x140] sm:$0xff]
  %v130 = vld [vmem:[%s11 + $0x148] sm:$0xff]
  %v131 = vld [vmem:[%s11 + $0x150] sm:$0xff]
  %v132 = vld [vmem:[%s11 + $0x158] sm:$0xff]
  %v133 = vld [vmem:[%s11 + $0x160] sm:$0xff]
  %v134 = vld [vmem:[%s11 + $0x168] sm:$0xff]
  %v135 = vld [vmem:[%s11 + $0x170] sm:$0xff]
  %v136 = vld [vmem:[%s11 + $0x178] sm:$0xff]
  %v137 = vld [vmem:[%s11 + $0x180] sm:$0xff]
  %v138 = vld [vmem:[%s11 + $0x188] sm:$0xff]
  %v139 = vld [vmem:[%s11 + $0x190] sm:$0xff]
  %v140 = vld [vmem:[%s11 + $0x198] sm:$0xff]
  %v141 = vld [vmem:[%s11 + $0x1a0] sm:$0xff]
  %v142 = vld [vmem:[%s11 + $0x1a8] sm:$0xff]
  %v143 = vld [vmem:[%s11 + $0x1b0] sm:$0xff]
  %v144 = vld [vmem:[%s11 + $0x1b8] sm:$0xff]
  %v145 = vld [vmem:[%s11 + $0x1c0] sm:$0xff]
  %v146 = vld [vmem:[%s11 + $0x1c8] sm:$0xff]
  %v147 = vld [vmem:[%s11 + $0x1d0] sm:$0xff]
  %v148 = vld [vmem:[%s11 + $0x1d8] sm:$0xff]
  %v149 = vld [vmem:[%s11 + $0x1e0] sm:$0xff]
  %v150 = vld [vmem:[%s11 + $0x1e8] sm:$0xff]
  %v151 = vld [vmem:[%s11 + $0x1f0] sm:$0xff]
  %v152 = vld [vmem:[%s11 + $0x1f8] sm:$0xff]
  %v153 = vld [vmem:[%s4] sm:$0xff]
  %v154 = vld [vmem:[%s4 + $0x8] sm:$0xff]
  %v155 = vld [vmem:[%s4 + $0x10] sm:$0xff]
  %v156 = vld [vmem:[%s4 + $0x18] sm:$0xff]
  %v157 = vld [vmem:[%s4 + $0x20] sm:$0xff]
  %v158 = vld [vmem:[%s4 + $0x28] sm:$0xff]
  %v159 = vld [vmem:[%s4 + $0x30] sm:$0xff]
  %v160 = vld [vmem:[%s4 + $0x38] sm:$0xff]
  %v161 = vld [vmem:[%s4 + $0x40] sm:$0xff]
  %v162 = vld [vmem:[%s4 + $0x48] sm:$0xff]
  %v163 = vld [vmem:[%s4 + $0x50] sm:$0xff]
  %v164 = vld [vmem:[%s4 + $0x58] sm:$0xff]
  %v165 = vld [vmem:[%s4 + $0x60] sm:$0xff]
  %v166 = vld [vmem:[%s4 + $0x68] sm:$0xff]
  %v167 = vld [vmem:[%s4 + $0x70] sm:$0xff]
  %v168 = vld [vmem:[%s4 + $0x78] sm:$0xff]
  %v169 = vld [vmem:[%s4 + $0x80] sm:$0xff]
  %v170 = vld [vmem:[%s4 + $0x88] sm:$0xff]
  %v171 = vld [vmem:[%s4 + $0x90] sm:$0xff]
  %v172 = vld [vmem:[%s4 + $0x98] sm:$0xff]
  %v173 = vld [vmem:[%s4 + $0xa0] sm:$0xff]
  %v174 = vld [vmem:[%s4 + $0xa8] sm:$0xff]
  %v175 = vld [vmem:[%s4 + $0xb0] sm:$0xff]
  %v176 = vld [vmem:[%s4 + $0xb8] sm:$0xff]
  %v177 = vld [vmem:[%s4 + $0xc0] sm:$0xff]
  %v178 = vld [vmem:[%s4 + $0xc8] sm:$0xff]
  %v179 = vld [vmem:[%s4 + $0xd0] sm:$0xff]
  %v180 = vld [vmem:[%s4 + $0xd8] sm:$0xff]
  %v181 = vld [vmem:[%s4 + $0xe0] sm:$0xff]
  %v182 = vld [vmem:[%s4 + $0xe8] sm:$0xff]
  %v183 = vld [vmem:[%s4 + $0xf0] sm:$0xff]
  %v184 = vld [vmem:[%s4 + $0xf8] sm:$0xff]
  %v185 = vld [vmem:[%s4 + $0x100] sm:$0xff]
  %v186 = vld [vmem:[%s4 + $0x108] sm:$0xff]
  %v187 = vld [vmem:[%s4 + $0x110] sm:$0xff]
  %v188 = vld [vmem:[%s4 + $0x118] sm:$0xff]
  %v189 = vld [vmem:[%s4 + $0x120] sm:$0xff]
  %v190 = vld [vmem:[%s4 + $0x128] sm:$0xff]
  %v191 = vld [vmem:[%s4 + $0x130] sm:$0xff]
  %v192 = vld [vmem:[%s4 + $0x138] sm:$0xff]
  %v193 = vld [vmem:[%s4 + $0x140] sm:$0xff]
  %v194 = vld [vmem:[%s4 + $0x148] sm:$0xff]
  %v195 = vld [vmem:[%s4 + $0x150] sm:$0xff]
  %v196 = vld [vmem:[%s4 + $0x158] sm:$0xff]
  %v197 = vld [vmem:[%s4 + $0x160] sm:$0xff]
  %v198 = vld [vmem:[%s4 + $0x168] sm:$0xff]
  %v199 = vld [vmem:[%s4 + $0x170] sm:$0xff]
  %v200 = vld [vmem:[%s4 + $0x178] sm:$0xff]
  %v201 = vld [vmem:[%s4 + $0x180] sm:$0xff]
  %v202 = vld [vmem:[%s4 + $0x188] sm:$0xff]
  %v203 = vld [vmem:[%s4 + $0x190] sm:$0xff]
  %v204 = vld [vmem:[%s4 + $0x198] sm:$0xff]
  %v205 = vld [vmem:[%s4 + $0x1a0] sm:$0xff]
  %v206 = vld [vmem:[%s4 + $0x1a8] sm:$0xff]
  %v207 = vld [vmem:[%s4 + $0x1b0] sm:$0xff]
  %v208 = vld [vmem:[%s4 + $0x1b8] sm:$0xff]
  %v209 = vld [vmem:[%s4 + $0x1c0] sm:$0xff]
  %v210 = vld [vmem:[%s4 + $0x1c8] sm:$0xff]
  %v211 = vld [vmem:[%s4 + $0x1d0] sm:$0xff]
  %v212 = vld [vmem:[%s4 + $0x1d8] sm:$0xff]
  %v213 = vld [vmem:[%s4 + $0x1e0] sm:$0xff]
  %v214 = vld [vmem:[%s4 + $0x1e8] sm:$0xff]
  %v215 = vld [vmem:[%s4 + $0x1f0] sm:$0xff]
  %v216 = vld [vmem:[%s4 + $0x1f8] sm:$0xff]
  %v217 = vpack.c.bf16 %v154, %v153
  %v218 = vpack.c.bf16 %v156, %v155
  %v219 = vpack.c.bf16 %v158, %v157
  %v220 = vpack.c.bf16 %v160, %v159
  %v221 = vpack.c.bf16 %v162, %v161
  %v222 = vpack.c.bf16 %v164, %v163
  %v223 = vpack.c.bf16 %v166, %v165
  %v224 = vpack.c.bf16 %v168, %v167
  %v225 = vpack.c.bf16 %v170, %v169
  %v226 = vpack.c.bf16 %v172, %v171
  %v227 = vpack.c.bf16 %v174, %v173
  %v228 = vpack.c.bf16 %v176, %v175
  %v229 = vpack.c.bf16 %v178, %v177
  %v230 = vpack.c.bf16 %v180, %v179
  %v231 = vpack.c.bf16 %v182, %v181
  %v232 = vpack.c.bf16 %v184, %v183
  %v233 = vpack.c.bf16 %v186, %v185
  %v234 = vpack.c.bf16 %v188, %v187
  %v235 = vpack.c.bf16 %v190, %v189
  %v236 = vpack.c.bf16 %v192, %v191
  %v237 = vpack.c.bf16 %v194, %v193
  %v238 = vpack.c.bf16 %v196, %v195
  %v239 = vpack.c.bf16 %v198, %v197
  %v240 = vpack.c.bf16 %v200, %v199
  %v241 = vpack.c.bf16 %v202, %v201
  %v242 = vpack.c.bf16 %v204, %v203
  %v243 = vpack.c.bf16 %v206, %v205
  %v244 = vpack.c.bf16 %v208, %v207
  %v245 = vpack.c.bf16 %v210, %v209
  %v246 = vpack.c.bf16 %v212, %v211
  %v247 = vpack.c.bf16 %v214, %v213
  %v248 = vpack.c.bf16 %v216, %v215
  %v249 = vld [vmem:[%s12] sm:$0xff]
  %v250 = vld [vmem:[%s12 + $0x8] sm:$0xff]
  %v251 = vld [vmem:[%s12 + $0x10] sm:$0xff]
  %v252 = vld [vmem:[%s12 + $0x18] sm:$0xff]
  %v253 = vld [vmem:[%s12 + $0x20] sm:$0xff]
  %v254 = vld [vmem:[%s12 + $0x28] sm:$0xff]
  %v255 = vld [vmem:[%s12 + $0x30] sm:$0xff]
  %v256 = vld [vmem:[%s12 + $0x38] sm:$0xff]
  %v257 = vld [vmem:[%s12 + $0x40] sm:$0xff]
  %v258 = vld [vmem:[%s12 + $0x48] sm:$0xff]
  %v259 = vld [vmem:[%s12 + $0x50] sm:$0xff]
  %v260 = vld [vmem:[%s12 + $0x58] sm:$0xff]
  %v261 = vld [vmem:[%s12 + $0x60] sm:$0xff]
  %v262 = vld [vmem:[%s12 + $0x68] sm:$0xff]
  %v263 = vld [vmem:[%s12 + $0x70] sm:$0xff]
  %v264 = vld [vmem:[%s12 + $0x78] sm:$0xff]
  %v265 = vld [vmem:[%s12 + $0x80] sm:$0xff]
  %v266 = vld [vmem:[%s12 + $0x88] sm:$0xff]
  %v267 = vld [vmem:[%s12 + $0x90] sm:$0xff]
  %v268 = vld [vmem:[%s12 + $0x98] sm:$0xff]
  %v269 = vld [vmem:[%s12 + $0xa0] sm:$0xff]
  %v270 = vld [vmem:[%s12 + $0xa8] sm:$0xff]
  %v271 = vld [vmem:[%s12 + $0xb0] sm:$0xff]
  %v272 = vld [vmem:[%s12 + $0xb8] sm:$0xff]
  %v273 = vld [vmem:[%s12 + $0xc0] sm:$0xff]
  %v274 = vld [vmem:[%s12 + $0xc8] sm:$0xff]
  %v275 = vld [vmem:[%s12 + $0xd0] sm:$0xff]
  %v276 = vld [vmem:[%s12 + $0xd8] sm:$0xff]
  %v277 = vld [vmem:[%s12 + $0xe0] sm:$0xff]
  %v278 = vld [vmem:[%s12 + $0xe8] sm:$0xff]
  %v279 = vld [vmem:[%s12 + $0xf0] sm:$0xff]
  %v280 = vld [vmem:[%s12 + $0xf8] sm:$0xff]
  %282 = vset.pattern.permute.xlu0 0
  %283 = vperm.xlu0 %282, %v249
  %v284 = vpop.permute.xlu0 %283
  %287 = vset.pattern.permute.xlu0 0
  %288 = vperm.xlu0 %287, %v250
  %v289 = vpop.permute.xlu0 %288
  %292 = vset.pattern.permute.xlu0 0
  %293 = vperm.xlu0 %292, %v251
  %v294 = vpop.permute.xlu0 %293
  %297 = vset.pattern.permute.xlu0 0
  %298 = vperm.xlu0 %297, %v252
  %v299 = vpop.permute.xlu0 %298
  %302 = vset.pattern.permute.xlu0 0
  %303 = vperm.xlu0 %302, %v253
  %v304 = vpop.permute.xlu0 %303
  %307 = vset.pattern.permute.xlu0 0
  %308 = vperm.xlu0 %307, %v254
  %v309 = vpop.permute.xlu0 %308
  %312 = vset.pattern.permute.xlu0 0
  %313 = vperm.xlu0 %312, %v255
  %v314 = vpop.permute.xlu0 %313
  %317 = vset.pattern.permute.xlu0 0
  %318 = vperm.xlu0 %317, %v256
  %v319 = vpop.permute.xlu0 %318
  %322 = vset.pattern.permute.xlu0 0
  %323 = vperm.xlu0 %322, %v257
  %v324 = vpop.permute.xlu0 %323
  %327 = vset.pattern.permute.xlu0 0
  %328 = vperm.xlu0 %327, %v258
  %v329 = vpop.permute.xlu0 %328
  %332 = vset.pattern.permute.xlu0 0
  %333 = vperm.xlu0 %332, %v259
  %v334 = vpop.permute.xlu0 %333
  %337 = vset.pattern.permute.xlu0 0
  %338 = vperm.xlu0 %337, %v260
  %v339 = vpop.permute.xlu0 %338
  %342 = vset.pattern.permute.xlu0 0
  %343 = vperm.xlu0 %342, %v261
  %v344 = vpop.permute.xlu0 %343
  %347 = vset.pattern.permute.xlu0 0
  %348 = vperm.xlu0 %347, %v262
  %v349 = vpop.permute.xlu0 %348
  %352 = vset.pattern.permute.xlu0 0
  %353 = vperm.xlu0 %352, %v263
  %v354 = vpop.permute.xlu0 %353
  %357 = vset.pattern.permute.xlu0 0
  %358 = vperm.xlu0 %357, %v264
  %v359 = vpop.permute.xlu0 %358
  %362 = vset.pattern.permute.xlu0 0
  %363 = vperm.xlu0 %362, %v265
  %v364 = vpop.permute.xlu0 %363
  %367 = vset.pattern.permute.xlu0 0
  %368 = vperm.xlu0 %367, %v266
  %v369 = vpop.permute.xlu0 %368
  %372 = vset.pattern.permute.xlu0 0
  %373 = vperm.xlu0 %372, %v267
  %v374 = vpop.permute.xlu0 %373
  %377 = vset.pattern.permute.xlu0 0
  %378 = vperm.xlu0 %377, %v268
  %v379 = vpop.permute.xlu0 %378
  %382 = vset.pattern.permute.xlu0 0
  %383 = vperm.xlu0 %382, %v269
  %v384 = vpop.permute.xlu0 %383
  %387 = vset.pattern.permute.xlu0 0
  %388 = vperm.xlu0 %387, %v270
  %v389 = vpop.permute.xlu0 %388
  %392 = vset.pattern.permute.xlu0 0
  %393 = vperm.xlu0 %392, %v271
  %v394 = vpop.permute.xlu0 %393
  %397 = vset.pattern.permute.xlu0 0
  %398 = vperm.xlu0 %397, %v272
  %v399 = vpop.permute.xlu0 %398
  %402 = vset.pattern.permute.xlu0 0
  %403 = vperm.xlu0 %402, %v273
  %v404 = vpop.permute.xlu0 %403
  %407 = vset.pattern.permute.xlu0 0
  %408 = vperm.xlu0 %407, %v274
  %v409 = vpop.permute.xlu0 %408
  %412 = vset.pattern.permute.xlu0 0
  %413 = vperm.xlu0 %412, %v275
  %v414 = vpop.permute.xlu0 %413
  %417 = vset.pattern.permute.xlu0 0
  %418 = vperm.xlu0 %417, %v276
  %v419 = vpop.permute.xlu0 %418
  %422 = vset.pattern.permute.xlu0 0
  %423 = vperm.xlu0 %422, %v277
  %v424 = vpop.permute.xlu0 %423
  %427 = vset.pattern.permute.xlu0 0
  %428 = vperm.xlu0 %427, %v278
  %v429 = vpop.permute.xlu0 %428
  %432 = vset.pattern.permute.xlu0 0
  %433 = vperm.xlu0 %432, %v279
  %v434 = vpop.permute.xlu0 %433
  %437 = vset.pattern.permute.xlu0 0
  %438 = vperm.xlu0 %437, %v280
  %v439 = vpop.permute.xlu0 %438
  %v505 = vunpack.c.l.b16 %v89
  %v506 = vunpack.c.h.b16 %v89
  %v507 = vunpack.c.l.b16 %v90
  %v508 = vunpack.c.h.b16 %v90
  %v509 = vunpack.c.l.b16 %v91
  %v510 = vunpack.c.h.b16 %v91
  %v511 = vunpack.c.l.b16 %v92
  %v512 = vunpack.c.h.b16 %v92
  %v513 = vunpack.c.l.b16 %v93
  %v514 = vunpack.c.h.b16 %v93
  %v515 = vunpack.c.l.b16 %v94
  %v516 = vunpack.c.h.b16 %v94
  %v517 = vunpack.c.l.b16 %v95
  %v518 = vunpack.c.h.b16 %v95
  %v519 = vunpack.c.l.b16 %v96
  %v520 = vunpack.c.h.b16 %v96
  %v521 = vunpack.c.l.b16 %v97
  %v522 = vunpack.c.h.b16 %v97
  %v523 = vunpack.c.l.b16 %v98
  %v524 = vunpack.c.h.b16 %v98
  %v525 = vunpack.c.l.b16 %v99
  %v526 = vunpack.c.h.b16 %v99
  %v527 = vunpack.c.l.b16 %v100
  %v528 = vunpack.c.h.b16 %v100
  %v529 = vunpack.c.l.b16 %v101
  %v530 = vunpack.c.h.b16 %v101
  %v531 = vunpack.c.l.b16 %v102
  %v532 = vunpack.c.h.b16 %v102
  %v533 = vunpack.c.l.b16 %v103
  %v534 = vunpack.c.h.b16 %v103
  %v535 = vunpack.c.l.b16 %v104
  %v536 = vunpack.c.h.b16 %v104
  %v537 = vunpack.c.l.b16 %v105
  %v538 = vunpack.c.h.b16 %v105
  %v539 = vunpack.c.l.b16 %v106
  %v540 = vunpack.c.h.b16 %v106
  %v541 = vunpack.c.l.b16 %v107
  %v542 = vunpack.c.h.b16 %v107
  %v543 = vunpack.c.l.b16 %v108
  %v544 = vunpack.c.h.b16 %v108
  %v545 = vunpack.c.l.b16 %v109
  %v546 = vunpack.c.h.b16 %v109
  %v547 = vunpack.c.l.b16 %v110
  %v548 = vunpack.c.h.b16 %v110
  %v549 = vunpack.c.l.b16 %v111
  %v550 = vunpack.c.h.b16 %v111
  %v551 = vunpack.c.l.b16 %v112
  %v552 = vunpack.c.h.b16 %v112
  %v553 = vunpack.c.l.b16 %v113
  %v554 = vunpack.c.h.b16 %v113
  %v555 = vunpack.c.l.b16 %v114
  %v556 = vunpack.c.h.b16 %v114
  %v557 = vunpack.c.l.b16 %v115
  %v558 = vunpack.c.h.b16 %v115
  %v559 = vunpack.c.l.b16 %v116
  %v560 = vunpack.c.h.b16 %v116
  %v561 = vunpack.c.l.b16 %v117
  %v562 = vunpack.c.h.b16 %v117
  %v563 = vunpack.c.l.b16 %v118
  %v564 = vunpack.c.h.b16 %v118
  %v565 = vunpack.c.l.b16 %v119
  %v566 = vunpack.c.h.b16 %v119
  %v567 = vunpack.c.l.b16 %v120
  %v568 = vunpack.c.h.b16 %v120
  %v569 = vunpack.c.l.b16 %v121
  %v570 = vunpack.c.h.b16 %v121
  %v571 = vunpack.c.l.b16 %v122
  %v572 = vunpack.c.h.b16 %v122
  %v573 = vunpack.c.l.b16 %v123
  %v574 = vunpack.c.h.b16 %v123
  %v575 = vunpack.c.l.b16 %v124
  %v576 = vunpack.c.h.b16 %v124
  %v577 = vunpack.c.l.b16 %v125
  %v578 = vunpack.c.h.b16 %v125
  %v579 = vunpack.c.l.b16 %v126
  %v580 = vunpack.c.h.b16 %v126
  %v581 = vunpack.c.l.b16 %v127
  %v582 = vunpack.c.h.b16 %v127
  %v583 = vunpack.c.l.b16 %v128
  %v584 = vunpack.c.h.b16 %v128
  %v585 = vunpack.c.l.b16 %v129
  %v586 = vunpack.c.h.b16 %v129
  %v587 = vunpack.c.l.b16 %v130
  %v588 = vunpack.c.h.b16 %v130
  %v589 = vunpack.c.l.b16 %v131
  %v590 = vunpack.c.h.b16 %v131
  %v591 = vunpack.c.l.b16 %v132
  %v592 = vunpack.c.h.b16 %v132
  %v593 = vunpack.c.l.b16 %v133
  %v594 = vunpack.c.h.b16 %v133
  %v595 = vunpack.c.l.b16 %v134
  %v596 = vunpack.c.h.b16 %v134
  %v597 = vunpack.c.l.b16 %v135
  %v598 = vunpack.c.h.b16 %v135
  %v599 = vunpack.c.l.b16 %v136
  %v600 = vunpack.c.h.b16 %v136
  %v601 = vunpack.c.l.b16 %v137
  %v602 = vunpack.c.h.b16 %v137
  %v603 = vunpack.c.l.b16 %v138
  %v604 = vunpack.c.h.b16 %v138
  %v605 = vunpack.c.l.b16 %v139
  %v606 = vunpack.c.h.b16 %v139
  %v607 = vunpack.c.l.b16 %v140
  %v608 = vunpack.c.h.b16 %v140
  %v609 = vunpack.c.l.b16 %v141
  %v610 = vunpack.c.h.b16 %v141
  %v611 = vunpack.c.l.b16 %v142
  %v612 = vunpack.c.h.b16 %v142
  %v613 = vunpack.c.l.b16 %v143
  %v614 = vunpack.c.h.b16 %v143
  %v615 = vunpack.c.l.b16 %v144
  %v616 = vunpack.c.h.b16 %v144
  %v617 = vunpack.c.l.b16 %v145
  %v618 = vunpack.c.h.b16 %v145
  %v619 = vunpack.c.l.b16 %v146
  %v620 = vunpack.c.h.b16 %v146
  %v621 = vunpack.c.l.b16 %v147
  %v622 = vunpack.c.h.b16 %v147
  %v623 = vunpack.c.l.b16 %v148
  %v624 = vunpack.c.h.b16 %v148
  %v625 = vunpack.c.l.b16 %v149
  %v626 = vunpack.c.h.b16 %v149
  %v627 = vunpack.c.l.b16 %v150
  %v628 = vunpack.c.h.b16 %v150
  %v629 = vunpack.c.l.b16 %v151
  %v630 = vunpack.c.h.b16 %v151
  %v631 = vunpack.c.l.b16 %v152
  %v632 = vunpack.c.h.b16 %v152
  %v633 = vpack.c.b16 %v509, %v505
  %v634 = vpack.c.b16 %v510, %v506
  %v635 = vpack.c.b16 %v511, %v507
  %v636 = vpack.c.b16 %v512, %v508
  %v637 = vpack.c.b16 %v517, %v513
  %v638 = vpack.c.b16 %v518, %v514
  %v639 = vpack.c.b16 %v519, %v515
  %v640 = vpack.c.b16 %v520, %v516
  %v641 = vpack.c.b16 %v525, %v521
  %v642 = vpack.c.b16 %v526, %v522
  %v643 = vpack.c.b16 %v527, %v523
  %v644 = vpack.c.b16 %v528, %v524
  %v645 = vpack.c.b16 %v533, %v529
  %v646 = vpack.c.b16 %v534, %v530
  %v647 = vpack.c.b16 %v535, %v531
  %v648 = vpack.c.b16 %v536, %v532
  %v649 = vpack.c.b16 %v541, %v537
  %v650 = vpack.c.b16 %v542, %v538
  %v651 = vpack.c.b16 %v543, %v539
  %v652 = vpack.c.b16 %v544, %v540
  %v653 = vpack.c.b16 %v549, %v545
  %v654 = vpack.c.b16 %v550, %v546
  %v655 = vpack.c.b16 %v551, %v547
  %v656 = vpack.c.b16 %v552, %v548
  %v657 = vpack.c.b16 %v557, %v553
  %v658 = vpack.c.b16 %v558, %v554
  %v659 = vpack.c.b16 %v559, %v555
  %v660 = vpack.c.b16 %v560, %v556
  %v661 = vpack.c.b16 %v565, %v561
  %v662 = vpack.c.b16 %v566, %v562
  %v663 = vpack.c.b16 %v567, %v563
  %v664 = vpack.c.b16 %v568, %v564
  %v665 = vpack.c.b16 %v573, %v569
  %v666 = vpack.c.b16 %v574, %v570
  %v667 = vpack.c.b16 %v575, %v571
  %v668 = vpack.c.b16 %v576, %v572
  %v669 = vpack.c.b16 %v581, %v577
  %v670 = vpack.c.b16 %v582, %v578
  %v671 = vpack.c.b16 %v583, %v579
  %v672 = vpack.c.b16 %v584, %v580
  %v673 = vpack.c.b16 %v589, %v585
  %v674 = vpack.c.b16 %v590, %v586
  %v675 = vpack.c.b16 %v591, %v587
  %v676 = vpack.c.b16 %v592, %v588
  %v677 = vpack.c.b16 %v597, %v593
  %v678 = vpack.c.b16 %v598, %v594
  %v679 = vpack.c.b16 %v599, %v595
  %v680 = vpack.c.b16 %v600, %v596
  %v681 = vpack.c.b16 %v605, %v601
  %v682 = vpack.c.b16 %v606, %v602
  %v683 = vpack.c.b16 %v607, %v603
  %v684 = vpack.c.b16 %v608, %v604
  %v685 = vpack.c.b16 %v613, %v609
  %v686 = vpack.c.b16 %v614, %v610
  %v687 = vpack.c.b16 %v615, %v611
  %v688 = vpack.c.b16 %v616, %v612
  %v689 = vpack.c.b16 %v621, %v617
  %v690 = vpack.c.b16 %v622, %v618
  %v691 = vpack.c.b16 %v623, %v619
  %v692 = vpack.c.b16 %v624, %v620
  %v693 = vpack.c.b16 %v629, %v625
  %v694 = vpack.c.b16 %v630, %v626
  %v695 = vpack.c.b16 %v631, %v627
  %v696 = vpack.c.b16 %v632, %v628
  %761 = vmatprep.subr.bf16.mxu0 0
  %762 = vmatpush1.bf16.msra.mxu0 %v217
  %763 = vmatprep.subr.bf16.mxu0 0
  %764 = vmatpush1.bf16.msra.mxu0 %v218
  %765 = vmatprep.subr.bf16.mxu0 0
  %766 = vmatpush1.bf16.msra.mxu0 %v219
  %767 = vmatprep.subr.bf16.mxu0 0
  %768 = vmatpush1.bf16.msra.mxu0 %v220
  %769 = vmatprep.subr.bf16.mxu0 0
  %770 = vmatpush1.bf16.msra.mxu0 %v221
  %771 = vmatprep.subr.bf16.mxu0 0
  %772 = vmatpush1.bf16.msra.mxu0 %v222
  %773 = vmatprep.subr.bf16.mxu0 0
  %774 = vmatpush1.bf16.msra.mxu0 %v223
  %775 = vmatprep.subr.bf16.mxu0 0
  %776 = vmatpush1.bf16.msra.mxu0 %v224
  %777 = vmatprep.subr.bf16.mxu0 0
  %778 = vmatpush1.bf16.msra.mxu0 %v225
  %779 = vmatprep.subr.bf16.mxu0 0
  %780 = vmatpush1.bf16.msra.mxu0 %v226
  %781 = vmatprep.subr.bf16.mxu0 0
  %782 = vmatpush1.bf16.msra.mxu0 %v227
  %783 = vmatprep.subr.bf16.mxu0 0
  %784 = vmatpush1.bf16.msra.mxu0 %v228
  %785 = vmatprep.subr.bf16.mxu0 0
  %786 = vmatpush1.bf16.msra.mxu0 %v229
  %787 = vmatprep.subr.bf16.mxu0 0
  %788 = vmatpush1.bf16.msra.mxu0 %v230
  %789 = vmatprep.subr.bf16.mxu0 0
  %790 = vmatpush1.bf16.msra.mxu0 %v231
  %791 = vmatprep.subr.bf16.mxu0 0
  %792 = vmatpush1.bf16.msra.mxu0 %v232
  %793 = vmatprep.mubr.bf16.mxu0 %v634
  %794 = vmatmul.mubr.bf16.gmra.mrb[0].mxu0 %v633
  %v795 = vpop.f32.mrb[0].mxu0
  %v796 = vadd.f32 %v284, %v795
  %v797 = vpop.f32.mrb[0].mxu0
  %v798 = vpop.f32.mrb[0].mxu0
  %v799 = vadd.f32 %v289, %v798
  %v800 = vpop.f32.mrb[0].mxu0
  %801 = vmatprep.mubr.bf16.mxu0 %v638
  %802 = vmatmul.mubr.bf16.gmra.mrb[0].mxu0 %v637
  %v803 = vpop.f32.mrb[0].mxu0
  %v804 = vadd.f32 %v294, %v803
  %v805 = vpop.f32.mrb[0].mxu0
  %v806 = vpop.f32.mrb[0].mxu0
  %v807 = vadd.f32 %v299, %v806
  %v808 = vpop.f32.mrb[0].mxu0
  %809 = vmatprep.mubr.bf16.mxu0 %v642
  %810 = vmatmul.mubr.bf16.gmra.mrb[0].mxu0 %v641
  %v811 = vpop.f32.mrb[0].mxu0
  %v812 = vadd.f32 %v304, %v811
  %v813 = vpop.f32.mrb[0].mxu0
  %v814 = vpop.f32.mrb[0].mxu0
  %v815 = vadd.f32 %v309, %v814
  %v816 = vpop.f32.mrb[0].mxu0
  %817 = vmatprep.mubr.bf16.mxu0 %v646
  %818 = vmatmul.mubr.bf16.gmra.mrb[0].mxu0 %v645
  %v819 = vpop.f32.mrb[0].mxu0
  %v820 = vadd.f32 %v314, %v819
  %v821 = vpop.f32.mrb[0].mxu0
  %v822 = vpop.f32.mrb[0].mxu0
  %v823 = vadd.f32 %v319, %v822
  %v824 = vpop.f32.mrb[0].mxu0
  %825 = vmatprep.mubr.bf16.mxu0 %v650
  %826 = vmatmul.mubr.bf16.gmra.mrb[0].mxu0 %v649
  %v827 = vpop.f32.mrb[0].mxu0
  %v828 = vadd.f32 %v324, %v827
  %v829 = vpop.f32.mrb[0].mxu0
  %v830 = vpop.f32.mrb[0].mxu0
  %v831 = vadd.f32 %v329, %v830
  %v832 = vpop.f32.mrb[0].mxu0
  %833 = vmatprep.mubr.bf16.mxu0 %v654
  %834 = vmatmul.mubr.bf16.gmra.mrb[0].mxu0 %v653
  %v835 = vpop.f32.mrb[0].mxu0
  %v836 = vadd.f32 %v334, %v835
  %v837 = vpop.f32.mrb[0].mxu0
  %v838 = vpop.f32.mrb[0].mxu0
  %v839 = vadd.f32 %v339, %v838
  %v840 = vpop.f32.mrb[0].mxu0
  %841 = vmatprep.mubr.bf16.mxu0 %v658
  %842 = vmatmul.mubr.bf16.gmra.mrb[0].mxu0 %v657
  %v843 = vpop.f32.mrb[0].mxu0
  %v844 = vadd.f32 %v344, %v843
  %v845 = vpop.f32.mrb[0].mxu0
  %v846 = vpop.f32.mrb[0].mxu0
  %v847 = vadd.f32 %v349, %v846
  %v848 = vpop.f32.mrb[0].mxu0
  %849 = vmatprep.mubr.bf16.mxu0 %v662
  %850 = vmatmul.mubr.bf16.gmra.mrb[0].mxu0 %v661
  %v851 = vpop.f32.mrb[0].mxu0
  %v852 = vadd.f32 %v354, %v851
  %v853 = vpop.f32.mrb[0].mxu0
  %v854 = vpop.f32.mrb[0].mxu0
  %v855 = vadd.f32 %v359, %v854
  %v856 = vpop.f32.mrb[0].mxu0
  %857 = vmatprep.mubr.bf16.mxu0 %v666
  %858 = vmatmul.mubr.bf16.gmra.mrb[0].mxu0 %v665
  %v859 = vpop.f32.mrb[0].mxu0
  %v860 = vadd.f32 %v364, %v859
  %v861 = vpop.f32.mrb[0].mxu0
  %v862 = vpop.f32.mrb[0].mxu0
  %v863 = vadd.f32 %v369, %v862
  %v864 = vpop.f32.mrb[0].mxu0
  %865 = vmatprep.mubr.bf16.mxu0 %v670
  %866 = vmatmul.mubr.bf16.gmra.mrb[0].mxu0 %v669
  %v867 = vpop.f32.mrb[0].mxu0
  %v868 = vadd.f32 %v374, %v867
  %v869 = vpop.f32.mrb[0].mxu0
  %v870 = vpop.f32.mrb[0].mxu0
  %v871 = vadd.f32 %v379, %v870
  %v872 = vpop.f32.mrb[0].mxu0
  %873 = vmatprep.mubr.bf16.mxu0 %v674
  %874 = vmatmul.mubr.bf16.gmra.mrb[0].mxu0 %v673
  %v875 = vpop.f32.mrb[0].mxu0
  %v876 = vadd.f32 %v384, %v875
  %v877 = vpop.f32.mrb[0].mxu0
  %v878 = vpop.f32.mrb[0].mxu0
  %v879 = vadd.f32 %v389, %v878
  %v880 = vpop.f32.mrb[0].mxu0
  %881 = vmatprep.mubr.bf16.mxu0 %v678
  %882 = vmatmul.mubr.bf16.gmra.mrb[0].mxu0 %v677
  %v883 = vpop.f32.mrb[0].mxu0
  %v884 = vadd.f32 %v394, %v883
  %v885 = vpop.f32.mrb[0].mxu0
  %v886 = vpop.f32.mrb[0].mxu0
  %v887 = vadd.f32 %v399, %v886
  %v888 = vpop.f32.mrb[0].mxu0
  %889 = vmatprep.mubr.bf16.mxu0 %v682
  %890 = vmatmul.mubr.bf16.gmra.mrb[0].mxu0 %v681
  %v891 = vpop.f32.mrb[0].mxu0
  %v892 = vadd.f32 %v404, %v891
  %v893 = vpop.f32.mrb[0].mxu0
  %v894 = vpop.f32.mrb[0].mxu0
  %v895 = vadd.f32 %v409, %v894
  %v896 = vpop.f32.mrb[0].mxu0
  %897 = vmatprep.mubr.bf16.mxu0 %v686
  %898 = vmatmul.mubr.bf16.gmra.mrb[0].mxu0 %v685
  %v899 = vpop.f32.mrb[0].mxu0
  %v900 = vadd.f32 %v414, %v899
  %v901 = vpop.f32.mrb[0].mxu0
  %v902 = vpop.f32.mrb[0].mxu0
  %v903 = vadd.f32 %v419, %v902
  %v904 = vpop.f32.mrb[0].mxu0
  %905 = vmatprep.mubr.bf16.mxu0 %v690
  %906 = vmatmul.mubr.bf16.gmra.mrb[0].mxu0 %v689
  %v907 = vpop.f32.mrb[0].mxu0
  %v908 = vadd.f32 %v424, %v907
  %v909 = vpop.f32.mrb[0].mxu0
  %v910 = vpop.f32.mrb[0].mxu0
  %v911 = vadd.f32 %v429, %v910
  %v912 = vpop.f32.mrb[0].mxu0
  %913 = vmatprep.mubr.bf16.mxu0 %v694
  %914 = vmatmul.mubr.bf16.gmra.mrb[0].mxu0 %v693
  %v915 = vpop.f32.mrb[0].mxu0
  %v916 = vadd.f32 %v434, %v915
  %v917 = vpop.f32.mrb[0].mxu0
  %v918 = vpop.f32.mrb[0].mxu0
  %v919 = vadd.f32 %v439, %v918
  %v920 = vpop.f32.mrb[0].mxu0
  %921 = vdwg.mxu0
  %922 = vmatprep.subr.bf16.mxu0 0
  %923 = vmatpush1.bf16.msra.mxu0 %v233
  %924 = vmatprep.subr.bf16.mxu0 0
  %925 = vmatpush1.bf16.msra.mxu0 %v234
  %926 = vmatprep.subr.bf16.mxu0 0
  %927 = vmatpush1.bf16.msra.mxu0 %v235
  %928 = vmatprep.subr.bf16.mxu0 0
  %929 = vmatpush1.bf16.msra.mxu0 %v236
  %930 = vmatprep.subr.bf16.mxu0 0
  %931 = vmatpush1.bf16.msra.mxu0 %v237
  %932 = vmatprep.subr.bf16.mxu0 0
  %933 = vmatpush1.bf16.msra.mxu0 %v238
  %934 = vmatprep.subr.bf16.mxu0 0
  %935 = vmatpush1.bf16.msra.mxu0 %v239
  %936 = vmatprep.subr.bf16.mxu0 0
  %937 = vmatpush1.bf16.msra.mxu0 %v240
  %938 = vmatprep.subr.bf16.mxu0 0
  %939 = vmatpush1.bf16.msra.mxu0 %v241
  %940 = vmatprep.subr.bf16.mxu0 0
  %941 = vmatpush1.bf16.msra.mxu0 %v242
  %942 = vmatprep.subr.bf16.mxu0 0
  %943 = vmatpush1.bf16.msra.mxu0 %v243
  %944 = vmatprep.subr.bf16.mxu0 0
  %945 = vmatpush1.bf16.msra.mxu0 %v244
  %946 = vmatprep.subr.bf16.mxu0 0
  %947 = vmatpush1.bf16.msra.mxu0 %v245
  %948 = vmatprep.subr.bf16.mxu0 0
  %949 = vmatpush1.bf16.msra.mxu0 %v246
  %950 = vmatprep.subr.bf16.mxu0 0
  %951 = vmatpush1.bf16.msra.mxu0 %v247
  %952 = vmatprep.subr.bf16.mxu0 0
  %953 = vmatpush1.bf16.msra.mxu0 %v248
  %954 = vmatprep.mubr.bf16.mxu0 %v636
  %955 = vmatmul.mubr.bf16.gmra.mrb[0].mxu0 %v635
  %v956 = vpop.f32.mrb[0].mxu0
  %v957 = vadd.f32 %v796, %v956
  %v958 = vpop.f32.mrb[0].mxu0
  %v959 = vpop.f32.mrb[0].mxu0
  %v960 = vadd.f32 %v799, %v959
  %v961 = vpop.f32.mrb[0].mxu0
  %962 = vmatprep.mubr.bf16.mxu0 %v640
  %963 = vmatmul.mubr.bf16.gmra.mrb[0].mxu0 %v639
  %v964 = vpop.f32.mrb[0].mxu0
  %v965 = vadd.f32 %v804, %v964
  %v966 = vpop.f32.mrb[0].mxu0
  %v967 = vpop.f32.mrb[0].mxu0
  %v968 = vadd.f32 %v807, %v967
  %v969 = vpop.f32.mrb[0].mxu0
  %970 = vmatprep.mubr.bf16.mxu0 %v644
  %971 = vmatmul.mubr.bf16.gmra.mrb[0].mxu0 %v643
  %v972 = vpop.f32.mrb[0].mxu0
  %v973 = vadd.f32 %v812, %v972
  %v974 = vpop.f32.mrb[0].mxu0
  %v975 = vpop.f32.mrb[0].mxu0
  %v976 = vadd.f32 %v815, %v975
  %v977 = vpop.f32.mrb[0].mxu0
  %978 = vmatprep.mubr.bf16.mxu0 %v648
  %979 = vmatmul.mubr.bf16.gmra.mrb[0].mxu0 %v647
  %v980 = vpop.f32.mrb[0].mxu0
  %v981 = vadd.f32 %v820, %v980
  %v982 = vpop.f32.mrb[0].mxu0
  %v983 = vpop.f32.mrb[0].mxu0
  %v984 = vadd.f32 %v823, %v983
  %v985 = vpop.f32.mrb[0].mxu0
  %986 = vmatprep.mubr.bf16.mxu0 %v652
  %987 = vmatmul.mubr.bf16.gmra.mrb[0].mxu0 %v651
  %v988 = vpop.f32.mrb[0].mxu0
  %v989 = vadd.f32 %v828, %v988
  %v990 = vpop.f32.mrb[0].mxu0
  %v991 = vpop.f32.mrb[0].mxu0
  %v992 = vadd.f32 %v831, %v991
  %v993 = vpop.f32.mrb[0].mxu0
  %994 = vmatprep.mubr.bf16.mxu0 %v656
  %995 = vmatmul.mubr.bf16.gmra.mrb[0].mxu0 %v655
  %v996 = vpop.f32.mrb[0].mxu0
  %v997 = vadd.f32 %v836, %v996
  %v998 = vpop.f32.mrb[0].mxu0
  %v999 = vpop.f32.mrb[0].mxu0
  %v1000 = vadd.f32 %v839, %v999
  %v1001 = vpop.f32.mrb[0].mxu0
  %1002 = vmatprep.mubr.bf16.mxu0 %v660
  %1003 = vmatmul.mubr.bf16.gmra.mrb[0].mxu0 %v659
  %v1004 = vpop.f32.mrb[0].mxu0
  %v1005 = vadd.f32 %v844, %v1004
  %v1006 = vpop.f32.mrb[0].mxu0
  %v1007 = vpop.f32.mrb[0].mxu0
  %v1008 = vadd.f32 %v847, %v1007
  %v1009 = vpop.f32.mrb[0].mxu0
  %1010 = vmatprep.mubr.bf16.mxu0 %v664
  %1011 = vmatmul.mubr.bf16.gmra.mrb[0].mxu0 %v663
  %v1012 = vpop.f32.mrb[0].mxu0
  %v1013 = vadd.f32 %v852, %v1012
  %v1014 = vpop.f32.mrb[0].mxu0
  %v1015 = vpop.f32.mrb[0].mxu0
  %v1016 = vadd.f32 %v855, %v1015
  %v1017 = vpop.f32.mrb[0].mxu0
  %1018 = vmatprep.mubr.bf16.mxu0 %v668
  %1019 = vmatmul.mubr.bf16.gmra.mrb[0].mxu0 %v667
  %v1020 = vpop.f32.mrb[0].mxu0
  %v1021 = vadd.f32 %v860, %v1020
  %v1022 = vpop.f32.mrb[0].mxu0
  %v1023 = vpop.f32.mrb[0].mxu0
  %v1024 = vadd.f32 %v863, %v1023
  %v1025 = vpop.f32.mrb[0].mxu0
  %1026 = vmatprep.mubr.bf16.mxu0 %v672
  %1027 = vmatmul.mubr.bf16.gmra.mrb[0].mxu0 %v671
  %v1028 = vpop.f32.mrb[0].mxu0
  %v1029 = vadd.f32 %v868, %v1028
  %v1030 = vpop.f32.mrb[0].mxu0
  %v1031 = vpop.f32.mrb[0].mxu0
  %v1032 = vadd.f32 %v871, %v1031
  %v1033 = vpop.f32.mrb[0].mxu0
  %1034 = vmatprep.mubr.bf16.mxu0 %v676
  %1035 = vmatmul.mubr.bf16.gmra.mrb[0].mxu0 %v675
  %v1036 = vpop.f32.mrb[0].mxu0
  %v1037 = vadd.f32 %v876, %v1036
  %v1038 = vpop.f32.mrb[0].mxu0
  %v1039 = vpop.f32.mrb[0].mxu0
  %v1040 = vadd.f32 %v879, %v1039
  %v1041 = vpop.f32.mrb[0].mxu0
  %1042 = vmatprep.mubr.bf16.mxu0 %v680
  %1043 = vmatmul.mubr.bf16.gmra.mrb[0].mxu0 %v679
  %v1044 = vpop.f32.mrb[0].mxu0
  %v1045 = vadd.f32 %v884, %v1044
  %v1046 = vpop.f32.mrb[0].mxu0
  %v1047 = vpop.f32.mrb[0].mxu0
  %v1048 = vadd.f32 %v887, %v1047
  %v1049 = vpop.f32.mrb[0].mxu0
  %1050 = vmatprep.mubr.bf16.mxu0 %v684
  %1051 = vmatmul.mubr.bf16.gmra.mrb[0].mxu0 %v683
  %v1052 = vpop.f32.mrb[0].mxu0
  %v1053 = vadd.f32 %v892, %v1052
  %v1054 = vpop.f32.mrb[0].mxu0
  %v1055 = vpop.f32.mrb[0].mxu0
  %v1056 = vadd.f32 %v895, %v1055
  %v1057 = vpop.f32.mrb[0].mxu0
  %1058 = vmatprep.mubr.bf16.mxu0 %v688
  %1059 = vmatmul.mubr.bf16.gmra.mrb[0].mxu0 %v687
  %v1060 = vpop.f32.mrb[0].mxu0
  %v1061 = vadd.f32 %v900, %v1060
  %v1062 = vpop.f32.mrb[0].mxu0
  %v1063 = vpop.f32.mrb[0].mxu0
  %v1064 = vadd.f32 %v903, %v1063
  %v1065 = vpop.f32.mrb[0].mxu0
  %1066 = vmatprep.mubr.bf16.mxu0 %v692
  %1067 = vmatmul.mubr.bf16.gmra.mrb[0].mxu0 %v691
  %v1068 = vpop.f32.mrb[0].mxu0
  %v1069 = vadd.f32 %v908, %v1068
  %v1070 = vpop.f32.mrb[0].mxu0
  %v1071 = vpop.f32.mrb[0].mxu0
  %v1072 = vadd.f32 %v911, %v1071
  %v1073 = vpop.f32.mrb[0].mxu0
  %1074 = vmatprep.mubr.bf16.mxu0 %v696
  %1075 = vmatmul.mubr.bf16.gmra.mrb[0].mxu0 %v695
  %v1076 = vpop.f32.mrb[0].mxu0
  %v1077 = vadd.f32 %v916, %v1076
  %v1078 = vpop.f32.mrb[0].mxu0
  %v1079 = vpop.f32.mrb[0].mxu0
  %v1080 = vadd.f32 %v919, %v1079
  %v1081 = vpop.f32.mrb[0].mxu0
  %1082 = vdwg.mxu0
  %v1083 = vld [vmem:[%s5] sm:$0xf]
  %v1084 = vpack.c.bf16 %v960, %v957
  %v1085 = vpack.c.bf16 %v968, %v965
  %v1086 = vpack.c.bf16 %v976, %v973
  %v1087 = vpack.c.bf16 %v984, %v981
  %v1088 = vpack.c.bf16 %v992, %v989
  %v1089 = vpack.c.bf16 %v1000, %v997
  %v1090 = vpack.c.bf16 %v1008, %v1005
  %v1091 = vpack.c.bf16 %v1016, %v1013
  %v1092 = vpack.c.bf16 %v1024, %v1021
  %v1093 = vpack.c.bf16 %v1032, %v1029
  %v1094 = vpack.c.bf16 %v1040, %v1037
  %v1095 = vpack.c.bf16 %v1048, %v1045
  %v1096 = vpack.c.bf16 %v1056, %v1053
  %v1097 = vpack.c.bf16 %v1064, %v1061
  %v1098 = vpack.c.bf16 %v1072, %v1069
  %v1099 = vpack.c.bf16 %v1080, %v1077
  %v1100 = vld [vmem:[%s3] sm:$0xff]
  %v1101 = vld [vmem:[%s3 + $0x8] sm:$0xff]
  %v1102 = vld [vmem:[%s3 + $0x10] sm:$0xff]
  %v1103 = vld [vmem:[%s3 + $0x18] sm:$0xff]
  %v1104 = vld [vmem:[%s3 + $0x20] sm:$0xff]
  %v1105 = vld [vmem:[%s3 + $0x28] sm:$0xff]
  %v1106 = vld [vmem:[%s3 + $0x30] sm:$0xff]
  %v1107 = vld [vmem:[%s3 + $0x38] sm:$0xff]
  %v1108 = vld [vmem:[%s3 + $0x40] sm:$0xff]
  %v1109 = vld [vmem:[%s3 + $0x48] sm:$0xff]
  %v1110 = vld [vmem:[%s3 + $0x50] sm:$0xff]
  %v1111 = vld [vmem:[%s3 + $0x58] sm:$0xff]
  %v1112 = vld [vmem:[%s3 + $0x60] sm:$0xff]
  %v1113 = vld [vmem:[%s3 + $0x68] sm:$0xff]
  %v1114 = vld [vmem:[%s3 + $0x70] sm:$0xff]
  %v1115 = vld [vmem:[%s3 + $0x78] sm:$0xff]
  %v1116 = vld [vmem:[%s3 + $0x80] sm:$0xff]
  %v1117 = vld [vmem:[%s3 + $0x88] sm:$0xff]
  %v1118 = vld [vmem:[%s3 + $0x90] sm:$0xff]
  %v1119 = vld [vmem:[%s3 + $0x98] sm:$0xff]
  %v1120 = vld [vmem:[%s3 + $0xa0] sm:$0xff]
  %v1121 = vld [vmem:[%s3 + $0xa8] sm:$0xff]
  %v1122 = vld [vmem:[%s3 + $0xb0] sm:$0xff]
  %v1123 = vld [vmem:[%s3 + $0xb8] sm:$0xff]
  %v1124 = vld [vmem:[%s3 + $0xc0] sm:$0xff]
  %v1125 = vld [vmem:[%s3 + $0xc8] sm:$0xff]
  %v1126 = vld [vmem:[%s3 + $0xd0] sm:$0xff]
  %v1127 = vld [vmem:[%s3 + $0xd8] sm:$0xff]
  %v1128 = vld [vmem:[%s3 + $0xe0] sm:$0xff]
  %v1129 = vld [vmem:[%s3 + $0xe8] sm:$0xff]
  %v1130 = vld [vmem:[%s3 + $0xf0] sm:$0xff]
  %v1131 = vld [vmem:[%s3 + $0xf8] sm:$0xff]
  %vm1132 = vcmask 64512
  %v1134 = vsel %vm1132, %v1084, 0
  %v1137 = vsel %vm1132, %v1085, 0
  %v1140 = vsel %vm1132, %v1086, 0
  %v1143 = vsel %vm1132, %v1087, 0
  %v1146 = vsel %vm1132, %v1088, 0
  %v1149 = vsel %vm1132, %v1089, 0
  %v1152 = vsel %vm1132, %v1090, 0
  %v1155 = vsel %vm1132, %v1091, 0
  %v1158 = vsel %vm1132, %v1092, 0
  %v1161 = vsel %vm1132, %v1093, 0
  %v1164 = vsel %vm1132, %v1094, 0
  %v1167 = vsel %vm1132, %v1095, 0
  %v1170 = vsel %vm1132, %v1096, 0
  %v1173 = vsel %vm1132, %v1097, 0
  %v1176 = vsel %vm1132, %v1098, 0
  %v1179 = vsel %vm1132, %v1099, 0
  %vm1181 = vcmask 1043456
  %v1183 = vsel %vm1181, %v1083, 0
  %1185 = vmatprep.subr.bf16.mxu0 0
  %1186 = vmatpush1.bf16.msra.mxu0 %v1183
  %1187 = vmatprep.subr.bf16.mxu0 0
  %1188 = vmatpush1.bf16.msra.mxu0 0
  %1189 = vmatprep.subr.bf16.mxu0 0
  %1190 = vmatpush1.bf16.msra.mxu0 0
  %1191 = vmatprep.subr.bf16.mxu0 0
  %1192 = vmatpush1.bf16.msra.mxu0 0
  %1193 = vmatprep.subr.bf16.mxu0 0
  %1194 = vmatpush1.bf16.msra.mxu0 0
  %1195 = vmatprep.subr.bf16.mxu0 0
  %1196 = vmatpush1.bf16.msra.mxu0 0
  %1197 = vmatprep.subr.bf16.mxu0 0
  %1198 = vmatpush1.bf16.msra.mxu0 0
  %1199 = vmatprep.subr.bf16.mxu0 0
  %1200 = vmatpush1.bf16.msra.mxu0 0
  %1201 = vmatprep.subr.bf16.mxu0 0
  %1202 = vmatpush1.bf16.msra.mxu0 0
  %1203 = vmatprep.subr.bf16.mxu0 0
  %1204 = vmatpush1.bf16.msra.mxu0 0
  %1205 = vmatprep.subr.bf16.mxu0 0
  %1206 = vmatpush1.bf16.msra.mxu0 0
  %1207 = vmatprep.subr.bf16.mxu0 0
  %1208 = vmatpush1.bf16.msra.mxu0 0
  %1209 = vmatprep.subr.bf16.mxu0 0
  %1210 = vmatpush1.bf16.msra.mxu0 0
  %1211 = vmatprep.subr.bf16.mxu0 0
  %1212 = vmatpush1.bf16.msra.mxu0 0
  %1213 = vmatprep.subr.bf16.mxu0 0
  %1214 = vmatpush1.bf16.msra.mxu0 0
  %1215 = vmatprep.subr.bf16.mxu0 0
  %1216 = vmatpush1.bf16.msra.mxu0 0
  %1217 = vmatprep.mubr.bf16.mxu0 0
  %1218 = vmatmul.mubr.bf16.gmra.mrb[0].mxu0 %v1134
  %v1219 = vpop.f32.mrb[0].mxu0
  %v1220 = vadd.f32 %v1100, %v1219
  %v1221 = vpop.f32.mrb[0].mxu0
  %v1222 = vpop.f32.mrb[0].mxu0
  %v1223 = vadd.f32 %v1101, %v1222
  %v1224 = vpop.f32.mrb[0].mxu0
  %1225 = vmatprep.mubr.bf16.mxu0 0
  %1226 = vmatmul.mubr.bf16.gmra.mrb[0].mxu0 %v1137
  %v1227 = vpop.f32.mrb[0].mxu0
  %v1228 = vadd.f32 %v1102, %v1227
  %v1229 = vpop.f32.mrb[0].mxu0
  %v1230 = vpop.f32.mrb[0].mxu0
  %v1231 = vadd.f32 %v1103, %v1230
  %v1232 = vpop.f32.mrb[0].mxu0
  %1233 = vmatprep.mubr.bf16.mxu0 0
  %1234 = vmatmul.mubr.bf16.gmra.mrb[0].mxu0 %v1140
  %v1235 = vpop.f32.mrb[0].mxu0
  %v1236 = vadd.f32 %v1104, %v1235
  %v1237 = vpop.f32.mrb[0].mxu0
  %v1238 = vpop.f32.mrb[0].mxu0
  %v1239 = vadd.f32 %v1105, %v1238
  %v1240 = vpop.f32.mrb[0].mxu0
  %1241 = vmatprep.mubr.bf16.mxu0 0
  %1242 = vmatmul.mubr.bf16.gmra.mrb[0].mxu0 %v1143
  %v1243 = vpop.f32.mrb[0].mxu0
  %v1244 = vadd.f32 %v1106, %v1243
  %v1245 = vpop.f32.mrb[0].mxu0
  %v1246 = vpop.f32.mrb[0].mxu0
  %v1247 = vadd.f32 %v1107, %v1246
  %v1248 = vpop.f32.mrb[0].mxu0
  %1249 = vmatprep.mubr.bf16.mxu0 0
  %1250 = vmatmul.mubr.bf16.gmra.mrb[0].mxu0 %v1146
  %v1251 = vpop.f32.mrb[0].mxu0
  %v1252 = vadd.f32 %v1108, %v1251
  %v1253 = vpop.f32.mrb[0].mxu0
  %v1254 = vpop.f32.mrb[0].mxu0
  %v1255 = vadd.f32 %v1109, %v1254
  %v1256 = vpop.f32.mrb[0].mxu0
  %1257 = vmatprep.mubr.bf16.mxu0 0
  %1258 = vmatmul.mubr.bf16.gmra.mrb[0].mxu0 %v1149
  %v1259 = vpop.f32.mrb[0].mxu0
  %v1260 = vadd.f32 %v1110, %v1259
  %v1261 = vpop.f32.mrb[0].mxu0
  %v1262 = vpop.f32.mrb[0].mxu0
  %v1263 = vadd.f32 %v1111, %v1262
  %v1264 = vpop.f32.mrb[0].mxu0
  %1265 = vmatprep.mubr.bf16.mxu0 0
  %1266 = vmatmul.mubr.bf16.gmra.mrb[0].mxu0 %v1152
  %v1267 = vpop.f32.mrb[0].mxu0
  %v1268 = vadd.f32 %v1112, %v1267
  %v1269 = vpop.f32.mrb[0].mxu0
  %v1270 = vpop.f32.mrb[0].mxu0
  %v1271 = vadd.f32 %v1113, %v1270
  %v1272 = vpop.f32.mrb[0].mxu0
  %1273 = vmatprep.mubr.bf16.mxu0 0
  %1274 = vmatmul.mubr.bf16.gmra.mrb[0].mxu0 %v1155
  %v1275 = vpop.f32.mrb[0].mxu0
  %v1276 = vadd.f32 %v1114, %v1275
  %v1277 = vpop.f32.mrb[0].mxu0
  %v1278 = vpop.f32.mrb[0].mxu0
  %v1279 = vadd.f32 %v1115, %v1278
  %v1280 = vpop.f32.mrb[0].mxu0
  %1281 = vmatprep.mubr.bf16.mxu0 0
  %1282 = vmatmul.mubr.bf16.gmra.mrb[0].mxu0 %v1158
  %v1283 = vpop.f32.mrb[0].mxu0
  %v1284 = vadd.f32 %v1116, %v1283
  %v1285 = vpop.f32.mrb[0].mxu0
  %v1286 = vpop.f32.mrb[0].mxu0
  %v1287 = vadd.f32 %v1117, %v1286
  %v1288 = vpop.f32.mrb[0].mxu0
  %1289 = vmatprep.mubr.bf16.mxu0 0
  %1290 = vmatmul.mubr.bf16.gmra.mrb[0].mxu0 %v1161
  %v1291 = vpop.f32.mrb[0].mxu0
  %v1292 = vadd.f32 %v1118, %v1291
  %v1293 = vpop.f32.mrb[0].mxu0
  %v1294 = vpop.f32.mrb[0].mxu0
  %v1295 = vadd.f32 %v1119, %v1294
  %v1296 = vpop.f32.mrb[0].mxu0
  %1297 = vmatprep.mubr.bf16.mxu0 0
  %1298 = vmatmul.mubr.bf16.gmra.mrb[0].mxu0 %v1164
  %v1299 = vpop.f32.mrb[0].mxu0
  %v1300 = vadd.f32 %v1120, %v1299
  %v1301 = vpop.f32.mrb[0].mxu0
  %v1302 = vpop.f32.mrb[0].mxu0
  %v1303 = vadd.f32 %v1121, %v1302
  %v1304 = vpop.f32.mrb[0].mxu0
  %1305 = vmatprep.mubr.bf16.mxu0 0
  %1306 = vmatmul.mubr.bf16.gmra.mrb[0].mxu0 %v1167
  %v1307 = vpop.f32.mrb[0].mxu0
  %v1308 = vadd.f32 %v1122, %v1307
  %v1309 = vpop.f32.mrb[0].mxu0
  %v1310 = vpop.f32.mrb[0].mxu0
  %v1311 = vadd.f32 %v1123, %v1310
  %v1312 = vpop.f32.mrb[0].mxu0
  %1313 = vmatprep.mubr.bf16.mxu0 0
  %1314 = vmatmul.mubr.bf16.gmra.mrb[0].mxu0 %v1170
  %v1315 = vpop.f32.mrb[0].mxu0
  %v1316 = vadd.f32 %v1124, %v1315
  %v1317 = vpop.f32.mrb[0].mxu0
  %v1318 = vpop.f32.mrb[0].mxu0
  %v1319 = vadd.f32 %v1125, %v1318
  %v1320 = vpop.f32.mrb[0].mxu0
  %1321 = vmatprep.mubr.bf16.mxu0 0
  %1322 = vmatmul.mubr.bf16.gmra.mrb[0].mxu0 %v1173
  %v1323 = vpop.f32.mrb[0].mxu0
  %v1324 = vadd.f32 %v1126, %v1323
  %v1325 = vpop.f32.mrb[0].mxu0
  %v1326 = vpop.f32.mrb[0].mxu0
  %v1327 = vadd.f32 %v1127, %v1326
  %v1328 = vpop.f32.mrb[0].mxu0
  %1329 = vmatprep.mubr.bf16.mxu0 0
  %1330 = vmatmul.mubr.bf16.gmra.mrb[0].mxu0 %v1176
  %v1331 = vpop.f32.mrb[0].mxu0
  %v1332 = vadd.f32 %v1128, %v1331
  %v1333 = vpop.f32.mrb[0].mxu0
  %v1334 = vpop.f32.mrb[0].mxu0
  %v1335 = vadd.f32 %v1129, %v1334
  %v1336 = vpop.f32.mrb[0].mxu0
  %1337 = vmatprep.mubr.bf16.mxu0 0
  %1338 = vmatmul.mubr.bf16.gmra.mrb[0].mxu0 %v1179
  %v1339 = vpop.f32.mrb[0].mxu0
  %v1340 = vadd.f32 %v1130, %v1339
  %v1341 = vpop.f32.mrb[0].mxu0
  %v1342 = vpop.f32.mrb[0].mxu0
  %v1343 = vadd.f32 %v1131, %v1342
  %v1344 = vpop.f32.mrb[0].mxu0
  %1345 = vdwg.mxu0
  %v1346 = vpack.c.bf16 %v1223, %v1220
  %v1347 = vpack.c.bf16 %v1231, %v1228
  %v1348 = vpack.c.bf16 %v1239, %v1236
  %v1349 = vpack.c.bf16 %v1247, %v1244
  %v1350 = vpack.c.bf16 %v1255, %v1252
  %v1351 = vpack.c.bf16 %v1263, %v1260
  %v1352 = vpack.c.bf16 %v1271, %v1268
  %v1353 = vpack.c.bf16 %v1279, %v1276
  %v1354 = vpack.c.bf16 %v1287, %v1284
  %v1355 = vpack.c.bf16 %v1295, %v1292
  %v1356 = vpack.c.bf16 %v1303, %v1300
  %v1357 = vpack.c.bf16 %v1311, %v1308
  %v1358 = vpack.c.bf16 %v1319, %v1316
  %v1359 = vpack.c.bf16 %v1327, %v1324
  %v1360 = vpack.c.bf16 %v1335, %v1332
  %v1361 = vpack.c.bf16 %v1343, %v1340
  %v1362 = vld [vmem:[%s8] sm:$0x1]
  %v1363 = vpack.c.bf16 %v1362, %v1362
  %v1364 = vld [vmem:[%s8 + $0x1] sm:$0x1]
  %v1365 = vpack.c.bf16 %v1364, %v1364
  %1382 = vrot.lane.b32.xlu0 %v1346, 1
  %v1383 = vpop.permute.xlu0 %1382
  %1384 = vrot.lane.b32.xlu0 %v1347, 1
  %v1385 = vpop.permute.xlu0 %1384
  %1386 = vrot.lane.b32.xlu0 %v1348, 1
  %v1387 = vpop.permute.xlu0 %1386
  %1388 = vrot.lane.b32.xlu0 %v1349, 1
  %v1389 = vpop.permute.xlu0 %1388
  %1390 = vrot.lane.b32.xlu0 %v1350, 1
  %v1391 = vpop.permute.xlu0 %1390
  %1392 = vrot.lane.b32.xlu0 %v1351, 1
  %v1393 = vpop.permute.xlu0 %1392
  %1394 = vrot.lane.b32.xlu0 %v1352, 1
  %v1395 = vpop.permute.xlu0 %1394
  %1396 = vrot.lane.b32.xlu0 %v1353, 1
  %v1397 = vpop.permute.xlu0 %1396
  %1398 = vrot.lane.b32.xlu0 %v1354, 1
  %v1399 = vpop.permute.xlu0 %1398
  %1400 = vrot.lane.b32.xlu0 %v1355, 1
  %v1401 = vpop.permute.xlu0 %1400
  %1402 = vrot.lane.b32.xlu0 %v1356, 1
  %v1403 = vpop.permute.xlu0 %1402
  %1404 = vrot.lane.b32.xlu0 %v1357, 1
  %v1405 = vpop.permute.xlu0 %1404
  %1406 = vrot.lane.b32.xlu0 %v1358, 1
  %v1407 = vpop.permute.xlu0 %1406
  %1408 = vrot.lane.b32.xlu0 %v1359, 1
  %v1409 = vpop.permute.xlu0 %1408
  %1410 = vrot.lane.b32.xlu0 %v1360, 1
  %v1411 = vpop.permute.xlu0 %1410
  %1412 = vrot.lane.b32.xlu0 %v1361, 1
  %v1413 = vpop.permute.xlu0 %1412
  %vm1414 = vcmask 7168
  %v1417 = vsel %vm1414, 0, %v1383
  %v1420 = vsel %vm1414, 0, %v1385
  %v1423 = vsel %vm1414, 0, %v1387
  %v1426 = vsel %vm1414, 0, %v1389
  %v1429 = vsel %vm1414, 0, %v1391
  %v1432 = vsel %vm1414, 0, %v1393
  %v1435 = vsel %vm1414, 0, %v1395
  %v1438 = vsel %vm1414, 0, %v1397
  %v1441 = vsel %vm1414, 0, %v1399
  %v1444 = vsel %vm1414, 0, %v1401
  %v1447 = vsel %vm1414, 0, %v1403
  %v1450 = vsel %vm1414, 0, %v1405
  %v1453 = vsel %vm1414, 0, %v1407
  %v1456 = vsel %vm1414, 0, %v1409
  %v1459 = vsel %vm1414, 0, %v1411
  %v1462 = vsel %vm1414, 0, %v1413
  %v1465 = vpack.i.b16 %v1363, %v1363
  %v1467 = vlaneseq
  %v1468 = vshrl.u32 %v1467, 7
  %v1469 = vsub.s32 0, %v1468
  %v1470 = vrot.slane %v1465, %v1469
  %v1471 = vmul.bf16 %v1417, %v1470
  %v1472 = vmul.bf16 %v1420, %v1470
  %v1473 = vmul.bf16 %v1423, %v1470
  %v1474 = vmul.bf16 %v1426, %v1470
  %v1475 = vmul.bf16 %v1429, %v1470
  %v1476 = vmul.bf16 %v1432, %v1470
  %v1477 = vmul.bf16 %v1435, %v1470
  %v1478 = vmul.bf16 %v1438, %v1470
  %v1479 = vmul.bf16 %v1441, %v1470
  %v1480 = vmul.bf16 %v1444, %v1470
  %v1481 = vmul.bf16 %v1447, %v1470
  %v1482 = vmul.bf16 %v1450, %v1470
  %v1483 = vmul.bf16 %v1453, %v1470
  %v1484 = vmul.bf16 %v1456, %v1470
  %v1485 = vmul.bf16 %v1459, %v1470
  %v1486 = vmul.bf16 %v1462, %v1470
  %1487 = vrot.lane.b32.xlu0 %v1346, 127
  %v1488 = vpop.permute.xlu0 %1487
  %1489 = vrot.lane.b32.xlu0 %v1347, 127
  %v1490 = vpop.permute.xlu0 %1489
  %1491 = vrot.lane.b32.xlu0 %v1348, 127
  %v1492 = vpop.permute.xlu0 %1491
  %1493 = vrot.lane.b32.xlu0 %v1349, 127
  %v1494 = vpop.permute.xlu0 %1493
  %1495 = vrot.lane.b32.xlu0 %v1350, 127
  %v1496 = vpop.permute.xlu0 %1495
  %1497 = vrot.lane.b32.xlu0 %v1351, 127
  %v1498 = vpop.permute.xlu0 %1497
  %1499 = vrot.lane.b32.xlu0 %v1352, 127
  %v1500 = vpop.permute.xlu0 %1499
  %1501 = vrot.lane.b32.xlu0 %v1353, 127
  %v1502 = vpop.permute.xlu0 %1501
  %1503 = vrot.lane.b32.xlu0 %v1354, 127
  %v1504 = vpop.permute.xlu0 %1503
  %1505 = vrot.lane.b32.xlu0 %v1355, 127
  %v1506 = vpop.permute.xlu0 %1505
  %1507 = vrot.lane.b32.xlu0 %v1356, 127
  %v1508 = vpop.permute.xlu0 %1507
  %1509 = vrot.lane.b32.xlu0 %v1357, 127
  %v1510 = vpop.permute.xlu0 %1509
  %1511 = vrot.lane.b32.xlu0 %v1358, 127
  %v1512 = vpop.permute.xlu0 %1511
  %1513 = vrot.lane.b32.xlu0 %v1359, 127
  %v1514 = vpop.permute.xlu0 %1513
  %1515 = vrot.lane.b32.xlu0 %v1360, 127
  %v1516 = vpop.permute.xlu0 %1515
  %1517 = vrot.lane.b32.xlu0 %v1361, 127
  %v1518 = vpop.permute.xlu0 %1517
  %vm1519 = vcmask 252928
  %v1521 = vsel %vm1519, %v1488, 0
  %v1524 = vsel %vm1519, %v1490, 0
  %v1527 = vsel %vm1519, %v1492, 0
  %v1530 = vsel %vm1519, %v1494, 0
  %v1533 = vsel %vm1519, %v1496, 0
  %v1536 = vsel %vm1519, %v1498, 0
  %v1539 = vsel %vm1519, %v1500, 0
  %v1542 = vsel %vm1519, %v1502, 0
  %v1545 = vsel %vm1519, %v1504, 0
  %v1548 = vsel %vm1519, %v1506, 0
  %v1551 = vsel %vm1519, %v1508, 0
  %v1554 = vsel %vm1519, %v1510, 0
  %v1557 = vsel %vm1519, %v1512, 0
  %v1560 = vsel %vm1519, %v1514, 0
  %v1563 = vsel %vm1519, %v1516, 0
  %v1566 = vsel %vm1519, %v1518, 0
  %v1569 = vpack.i.b16 %v1365, %v1365
  %v1571 = vlaneseq
  %v1572 = vshrl.u32 %v1571, 7
  %v1573 = vsub.s32 0, %v1572
  %v1574 = vrot.slane %v1569, %v1573
  %v1575 = vmul.bf16 %v1521, %v1574
  %v1576 = vmul.bf16 %v1524, %v1574
  %v1577 = vmul.bf16 %v1527, %v1574
  %v1578 = vmul.bf16 %v1530, %v1574
  %v1579 = vmul.bf16 %v1533, %v1574
  %v1580 = vmul.bf16 %v1536, %v1574
  %v1581 = vmul.bf16 %v1539, %v1574
  %v1582 = vmul.bf16 %v1542, %v1574
  %v1583 = vmul.bf16 %v1545, %v1574
  %v1584 = vmul.bf16 %v1548, %v1574
  %v1585 = vmul.bf16 %v1551, %v1574
  %v1586 = vmul.bf16 %v1554, %v1574
  %v1587 = vmul.bf16 %v1557, %v1574
  %v1588 = vmul.bf16 %v1560, %v1574
  %v1589 = vmul.bf16 %v1563, %v1574
  %v1590 = vmul.bf16 %v1566, %v1574
  %v1591 = vld [vmem:[%s13] sm:$0xff]
  %v1592 = vld [vmem:[%s13 + $0x8] sm:$0xff]
  %v1593 = vld [vmem:[%s13 + $0x10] sm:$0xff]
  %v1594 = vld [vmem:[%s13 + $0x18] sm:$0xff]
  %v1595 = vld [vmem:[%s13 + $0x20] sm:$0xff]
  %v1596 = vld [vmem:[%s13 + $0x28] sm:$0xff]
  %v1597 = vld [vmem:[%s13 + $0x30] sm:$0xff]
  %v1598 = vld [vmem:[%s13 + $0x38] sm:$0xff]
  %v1599 = vld [vmem:[%s13 + $0x40] sm:$0xff]
  %v1600 = vld [vmem:[%s13 + $0x48] sm:$0xff]
  %v1601 = vld [vmem:[%s13 + $0x50] sm:$0xff]
  %v1602 = vld [vmem:[%s13 + $0x58] sm:$0xff]
  %v1603 = vld [vmem:[%s13 + $0x60] sm:$0xff]
  %v1604 = vld [vmem:[%s13 + $0x68] sm:$0xff]
  %v1605 = vld [vmem:[%s13 + $0x70] sm:$0xff]
  %v1606 = vld [vmem:[%s13 + $0x78] sm:$0xff]
  %v1607 = vld [vmem:[%s13 + $0x80] sm:$0xff]
  %v1608 = vld [vmem:[%s13 + $0x88] sm:$0xff]
  %v1609 = vld [vmem:[%s13 + $0x90] sm:$0xff]
  %v1610 = vld [vmem:[%s13 + $0x98] sm:$0xff]
  %v1611 = vld [vmem:[%s13 + $0xa0] sm:$0xff]
  %v1612 = vld [vmem:[%s13 + $0xa8] sm:$0xff]
  %v1613 = vld [vmem:[%s13 + $0xb0] sm:$0xff]
  %v1614 = vld [vmem:[%s13 + $0xb8] sm:$0xff]
  %v1615 = vld [vmem:[%s13 + $0xc0] sm:$0xff]
  %v1616 = vld [vmem:[%s13 + $0xc8] sm:$0xff]
  %v1617 = vld [vmem:[%s13 + $0xd0] sm:$0xff]
  %v1618 = vld [vmem:[%s13 + $0xd8] sm:$0xff]
  %v1619 = vld [vmem:[%s13 + $0xe0] sm:$0xff]
  %v1620 = vld [vmem:[%s13 + $0xe8] sm:$0xff]
  %v1621 = vld [vmem:[%s13 + $0xf0] sm:$0xff]
  %v1622 = vld [vmem:[%s13 + $0xf8] sm:$0xff]
  %v1623 = vld [vmem:[%s13 + $0x100] sm:$0xff]
  %v1624 = vld [vmem:[%s13 + $0x108] sm:$0xff]
  %v1625 = vld [vmem:[%s13 + $0x110] sm:$0xff]
  %v1626 = vld [vmem:[%s13 + $0x118] sm:$0xff]
  %v1627 = vld [vmem:[%s13 + $0x120] sm:$0xff]
  %v1628 = vld [vmem:[%s13 + $0x128] sm:$0xff]
  %v1629 = vld [vmem:[%s13 + $0x130] sm:$0xff]
  %v1630 = vld [vmem:[%s13 + $0x138] sm:$0xff]
  %v1631 = vld [vmem:[%s13 + $0x140] sm:$0xff]
  %v1632 = vld [vmem:[%s13 + $0x148] sm:$0xff]
  %v1633 = vld [vmem:[%s13 + $0x150] sm:$0xff]
  %v1634 = vld [vmem:[%s13 + $0x158] sm:$0xff]
  %v1635 = vld [vmem:[%s13 + $0x160] sm:$0xff]
  %v1636 = vld [vmem:[%s13 + $0x168] sm:$0xff]
  %v1637 = vld [vmem:[%s13 + $0x170] sm:$0xff]
  %v1638 = vld [vmem:[%s13 + $0x178] sm:$0xff]
  %v1639 = vld [vmem:[%s13 + $0x180] sm:$0xff]
  %v1640 = vld [vmem:[%s13 + $0x188] sm:$0xff]
  %v1641 = vld [vmem:[%s13 + $0x190] sm:$0xff]
  %v1642 = vld [vmem:[%s13 + $0x198] sm:$0xff]
  %v1643 = vld [vmem:[%s13 + $0x1a0] sm:$0xff]
  %v1644 = vld [vmem:[%s13 + $0x1a8] sm:$0xff]
  %v1645 = vld [vmem:[%s13 + $0x1b0] sm:$0xff]
  %v1646 = vld [vmem:[%s13 + $0x1b8] sm:$0xff]
  %v1647 = vld [vmem:[%s13 + $0x1c0] sm:$0xff]
  %v1648 = vld [vmem:[%s13 + $0x1c8] sm:$0xff]
  %v1649 = vld [vmem:[%s13 + $0x1d0] sm:$0xff]
  %v1650 = vld [vmem:[%s13 + $0x1d8] sm:$0xff]
  %v1651 = vld [vmem:[%s13 + $0x1e0] sm:$0xff]
  %v1652 = vld [vmem:[%s13 + $0x1e8] sm:$0xff]
  %v1653 = vld [vmem:[%s13 + $0x1f0] sm:$0xff]
  %v1654 = vld [vmem:[%s13 + $0x1f8] sm:$0xff]
  %v1655 = vld [vmem:[%s13 + $0x200] sm:$0xff]
  %v1656 = vld [vmem:[%s13 + $0x208] sm:$0xff]
  %v1657 = vld [vmem:[%s13 + $0x210] sm:$0xff]
  %v1658 = vld [vmem:[%s13 + $0x218] sm:$0xff]
  %v1659 = vld [vmem:[%s13 + $0x220] sm:$0xff]
  %v1660 = vld [vmem:[%s13 + $0x228] sm:$0xff]
  %v1661 = vld [vmem:[%s13 + $0x230] sm:$0xff]
  %v1662 = vld [vmem:[%s13 + $0x238] sm:$0xff]
  %v1663 = vld [vmem:[%s13 + $0x240] sm:$0xff]
  %v1664 = vld [vmem:[%s13 + $0x248] sm:$0xff]
  %v1665 = vld [vmem:[%s13 + $0x250] sm:$0xff]
  %v1666 = vld [vmem:[%s13 + $0x258] sm:$0xff]
  %v1667 = vld [vmem:[%s13 + $0x260] sm:$0xff]
  %v1668 = vld [vmem:[%s13 + $0x268] sm:$0xff]
  %v1669 = vld [vmem:[%s13 + $0x270] sm:$0xff]
  %v1670 = vld [vmem:[%s13 + $0x278] sm:$0xff]
  %v1671 = vld [vmem:[%s13 + $0x280] sm:$0xff]
  %v1672 = vld [vmem:[%s13 + $0x288] sm:$0xff]
  %v1673 = vld [vmem:[%s13 + $0x290] sm:$0xff]
  %v1674 = vld [vmem:[%s13 + $0x298] sm:$0xff]
  %v1675 = vld [vmem:[%s13 + $0x2a0] sm:$0xff]
  %v1676 = vld [vmem:[%s13 + $0x2a8] sm:$0xff]
  %v1677 = vld [vmem:[%s13 + $0x2b0] sm:$0xff]
  %v1678 = vld [vmem:[%s13 + $0x2b8] sm:$0xff]
  %v1679 = vld [vmem:[%s13 + $0x2c0] sm:$0xff]
  %v1680 = vld [vmem:[%s13 + $0x2c8] sm:$0xff]
  %v1681 = vld [vmem:[%s13 + $0x2d0] sm:$0xff]
  %v1682 = vld [vmem:[%s13 + $0x2d8] sm:$0xff]
  %v1683 = vld [vmem:[%s13 + $0x2e0] sm:$0xff]
  %v1684 = vld [vmem:[%s13 + $0x2e8] sm:$0xff]
  %v1685 = vld [vmem:[%s13 + $0x2f0] sm:$0xff]
  %v1686 = vld [vmem:[%s13 + $0x2f8] sm:$0xff]
  %v1687 = vld [vmem:[%s13 + $0x300] sm:$0xff]
  %v1688 = vld [vmem:[%s13 + $0x308] sm:$0xff]
  %v1689 = vld [vmem:[%s13 + $0x310] sm:$0xff]
  %v1690 = vld [vmem:[%s13 + $0x318] sm:$0xff]
  %v1691 = vld [vmem:[%s13 + $0x320] sm:$0xff]
  %v1692 = vld [vmem:[%s13 + $0x328] sm:$0xff]
  %v1693 = vld [vmem:[%s13 + $0x330] sm:$0xff]
  %v1694 = vld [vmem:[%s13 + $0x338] sm:$0xff]
  %v1695 = vld [vmem:[%s13 + $0x340] sm:$0xff]
  %v1696 = vld [vmem:[%s13 + $0x348] sm:$0xff]
  %v1697 = vld [vmem:[%s13 + $0x350] sm:$0xff]
  %v1698 = vld [vmem:[%s13 + $0x358] sm:$0xff]
  %v1699 = vld [vmem:[%s13 + $0x360] sm:$0xff]
  %v1700 = vld [vmem:[%s13 + $0x368] sm:$0xff]
  %v1701 = vld [vmem:[%s13 + $0x370] sm:$0xff]
  %v1702 = vld [vmem:[%s13 + $0x378] sm:$0xff]
  %v1703 = vld [vmem:[%s13 + $0x380] sm:$0xff]
  %v1704 = vld [vmem:[%s13 + $0x388] sm:$0xff]
  %v1705 = vld [vmem:[%s13 + $0x390] sm:$0xff]
  %v1706 = vld [vmem:[%s13 + $0x398] sm:$0xff]
  %v1707 = vld [vmem:[%s13 + $0x3a0] sm:$0xff]
  %v1708 = vld [vmem:[%s13 + $0x3a8] sm:$0xff]
  %v1709 = vld [vmem:[%s13 + $0x3b0] sm:$0xff]
  %v1710 = vld [vmem:[%s13 + $0x3b8] sm:$0xff]
  %v1711 = vld [vmem:[%s13 + $0x3c0] sm:$0xff]
  %v1712 = vld [vmem:[%s13 + $0x3c8] sm:$0xff]
  %v1713 = vld [vmem:[%s13 + $0x3d0] sm:$0xff]
  %v1714 = vld [vmem:[%s13 + $0x3d8] sm:$0xff]
  %v1715 = vld [vmem:[%s13 + $0x3e0] sm:$0xff]
  %v1716 = vld [vmem:[%s13 + $0x3e8] sm:$0xff]
  %v1717 = vld [vmem:[%s13 + $0x3f0] sm:$0xff]
  %v1718 = vld [vmem:[%s13 + $0x3f8] sm:$0xff]
  %v1719 = vld [vmem:[%s13 + $0x400] sm:$0xff]
  %v1720 = vld [vmem:[%s13 + $0x408] sm:$0xff]
  %v1721 = vld [vmem:[%s13 + $0x410] sm:$0xff]
  %v1722 = vld [vmem:[%s13 + $0x418] sm:$0xff]
  %v1723 = vld [vmem:[%s13 + $0x420] sm:$0xff]
  %v1724 = vld [vmem:[%s13 + $0x428] sm:$0xff]
  %v1725 = vld [vmem:[%s13 + $0x430] sm:$0xff]
  %v1726 = vld [vmem:[%s13 + $0x438] sm:$0xff]
  %v1727 = vld [vmem:[%s13 + $0x440] sm:$0xff]
  %v1728 = vld [vmem:[%s13 + $0x448] sm:$0xff]
  %v1729 = vld [vmem:[%s13 + $0x450] sm:$0xff]
  %v1730 = vld [vmem:[%s13 + $0x458] sm:$0xff]
  %v1731 = vld [vmem:[%s13 + $0x460] sm:$0xff]
  %v1732 = vld [vmem:[%s13 + $0x468] sm:$0xff]
  %v1733 = vld [vmem:[%s13 + $0x470] sm:$0xff]
  %v1734 = vld [vmem:[%s13 + $0x478] sm:$0xff]
  %v1735 = vld [vmem:[%s13 + $0x480] sm:$0xff]
  %v1736 = vld [vmem:[%s13 + $0x488] sm:$0xff]
  %v1737 = vld [vmem:[%s13 + $0x490] sm:$0xff]
  %v1738 = vld [vmem:[%s13 + $0x498] sm:$0xff]
  %v1739 = vld [vmem:[%s13 + $0x4a0] sm:$0xff]
  %v1740 = vld [vmem:[%s13 + $0x4a8] sm:$0xff]
  %v1741 = vld [vmem:[%s13 + $0x4b0] sm:$0xff]
  %v1742 = vld [vmem:[%s13 + $0x4b8] sm:$0xff]
  %v1743 = vld [vmem:[%s13 + $0x4c0] sm:$0xff]
  %v1744 = vld [vmem:[%s13 + $0x4c8] sm:$0xff]
  %v1745 = vld [vmem:[%s13 + $0x4d0] sm:$0xff]
  %v1746 = vld [vmem:[%s13 + $0x4d8] sm:$0xff]
  %v1747 = vld [vmem:[%s13 + $0x4e0] sm:$0xff]
  %v1748 = vld [vmem:[%s13 + $0x4e8] sm:$0xff]
  %v1749 = vld [vmem:[%s13 + $0x4f0] sm:$0xff]
  %v1750 = vld [vmem:[%s13 + $0x4f8] sm:$0xff]
  %v1751 = vld [vmem:[%s13 + $0x500] sm:$0xff]
  %v1752 = vld [vmem:[%s13 + $0x508] sm:$0xff]
  %v1753 = vld [vmem:[%s13 + $0x510] sm:$0xff]
  %v1754 = vld [vmem:[%s13 + $0x518] sm:$0xff]
  %v1755 = vld [vmem:[%s13 + $0x520] sm:$0xff]
  %v1756 = vld [vmem:[%s13 + $0x528] sm:$0xff]
  %v1757 = vld [vmem:[%s13 + $0x530] sm:$0xff]
  %v1758 = vld [vmem:[%s13 + $0x538] sm:$0xff]
  %v1759 = vld [vmem:[%s13 + $0x540] sm:$0xff]
  %v1760 = vld [vmem:[%s13 + $0x548] sm:$0xff]
  %v1761 = vld [vmem:[%s13 + $0x550] sm:$0xff]
  %v1762 = vld [vmem:[%s13 + $0x558] sm:$0xff]
  %v1763 = vld [vmem:[%s13 + $0x560] sm:$0xff]
  %v1764 = vld [vmem:[%s13 + $0x568] sm:$0xff]
  %v1765 = vld [vmem:[%s13 + $0x570] sm:$0xff]
  %v1766 = vld [vmem:[%s13 + $0x578] sm:$0xff]
  %v1767 = vld [vmem:[%s13 + $0x580] sm:$0xff]
  %v1768 = vld [vmem:[%s13 + $0x588] sm:$0xff]
  %v1769 = vld [vmem:[%s13 + $0x590] sm:$0xff]
  %v1770 = vld [vmem:[%s13 + $0x598] sm:$0xff]
  %v1771 = vld [vmem:[%s13 + $0x5a0] sm:$0xff]
  %v1772 = vld [vmem:[%s13 + $0x5a8] sm:$0xff]
  %v1773 = vld [vmem:[%s13 + $0x5b0] sm:$0xff]
  %v1774 = vld [vmem:[%s13 + $0x5b8] sm:$0xff]
  %v1775 = vld [vmem:[%s13 + $0x5c0] sm:$0xff]
  %v1776 = vld [vmem:[%s13 + $0x5c8] sm:$0xff]
  %v1777 = vld [vmem:[%s13 + $0x5d0] sm:$0xff]
  %v1778 = vld [vmem:[%s13 + $0x5d8] sm:$0xff]
  %v1779 = vld [vmem:[%s13 + $0x5e0] sm:$0xff]
  %v1780 = vld [vmem:[%s13 + $0x5e8] sm:$0xff]
  %v1781 = vld [vmem:[%s13 + $0x5f0] sm:$0xff]
  %v1782 = vld [vmem:[%s13 + $0x5f8] sm:$0xff]
  %v1783 = vld [vmem:[%s13 + $0x600] sm:$0xff]
  %v1784 = vld [vmem:[%s13 + $0x608] sm:$0xff]
  %v1785 = vld [vmem:[%s13 + $0x610] sm:$0xff]
  %v1786 = vld [vmem:[%s13 + $0x618] sm:$0xff]
  %v1787 = vld [vmem:[%s13 + $0x620] sm:$0xff]
  %v1788 = vld [vmem:[%s13 + $0x628] sm:$0xff]
  %v1789 = vld [vmem:[%s13 + $0x630] sm:$0xff]
  %v1790 = vld [vmem:[%s13 + $0x638] sm:$0xff]
  %v1791 = vld [vmem:[%s13 + $0x640] sm:$0xff]
  %v1792 = vld [vmem:[%s13 + $0x648] sm:$0xff]
  %v1793 = vld [vmem:[%s13 + $0x650] sm:$0xff]
  %v1794 = vld [vmem:[%s13 + $0x658] sm:$0xff]
  %v1795 = vld [vmem:[%s13 + $0x660] sm:$0xff]
  %v1796 = vld [vmem:[%s13 + $0x668] sm:$0xff]
  %v1797 = vld [vmem:[%s13 + $0x670] sm:$0xff]
  %v1798 = vld [vmem:[%s13 + $0x678] sm:$0xff]
  %v1799 = vld [vmem:[%s13 + $0x680] sm:$0xff]
  %v1800 = vld [vmem:[%s13 + $0x688] sm:$0xff]
  %v1801 = vld [vmem:[%s13 + $0x690] sm:$0xff]
  %v1802 = vld [vmem:[%s13 + $0x698] sm:$0xff]
  %v1803 = vld [vmem:[%s13 + $0x6a0] sm:$0xff]
  %v1804 = vld [vmem:[%s13 + $0x6a8] sm:$0xff]
  %v1805 = vld [vmem:[%s13 + $0x6b0] sm:$0xff]
  %v1806 = vld [vmem:[%s13 + $0x6b8] sm:$0xff]
  %v1807 = vld [vmem:[%s13 + $0x6c0] sm:$0xff]
  %v1808 = vld [vmem:[%s13 + $0x6c8] sm:$0xff]
  %v1809 = vld [vmem:[%s13 + $0x6d0] sm:$0xff]
  %v1810 = vld [vmem:[%s13 + $0x6d8] sm:$0xff]
  %v1811 = vld [vmem:[%s13 + $0x6e0] sm:$0xff]
  %v1812 = vld [vmem:[%s13 + $0x6e8] sm:$0xff]
  %v1813 = vld [vmem:[%s13 + $0x6f0] sm:$0xff]
  %v1814 = vld [vmem:[%s13 + $0x6f8] sm:$0xff]
  %v1815 = vld [vmem:[%s13 + $0x700] sm:$0xff]
  %v1816 = vld [vmem:[%s13 + $0x708] sm:$0xff]
  %v1817 = vld [vmem:[%s13 + $0x710] sm:$0xff]
  %v1818 = vld [vmem:[%s13 + $0x718] sm:$0xff]
  %v1819 = vld [vmem:[%s13 + $0x720] sm:$0xff]
  %v1820 = vld [vmem:[%s13 + $0x728] sm:$0xff]
  %v1821 = vld [vmem:[%s13 + $0x730] sm:$0xff]
  %v1822 = vld [vmem:[%s13 + $0x738] sm:$0xff]
  %v1823 = vld [vmem:[%s13 + $0x740] sm:$0xff]
  %v1824 = vld [vmem:[%s13 + $0x748] sm:$0xff]
  %v1825 = vld [vmem:[%s13 + $0x750] sm:$0xff]
  %v1826 = vld [vmem:[%s13 + $0x758] sm:$0xff]
  %v1827 = vld [vmem:[%s13 + $0x760] sm:$0xff]
  %v1828 = vld [vmem:[%s13 + $0x768] sm:$0xff]
  %v1829 = vld [vmem:[%s13 + $0x770] sm:$0xff]
  %v1830 = vld [vmem:[%s13 + $0x778] sm:$0xff]
  %v1831 = vld [vmem:[%s13 + $0x780] sm:$0xff]
  %v1832 = vld [vmem:[%s13 + $0x788] sm:$0xff]
  %v1833 = vld [vmem:[%s13 + $0x790] sm:$0xff]
  %v1834 = vld [vmem:[%s13 + $0x798] sm:$0xff]
  %v1835 = vld [vmem:[%s13 + $0x7a0] sm:$0xff]
  %v1836 = vld [vmem:[%s13 + $0x7a8] sm:$0xff]
  %v1837 = vld [vmem:[%s13 + $0x7b0] sm:$0xff]
  %v1838 = vld [vmem:[%s13 + $0x7b8] sm:$0xff]
  %v1839 = vld [vmem:[%s13 + $0x7c0] sm:$0xff]
  %v1840 = vld [vmem:[%s13 + $0x7c8] sm:$0xff]
  %v1841 = vld [vmem:[%s13 + $0x7d0] sm:$0xff]
  %v1842 = vld [vmem:[%s13 + $0x7d8] sm:$0xff]
  %v1843 = vld [vmem:[%s13 + $0x7e0] sm:$0xff]
  %v1844 = vld [vmem:[%s13 + $0x7e8] sm:$0xff]
  %v1845 = vld [vmem:[%s13 + $0x7f0] sm:$0xff]
  %v1846 = vld [vmem:[%s13 + $0x7f8] sm:$0xff]
  %v1847 = vld [vmem:[%s13 + $0x800] sm:$0xff]
  %v1848 = vld [vmem:[%s13 + $0x808] sm:$0xff]
  %v1849 = vld [vmem:[%s13 + $0x810] sm:$0xff]
  %v1850 = vld [vmem:[%s13 + $0x818] sm:$0xff]
  %v1851 = vld [vmem:[%s13 + $0x820] sm:$0xff]
  %v1852 = vld [vmem:[%s13 + $0x828] sm:$0xff]
  %v1853 = vld [vmem:[%s13 + $0x830] sm:$0xff]
  %v1854 = vld [vmem:[%s13 + $0x838] sm:$0xff]
  %v1855 = vld [vmem:[%s13 + $0x840] sm:$0xff]
  %v1856 = vld [vmem:[%s13 + $0x848] sm:$0xff]
  %v1857 = vld [vmem:[%s13 + $0x850] sm:$0xff]
  %v1858 = vld [vmem:[%s13 + $0x858] sm:$0xff]
  %v1859 = vld [vmem:[%s13 + $0x860] sm:$0xff]
  %v1860 = vld [vmem:[%s13 + $0x868] sm:$0xff]
  %v1861 = vld [vmem:[%s13 + $0x870] sm:$0xff]
  %v1862 = vld [vmem:[%s13 + $0x878] sm:$0xff]
  %v1863 = vld [vmem:[%s13 + $0x880] sm:$0xff]
  %v1864 = vld [vmem:[%s13 + $0x888] sm:$0xff]
  %v1865 = vld [vmem:[%s13 + $0x890] sm:$0xff]
  %v1866 = vld [vmem:[%s13 + $0x898] sm:$0xff]
  %v1867 = vld [vmem:[%s13 + $0x8a0] sm:$0xff]
  %v1868 = vld [vmem:[%s13 + $0x8a8] sm:$0xff]
  %v1869 = vld [vmem:[%s13 + $0x8b0] sm:$0xff]
  %v1870 = vld [vmem:[%s13 + $0x8b8] sm:$0xff]
  %v1871 = vld [vmem:[%s13 + $0x8c0] sm:$0xff]
  %v1872 = vld [vmem:[%s13 + $0x8c8] sm:$0xff]
  %v1873 = vld [vmem:[%s13 + $0x8d0] sm:$0xff]
  %v1874 = vld [vmem:[%s13 + $0x8d8] sm:$0xff]
  %v1875 = vld [vmem:[%s13 + $0x8e0] sm:$0xff]
  %v1876 = vld [vmem:[%s13 + $0x8e8] sm:$0xff]
  %v1877 = vld [vmem:[%s13 + $0x8f0] sm:$0xff]
  %v1878 = vld [vmem:[%s13 + $0x8f8] sm:$0xff]
  %v2167 = vunpack.c.l.b16 %v1591
  %v2168 = vunpack.c.h.b16 %v1591
  %v2169 = vunpack.c.l.b16 %v1592
  %v2170 = vunpack.c.h.b16 %v1592
  %v2171 = vunpack.c.l.b16 %v1593
  %v2172 = vunpack.c.h.b16 %v1593
  %v2173 = vunpack.c.l.b16 %v1594
  %v2174 = vunpack.c.h.b16 %v1594
  %v2175 = vunpack.c.l.b16 %v1595
  %v2176 = vunpack.c.h.b16 %v1595
  %v2177 = vunpack.c.l.b16 %v1596
  %v2178 = vunpack.c.h.b16 %v1596
  %v2179 = vunpack.c.l.b16 %v1597
  %v2180 = vunpack.c.h.b16 %v1597
  %v2181 = vunpack.c.l.b16 %v1598
  %v2182 = vunpack.c.h.b16 %v1598
  %v2183 = vunpack.c.l.b16 %v1599
  %v2184 = vunpack.c.h.b16 %v1599
  %v2185 = vunpack.c.l.b16 %v1600
  %v2186 = vunpack.c.h.b16 %v1600
  %v2187 = vunpack.c.l.b16 %v1601
  %v2188 = vunpack.c.h.b16 %v1601
  %v2189 = vunpack.c.l.b16 %v1602
  %v2190 = vunpack.c.h.b16 %v1602
  %v2191 = vunpack.c.l.b16 %v1603
  %v2192 = vunpack.c.h.b16 %v1603
  %v2193 = vunpack.c.l.b16 %v1604
  %v2194 = vunpack.c.h.b16 %v1604
  %v2195 = vunpack.c.l.b16 %v1605
  %v2196 = vunpack.c.h.b16 %v1605
  %v2197 = vunpack.c.l.b16 %v1606
  %v2198 = vunpack.c.h.b16 %v1606
  %v2199 = vunpack.c.l.b16 %v1607
  %v2200 = vunpack.c.h.b16 %v1607
  %v2201 = vunpack.c.l.b16 %v1608
  %v2202 = vunpack.c.h.b16 %v1608
  %v2203 = vunpack.c.l.b16 %v1609
  %v2204 = vunpack.c.h.b16 %v1609
  %v2205 = vunpack.c.l.b16 %v1610
  %v2206 = vunpack.c.h.b16 %v1610
  %v2207 = vunpack.c.l.b16 %v1611
  %v2208 = vunpack.c.h.b16 %v1611
  %v2209 = vunpack.c.l.b16 %v1612
  %v2210 = vunpack.c.h.b16 %v1612
  %v2211 = vunpack.c.l.b16 %v1613
  %v2212 = vunpack.c.h.b16 %v1613
  %v2213 = vunpack.c.l.b16 %v1614
  %v2214 = vunpack.c.h.b16 %v1614
  %v2215 = vunpack.c.l.b16 %v1615
  %v2216 = vunpack.c.h.b16 %v1615
  %v2217 = vunpack.c.l.b16 %v1616
  %v2218 = vunpack.c.h.b16 %v1616
  %v2219 = vunpack.c.l.b16 %v1617
  %v2220 = vunpack.c.h.b16 %v1617
  %v2221 = vunpack.c.l.b16 %v1618
  %v2222 = vunpack.c.h.b16 %v1618
  %v2223 = vunpack.c.l.b16 %v1619
  %v2224 = vunpack.c.h.b16 %v1619
  %v2225 = vunpack.c.l.b16 %v1620
  %v2226 = vunpack.c.h.b16 %v1620
  %v2227 = vunpack.c.l.b16 %v1621
  %v2228 = vunpack.c.h.b16 %v1621
  %v2229 = vunpack.c.l.b16 %v1622
  %v2230 = vunpack.c.h.b16 %v1622
  %v2231 = vunpack.c.l.b16 %v1623
  %v2232 = vunpack.c.h.b16 %v1623
  %v2233 = vunpack.c.l.b16 %v1624
  %v2234 = vunpack.c.h.b16 %v1624
  %v2235 = vunpack.c.l.b16 %v1625
  %v2236 = vunpack.c.h.b16 %v1625
  %v2237 = vunpack.c.l.b16 %v1626
  %v2238 = vunpack.c.h.b16 %v1626
  %v2239 = vunpack.c.l.b16 %v1627
  %v2240 = vunpack.c.h.b16 %v1627
  %v2241 = vunpack.c.l.b16 %v1628
  %v2242 = vunpack.c.h.b16 %v1628
  %v2243 = vunpack.c.l.b16 %v1629
  %v2244 = vunpack.c.h.b16 %v1629
  %v2245 = vunpack.c.l.b16 %v1630
  %v2246 = vunpack.c.h.b16 %v1630
  %v2247 = vunpack.c.l.b16 %v1631
  %v2248 = vunpack.c.h.b16 %v1631
  %v2249 = vunpack.c.l.b16 %v1632
  %v2250 = vunpack.c.h.b16 %v1632
  %v2251 = vunpack.c.l.b16 %v1633
  %v2252 = vunpack.c.h.b16 %v1633
  %v2253 = vunpack.c.l.b16 %v1634
  %v2254 = vunpack.c.h.b16 %v1634
  %v2255 = vunpack.c.l.b16 %v1635
  %v2256 = vunpack.c.h.b16 %v1635
  %v2257 = vunpack.c.l.b16 %v1636
  %v2258 = vunpack.c.h.b16 %v1636
  %v2259 = vunpack.c.l.b16 %v1637
  %v2260 = vunpack.c.h.b16 %v1637
  %v2261 = vunpack.c.l.b16 %v1638
  %v2262 = vunpack.c.h.b16 %v1638
  %v2263 = vunpack.c.l.b16 %v1639
  %v2264 = vunpack.c.h.b16 %v1639
  %v2265 = vunpack.c.l.b16 %v1640
  %v2266 = vunpack.c.h.b16 %v1640
  %v2267 = vunpack.c.l.b16 %v1641
  %v2268 = vunpack.c.h.b16 %v1641
  %v2269 = vunpack.c.l.b16 %v1642
  %v2270 = vunpack.c.h.b16 %v1642
  %v2271 = vunpack.c.l.b16 %v1643
  %v2272 = vunpack.c.h.b16 %v1643
  %v2273 = vunpack.c.l.b16 %v1644
  %v2274 = vunpack.c.h.b16 %v1644
  %v2275 = vunpack.c.l.b16 %v1645
  %v2276 = vunpack.c.h.b16 %v1645
  %v2277 = vunpack.c.l.b16 %v1646
  %v2278 = vunpack.c.h.b16 %v1646
  %v2279 = vunpack.c.l.b16 %v1647
  %v2280 = vunpack.c.h.b16 %v1647
  %v2281 = vunpack.c.l.b16 %v1648
  %v2282 = vunpack.c.h.b16 %v1648
  %v2283 = vunpack.c.l.b16 %v1649
  %v2284 = vunpack.c.h.b16 %v1649
  %v2285 = vunpack.c.l.b16 %v1650
  %v2286 = vunpack.c.h.b16 %v1650
  %v2287 = vunpack.c.l.b16 %v1651
  %v2288 = vunpack.c.h.b16 %v1651
  %v2289 = vunpack.c.l.b16 %v1652
  %v2290 = vunpack.c.h.b16 %v1652
  %v2291 = vunpack.c.l.b16 %v1653
  %v2292 = vunpack.c.h.b16 %v1653
  %v2293 = vunpack.c.l.b16 %v1654
  %v2294 = vunpack.c.h.b16 %v1654
  %v2295 = vunpack.c.l.b16 %v1655
  %v2296 = vunpack.c.h.b16 %v1655
  %v2297 = vunpack.c.l.b16 %v1656
  %v2298 = vunpack.c.h.b16 %v1656
  %v2299 = vunpack.c.l.b16 %v1657
  %v2300 = vunpack.c.h.b16 %v1657
  %v2301 = vunpack.c.l.b16 %v1658
  %v2302 = vunpack.c.h.b16 %v1658
  %v2303 = vunpack.c.l.b16 %v1659
  %v2304 = vunpack.c.h.b16 %v1659
  %v2305 = vunpack.c.l.b16 %v1660
  %v2306 = vunpack.c.h.b16 %v1660
  %v2307 = vunpack.c.l.b16 %v1661
  %v2308 = vunpack.c.h.b16 %v1661
  %v2309 = vunpack.c.l.b16 %v1662
  %v2310 = vunpack.c.h.b16 %v1662
  %v2311 = vunpack.c.l.b16 %v1663
  %v2312 = vunpack.c.h.b16 %v1663
  %v2313 = vunpack.c.l.b16 %v1664
  %v2314 = vunpack.c.h.b16 %v1664
  %v2315 = vunpack.c.l.b16 %v1665
  %v2316 = vunpack.c.h.b16 %v1665
  %v2317 = vunpack.c.l.b16 %v1666
  %v2318 = vunpack.c.h.b16 %v1666
  %v2319 = vunpack.c.l.b16 %v1667
  %v2320 = vunpack.c.h.b16 %v1667
  %v2321 = vunpack.c.l.b16 %v1668
  %v2322 = vunpack.c.h.b16 %v1668
  %v2323 = vunpack.c.l.b16 %v1669
  %v2324 = vunpack.c.h.b16 %v1669
  %v2325 = vunpack.c.l.b16 %v1670
  %v2326 = vunpack.c.h.b16 %v1670
  %v2327 = vunpack.c.l.b16 %v1671
  %v2328 = vunpack.c.h.b16 %v1671
  %v2329 = vunpack.c.l.b16 %v1672
  %v2330 = vunpack.c.h.b16 %v1672
  %v2331 = vunpack.c.l.b16 %v1673
  %v2332 = vunpack.c.h.b16 %v1673
  %v2333 = vunpack.c.l.b16 %v1674
  %v2334 = vunpack.c.h.b16 %v1674
  %v2335 = vunpack.c.l.b16 %v1675
  %v2336 = vunpack.c.h.b16 %v1675
  %v2337 = vunpack.c.l.b16 %v1676
  %v2338 = vunpack.c.h.b16 %v1676
  %v2339 = vunpack.c.l.b16 %v1677
  %v2340 = vunpack.c.h.b16 %v1677
  %v2341 = vunpack.c.l.b16 %v1678
  %v2342 = vunpack.c.h.b16 %v1678
  %v2343 = vunpack.c.l.b16 %v1679
  %v2344 = vunpack.c.h.b16 %v1679
  %v2345 = vunpack.c.l.b16 %v1680
  %v2346 = vunpack.c.h.b16 %v1680
  %v2347 = vunpack.c.l.b16 %v1681
  %v2348 = vunpack.c.h.b16 %v1681
  %v2349 = vunpack.c.l.b16 %v1682
  %v2350 = vunpack.c.h.b16 %v1682
  %v2351 = vunpack.c.l.b16 %v1683
  %v2352 = vunpack.c.h.b16 %v1683
  %v2353 = vunpack.c.l.b16 %v1684
  %v2354 = vunpack.c.h.b16 %v1684
  %v2355 = vunpack.c.l.b16 %v1685
  %v2356 = vunpack.c.h.b16 %v1685
  %v2357 = vunpack.c.l.b16 %v1686
  %v2358 = vunpack.c.h.b16 %v1686
  %v2359 = vunpack.c.l.b16 %v1687
  %v2360 = vunpack.c.h.b16 %v1687
  %v2361 = vunpack.c.l.b16 %v1688
  %v2362 = vunpack.c.h.b16 %v1688
  %v2363 = vunpack.c.l.b16 %v1689
  %v2364 = vunpack.c.h.b16 %v1689
  %v2365 = vunpack.c.l.b16 %v1690
  %v2366 = vunpack.c.h.b16 %v1690
  %v2367 = vunpack.c.l.b16 %v1691
  %v2368 = vunpack.c.h.b16 %v1691
  %v2369 = vunpack.c.l.b16 %v1692
  %v2370 = vunpack.c.h.b16 %v1692
  %v2371 = vunpack.c.l.b16 %v1693
  %v2372 = vunpack.c.h.b16 %v1693
  %v2373 = vunpack.c.l.b16 %v1694
  %v2374 = vunpack.c.h.b16 %v1694
  %v2375 = vunpack.c.l.b16 %v1695
  %v2376 = vunpack.c.h.b16 %v1695
  %v2377 = vunpack.c.l.b16 %v1696
  %v2378 = vunpack.c.h.b16 %v1696
  %v2379 = vunpack.c.l.b16 %v1697
  %v2380 = vunpack.c.h.b16 %v1697
  %v2381 = vunpack.c.l.b16 %v1698
  %v2382 = vunpack.c.h.b16 %v1698
  %v2383 = vunpack.c.l.b16 %v1699
  %v2384 = vunpack.c.h.b16 %v1699
  %v2385 = vunpack.c.l.b16 %v1700
  %v2386 = vunpack.c.h.b16 %v1700
  %v2387 = vunpack.c.l.b16 %v1701
  %v2388 = vunpack.c.h.b16 %v1701
  %v2389 = vunpack.c.l.b16 %v1702
  %v2390 = vunpack.c.h.b16 %v1702
  %v2391 = vunpack.c.l.b16 %v1703
  %v2392 = vunpack.c.h.b16 %v1703
  %v2393 = vunpack.c.l.b16 %v1704
  %v2394 = vunpack.c.h.b16 %v1704
  %v2395 = vunpack.c.l.b16 %v1705
  %v2396 = vunpack.c.h.b16 %v1705
  %v2397 = vunpack.c.l.b16 %v1706
  %v2398 = vunpack.c.h.b16 %v1706
  %v2399 = vunpack.c.l.b16 %v1707
  %v2400 = vunpack.c.h.b16 %v1707
  %v2401 = vunpack.c.l.b16 %v1708
  %v2402 = vunpack.c.h.b16 %v1708
  %v2403 = vunpack.c.l.b16 %v1709
  %v2404 = vunpack.c.h.b16 %v1709
  %v2405 = vunpack.c.l.b16 %v1710
  %v2406 = vunpack.c.h.b16 %v1710
  %v2407 = vunpack.c.l.b16 %v1711
  %v2408 = vunpack.c.h.b16 %v1711
  %v2409 = vunpack.c.l.b16 %v1712
  %v2410 = vunpack.c.h.b16 %v1712
  %v2411 = vunpack.c.l.b16 %v1713
  %v2412 = vunpack.c.h.b16 %v1713
  %v2413 = vunpack.c.l.b16 %v1714
  %v2414 = vunpack.c.h.b16 %v1714
  %v2415 = vunpack.c.l.b16 %v1715
  %v2416 = vunpack.c.h.b16 %v1715
  %v2417 = vunpack.c.l.b16 %v1716
  %v2418 = vunpack.c.h.b16 %v1716
  %v2419 = vunpack.c.l.b16 %v1717
  %v2420 = vunpack.c.h.b16 %v1717
  %v2421 = vunpack.c.l.b16 %v1718
  %v2422 = vunpack.c.h.b16 %v1718
  %v2423 = vunpack.c.l.b16 %v1719
  %v2424 = vunpack.c.h.b16 %v1719
  %v2425 = vunpack.c.l.b16 %v1720
  %v2426 = vunpack.c.h.b16 %v1720
  %v2427 = vunpack.c.l.b16 %v1721
  %v2428 = vunpack.c.h.b16 %v1721
  %v2429 = vunpack.c.l.b16 %v1722
  %v2430 = vunpack.c.h.b16 %v1722
  %v2431 = vunpack.c.l.b16 %v1723
  %v2432 = vunpack.c.h.b16 %v1723
  %v2433 = vunpack.c.l.b16 %v1724
  %v2434 = vunpack.c.h.b16 %v1724
  %v2435 = vunpack.c.l.b16 %v1725
  %v2436 = vunpack.c.h.b16 %v1725
  %v2437 = vunpack.c.l.b16 %v1726
  %v2438 = vunpack.c.h.b16 %v1726
  %v2439 = vunpack.c.l.b16 %v1727
  %v2440 = vunpack.c.h.b16 %v1727
  %v2441 = vunpack.c.l.b16 %v1728
  %v2442 = vunpack.c.h.b16 %v1728
  %v2443 = vunpack.c.l.b16 %v1729
  %v2444 = vunpack.c.h.b16 %v1729
  %v2445 = vunpack.c.l.b16 %v1730
  %v2446 = vunpack.c.h.b16 %v1730
  %v2447 = vunpack.c.l.b16 %v1731
  %v2448 = vunpack.c.h.b16 %v1731
  %v2449 = vunpack.c.l.b16 %v1732
  %v2450 = vunpack.c.h.b16 %v1732
  %v2451 = vunpack.c.l.b16 %v1733
  %v2452 = vunpack.c.h.b16 %v1733
  %v2453 = vunpack.c.l.b16 %v1734
  %v2454 = vunpack.c.h.b16 %v1734
  %v2455 = vunpack.c.l.b16 %v1735
  %v2456 = vunpack.c.h.b16 %v1735
  %v2457 = vunpack.c.l.b16 %v1736
  %v2458 = vunpack.c.h.b16 %v1736
  %v2459 = vunpack.c.l.b16 %v1737
  %v2460 = vunpack.c.h.b16 %v1737
  %v2461 = vunpack.c.l.b16 %v1738
  %v2462 = vunpack.c.h.b16 %v1738
  %v2463 = vunpack.c.l.b16 %v1739
  %v2464 = vunpack.c.h.b16 %v1739
  %v2465 = vunpack.c.l.b16 %v1740
  %v2466 = vunpack.c.h.b16 %v1740
  %v2467 = vunpack.c.l.b16 %v1741
  %v2468 = vunpack.c.h.b16 %v1741
  %v2469 = vunpack.c.l.b16 %v1742
  %v2470 = vunpack.c.h.b16 %v1742
  %v2471 = vunpack.c.l.b16 %v1743
  %v2472 = vunpack.c.h.b16 %v1743
  %v2473 = vunpack.c.l.b16 %v1744
  %v2474 = vunpack.c.h.b16 %v1744
  %v2475 = vunpack.c.l.b16 %v1745
  %v2476 = vunpack.c.h.b16 %v1745
  %v2477 = vunpack.c.l.b16 %v1746
  %v2478 = vunpack.c.h.b16 %v1746
  %v2479 = vunpack.c.l.b16 %v1747
  %v2480 = vunpack.c.h.b16 %v1747
  %v2481 = vunpack.c.l.b16 %v1748
  %v2482 = vunpack.c.h.b16 %v1748
  %v2483 = vunpack.c.l.b16 %v1749
  %v2484 = vunpack.c.h.b16 %v1749
  %v2485 = vunpack.c.l.b16 %v1750
  %v2486 = vunpack.c.h.b16 %v1750
  %v2487 = vunpack.c.l.b16 %v1751
  %v2488 = vunpack.c.h.b16 %v1751
  %v2489 = vunpack.c.l.b16 %v1752
  %v2490 = vunpack.c.h.b16 %v1752
  %v2491 = vunpack.c.l.b16 %v1753
  %v2492 = vunpack.c.h.b16 %v1753
  %v2493 = vunpack.c.l.b16 %v1754
  %v2494 = vunpack.c.h.b16 %v1754
  %v2495 = vunpack.c.l.b16 %v1755
  %v2496 = vunpack.c.h.b16 %v1755
  %v2497 = vunpack.c.l.b16 %v1756
  %v2498 = vunpack.c.h.b16 %v1756
  %v2499 = vunpack.c.l.b16 %v1757
  %v2500 = vunpack.c.h.b16 %v1757
  %v2501 = vunpack.c.l.b16 %v1758
  %v2502 = vunpack.c.h.b16 %v1758
  %v2503 = vunpack.c.l.b16 %v1759
  %v2504 = vunpack.c.h.b16 %v1759
  %v2505 = vunpack.c.l.b16 %v1760
  %v2506 = vunpack.c.h.b16 %v1760
  %v2507 = vunpack.c.l.b16 %v1761
  %v2508 = vunpack.c.h.b16 %v1761
  %v2509 = vunpack.c.l.b16 %v1762
  %v2510 = vunpack.c.h.b16 %v1762
  %v2511 = vunpack.c.l.b16 %v1763
  %v2512 = vunpack.c.h.b16 %v1763
  %v2513 = vunpack.c.l.b16 %v1764
  %v2514 = vunpack.c.h.b16 %v1764
  %v2515 = vunpack.c.l.b16 %v1765
  %v2516 = vunpack.c.h.b16 %v1765
  %v2517 = vunpack.c.l.b16 %v1766
  %v2518 = vunpack.c.h.b16 %v1766
  %v2519 = vunpack.c.l.b16 %v1767
  %v2520 = vunpack.c.h.b16 %v1767
  %v2521 = vunpack.c.l.b16 %v1768
  %v2522 = vunpack.c.h.b16 %v1768
  %v2523 = vunpack.c.l.b16 %v1769
  %v2524 = vunpack.c.h.b16 %v1769
  %v2525 = vunpack.c.l.b16 %v1770
  %v2526 = vunpack.c.h.b16 %v1770
  %v2527 = vunpack.c.l.b16 %v1771
  %v2528 = vunpack.c.h.b16 %v1771
  %v2529 = vunpack.c.l.b16 %v1772
  %v2530 = vunpack.c.h.b16 %v1772
  %v2531 = vunpack.c.l.b16 %v1773
  %v2532 = vunpack.c.h.b16 %v1773
  %v2533 = vunpack.c.l.b16 %v1774
  %v2534 = vunpack.c.h.b16 %v1774
  %v2535 = vunpack.c.l.b16 %v1775
  %v2536 = vunpack.c.h.b16 %v1775
  %v2537 = vunpack.c.l.b16 %v1776
  %v2538 = vunpack.c.h.b16 %v1776
  %v2539 = vunpack.c.l.b16 %v1777
  %v2540 = vunpack.c.h.b16 %v1777
  %v2541 = vunpack.c.l.b16 %v1778
  %v2542 = vunpack.c.h.b16 %v1778
  %v2543 = vunpack.c.l.b16 %v1779
  %v2544 = vunpack.c.h.b16 %v1779
  %v2545 = vunpack.c.l.b16 %v1780
  %v2546 = vunpack.c.h.b16 %v1780
  %v2547 = vunpack.c.l.b16 %v1781
  %v2548 = vunpack.c.h.b16 %v1781
  %v2549 = vunpack.c.l.b16 %v1782
  %v2550 = vunpack.c.h.b16 %v1782
  %v2551 = vunpack.c.l.b16 %v1783
  %v2552 = vunpack.c.h.b16 %v1783
  %v2553 = vunpack.c.l.b16 %v1784
  %v2554 = vunpack.c.h.b16 %v1784
  %v2555 = vunpack.c.l.b16 %v1785
  %v2556 = vunpack.c.h.b16 %v1785
  %v2557 = vunpack.c.l.b16 %v1786
  %v2558 = vunpack.c.h.b16 %v1786
  %v2559 = vunpack.c.l.b16 %v1787
  %v2560 = vunpack.c.h.b16 %v1787
  %v2561 = vunpack.c.l.b16 %v1788
  %v2562 = vunpack.c.h.b16 %v1788
  %v2563 = vunpack.c.l.b16 %v1789
  %v2564 = vunpack.c.h.b16 %v1789
  %v2565 = vunpack.c.l.b16 %v1790
  %v2566 = vunpack.c.h.b16 %v1790
  %v2567 = vunpack.c.l.b16 %v1791
  %v2568 = vunpack.c.h.b16 %v1791
  %v2569 = vunpack.c.l.b16 %v1792
  %v2570 = vunpack.c.h.b16 %v1792
  %v2571 = vunpack.c.l.b16 %v1793
  %v2572 = vunpack.c.h.b16 %v1793
  %v2573 = vunpack.c.l.b16 %v1794
  %v2574 = vunpack.c.h.b16 %v1794
  %v2575 = vunpack.c.l.b16 %v1795
  %v2576 = vunpack.c.h.b16 %v1795
  %v2577 = vunpack.c.l.b16 %v1796
  %v2578 = vunpack.c.h.b16 %v1796
  %v2579 = vunpack.c.l.b16 %v1797
  %v2580 = vunpack.c.h.b16 %v1797
  %v2581 = vunpack.c.l.b16 %v1798
  %v2582 = vunpack.c.h.b16 %v1798
  %v2583 = vunpack.c.l.b16 %v1799
  %v2584 = vunpack.c.h.b16 %v1799
  %v2585 = vunpack.c.l.b16 %v1800
  %v2586 = vunpack.c.h.b16 %v1800
  %v2587 = vunpack.c.l.b16 %v1801
  %v2588 = vunpack.c.h.b16 %v1801
  %v2589 = vunpack.c.l.b16 %v1802
  %v2590 = vunpack.c.h.b16 %v1802
  %v2591 = vunpack.c.l.b16 %v1803
  %v2592 = vunpack.c.h.b16 %v1803
  %v2593 = vunpack.c.l.b16 %v1804
  %v2594 = vunpack.c.h.b16 %v1804
  %v2595 = vunpack.c.l.b16 %v1805
  %v2596 = vunpack.c.h.b16 %v1805
  %v2597 = vunpack.c.l.b16 %v1806
  %v2598 = vunpack.c.h.b16 %v1806
  %v2599 = vunpack.c.l.b16 %v1807
  %v2600 = vunpack.c.h.b16 %v1807
  %v2601 = vunpack.c.l.b16 %v1808
  %v2602 = vunpack.c.h.b16 %v1808
  %v2603 = vunpack.c.l.b16 %v1809
  %v2604 = vunpack.c.h.b16 %v1809
  %v2605 = vunpack.c.l.b16 %v1810
  %v2606 = vunpack.c.h.b16 %v1810
  %v2607 = vunpack.c.l.b16 %v1811
  %v2608 = vunpack.c.h.b16 %v1811
  %v2609 = vunpack.c.l.b16 %v1812
  %v2610 = vunpack.c.h.b16 %v1812
  %v2611 = vunpack.c.l.b16 %v1813
  %v2612 = vunpack.c.h.b16 %v1813
  %v2613 = vunpack.c.l.b16 %v1814
  %v2614 = vunpack.c.h.b16 %v1814
  %v2615 = vunpack.c.l.b16 %v1815
  %v2616 = vunpack.c.h.b16 %v1815
  %v2617 = vunpack.c.l.b16 %v1816
  %v2618 = vunpack.c.h.b16 %v1816
  %v2619 = vunpack.c.l.b16 %v1817
  %v2620 = vunpack.c.h.b16 %v1817
  %v2621 = vunpack.c.l.b16 %v1818
  %v2622 = vunpack.c.h.b16 %v1818
  %v2623 = vunpack.c.l.b16 %v1819
  %v2624 = vunpack.c.h.b16 %v1819
  %v2625 = vunpack.c.l.b16 %v1820
  %v2626 = vunpack.c.h.b16 %v1820
  %v2627 = vunpack.c.l.b16 %v1821
  %v2628 = vunpack.c.h.b16 %v1821
  %v2629 = vunpack.c.l.b16 %v1822
  %v2630 = vunpack.c.h.b16 %v1822
  %v2631 = vunpack.c.l.b16 %v1823
  %v2632 = vunpack.c.h.b16 %v1823
  %v2633 = vunpack.c.l.b16 %v1824
  %v2634 = vunpack.c.h.b16 %v1824
  %v2635 = vunpack.c.l.b16 %v1825
  %v2636 = vunpack.c.h.b16 %v1825
  %v2637 = vunpack.c.l.b16 %v1826
  %v2638 = vunpack.c.h.b16 %v1826
  %v2639 = vunpack.c.l.b16 %v1827
  %v2640 = vunpack.c.h.b16 %v1827
  %v2641 = vunpack.c.l.b16 %v1828
  %v2642 = vunpack.c.h.b16 %v1828
  %v2643 = vunpack.c.l.b16 %v1829
  %v2644 = vunpack.c.h.b16 %v1829
  %v2645 = vunpack.c.l.b16 %v1830
  %v2646 = vunpack.c.h.b16 %v1830
  %v2647 = vunpack.c.l.b16 %v1831
  %v2648 = vunpack.c.h.b16 %v1831
  %v2649 = vunpack.c.l.b16 %v1832
  %v2650 = vunpack.c.h.b16 %v1832
  %v2651 = vunpack.c.l.b16 %v1833
  %v2652 = vunpack.c.h.b16 %v1833
  %v2653 = vunpack.c.l.b16 %v1834
  %v2654 = vunpack.c.h.b16 %v1834
  %v2655 = vunpack.c.l.b16 %v1835
  %v2656 = vunpack.c.h.b16 %v1835
  %v2657 = vunpack.c.l.b16 %v1836
  %v2658 = vunpack.c.h.b16 %v1836
  %v2659 = vunpack.c.l.b16 %v1837
  %v2660 = vunpack.c.h.b16 %v1837
  %v2661 = vunpack.c.l.b16 %v1838
  %v2662 = vunpack.c.h.b16 %v1838
  %v2663 = vunpack.c.l.b16 %v1839
  %v2664 = vunpack.c.h.b16 %v1839
  %v2665 = vunpack.c.l.b16 %v1840
  %v2666 = vunpack.c.h.b16 %v1840
  %v2667 = vunpack.c.l.b16 %v1841
  %v2668 = vunpack.c.h.b16 %v1841
  %v2669 = vunpack.c.l.b16 %v1842
  %v2670 = vunpack.c.h.b16 %v1842
  %v2671 = vunpack.c.l.b16 %v1843
  %v2672 = vunpack.c.h.b16 %v1843
  %v2673 = vunpack.c.l.b16 %v1844
  %v2674 = vunpack.c.h.b16 %v1844
  %v2675 = vunpack.c.l.b16 %v1845
  %v2676 = vunpack.c.h.b16 %v1845
  %v2677 = vunpack.c.l.b16 %v1846
  %v2678 = vunpack.c.h.b16 %v1846
  %v2679 = vunpack.c.l.b16 %v1847
  %v2680 = vunpack.c.h.b16 %v1847
  %v2681 = vunpack.c.l.b16 %v1848
  %v2682 = vunpack.c.h.b16 %v1848
  %v2683 = vunpack.c.l.b16 %v1849
  %v2684 = vunpack.c.h.b16 %v1849
  %v2685 = vunpack.c.l.b16 %v1850
  %v2686 = vunpack.c.h.b16 %v1850
  %v2687 = vunpack.c.l.b16 %v1851
  %v2688 = vunpack.c.h.b16 %v1851
  %v2689 = vunpack.c.l.b16 %v1852
  %v2690 = vunpack.c.h.b16 %v1852
  %v2691 = vunpack.c.l.b16 %v1853
  %v2692 = vunpack.c.h.b16 %v1853
  %v2693 = vunpack.c.l.b16 %v1854
  %v2694 = vunpack.c.h.b16 %v1854
  %v2695 = vunpack.c.l.b16 %v1855
  %v2696 = vunpack.c.h.b16 %v1855
  %v2697 = vunpack.c.l.b16 %v1856
  %v2698 = vunpack.c.h.b16 %v1856
  %v2699 = vunpack.c.l.b16 %v1857
  %v2700 = vunpack.c.h.b16 %v1857
  %v2701 = vunpack.c.l.b16 %v1858
  %v2702 = vunpack.c.h.b16 %v1858
  %v2703 = vunpack.c.l.b16 %v1859
  %v2704 = vunpack.c.h.b16 %v1859
  %v2705 = vunpack.c.l.b16 %v1860
  %v2706 = vunpack.c.h.b16 %v1860
  %v2707 = vunpack.c.l.b16 %v1861
  %v2708 = vunpack.c.h.b16 %v1861
  %v2709 = vunpack.c.l.b16 %v1862
  %v2710 = vunpack.c.h.b16 %v1862
  %v2711 = vunpack.c.l.b16 %v1863
  %v2712 = vunpack.c.h.b16 %v1863
  %v2713 = vunpack.c.l.b16 %v1864
  %v2714 = vunpack.c.h.b16 %v1864
  %v2715 = vunpack.c.l.b16 %v1865
  %v2716 = vunpack.c.h.b16 %v1865
  %v2717 = vunpack.c.l.b16 %v1866
  %v2718 = vunpack.c.h.b16 %v1866
  %v2719 = vunpack.c.l.b16 %v1867
  %v2720 = vunpack.c.h.b16 %v1867
  %v2721 = vunpack.c.l.b16 %v1868
  %v2722 = vunpack.c.h.b16 %v1868
  %v2723 = vunpack.c.l.b16 %v1869
  %v2724 = vunpack.c.h.b16 %v1869
  %v2725 = vunpack.c.l.b16 %v1870
  %v2726 = vunpack.c.h.b16 %v1870
  %v2727 = vunpack.c.l.b16 %v1871
  %v2728 = vunpack.c.h.b16 %v1871
  %v2729 = vunpack.c.l.b16 %v1872
  %v2730 = vunpack.c.h.b16 %v1872
  %v2731 = vunpack.c.l.b16 %v1873
  %v2732 = vunpack.c.h.b16 %v1873
  %v2733 = vunpack.c.l.b16 %v1874
  %v2734 = vunpack.c.h.b16 %v1874
  %v2735 = vunpack.c.l.b16 %v1875
  %v2736 = vunpack.c.h.b16 %v1875
  %v2737 = vunpack.c.l.b16 %v1876
  %v2738 = vunpack.c.h.b16 %v1876
  %v2739 = vunpack.c.l.b16 %v1877
  %v2740 = vunpack.c.h.b16 %v1877
  %v2741 = vunpack.c.l.b16 %v1878
  %v2742 = vunpack.c.h.b16 %v1878
  %v2743 = vpack.c.b16 %v2173, %v2167
  %v2744 = vpack.c.b16 %v2174, %v2168
  %v2745 = vpack.c.b16 %v2175, %v2169
  %v2746 = vpack.c.b16 %v2176, %v2170
  %v2747 = vpack.c.b16 %v2177, %v2171
  %v2748 = vpack.c.b16 %v2178, %v2172
  %v2749 = vpack.c.b16 %v2185, %v2179
  %v2750 = vpack.c.b16 %v2186, %v2180
  %v2751 = vpack.c.b16 %v2187, %v2181
  %v2752 = vpack.c.b16 %v2188, %v2182
  %v2753 = vpack.c.b16 %v2189, %v2183
  %v2754 = vpack.c.b16 %v2190, %v2184
  %v2755 = vpack.c.b16 %v2197, %v2191
  %v2756 = vpack.c.b16 %v2198, %v2192
  %v2757 = vpack.c.b16 %v2199, %v2193
  %v2758 = vpack.c.b16 %v2200, %v2194
  %v2759 = vpack.c.b16 %v2201, %v2195
  %v2760 = vpack.c.b16 %v2202, %v2196
  %v2761 = vpack.c.b16 %v2209, %v2203
  %v2762 = vpack.c.b16 %v2210, %v2204
  %v2763 = vpack.c.b16 %v2211, %v2205
  %v2764 = vpack.c.b16 %v2212, %v2206
  %v2765 = vpack.c.b16 %v2213, %v2207
  %v2766 = vpack.c.b16 %v2214, %v2208
  %v2767 = vpack.c.b16 %v2221, %v2215
  %v2768 = vpack.c.b16 %v2222, %v2216
  %v2769 = vpack.c.b16 %v2223, %v2217
  %v2770 = vpack.c.b16 %v2224, %v2218
  %v2771 = vpack.c.b16 %v2225, %v2219
  %v2772 = vpack.c.b16 %v2226, %v2220
  %v2773 = vpack.c.b16 %v2233, %v2227
  %v2774 = vpack.c.b16 %v2234, %v2228
  %v2775 = vpack.c.b16 %v2235, %v2229
  %v2776 = vpack.c.b16 %v2236, %v2230
  %v2777 = vpack.c.b16 %v2237, %v2231
  %v2778 = vpack.c.b16 %v2238, %v2232
  %v2779 = vpack.c.b16 %v2245, %v2239
  %v2780 = vpack.c.b16 %v2246, %v2240
  %v2781 = vpack.c.b16 %v2247, %v2241
  %v2782 = vpack.c.b16 %v2248, %v2242
  %v2783 = vpack.c.b16 %v2249, %v2243
  %v2784 = vpack.c.b16 %v2250, %v2244
  %v2785 = vpack.c.b16 %v2257, %v2251
  %v2786 = vpack.c.b16 %v2258, %v2252
  %v2787 = vpack.c.b16 %v2259, %v2253
  %v2788 = vpack.c.b16 %v2260, %v2254
  %v2789 = vpack.c.b16 %v2261, %v2255
  %v2790 = vpack.c.b16 %v2262, %v2256
  %v2791 = vpack.c.b16 %v2269, %v2263
  %v2792 = vpack.c.b16 %v2270, %v2264
  %v2793 = vpack.c.b16 %v2271, %v2265
  %v2794 = vpack.c.b16 %v2272, %v2266
  %v2795 = vpack.c.b16 %v2273, %v2267
  %v2796 = vpack.c.b16 %v2274, %v2268
  %v2797 = vpack.c.b16 %v2281, %v2275
  %v2798 = vpack.c.b16 %v2282, %v2276
  %v2799 = vpack.c.b16 %v2283, %v2277
  %v2800 = vpack.c.b16 %v2284, %v2278
  %v2801 = vpack.c.b16 %v2285, %v2279
  %v2802 = vpack.c.b16 %v2286, %v2280
  %v2803 = vpack.c.b16 %v2293, %v2287
  %v2804 = vpack.c.b16 %v2294, %v2288
  %v2805 = vpack.c.b16 %v2295, %v2289
  %v2806 = vpack.c.b16 %v2296, %v2290
  %v2807 = vpack.c.b16 %v2297, %v2291
  %v2808 = vpack.c.b16 %v2298, %v2292
  %v2809 = vpack.c.b16 %v2305, %v2299
  %v2810 = vpack.c.b16 %v2306, %v2300
  %v2811 = vpack.c.b16 %v2307, %v2301
  %v2812 = vpack.c.b16 %v2308, %v2302
  %v2813 = vpack.c.b16 %v2309, %v2303
  %v2814 = vpack.c.b16 %v2310, %v2304
  %v2815 = vpack.c.b16 %v2317, %v2311
  %v2816 = vpack.c.b16 %v2318, %v2312
  %v2817 = vpack.c.b16 %v2319, %v2313
  %v2818 = vpack.c.b16 %v2320, %v2314
  %v2819 = vpack.c.b16 %v2321, %v2315
  %v2820 = vpack.c.b16 %v2322, %v2316
  %v2821 = vpack.c.b16 %v2329, %v2323
  %v2822 = vpack.c.b16 %v2330, %v2324
  %v2823 = vpack.c.b16 %v2331, %v2325
  %v2824 = vpack.c.b16 %v2332, %v2326
  %v2825 = vpack.c.b16 %v2333, %v2327
  %v2826 = vpack.c.b16 %v2334, %v2328
  %v2827 = vpack.c.b16 %v2341, %v2335
  %v2828 = vpack.c.b16 %v2342, %v2336
  %v2829 = vpack.c.b16 %v2343, %v2337
  %v2830 = vpack.c.b16 %v2344, %v2338
  %v2831 = vpack.c.b16 %v2345, %v2339
  %v2832 = vpack.c.b16 %v2346, %v2340
  %v2833 = vpack.c.b16 %v2353, %v2347
  %v2834 = vpack.c.b16 %v2354, %v2348
  %v2835 = vpack.c.b16 %v2355, %v2349
  %v2836 = vpack.c.b16 %v2356, %v2350
  %v2837 = vpack.c.b16 %v2357, %v2351
  %v2838 = vpack.c.b16 %v2358, %v2352
  %v2839 = vpack.c.b16 %v2365, %v2359
  %v2840 = vpack.c.b16 %v2366, %v2360
  %v2841 = vpack.c.b16 %v2367, %v2361
  %v2842 = vpack.c.b16 %v2368, %v2362
  %v2843 = vpack.c.b16 %v2369, %v2363
  %v2844 = vpack.c.b16 %v2370, %v2364
  %v2845 = vpack.c.b16 %v2377, %v2371
  %v2846 = vpack.c.b16 %v2378, %v2372
  %v2847 = vpack.c.b16 %v2379, %v2373
  %v2848 = vpack.c.b16 %v2380, %v2374
  %v2849 = vpack.c.b16 %v2381, %v2375
  %v2850 = vpack.c.b16 %v2382, %v2376
  %v2851 = vpack.c.b16 %v2389, %v2383
  %v2852 = vpack.c.b16 %v2390, %v2384
  %v2853 = vpack.c.b16 %v2391, %v2385
  %v2854 = vpack.c.b16 %v2392, %v2386
  %v2855 = vpack.c.b16 %v2393, %v2387
  %v2856 = vpack.c.b16 %v2394, %v2388
  %v2857 = vpack.c.b16 %v2401, %v2395
  %v2858 = vpack.c.b16 %v2402, %v2396
  %v2859 = vpack.c.b16 %v2403, %v2397
  %v2860 = vpack.c.b16 %v2404, %v2398
  %v2861 = vpack.c.b16 %v2405, %v2399
  %v2862 = vpack.c.b16 %v2406, %v2400
  %v2863 = vpack.c.b16 %v2413, %v2407
  %v2864 = vpack.c.b16 %v2414, %v2408
  %v2865 = vpack.c.b16 %v2415, %v2409
  %v2866 = vpack.c.b16 %v2416, %v2410
  %v2867 = vpack.c.b16 %v2417, %v2411
  %v2868 = vpack.c.b16 %v2418, %v2412
  %v2869 = vpack.c.b16 %v2425, %v2419
  %v2870 = vpack.c.b16 %v2426, %v2420
  %v2871 = vpack.c.b16 %v2427, %v2421
  %v2872 = vpack.c.b16 %v2428, %v2422
  %v2873 = vpack.c.b16 %v2429, %v2423
  %v2874 = vpack.c.b16 %v2430, %v2424
  %v2875 = vpack.c.b16 %v2437, %v2431
  %v2876 = vpack.c.b16 %v2438, %v2432
  %v2877 = vpack.c.b16 %v2439, %v2433
  %v2878 = vpack.c.b16 %v2440, %v2434
  %v2879 = vpack.c.b16 %v2441, %v2435
  %v2880 = vpack.c.b16 %v2442, %v2436
  %v2881 = vpack.c.b16 %v2449, %v2443
  %v2882 = vpack.c.b16 %v2450, %v2444
  %v2883 = vpack.c.b16 %v2451, %v2445
  %v2884 = vpack.c.b16 %v2452, %v2446
  %v2885 = vpack.c.b16 %v2453, %v2447
  %v2886 = vpack.c.b16 %v2454, %v2448
  %v2887 = vpack.c.b16 %v2461, %v2455
  %v2888 = vpack.c.b16 %v2462, %v2456
  %v2889 = vpack.c.b16 %v2463, %v2457
  %v2890 = vpack.c.b16 %v2464, %v2458
  %v2891 = vpack.c.b16 %v2465, %v2459
  %v2892 = vpack.c.b16 %v2466, %v2460
  %v2893 = vpack.c.b16 %v2473, %v2467
  %v2894 = vpack.c.b16 %v2474, %v2468
  %v2895 = vpack.c.b16 %v2475, %v2469
  %v2896 = vpack.c.b16 %v2476, %v2470
  %v2897 = vpack.c.b16 %v2477, %v2471
  %v2898 = vpack.c.b16 %v2478, %v2472
  %v2899 = vpack.c.b16 %v2485, %v2479
  %v2900 = vpack.c.b16 %v2486, %v2480
  %v2901 = vpack.c.b16 %v2487, %v2481
  %v2902 = vpack.c.b16 %v2488, %v2482
  %v2903 = vpack.c.b16 %v2489, %v2483
  %v2904 = vpack.c.b16 %v2490, %v2484
  %v2905 = vpack.c.b16 %v2497, %v2491
  %v2906 = vpack.c.b16 %v2498, %v2492
  %v2907 = vpack.c.b16 %v2499, %v2493
  %v2908 = vpack.c.b16 %v2500, %v2494
  %v2909 = vpack.c.b16 %v2501, %v2495
  %v2910 = vpack.c.b16 %v2502, %v2496
  %v2911 = vpack.c.b16 %v2509, %v2503
  %v2912 = vpack.c.b16 %v2510, %v2504
  %v2913 = vpack.c.b16 %v2511, %v2505
  %v2914 = vpack.c.b16 %v2512, %v2506
  %v2915 = vpack.c.b16 %v2513, %v2507
  %v2916 = vpack.c.b16 %v2514, %v2508
  %v2917 = vpack.c.b16 %v2521, %v2515
  %v2918 = vpack.c.b16 %v2522, %v2516
  %v2919 = vpack.c.b16 %v2523, %v2517
  %v2920 = vpack.c.b16 %v2524, %v2518
  %v2921 = vpack.c.b16 %v2525, %v2519
  %v2922 = vpack.c.b16 %v2526, %v2520
  %v2923 = vpack.c.b16 %v2533, %v2527
  %v2924 = vpack.c.b16 %v2534, %v2528
  %v2925 = vpack.c.b16 %v2535, %v2529
  %v2926 = vpack.c.b16 %v2536, %v2530
  %v2927 = vpack.c.b16 %v2537, %v2531
  %v2928 = vpack.c.b16 %v2538, %v2532
  %v2929 = vpack.c.b16 %v2545, %v2539
  %v2930 = vpack.c.b16 %v2546, %v2540
  %v2931 = vpack.c.b16 %v2547, %v2541
  %v2932 = vpack.c.b16 %v2548, %v2542
  %v2933 = vpack.c.b16 %v2549, %v2543
  %v2934 = vpack.c.b16 %v2550, %v2544
  %v2935 = vpack.c.b16 %v2557, %v2551
  %v2936 = vpack.c.b16 %v2558, %v2552
  %v2937 = vpack.c.b16 %v2559, %v2553
  %v2938 = vpack.c.b16 %v2560, %v2554
  %v2939 = vpack.c.b16 %v2561, %v2555
  %v2940 = vpack.c.b16 %v2562, %v2556
  %v2941 = vpack.c.b16 %v2569, %v2563
  %v2942 = vpack.c.b16 %v2570, %v2564
  %v2943 = vpack.c.b16 %v2571, %v2565
  %v2944 = vpack.c.b16 %v2572, %v2566
  %v2945 = vpack.c.b16 %v2573, %v2567
  %v2946 = vpack.c.b16 %v2574, %v2568
  %v2947 = vpack.c.b16 %v2581, %v2575
  %v2948 = vpack.c.b16 %v2582, %v2576
  %v2949 = vpack.c.b16 %v2583, %v2577
  %v2950 = vpack.c.b16 %v2584, %v2578
  %v2951 = vpack.c.b16 %v2585, %v2579
  %v2952 = vpack.c.b16 %v2586, %v2580
  %v2953 = vpack.c.b16 %v2593, %v2587
  %v2954 = vpack.c.b16 %v2594, %v2588
  %v2955 = vpack.c.b16 %v2595, %v2589
  %v2956 = vpack.c.b16 %v2596, %v2590
  %v2957 = vpack.c.b16 %v2597, %v2591
  %v2958 = vpack.c.b16 %v2598, %v2592
  %v2959 = vpack.c.b16 %v2605, %v2599
  %v2960 = vpack.c.b16 %v2606, %v2600
  %v2961 = vpack.c.b16 %v2607, %v2601
  %v2962 = vpack.c.b16 %v2608, %v2602
  %v2963 = vpack.c.b16 %v2609, %v2603
  %v2964 = vpack.c.b16 %v2610, %v2604
  %v2965 = vpack.c.b16 %v2617, %v2611
  %v2966 = vpack.c.b16 %v2618, %v2612
  %v2967 = vpack.c.b16 %v2619, %v2613
  %v2968 = vpack.c.b16 %v2620, %v2614
  %v2969 = vpack.c.b16 %v2621, %v2615
  %v2970 = vpack.c.b16 %v2622, %v2616
  %v2971 = vpack.c.b16 %v2629, %v2623
  %v2972 = vpack.c.b16 %v2630, %v2624
  %v2973 = vpack.c.b16 %v2631, %v2625
  %v2974 = vpack.c.b16 %v2632, %v2626
  %v2975 = vpack.c.b16 %v2633, %v2627
  %v2976 = vpack.c.b16 %v2634, %v2628
  %v2977 = vpack.c.b16 %v2641, %v2635
  %v2978 = vpack.c.b16 %v2642, %v2636
  %v2979 = vpack.c.b16 %v2643, %v2637
  %v2980 = vpack.c.b16 %v2644, %v2638
  %v2981 = vpack.c.b16 %v2645, %v2639
  %v2982 = vpack.c.b16 %v2646, %v2640
  %v2983 = vpack.c.b16 %v2653, %v2647
  %v2984 = vpack.c.b16 %v2654, %v2648
  %v2985 = vpack.c.b16 %v2655, %v2649
  %v2986 = vpack.c.b16 %v2656, %v2650
  %v2987 = vpack.c.b16 %v2657, %v2651
  %v2988 = vpack.c.b16 %v2658, %v2652
  %v2989 = vpack.c.b16 %v2665, %v2659
  %v2990 = vpack.c.b16 %v2666, %v2660
  %v2991 = vpack.c.b16 %v2667, %v2661
  %v2992 = vpack.c.b16 %v2668, %v2662
  %v2993 = vpack.c.b16 %v2669, %v2663
  %v2994 = vpack.c.b16 %v2670, %v2664
  %v2995 = vpack.c.b16 %v2677, %v2671
  %v2996 = vpack.c.b16 %v2678, %v2672
  %v2997 = vpack.c.b16 %v2679, %v2673
  %v2998 = vpack.c.b16 %v2680, %v2674
  %v2999 = vpack.c.b16 %v2681, %v2675
  %v3000 = vpack.c.b16 %v2682, %v2676
  %v3001 = vpack.c.b16 %v2689, %v2683
  %v3002 = vpack.c.b16 %v2690, %v2684
  %v3003 = vpack.c.b16 %v2691, %v2685
  %v3004 = vpack.c.b16 %v2692, %v2686
  %v3005 = vpack.c.b16 %v2693, %v2687
  %v3006 = vpack.c.b16 %v2694, %v2688
  %v3007 = vpack.c.b16 %v2701, %v2695
  %v3008 = vpack.c.b16 %v2702, %v2696
  %v3009 = vpack.c.b16 %v2703, %v2697
  %v3010 = vpack.c.b16 %v2704, %v2698
  %v3011 = vpack.c.b16 %v2705, %v2699
  %v3012 = vpack.c.b16 %v2706, %v2700
  %v3013 = vpack.c.b16 %v2713, %v2707
  %v3014 = vpack.c.b16 %v2714, %v2708
  %v3015 = vpack.c.b16 %v2715, %v2709
  %v3016 = vpack.c.b16 %v2716, %v2710
  %v3017 = vpack.c.b16 %v2717, %v2711
  %v3018 = vpack.c.b16 %v2718, %v2712
  %v3019 = vpack.c.b16 %v2725, %v2719
  %v3020 = vpack.c.b16 %v2726, %v2720
  %v3021 = vpack.c.b16 %v2727, %v2721
  %v3022 = vpack.c.b16 %v2728, %v2722
  %v3023 = vpack.c.b16 %v2729, %v2723
  %v3024 = vpack.c.b16 %v2730, %v2724
  %v3025 = vpack.c.b16 %v2737, %v2731
  %v3026 = vpack.c.b16 %v2738, %v2732
  %v3027 = vpack.c.b16 %v2739, %v2733
  %v3028 = vpack.c.b16 %v2740, %v2734
  %v3029 = vpack.c.b16 %v2741, %v2735
  %v3030 = vpack.c.b16 %v2742, %v2736
  %3319 = vmatprep.subr.bf16.mxu0 0
  %3320 = vmatpush1.bf16.msra.mxu0 %v1471
  %3321 = vmatprep.subr.bf16.mxu0 0
  %3322 = vmatpush1.bf16.msra.mxu0 %v1472
  %3323 = vmatprep.subr.bf16.mxu0 0
  %3324 = vmatpush1.bf16.msra.mxu0 %v1473
  %3325 = vmatprep.subr.bf16.mxu0 0
  %3326 = vmatpush1.bf16.msra.mxu0 %v1474
  %3327 = vmatprep.subr.bf16.mxu0 0
  %3328 = vmatpush1.bf16.msra.mxu0 %v1475
  %3329 = vmatprep.subr.bf16.mxu0 0
  %3330 = vmatpush1.bf16.msra.mxu0 %v1476
  %3331 = vmatprep.subr.bf16.mxu0 0
  %3332 = vmatpush1.bf16.msra.mxu0 %v1477
  %3333 = vmatprep.subr.bf16.mxu0 0
  %3334 = vmatpush1.bf16.msra.mxu0 %v1478
  %3335 = vmatprep.subr.bf16.mxu0 0
  %3336 = vmatpush1.bf16.msra.mxu0 %v1479
  %3337 = vmatprep.subr.bf16.mxu0 0
  %3338 = vmatpush1.bf16.msra.mxu0 %v1480
  %3339 = vmatprep.subr.bf16.mxu0 0
  %3340 = vmatpush1.bf16.msra.mxu0 %v1481
  %3341 = vmatprep.subr.bf16.mxu0 0
  %3342 = vmatpush1.bf16.msra.mxu0 %v1482
  %3343 = vmatprep.subr.bf16.mxu0 0
  %3344 = vmatpush1.bf16.msra.mxu0 %v1483
  %3345 = vmatprep.subr.bf16.mxu0 0
  %3346 = vmatpush1.bf16.msra.mxu0 %v1484
  %3347 = vmatprep.subr.bf16.mxu0 0
  %3348 = vmatpush1.bf16.msra.mxu0 %v1485
  %3349 = vmatprep.subr.bf16.mxu0 0
  %3350 = vmatpush1.bf16.msra.mxu0 %v1486
  %3351 = vmatprep.mubr.bf16.mxu0 %v2744
  %3352 = vmatmul.mubr.bf16.gmra.mrb[0].mxu0 %v2743
  %v3353 = vpop.f32.mrb[0].mxu0
  %v3354 = vadd.f32 0.0, %v3353
  %v3355 = vpop.f32.mrb[0].mxu0
  %v3356 = vpop.f32.mrb[0].mxu0
  %v3357 = vadd.f32 0.0, %v3356
  %v3358 = vpop.f32.mrb[0].mxu0
  %3359 = vmatprep.mubr.bf16.mxu0 %v2750
  %3360 = vmatmul.mubr.bf16.gmra.mrb[0].mxu0 %v2749
  %v3361 = vpop.f32.mrb[0].mxu0
  %v3362 = vadd.f32 0.0, %v3361
  %v3363 = vpop.f32.mrb[0].mxu0
  %v3364 = vpop.f32.mrb[0].mxu0
  %v3365 = vadd.f32 0.0, %v3364
  %v3366 = vpop.f32.mrb[0].mxu0
  %3367 = vmatprep.mubr.bf16.mxu0 %v2756
  %3368 = vmatmul.mubr.bf16.gmra.mrb[0].mxu0 %v2755
  %v3369 = vpop.f32.mrb[0].mxu0
  %v3370 = vadd.f32 0.0, %v3369
  %v3371 = vpop.f32.mrb[0].mxu0
  %v3372 = vpop.f32.mrb[0].mxu0
  %v3373 = vadd.f32 0.0, %v3372
  %v3374 = vpop.f32.mrb[0].mxu0
  %3375 = vmatprep.mubr.bf16.mxu0 %v2762
  %3376 = vmatmul.mubr.bf16.gmra.mrb[0].mxu0 %v2761
  %v3377 = vpop.f32.mrb[0].mxu0
  %v3378 = vadd.f32 0.0, %v3377
  %v3379 = vpop.f32.mrb[0].mxu0
  %v3380 = vpop.f32.mrb[0].mxu0
  %v3381 = vadd.f32 0.0, %v3380
  %v3382 = vpop.f32.mrb[0].mxu0
  %3383 = vmatprep.mubr.bf16.mxu0 %v2768
  %3384 = vmatmul.mubr.bf16.gmra.mrb[0].mxu0 %v2767
  %v3385 = vpop.f32.mrb[0].mxu0
  %v3386 = vadd.f32 0.0, %v3385
  %v3387 = vpop.f32.mrb[0].mxu0
  %v3388 = vpop.f32.mrb[0].mxu0
  %v3389 = vadd.f32 0.0, %v3388
  %v3390 = vpop.f32.mrb[0].mxu0
  %3391 = vmatprep.mubr.bf16.mxu0 %v2774
  %3392 = vmatmul.mubr.bf16.gmra.mrb[0].mxu0 %v2773
  %v3393 = vpop.f32.mrb[0].mxu0
  %v3394 = vadd.f32 0.0, %v3393
  %v3395 = vpop.f32.mrb[0].mxu0
  %v3396 = vpop.f32.mrb[0].mxu0
  %v3397 = vadd.f32 0.0, %v3396
  %v3398 = vpop.f32.mrb[0].mxu0
  %3399 = vmatprep.mubr.bf16.mxu0 %v2780
  %3400 = vmatmul.mubr.bf16.gmra.mrb[0].mxu0 %v2779
  %v3401 = vpop.f32.mrb[0].mxu0
  %v3402 = vadd.f32 0.0, %v3401
  %v3403 = vpop.f32.mrb[0].mxu0
  %v3404 = vpop.f32.mrb[0].mxu0
  %v3405 = vadd.f32 0.0, %v3404
  %v3406 = vpop.f32.mrb[0].mxu0
  %3407 = vmatprep.mubr.bf16.mxu0 %v2786
  %3408 = vmatmul.mubr.bf16.gmra.mrb[0].mxu0 %v2785
  %v3409 = vpop.f32.mrb[0].mxu0
  %v3410 = vadd.f32 0.0, %v3409
  %v3411 = vpop.f32.mrb[0].mxu0
  %v3412 = vpop.f32.mrb[0].mxu0
  %v3413 = vadd.f32 0.0, %v3412
  %v3414 = vpop.f32.mrb[0].mxu0
  %3415 = vmatprep.mubr.bf16.mxu0 %v2792
  %3416 = vmatmul.mubr.bf16.gmra.mrb[0].mxu0 %v2791
  %v3417 = vpop.f32.mrb[0].mxu0
  %v3418 = vadd.f32 0.0, %v3417
  %v3419 = vpop.f32.mrb[0].mxu0
  %v3420 = vpop.f32.mrb[0].mxu0
  %v3421 = vadd.f32 0.0, %v3420
  %v3422 = vpop.f32.mrb[0].mxu0
  %3423 = vmatprep.mubr.bf16.mxu0 %v2798
  %3424 = vmatmul.mubr.bf16.gmra.mrb[0].mxu0 %v2797
  %v3425 = vpop.f32.mrb[0].mxu0
  %v3426 = vadd.f32 0.0, %v3425
  %v3427 = vpop.f32.mrb[0].mxu0
  %v3428 = vpop.f32.mrb[0].mxu0
  %v3429 = vadd.f32 0.0, %v3428
  %v3430 = vpop.f32.mrb[0].mxu0
  %3431 = vmatprep.mubr.bf16.mxu0 %v2804
  %3432 = vmatmul.mubr.bf16.gmra.mrb[0].mxu0 %v2803
  %v3433 = vpop.f32.mrb[0].mxu0
  %v3434 = vadd.f32 0.0, %v3433
  %v3435 = vpop.f32.mrb[0].mxu0
  %v3436 = vpop.f32.mrb[0].mxu0
  %v3437 = vadd.f32 0.0, %v3436
  %v3438 = vpop.f32.mrb[0].mxu0
  %3439 = vmatprep.mubr.bf16.mxu0 %v2810
  %3440 = vmatmul.mubr.bf16.gmra.mrb[0].mxu0 %v2809
  %v3441 = vpop.f32.mrb[0].mxu0
  %v3442 = vadd.f32 0.0, %v3441
  %v3443 = vpop.f32.mrb[0].mxu0
  %v3444 = vpop.f32.mrb[0].mxu0
  %v3445 = vadd.f32 0.0, %v3444
  %v3446 = vpop.f32.mrb[0].mxu0
  %3447 = vmatprep.mubr.bf16.mxu0 %v2816
  %3448 = vmatmul.mubr.bf16.gmra.mrb[0].mxu0 %v2815
  %v3449 = vpop.f32.mrb[0].mxu0
  %v3450 = vadd.f32 0.0, %v3449
  %v3451 = vpop.f32.mrb[0].mxu0
  %v3452 = vpop.f32.mrb[0].mxu0
  %v3453 = vadd.f32 0.0, %v3452
  %v3454 = vpop.f32.mrb[0].mxu0
  %3455 = vmatprep.mubr.bf16.mxu0 %v2822
  %3456 = vmatmul.mubr.bf16.gmra.mrb[0].mxu0 %v2821
  %v3457 = vpop.f32.mrb[0].mxu0
  %v3458 = vadd.f32 0.0, %v3457
  %v3459 = vpop.f32.mrb[0].mxu0
  %v3460 = vpop.f32.mrb[0].mxu0
  %v3461 = vadd.f32 0.0, %v3460
  %v3462 = vpop.f32.mrb[0].mxu0
  %3463 = vmatprep.mubr.bf16.mxu0 %v2828
  %3464 = vmatmul.mubr.bf16.gmra.mrb[0].mxu0 %v2827
  %v3465 = vpop.f32.mrb[0].mxu0
  %v3466 = vadd.f32 0.0, %v3465
  %v3467 = vpop.f32.mrb[0].mxu0
  %v3468 = vpop.f32.mrb[0].mxu0
  %v3469 = vadd.f32 0.0, %v3468
  %v3470 = vpop.f32.mrb[0].mxu0
  %3471 = vmatprep.mubr.bf16.mxu0 %v2834
  %3472 = vmatmul.mubr.bf16.gmra.mrb[0].mxu0 %v2833
  %v3473 = vpop.f32.mrb[0].mxu0
  %v3474 = vadd.f32 0.0, %v3473
  %v3475 = vpop.f32.mrb[0].mxu0
  %v3476 = vpop.f32.mrb[0].mxu0
  %v3477 = vadd.f32 0.0, %v3476
  %v3478 = vpop.f32.mrb[0].mxu0
  %3479 = vmatprep.mubr.bf16.mxu0 %v2840
  %3480 = vmatmul.mubr.bf16.gmra.mrb[0].mxu0 %v2839
  %v3481 = vpop.f32.mrb[0].mxu0
  %v3482 = vadd.f32 0.0, %v3481
  %v3483 = vpop.f32.mrb[0].mxu0
  %v3484 = vpop.f32.mrb[0].mxu0
  %v3485 = vadd.f32 0.0, %v3484
  %v3486 = vpop.f32.mrb[0].mxu0
  %3487 = vmatprep.mubr.bf16.mxu0 %v2846
  %3488 = vmatmul.mubr.bf16.gmra.mrb[0].mxu0 %v2845
  %v3489 = vpop.f32.mrb[0].mxu0
  %v3490 = vadd.f32 0.0, %v3489
  %v3491 = vpop.f32.mrb[0].mxu0
  %v3492 = vpop.f32.mrb[0].mxu0
  %v3493 = vadd.f32 0.0, %v3492
  %v3494 = vpop.f32.mrb[0].mxu0
  %3495 = vmatprep.mubr.bf16.mxu0 %v2852
  %3496 = vmatmul.mubr.bf16.gmra.mrb[0].mxu0 %v2851
  %v3497 = vpop.f32.mrb[0].mxu0
  %v3498 = vadd.f32 0.0, %v3497
  %v3499 = vpop.f32.mrb[0].mxu0
  %v3500 = vpop.f32.mrb[0].mxu0
  %v3501 = vadd.f32 0.0, %v3500
  %v3502 = vpop.f32.mrb[0].mxu0
  %3503 = vmatprep.mubr.bf16.mxu0 %v2858
  %3504 = vmatmul.mubr.bf16.gmra.mrb[0].mxu0 %v2857
  %v3505 = vpop.f32.mrb[0].mxu0
  %v3506 = vadd.f32 0.0, %v3505
  %v3507 = vpop.f32.mrb[0].mxu0
  %v3508 = vpop.f32.mrb[0].mxu0
  %v3509 = vadd.f32 0.0, %v3508
  %v3510 = vpop.f32.mrb[0].mxu0
  %3511 = vmatprep.mubr.bf16.mxu0 %v2864
  %3512 = vmatmul.mubr.bf16.gmra.mrb[0].mxu0 %v2863
  %v3513 = vpop.f32.mrb[0].mxu0
  %v3514 = vadd.f32 0.0, %v3513
  %v3515 = vpop.f32.mrb[0].mxu0
  %v3516 = vpop.f32.mrb[0].mxu0
  %v3517 = vadd.f32 0.0, %v3516
  %v3518 = vpop.f32.mrb[0].mxu0
  %3519 = vmatprep.mubr.bf16.mxu0 %v2870
  %3520 = vmatmul.mubr.bf16.gmra.mrb[0].mxu0 %v2869
  %v3521 = vpop.f32.mrb[0].mxu0
  %v3522 = vadd.f32 0.0, %v3521
  %v3523 = vpop.f32.mrb[0].mxu0
  %v3524 = vpop.f32.mrb[0].mxu0
  %v3525 = vadd.f32 0.0, %v3524
  %v3526 = vpop.f32.mrb[0].mxu0
  %3527 = vmatprep.mubr.bf16.mxu0 %v2876
  %3528 = vmatmul.mubr.bf16.gmra.mrb[0].mxu0 %v2875
  %v3529 = vpop.f32.mrb[0].mxu0
  %v3530 = vadd.f32 0.0, %v3529
  %v3531 = vpop.f32.mrb[0].mxu0
  %v3532 = vpop.f32.mrb[0].mxu0
  %v3533 = vadd.f32 0.0, %v3532
  %v3534 = vpop.f32.mrb[0].mxu0
  %3535 = vmatprep.mubr.bf16.mxu0 %v2882
  %3536 = vmatmul.mubr.bf16.gmra.mrb[0].mxu0 %v2881
  %v3537 = vpop.f32.mrb[0].mxu0
  %v3538 = vadd.f32 0.0, %v3537
  %v3539 = vpop.f32.mrb[0].mxu0
  %v3540 = vpop.f32.mrb[0].mxu0
  %v3541 = vadd.f32 0.0, %v3540
  %v3542 = vpop.f32.mrb[0].mxu0
  %3543 = vmatprep.mubr.bf16.mxu0 %v2888
  %3544 = vmatmul.mubr.bf16.gmra.mrb[0].mxu0 %v2887
  %v3545 = vpop.f32.mrb[0].mxu0
  %v3546 = vadd.f32 0.0, %v3545
  %v3547 = vpop.f32.mrb[0].mxu0
  %v3548 = vpop.f32.mrb[0].mxu0
  %v3549 = vadd.f32 0.0, %v3548
  %v3550 = vpop.f32.mrb[0].mxu0
  %3551 = vmatprep.mubr.bf16.mxu0 %v2894
  %3552 = vmatmul.mubr.bf16.gmra.mrb[0].mxu0 %v2893
  %v3553 = vpop.f32.mrb[0].mxu0
  %v3554 = vadd.f32 0.0, %v3553
  %v3555 = vpop.f32.mrb[0].mxu0
  %v3556 = vpop.f32.mrb[0].mxu0
  %v3557 = vadd.f32 0.0, %v3556
  %v3558 = vpop.f32.mrb[0].mxu0
  %3559 = vmatprep.mubr.bf16.mxu0 %v2900
  %3560 = vmatmul.mubr.bf16.gmra.mrb[0].mxu0 %v2899
  %v3561 = vpop.f32.mrb[0].mxu0
  %v3562 = vadd.f32 0.0, %v3561
  %v3563 = vpop.f32.mrb[0].mxu0
  %v3564 = vpop.f32.mrb[0].mxu0
  %v3565 = vadd.f32 0.0, %v3564
  %v3566 = vpop.f32.mrb[0].mxu0
  %3567 = vmatprep.mubr.bf16.mxu0 %v2906
  %3568 = vmatmul.mubr.bf16.gmra.mrb[0].mxu0 %v2905
  %v3569 = vpop.f32.mrb[0].mxu0
  %v3570 = vadd.f32 0.0, %v3569
  %v3571 = vpop.f32.mrb[0].mxu0
  %v3572 = vpop.f32.mrb[0].mxu0
  %v3573 = vadd.f32 0.0, %v3572
  %v3574 = vpop.f32.mrb[0].mxu0
  %3575 = vmatprep.mubr.bf16.mxu0 %v2912
  %3576 = vmatmul.mubr.bf16.gmra.mrb[0].mxu0 %v2911
  %v3577 = vpop.f32.mrb[0].mxu0
  %v3578 = vadd.f32 0.0, %v3577
  %v3579 = vpop.f32.mrb[0].mxu0
  %v3580 = vpop.f32.mrb[0].mxu0
  %v3581 = vadd.f32 0.0, %v3580
  %v3582 = vpop.f32.mrb[0].mxu0
  %3583 = vmatprep.mubr.bf16.mxu0 %v2918
  %3584 = vmatmul.mubr.bf16.gmra.mrb[0].mxu0 %v2917
  %v3585 = vpop.f32.mrb[0].mxu0
  %v3586 = vadd.f32 0.0, %v3585
  %v3587 = vpop.f32.mrb[0].mxu0
  %v3588 = vpop.f32.mrb[0].mxu0
  %v3589 = vadd.f32 0.0, %v3588
  %v3590 = vpop.f32.mrb[0].mxu0
  %3591 = vmatprep.mubr.bf16.mxu0 %v2924
  %3592 = vmatmul.mubr.bf16.gmra.mrb[0].mxu0 %v2923
  %v3593 = vpop.f32.mrb[0].mxu0
  %v3594 = vadd.f32 0.0, %v3593
  %v3595 = vpop.f32.mrb[0].mxu0
  %v3596 = vpop.f32.mrb[0].mxu0
  %v3597 = vadd.f32 0.0, %v3596
  %v3598 = vpop.f32.mrb[0].mxu0
  %3599 = vmatprep.mubr.bf16.mxu0 %v2930
  %3600 = vmatmul.mubr.bf16.gmra.mrb[0].mxu0 %v2929
  %v3601 = vpop.f32.mrb[0].mxu0
  %v3602 = vadd.f32 0.0, %v3601
  %v3603 = vpop.f32.mrb[0].mxu0
  %v3604 = vpop.f32.mrb[0].mxu0
  %v3605 = vadd.f32 0.0, %v3604
  %v3606 = vpop.f32.mrb[0].mxu0
  %3607 = vmatprep.mubr.bf16.mxu0 %v2936
  %3608 = vmatmul.mubr.bf16.gmra.mrb[0].mxu0 %v2935
  %v3609 = vpop.f32.mrb[0].mxu0
  %v3610 = vadd.f32 0.0, %v3609
  %v3611 = vpop.f32.mrb[0].mxu0
  %v3612 = vpop.f32.mrb[0].mxu0
  %v3613 = vadd.f32 0.0, %v3612
  %v3614 = vpop.f32.mrb[0].mxu0
  %3615 = vmatprep.mubr.bf16.mxu0 %v2942
  %3616 = vmatmul.mubr.bf16.gmra.mrb[0].mxu0 %v2941
  %v3617 = vpop.f32.mrb[0].mxu0
  %v3618 = vadd.f32 0.0, %v3617
  %v3619 = vpop.f32.mrb[0].mxu0
  %v3620 = vpop.f32.mrb[0].mxu0
  %v3621 = vadd.f32 0.0, %v3620
  %v3622 = vpop.f32.mrb[0].mxu0
  %3623 = vmatprep.mubr.bf16.mxu0 %v2948
  %3624 = vmatmul.mubr.bf16.gmra.mrb[0].mxu0 %v2947
  %v3625 = vpop.f32.mrb[0].mxu0
  %v3626 = vadd.f32 0.0, %v3625
  %v3627 = vpop.f32.mrb[0].mxu0
  %v3628 = vpop.f32.mrb[0].mxu0
  %v3629 = vadd.f32 0.0, %v3628
  %v3630 = vpop.f32.mrb[0].mxu0
  %3631 = vmatprep.mubr.bf16.mxu0 %v2954
  %3632 = vmatmul.mubr.bf16.gmra.mrb[0].mxu0 %v2953
  %v3633 = vpop.f32.mrb[0].mxu0
  %v3634 = vadd.f32 0.0, %v3633
  %v3635 = vpop.f32.mrb[0].mxu0
  %v3636 = vpop.f32.mrb[0].mxu0
  %v3637 = vadd.f32 0.0, %v3636
  %v3638 = vpop.f32.mrb[0].mxu0
  %3639 = vmatprep.mubr.bf16.mxu0 %v2960
  %3640 = vmatmul.mubr.bf16.gmra.mrb[0].mxu0 %v2959
  %v3641 = vpop.f32.mrb[0].mxu0
  %v3642 = vadd.f32 0.0, %v3641
  %v3643 = vpop.f32.mrb[0].mxu0
  %v3644 = vpop.f32.mrb[0].mxu0
  %v3645 = vadd.f32 0.0, %v3644
  %v3646 = vpop.f32.mrb[0].mxu0
  %3647 = vmatprep.mubr.bf16.mxu0 %v2966
  %3648 = vmatmul.mubr.bf16.gmra.mrb[0].mxu0 %v2965
  %v3649 = vpop.f32.mrb[0].mxu0
  %v3650 = vadd.f32 0.0, %v3649
  %v3651 = vpop.f32.mrb[0].mxu0
  %v3652 = vpop.f32.mrb[0].mxu0
  %v3653 = vadd.f32 0.0, %v3652
  %v3654 = vpop.f32.mrb[0].mxu0
  %3655 = vmatprep.mubr.bf16.mxu0 %v2972
  %3656 = vmatmul.mubr.bf16.gmra.mrb[0].mxu0 %v2971
  %v3657 = vpop.f32.mrb[0].mxu0
  %v3658 = vadd.f32 0.0, %v3657
  %v3659 = vpop.f32.mrb[0].mxu0
  %v3660 = vpop.f32.mrb[0].mxu0
  %v3661 = vadd.f32 0.0, %v3660
  %v3662 = vpop.f32.mrb[0].mxu0
  %3663 = vmatprep.mubr.bf16.mxu0 %v2978
  %3664 = vmatmul.mubr.bf16.gmra.mrb[0].mxu0 %v2977
  %v3665 = vpop.f32.mrb[0].mxu0
  %v3666 = vadd.f32 0.0, %v3665
  %v3667 = vpop.f32.mrb[0].mxu0
  %v3668 = vpop.f32.mrb[0].mxu0
  %v3669 = vadd.f32 0.0, %v3668
  %v3670 = vpop.f32.mrb[0].mxu0
  %3671 = vmatprep.mubr.bf16.mxu0 %v2984
  %3672 = vmatmul.mubr.bf16.gmra.mrb[0].mxu0 %v2983
  %v3673 = vpop.f32.mrb[0].mxu0
  %v3674 = vadd.f32 0.0, %v3673
  %v3675 = vpop.f32.mrb[0].mxu0
  %v3676 = vpop.f32.mrb[0].mxu0
  %v3677 = vadd.f32 0.0, %v3676
  %v3678 = vpop.f32.mrb[0].mxu0
  %3679 = vmatprep.mubr.bf16.mxu0 %v2990
  %3680 = vmatmul.mubr.bf16.gmra.mrb[0].mxu0 %v2989
  %v3681 = vpop.f32.mrb[0].mxu0
  %v3682 = vadd.f32 0.0, %v3681
  %v3683 = vpop.f32.mrb[0].mxu0
  %v3684 = vpop.f32.mrb[0].mxu0
  %v3685 = vadd.f32 0.0, %v3684
  %v3686 = vpop.f32.mrb[0].mxu0
  %3687 = vmatprep.mubr.bf16.mxu0 %v2996
  %3688 = vmatmul.mubr.bf16.gmra.mrb[0].mxu0 %v2995
  %v3689 = vpop.f32.mrb[0].mxu0
  %v3690 = vadd.f32 0.0, %v3689
  %v3691 = vpop.f32.mrb[0].mxu0
  %v3692 = vpop.f32.mrb[0].mxu0
  %v3693 = vadd.f32 0.0, %v3692
  %v3694 = vpop.f32.mrb[0].mxu0
  %3695 = vmatprep.mubr.bf16.mxu0 %v3002
  %3696 = vmatmul.mubr.bf16.gmra.mrb[0].mxu0 %v3001
  %v3697 = vpop.f32.mrb[0].mxu0
  %v3698 = vadd.f32 0.0, %v3697
  %v3699 = vpop.f32.mrb[0].mxu0
  %v3700 = vpop.f32.mrb[0].mxu0
  %v3701 = vadd.f32 0.0, %v3700
  %v3702 = vpop.f32.mrb[0].mxu0
  %3703 = vmatprep.mubr.bf16.mxu0 %v3008
  %3704 = vmatmul.mubr.bf16.gmra.mrb[0].mxu0 %v3007
  %v3705 = vpop.f32.mrb[0].mxu0
  %v3706 = vadd.f32 0.0, %v3705
  %v3707 = vpop.f32.mrb[0].mxu0
  %v3708 = vpop.f32.mrb[0].mxu0
  %v3709 = vadd.f32 0.0, %v3708
  %v3710 = vpop.f32.mrb[0].mxu0
  %3711 = vmatprep.mubr.bf16.mxu0 %v3014
  %3712 = vmatmul.mubr.bf16.gmra.mrb[0].mxu0 %v3013
  %v3713 = vpop.f32.mrb[0].mxu0
  %v3714 = vadd.f32 0.0, %v3713
  %v3715 = vpop.f32.mrb[0].mxu0
  %v3716 = vpop.f32.mrb[0].mxu0
  %v3717 = vadd.f32 0.0, %v3716
  %v3718 = vpop.f32.mrb[0].mxu0
  %3719 = vmatprep.mubr.bf16.mxu0 %v3020
  %3720 = vmatmul.mubr.bf16.gmra.mrb[0].mxu0 %v3019
  %v3721 = vpop.f32.mrb[0].mxu0
  %v3722 = vadd.f32 0.0, %v3721
  %v3723 = vpop.f32.mrb[0].mxu0
  %v3724 = vpop.f32.mrb[0].mxu0
  %v3725 = vadd.f32 0.0, %v3724
  %v3726 = vpop.f32.mrb[0].mxu0
  %3727 = vmatprep.mubr.bf16.mxu0 %v3026
  %3728 = vmatmul.mubr.bf16.gmra.mrb[0].mxu0 %v3025
  %v3729 = vpop.f32.mrb[0].mxu0
  %v3730 = vadd.f32 0.0, %v3729
  %v3731 = vpop.f32.mrb[0].mxu0
  %v3732 = vpop.f32.mrb[0].mxu0
  %v3733 = vadd.f32 0.0, %v3732
  %v3734 = vpop.f32.mrb[0].mxu0
  %3735 = vdwg.mxu0
  %3736 = vmatprep.subr.bf16.mxu0 0
  %3737 = vmatpush1.bf16.msra.mxu0 %v1346
  %3738 = vmatprep.subr.bf16.mxu0 0
  %3739 = vmatpush1.bf16.msra.mxu0 %v1347
  %3740 = vmatprep.subr.bf16.mxu0 0
  %3741 = vmatpush1.bf16.msra.mxu0 %v1348
  %3742 = vmatprep.subr.bf16.mxu0 0
  %3743 = vmatpush1.bf16.msra.mxu0 %v1349
  %3744 = vmatprep.subr.bf16.mxu0 0
  %3745 = vmatpush1.bf16.msra.mxu0 %v1350
  %3746 = vmatprep.subr.bf16.mxu0 0
  %3747 = vmatpush1.bf16.msra.mxu0 %v1351
  %3748 = vmatprep.subr.bf16.mxu0 0
  %3749 = vmatpush1.bf16.msra.mxu0 %v1352
  %3750 = vmatprep.subr.bf16.mxu0 0
  %3751 = vmatpush1.bf16.msra.mxu0 %v1353
  %3752 = vmatprep.subr.bf16.mxu0 0
  %3753 = vmatpush1.bf16.msra.mxu0 %v1354
  %3754 = vmatprep.subr.bf16.mxu0 0
  %3755 = vmatpush1.bf16.msra.mxu0 %v1355
  %3756 = vmatprep.subr.bf16.mxu0 0
  %3757 = vmatpush1.bf16.msra.mxu0 %v1356
  %3758 = vmatprep.subr.bf16.mxu0 0
  %3759 = vmatpush1.bf16.msra.mxu0 %v1357
  %3760 = vmatprep.subr.bf16.mxu0 0
  %3761 = vmatpush1.bf16.msra.mxu0 %v1358
  %3762 = vmatprep.subr.bf16.mxu0 0
  %3763 = vmatpush1.bf16.msra.mxu0 %v1359
  %3764 = vmatprep.subr.bf16.mxu0 0
  %3765 = vmatpush1.bf16.msra.mxu0 %v1360
  %3766 = vmatprep.subr.bf16.mxu0 0
  %3767 = vmatpush1.bf16.msra.mxu0 %v1361
  %3768 = vmatprep.mubr.bf16.mxu0 %v2746
  %3769 = vmatmul.mubr.bf16.gmra.mrb[0].mxu0 %v2745
  %v3770 = vpop.f32.mrb[0].mxu0
  %v3771 = vadd.f32 %v3354, %v3770
  %v3772 = vpop.f32.mrb[0].mxu0
  %v3773 = vpop.f32.mrb[0].mxu0
  %v3774 = vadd.f32 %v3357, %v3773
  %v3775 = vpop.f32.mrb[0].mxu0
  %3776 = vmatprep.mubr.bf16.mxu0 %v2752
  %3777 = vmatmul.mubr.bf16.gmra.mrb[0].mxu0 %v2751
  %v3778 = vpop.f32.mrb[0].mxu0
  %v3779 = vadd.f32 %v3362, %v3778
  %v3780 = vpop.f32.mrb[0].mxu0
  %v3781 = vpop.f32.mrb[0].mxu0
  %v3782 = vadd.f32 %v3365, %v3781
  %v3783 = vpop.f32.mrb[0].mxu0
  %3784 = vmatprep.mubr.bf16.mxu0 %v2758
  %3785 = vmatmul.mubr.bf16.gmra.mrb[0].mxu0 %v2757
  %v3786 = vpop.f32.mrb[0].mxu0
  %v3787 = vadd.f32 %v3370, %v3786
  %v3788 = vpop.f32.mrb[0].mxu0
  %v3789 = vpop.f32.mrb[0].mxu0
  %v3790 = vadd.f32 %v3373, %v3789
  %v3791 = vpop.f32.mrb[0].mxu0
  %3792 = vmatprep.mubr.bf16.mxu0 %v2764
  %3793 = vmatmul.mubr.bf16.gmra.mrb[0].mxu0 %v2763
  %v3794 = vpop.f32.mrb[0].mxu0
  %v3795 = vadd.f32 %v3378, %v3794
  %v3796 = vpop.f32.mrb[0].mxu0
  %v3797 = vpop.f32.mrb[0].mxu0
  %v3798 = vadd.f32 %v3381, %v3797
  %v3799 = vpop.f32.mrb[0].mxu0
  %3800 = vmatprep.mubr.bf16.mxu0 %v2770
  %3801 = vmatmul.mubr.bf16.gmra.mrb[0].mxu0 %v2769
  %v3802 = vpop.f32.mrb[0].mxu0
  %v3803 = vadd.f32 %v3386, %v3802
  %v3804 = vpop.f32.mrb[0].mxu0
  %v3805 = vpop.f32.mrb[0].mxu0
  %v3806 = vadd.f32 %v3389, %v3805
  %v3807 = vpop.f32.mrb[0].mxu0
  %3808 = vmatprep.mubr.bf16.mxu0 %v2776
  %3809 = vmatmul.mubr.bf16.gmra.mrb[0].mxu0 %v2775
  %v3810 = vpop.f32.mrb[0].mxu0
  %v3811 = vadd.f32 %v3394, %v3810
  %v3812 = vpop.f32.mrb[0].mxu0
  %v3813 = vpop.f32.mrb[0].mxu0
  %v3814 = vadd.f32 %v3397, %v3813
  %v3815 = vpop.f32.mrb[0].mxu0
  %3816 = vmatprep.mubr.bf16.mxu0 %v2782
  %3817 = vmatmul.mubr.bf16.gmra.mrb[0].mxu0 %v2781
  %v3818 = vpop.f32.mrb[0].mxu0
  %v3819 = vadd.f32 %v3402, %v3818
  %v3820 = vpop.f32.mrb[0].mxu0
  %v3821 = vpop.f32.mrb[0].mxu0
  %v3822 = vadd.f32 %v3405, %v3821
  %v3823 = vpop.f32.mrb[0].mxu0
  %3824 = vmatprep.mubr.bf16.mxu0 %v2788
  %3825 = vmatmul.mubr.bf16.gmra.mrb[0].mxu0 %v2787
  %v3826 = vpop.f32.mrb[0].mxu0
  %v3827 = vadd.f32 %v3410, %v3826
  %v3828 = vpop.f32.mrb[0].mxu0
  %v3829 = vpop.f32.mrb[0].mxu0
  %v3830 = vadd.f32 %v3413, %v3829
  %v3831 = vpop.f32.mrb[0].mxu0
  %3832 = vmatprep.mubr.bf16.mxu0 %v2794
  %3833 = vmatmul.mubr.bf16.gmra.mrb[0].mxu0 %v2793
  %v3834 = vpop.f32.mrb[0].mxu0
  %v3835 = vadd.f32 %v3418, %v3834
  %v3836 = vpop.f32.mrb[0].mxu0
  %v3837 = vpop.f32.mrb[0].mxu0
  %v3838 = vadd.f32 %v3421, %v3837
  %v3839 = vpop.f32.mrb[0].mxu0
  %3840 = vmatprep.mubr.bf16.mxu0 %v2800
  %3841 = vmatmul.mubr.bf16.gmra.mrb[0].mxu0 %v2799
  %v3842 = vpop.f32.mrb[0].mxu0
  %v3843 = vadd.f32 %v3426, %v3842
  %v3844 = vpop.f32.mrb[0].mxu0
  %v3845 = vpop.f32.mrb[0].mxu0
  %v3846 = vadd.f32 %v3429, %v3845
  %v3847 = vpop.f32.mrb[0].mxu0
  %3848 = vmatprep.mubr.bf16.mxu0 %v2806
  %3849 = vmatmul.mubr.bf16.gmra.mrb[0].mxu0 %v2805
  %v3850 = vpop.f32.mrb[0].mxu0
  %v3851 = vadd.f32 %v3434, %v3850
  %v3852 = vpop.f32.mrb[0].mxu0
  %v3853 = vpop.f32.mrb[0].mxu0
  %v3854 = vadd.f32 %v3437, %v3853
  %v3855 = vpop.f32.mrb[0].mxu0
  %3856 = vmatprep.mubr.bf16.mxu0 %v2812
  %3857 = vmatmul.mubr.bf16.gmra.mrb[0].mxu0 %v2811
  %v3858 = vpop.f32.mrb[0].mxu0
  %v3859 = vadd.f32 %v3442, %v3858
  %v3860 = vpop.f32.mrb[0].mxu0
  %v3861 = vpop.f32.mrb[0].mxu0
  %v3862 = vadd.f32 %v3445, %v3861
  %v3863 = vpop.f32.mrb[0].mxu0
  %3864 = vmatprep.mubr.bf16.mxu0 %v2818
  %3865 = vmatmul.mubr.bf16.gmra.mrb[0].mxu0 %v2817
  %v3866 = vpop.f32.mrb[0].mxu0
  %v3867 = vadd.f32 %v3450, %v3866
  %v3868 = vpop.f32.mrb[0].mxu0
  %v3869 = vpop.f32.mrb[0].mxu0
  %v3870 = vadd.f32 %v3453, %v3869
  %v3871 = vpop.f32.mrb[0].mxu0
  %3872 = vmatprep.mubr.bf16.mxu0 %v2824
  %3873 = vmatmul.mubr.bf16.gmra.mrb[0].mxu0 %v2823
  %v3874 = vpop.f32.mrb[0].mxu0
  %v3875 = vadd.f32 %v3458, %v3874
  %v3876 = vpop.f32.mrb[0].mxu0
  %v3877 = vpop.f32.mrb[0].mxu0
  %v3878 = vadd.f32 %v3461, %v3877
  %v3879 = vpop.f32.mrb[0].mxu0
  %3880 = vmatprep.mubr.bf16.mxu0 %v2830
  %3881 = vmatmul.mubr.bf16.gmra.mrb[0].mxu0 %v2829
  %v3882 = vpop.f32.mrb[0].mxu0
  %v3883 = vadd.f32 %v3466, %v3882
  %v3884 = vpop.f32.mrb[0].mxu0
  %v3885 = vpop.f32.mrb[0].mxu0
  %v3886 = vadd.f32 %v3469, %v3885
  %v3887 = vpop.f32.mrb[0].mxu0
  %3888 = vmatprep.mubr.bf16.mxu0 %v2836
  %3889 = vmatmul.mubr.bf16.gmra.mrb[0].mxu0 %v2835
  %v3890 = vpop.f32.mrb[0].mxu0
  %v3891 = vadd.f32 %v3474, %v3890
  %v3892 = vpop.f32.mrb[0].mxu0
  %v3893 = vpop.f32.mrb[0].mxu0
  %v3894 = vadd.f32 %v3477, %v3893
  %v3895 = vpop.f32.mrb[0].mxu0
  %3896 = vmatprep.mubr.bf16.mxu0 %v2842
  %3897 = vmatmul.mubr.bf16.gmra.mrb[0].mxu0 %v2841
  %v3898 = vpop.f32.mrb[0].mxu0
  %v3899 = vadd.f32 %v3482, %v3898
  %v3900 = vpop.f32.mrb[0].mxu0
  %v3901 = vpop.f32.mrb[0].mxu0
  %v3902 = vadd.f32 %v3485, %v3901
  %v3903 = vpop.f32.mrb[0].mxu0
  %3904 = vmatprep.mubr.bf16.mxu0 %v2848
  %3905 = vmatmul.mubr.bf16.gmra.mrb[0].mxu0 %v2847
  %v3906 = vpop.f32.mrb[0].mxu0
  %v3907 = vadd.f32 %v3490, %v3906
  %v3908 = vpop.f32.mrb[0].mxu0
  %v3909 = vpop.f32.mrb[0].mxu0
  %v3910 = vadd.f32 %v3493, %v3909
  %v3911 = vpop.f32.mrb[0].mxu0
  %3912 = vmatprep.mubr.bf16.mxu0 %v2854
  %3913 = vmatmul.mubr.bf16.gmra.mrb[0].mxu0 %v2853
  %v3914 = vpop.f32.mrb[0].mxu0
  %v3915 = vadd.f32 %v3498, %v3914
  %v3916 = vpop.f32.mrb[0].mxu0
  %v3917 = vpop.f32.mrb[0].mxu0
  %v3918 = vadd.f32 %v3501, %v3917
  %v3919 = vpop.f32.mrb[0].mxu0
  %3920 = vmatprep.mubr.bf16.mxu0 %v2860
  %3921 = vmatmul.mubr.bf16.gmra.mrb[0].mxu0 %v2859
  %v3922 = vpop.f32.mrb[0].mxu0
  %v3923 = vadd.f32 %v3506, %v3922
  %v3924 = vpop.f32.mrb[0].mxu0
  %v3925 = vpop.f32.mrb[0].mxu0
  %v3926 = vadd.f32 %v3509, %v3925
  %v3927 = vpop.f32.mrb[0].mxu0
  %3928 = vmatprep.mubr.bf16.mxu0 %v2866
  %3929 = vmatmul.mubr.bf16.gmra.mrb[0].mxu0 %v2865
  %v3930 = vpop.f32.mrb[0].mxu0
  %v3931 = vadd.f32 %v3514, %v3930
  %v3932 = vpop.f32.mrb[0].mxu0
  %v3933 = vpop.f32.mrb[0].mxu0
  %v3934 = vadd.f32 %v3517, %v3933
  %v3935 = vpop.f32.mrb[0].mxu0
  %3936 = vmatprep.mubr.bf16.mxu0 %v2872
  %3937 = vmatmul.mubr.bf16.gmra.mrb[0].mxu0 %v2871
  %v3938 = vpop.f32.mrb[0].mxu0
  %v3939 = vadd.f32 %v3522, %v3938
  %v3940 = vpop.f32.mrb[0].mxu0
  %v3941 = vpop.f32.mrb[0].mxu0
  %v3942 = vadd.f32 %v3525, %v3941
  %v3943 = vpop.f32.mrb[0].mxu0
  %3944 = vmatprep.mubr.bf16.mxu0 %v2878
  %3945 = vmatmul.mubr.bf16.gmra.mrb[0].mxu0 %v2877
  %v3946 = vpop.f32.mrb[0].mxu0
  %v3947 = vadd.f32 %v3530, %v3946
  %v3948 = vpop.f32.mrb[0].mxu0
  %v3949 = vpop.f32.mrb[0].mxu0
  %v3950 = vadd.f32 %v3533, %v3949
  %v3951 = vpop.f32.mrb[0].mxu0
  %3952 = vmatprep.mubr.bf16.mxu0 %v2884
  %3953 = vmatmul.mubr.bf16.gmra.mrb[0].mxu0 %v2883
  %v3954 = vpop.f32.mrb[0].mxu0
  %v3955 = vadd.f32 %v3538, %v3954
  %v3956 = vpop.f32.mrb[0].mxu0
  %v3957 = vpop.f32.mrb[0].mxu0
  %v3958 = vadd.f32 %v3541, %v3957
  %v3959 = vpop.f32.mrb[0].mxu0
  %3960 = vmatprep.mubr.bf16.mxu0 %v2890
  %3961 = vmatmul.mubr.bf16.gmra.mrb[0].mxu0 %v2889
  %v3962 = vpop.f32.mrb[0].mxu0
  %v3963 = vadd.f32 %v3546, %v3962
  %v3964 = vpop.f32.mrb[0].mxu0
  %v3965 = vpop.f32.mrb[0].mxu0
  %v3966 = vadd.f32 %v3549, %v3965
  %v3967 = vpop.f32.mrb[0].mxu0
  %3968 = vmatprep.mubr.bf16.mxu0 %v2896
  %3969 = vmatmul.mubr.bf16.gmra.mrb[0].mxu0 %v2895
  %v3970 = vpop.f32.mrb[0].mxu0
  %v3971 = vadd.f32 %v3554, %v3970
  %v3972 = vpop.f32.mrb[0].mxu0
  %v3973 = vpop.f32.mrb[0].mxu0
  %v3974 = vadd.f32 %v3557, %v3973
  %v3975 = vpop.f32.mrb[0].mxu0
  %3976 = vmatprep.mubr.bf16.mxu0 %v2902
  %3977 = vmatmul.mubr.bf16.gmra.mrb[0].mxu0 %v2901
  %v3978 = vpop.f32.mrb[0].mxu0
  %v3979 = vadd.f32 %v3562, %v3978
  %v3980 = vpop.f32.mrb[0].mxu0
  %v3981 = vpop.f32.mrb[0].mxu0
  %v3982 = vadd.f32 %v3565, %v3981
  %v3983 = vpop.f32.mrb[0].mxu0
  %3984 = vmatprep.mubr.bf16.mxu0 %v2908
  %3985 = vmatmul.mubr.bf16.gmra.mrb[0].mxu0 %v2907
  %v3986 = vpop.f32.mrb[0].mxu0
  %v3987 = vadd.f32 %v3570, %v3986
  %v3988 = vpop.f32.mrb[0].mxu0
  %v3989 = vpop.f32.mrb[0].mxu0
  %v3990 = vadd.f32 %v3573, %v3989
  %v3991 = vpop.f32.mrb[0].mxu0
  %3992 = vmatprep.mubr.bf16.mxu0 %v2914
  %3993 = vmatmul.mubr.bf16.gmra.mrb[0].mxu0 %v2913
  %v3994 = vpop.f32.mrb[0].mxu0
  %v3995 = vadd.f32 %v3578, %v3994
  %v3996 = vpop.f32.mrb[0].mxu0
  %v3997 = vpop.f32.mrb[0].mxu0
  %v3998 = vadd.f32 %v3581, %v3997
  %v3999 = vpop.f32.mrb[0].mxu0
  %4000 = vmatprep.mubr.bf16.mxu0 %v2920
  %4001 = vmatmul.mubr.bf16.gmra.mrb[0].mxu0 %v2919
  %v4002 = vpop.f32.mrb[0].mxu0
  %v4003 = vadd.f32 %v3586, %v4002
  %v4004 = vpop.f32.mrb[0].mxu0
  %v4005 = vpop.f32.mrb[0].mxu0
  %v4006 = vadd.f32 %v3589, %v4005
  %v4007 = vpop.f32.mrb[0].mxu0
  %4008 = vmatprep.mubr.bf16.mxu0 %v2926
  %4009 = vmatmul.mubr.bf16.gmra.mrb[0].mxu0 %v2925
  %v4010 = vpop.f32.mrb[0].mxu0
  %v4011 = vadd.f32 %v3594, %v4010
  %v4012 = vpop.f32.mrb[0].mxu0
  %v4013 = vpop.f32.mrb[0].mxu0
  %v4014 = vadd.f32 %v3597, %v4013
  %v4015 = vpop.f32.mrb[0].mxu0
  %4016 = vmatprep.mubr.bf16.mxu0 %v2932
  %4017 = vmatmul.mubr.bf16.gmra.mrb[0].mxu0 %v2931
  %v4018 = vpop.f32.mrb[0].mxu0
  %v4019 = vadd.f32 %v3602, %v4018
  %v4020 = vpop.f32.mrb[0].mxu0
  %v4021 = vpop.f32.mrb[0].mxu0
  %v4022 = vadd.f32 %v3605, %v4021
  %v4023 = vpop.f32.mrb[0].mxu0
  %4024 = vmatprep.mubr.bf16.mxu0 %v2938
  %4025 = vmatmul.mubr.bf16.gmra.mrb[0].mxu0 %v2937
  %v4026 = vpop.f32.mrb[0].mxu0
  %v4027 = vadd.f32 %v3610, %v4026
  %v4028 = vpop.f32.mrb[0].mxu0
  %v4029 = vpop.f32.mrb[0].mxu0
  %v4030 = vadd.f32 %v3613, %v4029
  %v4031 = vpop.f32.mrb[0].mxu0
  %4032 = vmatprep.mubr.bf16.mxu0 %v2944
  %4033 = vmatmul.mubr.bf16.gmra.mrb[0].mxu0 %v2943
  %v4034 = vpop.f32.mrb[0].mxu0
  %v4035 = vadd.f32 %v3618, %v4034
  %v4036 = vpop.f32.mrb[0].mxu0
  %v4037 = vpop.f32.mrb[0].mxu0
  %v4038 = vadd.f32 %v3621, %v4037
  %v4039 = vpop.f32.mrb[0].mxu0
  %4040 = vmatprep.mubr.bf16.mxu0 %v2950
  %4041 = vmatmul.mubr.bf16.gmra.mrb[0].mxu0 %v2949
  %v4042 = vpop.f32.mrb[0].mxu0
  %v4043 = vadd.f32 %v3626, %v4042
  %v4044 = vpop.f32.mrb[0].mxu0
  %v4045 = vpop.f32.mrb[0].mxu0
  %v4046 = vadd.f32 %v3629, %v4045
  %v4047 = vpop.f32.mrb[0].mxu0
  %4048 = vmatprep.mubr.bf16.mxu0 %v2956
  %4049 = vmatmul.mubr.bf16.gmra.mrb[0].mxu0 %v2955
  %v4050 = vpop.f32.mrb[0].mxu0
  %v4051 = vadd.f32 %v3634, %v4050
  %v4052 = vpop.f32.mrb[0].mxu0
  %v4053 = vpop.f32.mrb[0].mxu0
  %v4054 = vadd.f32 %v3637, %v4053
  %v4055 = vpop.f32.mrb[0].mxu0
  %4056 = vmatprep.mubr.bf16.mxu0 %v2962
  %4057 = vmatmul.mubr.bf16.gmra.mrb[0].mxu0 %v2961
  %v4058 = vpop.f32.mrb[0].mxu0
  %v4059 = vadd.f32 %v3642, %v4058
  %v4060 = vpop.f32.mrb[0].mxu0
  %v4061 = vpop.f32.mrb[0].mxu0
  %v4062 = vadd.f32 %v3645, %v4061
  %v4063 = vpop.f32.mrb[0].mxu0
  %4064 = vmatprep.mubr.bf16.mxu0 %v2968
  %4065 = vmatmul.mubr.bf16.gmra.mrb[0].mxu0 %v2967
  %v4066 = vpop.f32.mrb[0].mxu0
  %v4067 = vadd.f32 %v3650, %v4066
  %v4068 = vpop.f32.mrb[0].mxu0
  %v4069 = vpop.f32.mrb[0].mxu0
  %v4070 = vadd.f32 %v3653, %v4069
  %v4071 = vpop.f32.mrb[0].mxu0
  %4072 = vmatprep.mubr.bf16.mxu0 %v2974
  %4073 = vmatmul.mubr.bf16.gmra.mrb[0].mxu0 %v2973
  %v4074 = vpop.f32.mrb[0].mxu0
  %v4075 = vadd.f32 %v3658, %v4074
  %v4076 = vpop.f32.mrb[0].mxu0
  %v4077 = vpop.f32.mrb[0].mxu0
  %v4078 = vadd.f32 %v3661, %v4077
  %v4079 = vpop.f32.mrb[0].mxu0
  %4080 = vmatprep.mubr.bf16.mxu0 %v2980
  %4081 = vmatmul.mubr.bf16.gmra.mrb[0].mxu0 %v2979
  %v4082 = vpop.f32.mrb[0].mxu0
  %v4083 = vadd.f32 %v3666, %v4082
  %v4084 = vpop.f32.mrb[0].mxu0
  %v4085 = vpop.f32.mrb[0].mxu0
  %v4086 = vadd.f32 %v3669, %v4085
  %v4087 = vpop.f32.mrb[0].mxu0
  %4088 = vmatprep.mubr.bf16.mxu0 %v2986
  %4089 = vmatmul.mubr.bf16.gmra.mrb[0].mxu0 %v2985
  %v4090 = vpop.f32.mrb[0].mxu0
  %v4091 = vadd.f32 %v3674, %v4090
  %v4092 = vpop.f32.mrb[0].mxu0
  %v4093 = vpop.f32.mrb[0].mxu0
  %v4094 = vadd.f32 %v3677, %v4093
  %v4095 = vpop.f32.mrb[0].mxu0
  %4096 = vmatprep.mubr.bf16.mxu0 %v2992
  %4097 = vmatmul.mubr.bf16.gmra.mrb[0].mxu0 %v2991
  %v4098 = vpop.f32.mrb[0].mxu0
  %v4099 = vadd.f32 %v3682, %v4098
  %v4100 = vpop.f32.mrb[0].mxu0
  %v4101 = vpop.f32.mrb[0].mxu0
  %v4102 = vadd.f32 %v3685, %v4101
  %v4103 = vpop.f32.mrb[0].mxu0
  %4104 = vmatprep.mubr.bf16.mxu0 %v2998
  %4105 = vmatmul.mubr.bf16.gmra.mrb[0].mxu0 %v2997
  %v4106 = vpop.f32.mrb[0].mxu0
  %v4107 = vadd.f32 %v3690, %v4106
  %v4108 = vpop.f32.mrb[0].mxu0
  %v4109 = vpop.f32.mrb[0].mxu0
  %v4110 = vadd.f32 %v3693, %v4109
  %v4111 = vpop.f32.mrb[0].mxu0
  %4112 = vmatprep.mubr.bf16.mxu0 %v3004
  %4113 = vmatmul.mubr.bf16.gmra.mrb[0].mxu0 %v3003
  %v4114 = vpop.f32.mrb[0].mxu0
  %v4115 = vadd.f32 %v3698, %v4114
  %v4116 = vpop.f32.mrb[0].mxu0
  %v4117 = vpop.f32.mrb[0].mxu0
  %v4118 = vadd.f32 %v3701, %v4117
  %v4119 = vpop.f32.mrb[0].mxu0
  %4120 = vmatprep.mubr.bf16.mxu0 %v3010
  %4121 = vmatmul.mubr.bf16.gmra.mrb[0].mxu0 %v3009
  %v4122 = vpop.f32.mrb[0].mxu0
  %v4123 = vadd.f32 %v3706, %v4122
  %v4124 = vpop.f32.mrb[0].mxu0
  %v4125 = vpop.f32.mrb[0].mxu0
  %v4126 = vadd.f32 %v3709, %v4125
  %v4127 = vpop.f32.mrb[0].mxu0
  %4128 = vmatprep.mubr.bf16.mxu0 %v3016
  %4129 = vmatmul.mubr.bf16.gmra.mrb[0].mxu0 %v3015
  %v4130 = vpop.f32.mrb[0].mxu0
  %v4131 = vadd.f32 %v3714, %v4130
  %v4132 = vpop.f32.mrb[0].mxu0
  %v4133 = vpop.f32.mrb[0].mxu0
  %v4134 = vadd.f32 %v3717, %v4133
  %v4135 = vpop.f32.mrb[0].mxu0
  %4136 = vmatprep.mubr.bf16.mxu0 %v3022
  %4137 = vmatmul.mubr.bf16.gmra.mrb[0].mxu0 %v3021
  %v4138 = vpop.f32.mrb[0].mxu0
  %v4139 = vadd.f32 %v3722, %v4138
  %v4140 = vpop.f32.mrb[0].mxu0
  %v4141 = vpop.f32.mrb[0].mxu0
  %v4142 = vadd.f32 %v3725, %v4141
  %v4143 = vpop.f32.mrb[0].mxu0
  %4144 = vmatprep.mubr.bf16.mxu0 %v3028
  %4145 = vmatmul.mubr.bf16.gmra.mrb[0].mxu0 %v3027
  %v4146 = vpop.f32.mrb[0].mxu0
  %v4147 = vadd.f32 %v3730, %v4146
  %v4148 = vpop.f32.mrb[0].mxu0
  %v4149 = vpop.f32.mrb[0].mxu0
  %v4150 = vadd.f32 %v3733, %v4149
  %v4151 = vpop.f32.mrb[0].mxu0
  %4152 = vdwg.mxu0
  %4153 = vmatprep.subr.bf16.mxu0 0
  %4154 = vmatpush1.bf16.msra.mxu0 %v1575
  %4155 = vmatprep.subr.bf16.mxu0 0
  %4156 = vmatpush1.bf16.msra.mxu0 %v1576
  %4157 = vmatprep.subr.bf16.mxu0 0
  %4158 = vmatpush1.bf16.msra.mxu0 %v1577
  %4159 = vmatprep.subr.bf16.mxu0 0
  %4160 = vmatpush1.bf16.msra.mxu0 %v1578
  %4161 = vmatprep.subr.bf16.mxu0 0
  %4162 = vmatpush1.bf16.msra.mxu0 %v1579
  %4163 = vmatprep.subr.bf16.mxu0 0
  %4164 = vmatpush1.bf16.msra.mxu0 %v1580
  %4165 = vmatprep.subr.bf16.mxu0 0
  %4166 = vmatpush1.bf16.msra.mxu0 %v1581
  %4167 = vmatprep.subr.bf16.mxu0 0
  %4168 = vmatpush1.bf16.msra.mxu0 %v1582
  %4169 = vmatprep.subr.bf16.mxu0 0
  %4170 = vmatpush1.bf16.msra.mxu0 %v1583
  %4171 = vmatprep.subr.bf16.mxu0 0
  %4172 = vmatpush1.bf16.msra.mxu0 %v1584
  %4173 = vmatprep.subr.bf16.mxu0 0
  %4174 = vmatpush1.bf16.msra.mxu0 %v1585
  %4175 = vmatprep.subr.bf16.mxu0 0
  %4176 = vmatpush1.bf16.msra.mxu0 %v1586
  %4177 = vmatprep.subr.bf16.mxu0 0
  %4178 = vmatpush1.bf16.msra.mxu0 %v1587
  %4179 = vmatprep.subr.bf16.mxu0 0
  %4180 = vmatpush1.bf16.msra.mxu0 %v1588
  %4181 = vmatprep.subr.bf16.mxu0 0
  %4182 = vmatpush1.bf16.msra.mxu0 %v1589
  %4183 = vmatprep.subr.bf16.mxu0 0
  %4184 = vmatpush1.bf16.msra.mxu0 %v1590
  %4185 = vmatprep.mubr.bf16.mxu0 %v2748
  %4186 = vmatmul.mubr.bf16.gmra.mrb[0].mxu0 %v2747
  %v4187 = vpop.f32.mrb[0].mxu0
  %v4188 = vadd.f32 %v3771, %v4187
  %v4189 = vpop.f32.mrb[0].mxu0
  %v4190 = vpop.f32.mrb[0].mxu0
  %v4191 = vadd.f32 %v3774, %v4190
  %v4192 = vpop.f32.mrb[0].mxu0
  %4193 = vmatprep.mubr.bf16.mxu0 %v2754
  %4194 = vmatmul.mubr.bf16.gmra.mrb[0].mxu0 %v2753
  %v4195 = vpop.f32.mrb[0].mxu0
  %v4196 = vadd.f32 %v3779, %v4195
  %v4197 = vpop.f32.mrb[0].mxu0
  %v4198 = vpop.f32.mrb[0].mxu0
  %v4199 = vadd.f32 %v3782, %v4198
  %v4200 = vpop.f32.mrb[0].mxu0
  %4201 = vmatprep.mubr.bf16.mxu0 %v2760
  %4202 = vmatmul.mubr.bf16.gmra.mrb[0].mxu0 %v2759
  %v4203 = vpop.f32.mrb[0].mxu0
  %v4204 = vadd.f32 %v3787, %v4203
  %v4205 = vpop.f32.mrb[0].mxu0
  %v4206 = vpop.f32.mrb[0].mxu0
  %v4207 = vadd.f32 %v3790, %v4206
  %v4208 = vpop.f32.mrb[0].mxu0
  %4209 = vmatprep.mubr.bf16.mxu0 %v2766
  %4210 = vmatmul.mubr.bf16.gmra.mrb[0].mxu0 %v2765
  %v4211 = vpop.f32.mrb[0].mxu0
  %v4212 = vadd.f32 %v3795, %v4211
  %v4213 = vpop.f32.mrb[0].mxu0
  %v4214 = vpop.f32.mrb[0].mxu0
  %v4215 = vadd.f32 %v3798, %v4214
  %v4216 = vpop.f32.mrb[0].mxu0
  %4217 = vmatprep.mubr.bf16.mxu0 %v2772
  %4218 = vmatmul.mubr.bf16.gmra.mrb[0].mxu0 %v2771
  %v4219 = vpop.f32.mrb[0].mxu0
  %v4220 = vadd.f32 %v3803, %v4219
  %v4221 = vpop.f32.mrb[0].mxu0
  %v4222 = vpop.f32.mrb[0].mxu0
  %v4223 = vadd.f32 %v3806, %v4222
  %v4224 = vpop.f32.mrb[0].mxu0
  %4225 = vmatprep.mubr.bf16.mxu0 %v2778
  %4226 = vmatmul.mubr.bf16.gmra.mrb[0].mxu0 %v2777
  %v4227 = vpop.f32.mrb[0].mxu0
  %v4228 = vadd.f32 %v3811, %v4227
  %v4229 = vpop.f32.mrb[0].mxu0
  %v4230 = vpop.f32.mrb[0].mxu0
  %v4231 = vadd.f32 %v3814, %v4230
  %v4232 = vpop.f32.mrb[0].mxu0
  %4233 = vmatprep.mubr.bf16.mxu0 %v2784
  %4234 = vmatmul.mubr.bf16.gmra.mrb[0].mxu0 %v2783
  %v4235 = vpop.f32.mrb[0].mxu0
  %v4236 = vadd.f32 %v3819, %v4235
  %v4237 = vpop.f32.mrb[0].mxu0
  %v4238 = vpop.f32.mrb[0].mxu0
  %v4239 = vadd.f32 %v3822, %v4238
  %v4240 = vpop.f32.mrb[0].mxu0
  %4241 = vmatprep.mubr.bf16.mxu0 %v2790
  %4242 = vmatmul.mubr.bf16.gmra.mrb[0].mxu0 %v2789
  %v4243 = vpop.f32.mrb[0].mxu0
  %v4244 = vadd.f32 %v3827, %v4243
  %v4245 = vpop.f32.mrb[0].mxu0
  %v4246 = vpop.f32.mrb[0].mxu0
  %v4247 = vadd.f32 %v3830, %v4246
  %v4248 = vpop.f32.mrb[0].mxu0
  %4249 = vmatprep.mubr.bf16.mxu0 %v2796
  %4250 = vmatmul.mubr.bf16.gmra.mrb[0].mxu0 %v2795
  %v4251 = vpop.f32.mrb[0].mxu0
  %v4252 = vadd.f32 %v3835, %v4251
  %v4253 = vpop.f32.mrb[0].mxu0
  %v4254 = vpop.f32.mrb[0].mxu0
  %v4255 = vadd.f32 %v3838, %v4254
  %v4256 = vpop.f32.mrb[0].mxu0
  %4257 = vmatprep.mubr.bf16.mxu0 %v2802
  %4258 = vmatmul.mubr.bf16.gmra.mrb[0].mxu0 %v2801
  %v4259 = vpop.f32.mrb[0].mxu0
  %v4260 = vadd.f32 %v3843, %v4259
  %v4261 = vpop.f32.mrb[0].mxu0
  %v4262 = vpop.f32.mrb[0].mxu0
  %v4263 = vadd.f32 %v3846, %v4262
  %v4264 = vpop.f32.mrb[0].mxu0
  %4265 = vmatprep.mubr.bf16.mxu0 %v2808
  %4266 = vmatmul.mubr.bf16.gmra.mrb[0].mxu0 %v2807
  %v4267 = vpop.f32.mrb[0].mxu0
  %v4268 = vadd.f32 %v3851, %v4267
  %v4269 = vpop.f32.mrb[0].mxu0
  %v4270 = vpop.f32.mrb[0].mxu0
  %v4271 = vadd.f32 %v3854, %v4270
  %v4272 = vpop.f32.mrb[0].mxu0
  %4273 = vmatprep.mubr.bf16.mxu0 %v2814
  %4274 = vmatmul.mubr.bf16.gmra.mrb[0].mxu0 %v2813
  %v4275 = vpop.f32.mrb[0].mxu0
  %v4276 = vadd.f32 %v3859, %v4275
  %v4277 = vpop.f32.mrb[0].mxu0
  %v4278 = vpop.f32.mrb[0].mxu0
  %v4279 = vadd.f32 %v3862, %v4278
  %v4280 = vpop.f32.mrb[0].mxu0
  %4281 = vmatprep.mubr.bf16.mxu0 %v2820
  %4282 = vmatmul.mubr.bf16.gmra.mrb[0].mxu0 %v2819
  %v4283 = vpop.f32.mrb[0].mxu0
  %v4284 = vadd.f32 %v3867, %v4283
  %v4285 = vpop.f32.mrb[0].mxu0
  %v4286 = vpop.f32.mrb[0].mxu0
  %v4287 = vadd.f32 %v3870, %v4286
  %v4288 = vpop.f32.mrb[0].mxu0
  %4289 = vmatprep.mubr.bf16.mxu0 %v2826
  %4290 = vmatmul.mubr.bf16.gmra.mrb[0].mxu0 %v2825
  %v4291 = vpop.f32.mrb[0].mxu0
  %v4292 = vadd.f32 %v3875, %v4291
  %v4293 = vpop.f32.mrb[0].mxu0
  %v4294 = vpop.f32.mrb[0].mxu0
  %v4295 = vadd.f32 %v3878, %v4294
  %v4296 = vpop.f32.mrb[0].mxu0
  %4297 = vmatprep.mubr.bf16.mxu0 %v2832
  %4298 = vmatmul.mubr.bf16.gmra.mrb[0].mxu0 %v2831
  %v4299 = vpop.f32.mrb[0].mxu0
  %v4300 = vadd.f32 %v3883, %v4299
  %v4301 = vpop.f32.mrb[0].mxu0
  %v4302 = vpop.f32.mrb[0].mxu0
  %v4303 = vadd.f32 %v3886, %v4302
  %v4304 = vpop.f32.mrb[0].mxu0
  %4305 = vmatprep.mubr.bf16.mxu0 %v2838
  %4306 = vmatmul.mubr.bf16.gmra.mrb[0].mxu0 %v2837
  %v4307 = vpop.f32.mrb[0].mxu0
  %v4308 = vadd.f32 %v3891, %v4307
  %v4309 = vpop.f32.mrb[0].mxu0
  %v4310 = vpop.f32.mrb[0].mxu0
  %v4311 = vadd.f32 %v3894, %v4310
  %v4312 = vpop.f32.mrb[0].mxu0
  %4313 = vmatprep.mubr.bf16.mxu0 %v2844
  %4314 = vmatmul.mubr.bf16.gmra.mrb[0].mxu0 %v2843
  %v4315 = vpop.f32.mrb[0].mxu0
  %v4316 = vadd.f32 %v3899, %v4315
  %v4317 = vpop.f32.mrb[0].mxu0
  %v4318 = vpop.f32.mrb[0].mxu0
  %v4319 = vadd.f32 %v3902, %v4318
  %v4320 = vpop.f32.mrb[0].mxu0
  %4321 = vmatprep.mubr.bf16.mxu0 %v2850
  %4322 = vmatmul.mubr.bf16.gmra.mrb[0].mxu0 %v2849
  %v4323 = vpop.f32.mrb[0].mxu0
  %v4324 = vadd.f32 %v3907, %v4323
  %v4325 = vpop.f32.mrb[0].mxu0
  %v4326 = vpop.f32.mrb[0].mxu0
  %v4327 = vadd.f32 %v3910, %v4326
  %v4328 = vpop.f32.mrb[0].mxu0
  %4329 = vmatprep.mubr.bf16.mxu0 %v2856
  %4330 = vmatmul.mubr.bf16.gmra.mrb[0].mxu0 %v2855
  %v4331 = vpop.f32.mrb[0].mxu0
  %v4332 = vadd.f32 %v3915, %v4331
  %v4333 = vpop.f32.mrb[0].mxu0
  %v4334 = vpop.f32.mrb[0].mxu0
  %v4335 = vadd.f32 %v3918, %v4334
  %v4336 = vpop.f32.mrb[0].mxu0
  %4337 = vmatprep.mubr.bf16.mxu0 %v2862
  %4338 = vmatmul.mubr.bf16.gmra.mrb[0].mxu0 %v2861
  %v4339 = vpop.f32.mrb[0].mxu0
  %v4340 = vadd.f32 %v3923, %v4339
  %v4341 = vpop.f32.mrb[0].mxu0
  %v4342 = vpop.f32.mrb[0].mxu0
  %v4343 = vadd.f32 %v3926, %v4342
  %v4344 = vpop.f32.mrb[0].mxu0
  %4345 = vmatprep.mubr.bf16.mxu0 %v2868
  %4346 = vmatmul.mubr.bf16.gmra.mrb[0].mxu0 %v2867
  %v4347 = vpop.f32.mrb[0].mxu0
  %v4348 = vadd.f32 %v3931, %v4347
  %v4349 = vpop.f32.mrb[0].mxu0
  %v4350 = vpop.f32.mrb[0].mxu0
  %v4351 = vadd.f32 %v3934, %v4350
  %v4352 = vpop.f32.mrb[0].mxu0
  %4353 = vmatprep.mubr.bf16.mxu0 %v2874
  %4354 = vmatmul.mubr.bf16.gmra.mrb[0].mxu0 %v2873
  %v4355 = vpop.f32.mrb[0].mxu0
  %v4356 = vadd.f32 %v3939, %v4355
  %v4357 = vpop.f32.mrb[0].mxu0
  %v4358 = vpop.f32.mrb[0].mxu0
  %v4359 = vadd.f32 %v3942, %v4358
  %v4360 = vpop.f32.mrb[0].mxu0
  %4361 = vmatprep.mubr.bf16.mxu0 %v2880
  %4362 = vmatmul.mubr.bf16.gmra.mrb[0].mxu0 %v2879
  %v4363 = vpop.f32.mrb[0].mxu0
  %v4364 = vadd.f32 %v3947, %v4363
  %v4365 = vpop.f32.mrb[0].mxu0
  %v4366 = vpop.f32.mrb[0].mxu0
  %v4367 = vadd.f32 %v3950, %v4366
  %v4368 = vpop.f32.mrb[0].mxu0
  %4369 = vmatprep.mubr.bf16.mxu0 %v2886
  %4370 = vmatmul.mubr.bf16.gmra.mrb[0].mxu0 %v2885
  %v4371 = vpop.f32.mrb[0].mxu0
  %v4372 = vadd.f32 %v3955, %v4371
  %v4373 = vpop.f32.mrb[0].mxu0
  %v4374 = vpop.f32.mrb[0].mxu0
  %v4375 = vadd.f32 %v3958, %v4374
  %v4376 = vpop.f32.mrb[0].mxu0
  %4377 = vmatprep.mubr.bf16.mxu0 %v2892
  %4378 = vmatmul.mubr.bf16.gmra.mrb[0].mxu0 %v2891
  %v4379 = vpop.f32.mrb[0].mxu0
  %v4380 = vadd.f32 %v3963, %v4379
  %v4381 = vpop.f32.mrb[0].mxu0
  %v4382 = vpop.f32.mrb[0].mxu0
  %v4383 = vadd.f32 %v3966, %v4382
  %v4384 = vpop.f32.mrb[0].mxu0
  %4385 = vmatprep.mubr.bf16.mxu0 %v2898
  %4386 = vmatmul.mubr.bf16.gmra.mrb[0].mxu0 %v2897
  %v4387 = vpop.f32.mrb[0].mxu0
  %v4388 = vadd.f32 %v3971, %v4387
  %v4389 = vpop.f32.mrb[0].mxu0
  %v4390 = vpop.f32.mrb[0].mxu0
  %v4391 = vadd.f32 %v3974, %v4390
  %v4392 = vpop.f32.mrb[0].mxu0
  %4393 = vmatprep.mubr.bf16.mxu0 %v2904
  %4394 = vmatmul.mubr.bf16.gmra.mrb[0].mxu0 %v2903
  %v4395 = vpop.f32.mrb[0].mxu0
  %v4396 = vadd.f32 %v3979, %v4395
  %v4397 = vpop.f32.mrb[0].mxu0
  %v4398 = vpop.f32.mrb[0].mxu0
  %v4399 = vadd.f32 %v3982, %v4398
  %v4400 = vpop.f32.mrb[0].mxu0
  %4401 = vmatprep.mubr.bf16.mxu0 %v2910
  %4402 = vmatmul.mubr.bf16.gmra.mrb[0].mxu0 %v2909
  %v4403 = vpop.f32.mrb[0].mxu0
  %v4404 = vadd.f32 %v3987, %v4403
  %v4405 = vpop.f32.mrb[0].mxu0
  %v4406 = vpop.f32.mrb[0].mxu0
  %v4407 = vadd.f32 %v3990, %v4406
  %v4408 = vpop.f32.mrb[0].mxu0
  %4409 = vmatprep.mubr.bf16.mxu0 %v2916
  %4410 = vmatmul.mubr.bf16.gmra.mrb[0].mxu0 %v2915
  %v4411 = vpop.f32.mrb[0].mxu0
  %v4412 = vadd.f32 %v3995, %v4411
  %v4413 = vpop.f32.mrb[0].mxu0
  %v4414 = vpop.f32.mrb[0].mxu0
  %v4415 = vadd.f32 %v3998, %v4414
  %v4416 = vpop.f32.mrb[0].mxu0
  %4417 = vmatprep.mubr.bf16.mxu0 %v2922
  %4418 = vmatmul.mubr.bf16.gmra.mrb[0].mxu0 %v2921
  %v4419 = vpop.f32.mrb[0].mxu0
  %v4420 = vadd.f32 %v4003, %v4419
  %v4421 = vpop.f32.mrb[0].mxu0
  %v4422 = vpop.f32.mrb[0].mxu0
  %v4423 = vadd.f32 %v4006, %v4422
  %v4424 = vpop.f32.mrb[0].mxu0
  %4425 = vmatprep.mubr.bf16.mxu0 %v2928
  %4426 = vmatmul.mubr.bf16.gmra.mrb[0].mxu0 %v2927
  %v4427 = vpop.f32.mrb[0].mxu0
  %v4428 = vadd.f32 %v4011, %v4427
  %v4429 = vpop.f32.mrb[0].mxu0
  %v4430 = vpop.f32.mrb[0].mxu0
  %v4431 = vadd.f32 %v4014, %v4430
  %v4432 = vpop.f32.mrb[0].mxu0
  %4433 = vmatprep.mubr.bf16.mxu0 %v2934
  %4434 = vmatmul.mubr.bf16.gmra.mrb[0].mxu0 %v2933
  %v4435 = vpop.f32.mrb[0].mxu0
  %v4436 = vadd.f32 %v4019, %v4435
  %v4437 = vpop.f32.mrb[0].mxu0
  %v4438 = vpop.f32.mrb[0].mxu0
  %v4439 = vadd.f32 %v4022, %v4438
  %v4440 = vpop.f32.mrb[0].mxu0
  %4441 = vmatprep.mubr.bf16.mxu0 %v2940
  %4442 = vmatmul.mubr.bf16.gmra.mrb[0].mxu0 %v2939
  %v4443 = vpop.f32.mrb[0].mxu0
  %v4444 = vadd.f32 %v4027, %v4443
  %v4445 = vpop.f32.mrb[0].mxu0
  %v4446 = vpop.f32.mrb[0].mxu0
  %v4447 = vadd.f32 %v4030, %v4446
  %v4448 = vpop.f32.mrb[0].mxu0
  %4449 = vmatprep.mubr.bf16.mxu0 %v2946
  %4450 = vmatmul.mubr.bf16.gmra.mrb[0].mxu0 %v2945
  %v4451 = vpop.f32.mrb[0].mxu0
  %v4452 = vadd.f32 %v4035, %v4451
  %v4453 = vpop.f32.mrb[0].mxu0
  %v4454 = vpop.f32.mrb[0].mxu0
  %v4455 = vadd.f32 %v4038, %v4454
  %v4456 = vpop.f32.mrb[0].mxu0
  %4457 = vmatprep.mubr.bf16.mxu0 %v2952
  %4458 = vmatmul.mubr.bf16.gmra.mrb[0].mxu0 %v2951
  %v4459 = vpop.f32.mrb[0].mxu0
  %v4460 = vadd.f32 %v4043, %v4459
  %v4461 = vpop.f32.mrb[0].mxu0
  %v4462 = vpop.f32.mrb[0].mxu0
  %v4463 = vadd.f32 %v4046, %v4462
  %v4464 = vpop.f32.mrb[0].mxu0
  %4465 = vmatprep.mubr.bf16.mxu0 %v2958
  %4466 = vmatmul.mubr.bf16.gmra.mrb[0].mxu0 %v2957
  %v4467 = vpop.f32.mrb[0].mxu0
  %v4468 = vadd.f32 %v4051, %v4467
  %v4469 = vpop.f32.mrb[0].mxu0
  %v4470 = vpop.f32.mrb[0].mxu0
  %v4471 = vadd.f32 %v4054, %v4470
  %v4472 = vpop.f32.mrb[0].mxu0
  %4473 = vmatprep.mubr.bf16.mxu0 %v2964
  %4474 = vmatmul.mubr.bf16.gmra.mrb[0].mxu0 %v2963
  %v4475 = vpop.f32.mrb[0].mxu0
  %v4476 = vadd.f32 %v4059, %v4475
  %v4477 = vpop.f32.mrb[0].mxu0
  %v4478 = vpop.f32.mrb[0].mxu0
  %v4479 = vadd.f32 %v4062, %v4478
  %v4480 = vpop.f32.mrb[0].mxu0
  %4481 = vmatprep.mubr.bf16.mxu0 %v2970
  %4482 = vmatmul.mubr.bf16.gmra.mrb[0].mxu0 %v2969
  %v4483 = vpop.f32.mrb[0].mxu0
  %v4484 = vadd.f32 %v4067, %v4483
  %v4485 = vpop.f32.mrb[0].mxu0
  %v4486 = vpop.f32.mrb[0].mxu0
  %v4487 = vadd.f32 %v4070, %v4486
  %v4488 = vpop.f32.mrb[0].mxu0
  %4489 = vmatprep.mubr.bf16.mxu0 %v2976
  %4490 = vmatmul.mubr.bf16.gmra.mrb[0].mxu0 %v2975
  %v4491 = vpop.f32.mrb[0].mxu0
  %v4492 = vadd.f32 %v4075, %v4491
  %v4493 = vpop.f32.mrb[0].mxu0
  %v4494 = vpop.f32.mrb[0].mxu0
  %v4495 = vadd.f32 %v4078, %v4494
  %v4496 = vpop.f32.mrb[0].mxu0
  %4497 = vmatprep.mubr.bf16.mxu0 %v2982
  %4498 = vmatmul.mubr.bf16.gmra.mrb[0].mxu0 %v2981
  %v4499 = vpop.f32.mrb[0].mxu0
  %v4500 = vadd.f32 %v4083, %v4499
  %v4501 = vpop.f32.mrb[0].mxu0
  %v4502 = vpop.f32.mrb[0].mxu0
  %v4503 = vadd.f32 %v4086, %v4502
  %v4504 = vpop.f32.mrb[0].mxu0
  %4505 = vmatprep.mubr.bf16.mxu0 %v2988
  %4506 = vmatmul.mubr.bf16.gmra.mrb[0].mxu0 %v2987
  %v4507 = vpop.f32.mrb[0].mxu0
  %v4508 = vadd.f32 %v4091, %v4507
  %v4509 = vpop.f32.mrb[0].mxu0
  %v4510 = vpop.f32.mrb[0].mxu0
  %v4511 = vadd.f32 %v4094, %v4510
  %v4512 = vpop.f32.mrb[0].mxu0
  %4513 = vmatprep.mubr.bf16.mxu0 %v2994
  %4514 = vmatmul.mubr.bf16.gmra.mrb[0].mxu0 %v2993
  %v4515 = vpop.f32.mrb[0].mxu0
  %v4516 = vadd.f32 %v4099, %v4515
  %v4517 = vpop.f32.mrb[0].mxu0
  %v4518 = vpop.f32.mrb[0].mxu0
  %v4519 = vadd.f32 %v4102, %v4518
  %v4520 = vpop.f32.mrb[0].mxu0
  %4521 = vmatprep.mubr.bf16.mxu0 %v3000
  %4522 = vmatmul.mubr.bf16.gmra.mrb[0].mxu0 %v2999
  %v4523 = vpop.f32.mrb[0].mxu0
  %v4524 = vadd.f32 %v4107, %v4523
  %v4525 = vpop.f32.mrb[0].mxu0
  %v4526 = vpop.f32.mrb[0].mxu0
  %v4527 = vadd.f32 %v4110, %v4526
  %v4528 = vpop.f32.mrb[0].mxu0
  %4529 = vmatprep.mubr.bf16.mxu0 %v3006
  %4530 = vmatmul.mubr.bf16.gmra.mrb[0].mxu0 %v3005
  %v4531 = vpop.f32.mrb[0].mxu0
  %v4532 = vadd.f32 %v4115, %v4531
  %v4533 = vpop.f32.mrb[0].mxu0
  %v4534 = vpop.f32.mrb[0].mxu0
  %v4535 = vadd.f32 %v4118, %v4534
  %v4536 = vpop.f32.mrb[0].mxu0
  %4537 = vmatprep.mubr.bf16.mxu0 %v3012
  %4538 = vmatmul.mubr.bf16.gmra.mrb[0].mxu0 %v3011
  %v4539 = vpop.f32.mrb[0].mxu0
  %v4540 = vadd.f32 %v4123, %v4539
  %v4541 = vpop.f32.mrb[0].mxu0
  %v4542 = vpop.f32.mrb[0].mxu0
  %v4543 = vadd.f32 %v4126, %v4542
  %v4544 = vpop.f32.mrb[0].mxu0
  %4545 = vmatprep.mubr.bf16.mxu0 %v3018
  %4546 = vmatmul.mubr.bf16.gmra.mrb[0].mxu0 %v3017
  %v4547 = vpop.f32.mrb[0].mxu0
  %v4548 = vadd.f32 %v4131, %v4547
  %v4549 = vpop.f32.mrb[0].mxu0
  %v4550 = vpop.f32.mrb[0].mxu0
  %v4551 = vadd.f32 %v4134, %v4550
  %v4552 = vpop.f32.mrb[0].mxu0
  %4553 = vmatprep.mubr.bf16.mxu0 %v3024
  %4554 = vmatmul.mubr.bf16.gmra.mrb[0].mxu0 %v3023
  %v4555 = vpop.f32.mrb[0].mxu0
  %v4556 = vadd.f32 %v4139, %v4555
  %v4557 = vpop.f32.mrb[0].mxu0
  %v4558 = vpop.f32.mrb[0].mxu0
  %v4559 = vadd.f32 %v4142, %v4558
  %v4560 = vpop.f32.mrb[0].mxu0
  %4561 = vmatprep.mubr.bf16.mxu0 %v3030
  %4562 = vmatmul.mubr.bf16.gmra.mrb[0].mxu0 %v3029
  %v4563 = vpop.f32.mrb[0].mxu0
  %v4564 = vadd.f32 %v4147, %v4563
  %v4565 = vpop.f32.mrb[0].mxu0
  %v4566 = vpop.f32.mrb[0].mxu0
  %v4567 = vadd.f32 %v4150, %v4566
  %v4568 = vpop.f32.mrb[0].mxu0
  %4569 = vdwg.mxu0
  %4602 = vrot.lane.b32.xlu0 %v4188, 4
  %v4603 = vpop.permute.xlu0 %4602
  %4604 = vrot.lane.b32.xlu0 %v4191, 4
  %v4605 = vpop.permute.xlu0 %4604
  %4606 = vrot.lane.b32.xlu0 %v4196, 4
  %v4607 = vpop.permute.xlu0 %4606
  %4608 = vrot.lane.b32.xlu0 %v4199, 4
  %v4609 = vpop.permute.xlu0 %4608
  %4610 = vrot.lane.b32.xlu0 %v4204, 4
  %v4611 = vpop.permute.xlu0 %4610
  %4612 = vrot.lane.b32.xlu0 %v4207, 4
  %v4613 = vpop.permute.xlu0 %4612
  %4614 = vrot.lane.b32.xlu0 %v4212, 4
  %v4615 = vpop.permute.xlu0 %4614
  %4616 = vrot.lane.b32.xlu0 %v4215, 4
  %v4617 = vpop.permute.xlu0 %4616
  %4618 = vrot.lane.b32.xlu0 %v4220, 4
  %v4619 = vpop.permute.xlu0 %4618
  %4620 = vrot.lane.b32.xlu0 %v4223, 4
  %v4621 = vpop.permute.xlu0 %4620
  %4622 = vrot.lane.b32.xlu0 %v4228, 4
  %v4623 = vpop.permute.xlu0 %4622
  %4624 = vrot.lane.b32.xlu0 %v4231, 4
  %v4625 = vpop.permute.xlu0 %4624
  %4626 = vrot.lane.b32.xlu0 %v4236, 4
  %v4627 = vpop.permute.xlu0 %4626
  %4628 = vrot.lane.b32.xlu0 %v4239, 4
  %v4629 = vpop.permute.xlu0 %4628
  %4630 = vrot.lane.b32.xlu0 %v4244, 4
  %v4631 = vpop.permute.xlu0 %4630
  %4632 = vrot.lane.b32.xlu0 %v4247, 4
  %v4633 = vpop.permute.xlu0 %4632
  %4634 = vrot.lane.b32.xlu0 %v4252, 4
  %v4635 = vpop.permute.xlu0 %4634
  %4636 = vrot.lane.b32.xlu0 %v4255, 4
  %v4637 = vpop.permute.xlu0 %4636
  %4638 = vrot.lane.b32.xlu0 %v4260, 4
  %v4639 = vpop.permute.xlu0 %4638
  %4640 = vrot.lane.b32.xlu0 %v4263, 4
  %v4641 = vpop.permute.xlu0 %4640
  %4642 = vrot.lane.b32.xlu0 %v4268, 4
  %v4643 = vpop.permute.xlu0 %4642
  %4644 = vrot.lane.b32.xlu0 %v4271, 4
  %v4645 = vpop.permute.xlu0 %4644
  %4646 = vrot.lane.b32.xlu0 %v4276, 4
  %v4647 = vpop.permute.xlu0 %4646
  %4648 = vrot.lane.b32.xlu0 %v4279, 4
  %v4649 = vpop.permute.xlu0 %4648
  %4650 = vrot.lane.b32.xlu0 %v4284, 4
  %v4651 = vpop.permute.xlu0 %4650
  %4652 = vrot.lane.b32.xlu0 %v4287, 4
  %v4653 = vpop.permute.xlu0 %4652
  %4654 = vrot.lane.b32.xlu0 %v4292, 4
  %v4655 = vpop.permute.xlu0 %4654
  %4656 = vrot.lane.b32.xlu0 %v4295, 4
  %v4657 = vpop.permute.xlu0 %4656
  %4658 = vrot.lane.b32.xlu0 %v4300, 4
  %v4659 = vpop.permute.xlu0 %4658
  %4660 = vrot.lane.b32.xlu0 %v4303, 4
  %v4661 = vpop.permute.xlu0 %4660
  %4662 = vrot.lane.b32.xlu0 %v4308, 4
  %v4663 = vpop.permute.xlu0 %4662
  %4664 = vrot.lane.b32.xlu0 %v4311, 4
  %v4665 = vpop.permute.xlu0 %4664
  %vm4698 = vcmask 31744
  %v4699 = vsel %vm4698, 0.0, %v4603
  %v4700 = vsel %vm4698, 0.0, %v4605
  %v4701 = vsel %vm4698, 0.0, %v4607
  %v4702 = vsel %vm4698, 0.0, %v4609
  %v4703 = vsel %vm4698, 0.0, %v4611
  %v4704 = vsel %vm4698, 0.0, %v4613
  %v4705 = vsel %vm4698, 0.0, %v4615
  %v4706 = vsel %vm4698, 0.0, %v4617
  %v4707 = vsel %vm4698, 0.0, %v4619
  %v4708 = vsel %vm4698, 0.0, %v4621
  %v4709 = vsel %vm4698, 0.0, %v4623
  %v4710 = vsel %vm4698, 0.0, %v4625
  %v4711 = vsel %vm4698, 0.0, %v4627
  %v4712 = vsel %vm4698, 0.0, %v4629
  %v4713 = vsel %vm4698, 0.0, %v4631
  %v4714 = vsel %vm4698, 0.0, %v4633
  %v4715 = vsel %vm4698, 0.0, %v4635
  %v4716 = vsel %vm4698, 0.0, %v4637
  %v4717 = vsel %vm4698, 0.0, %v4639
  %v4718 = vsel %vm4698, 0.0, %v4641
  %v4719 = vsel %vm4698, 0.0, %v4643
  %v4720 = vsel %vm4698, 0.0, %v4645
  %v4721 = vsel %vm4698, 0.0, %v4647
  %v4722 = vsel %vm4698, 0.0, %v4649
  %v4723 = vsel %vm4698, 0.0, %v4651
  %v4724 = vsel %vm4698, 0.0, %v4653
  %v4725 = vsel %vm4698, 0.0, %v4655
  %v4726 = vsel %vm4698, 0.0, %v4657
  %v4727 = vsel %vm4698, 0.0, %v4659
  %v4728 = vsel %vm4698, 0.0, %v4661
  %v4729 = vsel %vm4698, 0.0, %v4663
  %v4730 = vsel %vm4698, 0.0, %v4665
  %v4731 = vld [vmem:[%s8 + $0x2] sm:$0x1]
  %v4732 = vlaneseq
  %v4733 = vshrl.u32 %v4732, 7
  %v4734 = vsub.s32 0, %v4733
  %v4735 = vrot.slane %v4731, %v4734
  %v4736 = vmul.f32 %v4699, %v4735
  %v4737 = vmul.f32 %v4700, %v4735
  %v4738 = vmul.f32 %v4701, %v4735
  %v4739 = vmul.f32 %v4702, %v4735
  %v4740 = vmul.f32 %v4703, %v4735
  %v4741 = vmul.f32 %v4704, %v4735
  %v4742 = vmul.f32 %v4705, %v4735
  %v4743 = vmul.f32 %v4706, %v4735
  %v4744 = vmul.f32 %v4707, %v4735
  %v4745 = vmul.f32 %v4708, %v4735
  %v4746 = vmul.f32 %v4709, %v4735
  %v4747 = vmul.f32 %v4710, %v4735
  %v4748 = vmul.f32 %v4711, %v4735
  %v4749 = vmul.f32 %v4712, %v4735
  %v4750 = vmul.f32 %v4713, %v4735
  %v4751 = vmul.f32 %v4714, %v4735
  %v4752 = vmul.f32 %v4715, %v4735
  %v4753 = vmul.f32 %v4716, %v4735
  %v4754 = vmul.f32 %v4717, %v4735
  %v4755 = vmul.f32 %v4718, %v4735
  %v4756 = vmul.f32 %v4719, %v4735
  %v4757 = vmul.f32 %v4720, %v4735
  %v4758 = vmul.f32 %v4721, %v4735
  %v4759 = vmul.f32 %v4722, %v4735
  %v4760 = vmul.f32 %v4723, %v4735
  %v4761 = vmul.f32 %v4724, %v4735
  %v4762 = vmul.f32 %v4725, %v4735
  %v4763 = vmul.f32 %v4726, %v4735
  %v4764 = vmul.f32 %v4727, %v4735
  %v4765 = vmul.f32 %v4728, %v4735
  %v4766 = vmul.f32 %v4729, %v4735
  %v4767 = vmul.f32 %v4730, %v4735
  %4800 = vrot.lane.b32.xlu0 %v4444, 124
  %v4801 = vpop.permute.xlu0 %4800
  %4802 = vrot.lane.b32.xlu0 %v4447, 124
  %v4803 = vpop.permute.xlu0 %4802
  %4804 = vrot.lane.b32.xlu0 %v4452, 124
  %v4805 = vpop.permute.xlu0 %4804
  %4806 = vrot.lane.b32.xlu0 %v4455, 124
  %v4807 = vpop.permute.xlu0 %4806
  %4808 = vrot.lane.b32.xlu0 %v4460, 124
  %v4809 = vpop.permute.xlu0 %4808
  %4810 = vrot.lane.b32.xlu0 %v4463, 124
  %v4811 = vpop.permute.xlu0 %4810
  %4812 = vrot.lane.b32.xlu0 %v4468, 124
  %v4813 = vpop.permute.xlu0 %4812
  %4814 = vrot.lane.b32.xlu0 %v4471, 124
  %v4815 = vpop.permute.xlu0 %4814
  %4816 = vrot.lane.b32.xlu0 %v4476, 124
  %v4817 = vpop.permute.xlu0 %4816
  %4818 = vrot.lane.b32.xlu0 %v4479, 124
  %v4819 = vpop.permute.xlu0 %4818
  %4820 = vrot.lane.b32.xlu0 %v4484, 124
  %v4821 = vpop.permute.xlu0 %4820
  %4822 = vrot.lane.b32.xlu0 %v4487, 124
  %v4823 = vpop.permute.xlu0 %4822
  %4824 = vrot.lane.b32.xlu0 %v4492, 124
  %v4825 = vpop.permute.xlu0 %4824
  %4826 = vrot.lane.b32.xlu0 %v4495, 124
  %v4827 = vpop.permute.xlu0 %4826
  %4828 = vrot.lane.b32.xlu0 %v4500, 124
  %v4829 = vpop.permute.xlu0 %4828
  %4830 = vrot.lane.b32.xlu0 %v4503, 124
  %v4831 = vpop.permute.xlu0 %4830
  %4832 = vrot.lane.b32.xlu0 %v4508, 124
  %v4833 = vpop.permute.xlu0 %4832
  %4834 = vrot.lane.b32.xlu0 %v4511, 124
  %v4835 = vpop.permute.xlu0 %4834
  %4836 = vrot.lane.b32.xlu0 %v4516, 124
  %v4837 = vpop.permute.xlu0 %4836
  %4838 = vrot.lane.b32.xlu0 %v4519, 124
  %v4839 = vpop.permute.xlu0 %4838
  %4840 = vrot.lane.b32.xlu0 %v4524, 124
  %v4841 = vpop.permute.xlu0 %4840
  %4842 = vrot.lane.b32.xlu0 %v4527, 124
  %v4843 = vpop.permute.xlu0 %4842
  %4844 = vrot.lane.b32.xlu0 %v4532, 124
  %v4845 = vpop.permute.xlu0 %4844
  %4846 = vrot.lane.b32.xlu0 %v4535, 124
  %v4847 = vpop.permute.xlu0 %4846
  %4848 = vrot.lane.b32.xlu0 %v4540, 124
  %v4849 = vpop.permute.xlu0 %4848
  %4850 = vrot.lane.b32.xlu0 %v4543, 124
  %v4851 = vpop.permute.xlu0 %4850
  %4852 = vrot.lane.b32.xlu0 %v4548, 124
  %v4853 = vpop.permute.xlu0 %4852
  %4854 = vrot.lane.b32.xlu0 %v4551, 124
  %v4855 = vpop.permute.xlu0 %4854
  %4856 = vrot.lane.b32.xlu0 %v4556, 124
  %v4857 = vpop.permute.xlu0 %4856
  %4858 = vrot.lane.b32.xlu0 %v4559, 124
  %v4859 = vpop.permute.xlu0 %4858
  %4860 = vrot.lane.b32.xlu0 %v4564, 124
  %v4861 = vpop.permute.xlu0 %4860
  %4862 = vrot.lane.b32.xlu0 %v4567, 124
  %v4863 = vpop.permute.xlu0 %4862
  %vm4896 = vcmask 228352
  %v4897 = vsel %vm4896, %v4801, 0.0
  %v4898 = vsel %vm4896, %v4803, 0.0
  %v4899 = vsel %vm4896, %v4805, 0.0
  %v4900 = vsel %vm4896, %v4807, 0.0
  %v4901 = vsel %vm4896, %v4809, 0.0
  %v4902 = vsel %vm4896, %v4811, 0.0
  %v4903 = vsel %vm4896, %v4813, 0.0
  %v4904 = vsel %vm4896, %v4815, 0.0
  %v4905 = vsel %vm4896, %v4817, 0.0
  %v4906 = vsel %vm4896, %v4819, 0.0
  %v4907 = vsel %vm4896, %v4821, 0.0
  %v4908 = vsel %vm4896, %v4823, 0.0
  %v4909 = vsel %vm4896, %v4825, 0.0
  %v4910 = vsel %vm4896, %v4827, 0.0
  %v4911 = vsel %vm4896, %v4829, 0.0
  %v4912 = vsel %vm4896, %v4831, 0.0
  %v4913 = vsel %vm4896, %v4833, 0.0
  %v4914 = vsel %vm4896, %v4835, 0.0
  %v4915 = vsel %vm4896, %v4837, 0.0
  %v4916 = vsel %vm4896, %v4839, 0.0
  %v4917 = vsel %vm4896, %v4841, 0.0
  %v4918 = vsel %vm4896, %v4843, 0.0
  %v4919 = vsel %vm4896, %v4845, 0.0
  %v4920 = vsel %vm4896, %v4847, 0.0
  %v4921 = vsel %vm4896, %v4849, 0.0
  %v4922 = vsel %vm4896, %v4851, 0.0
  %v4923 = vsel %vm4896, %v4853, 0.0
  %v4924 = vsel %vm4896, %v4855, 0.0
  %v4925 = vsel %vm4896, %v4857, 0.0
  %v4926 = vsel %vm4896, %v4859, 0.0
  %v4927 = vsel %vm4896, %v4861, 0.0
  %v4928 = vsel %vm4896, %v4863, 0.0
  %v4929 = vld [vmem:[%s8 + $0x3] sm:$0x1]
  %v4930 = vlaneseq
  %v4931 = vshrl.u32 %v4930, 7
  %v4932 = vsub.s32 0, %v4931
  %v4933 = vrot.slane %v4929, %v4932
  %v4934 = vmul.f32 %v4897, %v4933
  %v4935 = vmul.f32 %v4898, %v4933
  %v4936 = vmul.f32 %v4899, %v4933
  %v4937 = vmul.f32 %v4900, %v4933
  %v4938 = vmul.f32 %v4901, %v4933
  %v4939 = vmul.f32 %v4902, %v4933
  %v4940 = vmul.f32 %v4903, %v4933
  %v4941 = vmul.f32 %v4904, %v4933
  %v4942 = vmul.f32 %v4905, %v4933
  %v4943 = vmul.f32 %v4906, %v4933
  %v4944 = vmul.f32 %v4907, %v4933
  %v4945 = vmul.f32 %v4908, %v4933
  %v4946 = vmul.f32 %v4909, %v4933
  %v4947 = vmul.f32 %v4910, %v4933
  %v4948 = vmul.f32 %v4911, %v4933
  %v4949 = vmul.f32 %v4912, %v4933
  %v4950 = vmul.f32 %v4913, %v4933
  %v4951 = vmul.f32 %v4914, %v4933
  %v4952 = vmul.f32 %v4915, %v4933
  %v4953 = vmul.f32 %v4916, %v4933
  %v4954 = vmul.f32 %v4917, %v4933
  %v4955 = vmul.f32 %v4918, %v4933
  %v4956 = vmul.f32 %v4919, %v4933
  %v4957 = vmul.f32 %v4920, %v4933
  %v4958 = vmul.f32 %v4921, %v4933
  %v4959 = vmul.f32 %v4922, %v4933
  %v4960 = vmul.f32 %v4923, %v4933
  %v4961 = vmul.f32 %v4924, %v4933
  %v4962 = vmul.f32 %v4925, %v4933
  %v4963 = vmul.f32 %v4926, %v4933
  %v4964 = vmul.f32 %v4927, %v4933
  %v4965 = vmul.f32 %v4928, %v4933
  %v4966 = vadd.f32 %v4736, %v4316
  %v4967 = vadd.f32 %v4737, %v4319
  %v4968 = vadd.f32 %v4738, %v4324
  %v4969 = vadd.f32 %v4739, %v4327
  %v4970 = vadd.f32 %v4740, %v4332
  %v4971 = vadd.f32 %v4741, %v4335
  %v4972 = vadd.f32 %v4742, %v4340
  %v4973 = vadd.f32 %v4743, %v4343
  %v4974 = vadd.f32 %v4744, %v4348
  %v4975 = vadd.f32 %v4745, %v4351
  %v4976 = vadd.f32 %v4746, %v4356
  %v4977 = vadd.f32 %v4747, %v4359
  %v4978 = vadd.f32 %v4748, %v4364
  %v4979 = vadd.f32 %v4749, %v4367
  %v4980 = vadd.f32 %v4750, %v4372
  %v4981 = vadd.f32 %v4751, %v4375
  %v4982 = vadd.f32 %v4752, %v4380
  %v4983 = vadd.f32 %v4753, %v4383
  %v4984 = vadd.f32 %v4754, %v4388
  %v4985 = vadd.f32 %v4755, %v4391
  %v4986 = vadd.f32 %v4756, %v4396
  %v4987 = vadd.f32 %v4757, %v4399
  %v4988 = vadd.f32 %v4758, %v4404
  %v4989 = vadd.f32 %v4759, %v4407
  %v4990 = vadd.f32 %v4760, %v4412
  %v4991 = vadd.f32 %v4761, %v4415
  %v4992 = vadd.f32 %v4762, %v4420
  %v4993 = vadd.f32 %v4763, %v4423
  %v4994 = vadd.f32 %v4764, %v4428
  %v4995 = vadd.f32 %v4765, %v4431
  %v4996 = vadd.f32 %v4766, %v4436
  %v4997 = vadd.f32 %v4767, %v4439
  %v4998 = vadd.f32 %v4966, %v4934
  %v4999 = vadd.f32 %v4967, %v4935
  %v5000 = vadd.f32 %v4968, %v4936
  %v5001 = vadd.f32 %v4969, %v4937
  %v5002 = vadd.f32 %v4970, %v4938
  %v5003 = vadd.f32 %v4971, %v4939
  %v5004 = vadd.f32 %v4972, %v4940
  %v5005 = vadd.f32 %v4973, %v4941
  %v5006 = vadd.f32 %v4974, %v4942
  %v5007 = vadd.f32 %v4975, %v4943
  %v5008 = vadd.f32 %v4976, %v4944
  %v5009 = vadd.f32 %v4977, %v4945
  %v5010 = vadd.f32 %v4978, %v4946
  %v5011 = vadd.f32 %v4979, %v4947
  %v5012 = vadd.f32 %v4980, %v4948
  %v5013 = vadd.f32 %v4981, %v4949
  %v5014 = vadd.f32 %v4982, %v4950
  %v5015 = vadd.f32 %v4983, %v4951
  %v5016 = vadd.f32 %v4984, %v4952
  %v5017 = vadd.f32 %v4985, %v4953
  %v5018 = vadd.f32 %v4986, %v4954
  %v5019 = vadd.f32 %v4987, %v4955
  %v5020 = vadd.f32 %v4988, %v4956
  %v5021 = vadd.f32 %v4989, %v4957
  %v5022 = vadd.f32 %v4990, %v4958
  %v5023 = vadd.f32 %v4991, %v4959
  %v5024 = vadd.f32 %v4992, %v4960
  %v5025 = vadd.f32 %v4993, %v4961
  %v5026 = vadd.f32 %v4994, %v4962
  %v5027 = vadd.f32 %v4995, %v4963
  %v5028 = vadd.f32 %v4996, %v4964
  %v5029 = vadd.f32 %v4997, %v4965
  %v5030 = vld [vmem:[%s14] sm:$0xff]
  %v5031 = vld [vmem:[%s14 + $0x8] sm:$0xff]
  %v5032 = vld [vmem:[%s14 + $0x10] sm:$0xff]
  %v5033 = vld [vmem:[%s14 + $0x18] sm:$0xff]
  %v5034 = vld [vmem:[%s14 + $0x20] sm:$0xff]
  %v5035 = vld [vmem:[%s14 + $0x28] sm:$0xff]
  %v5036 = vld [vmem:[%s14 + $0x30] sm:$0xff]
  %v5037 = vld [vmem:[%s14 + $0x38] sm:$0xff]
  %v5038 = vld [vmem:[%s14 + $0x40] sm:$0xff]
  %v5039 = vld [vmem:[%s14 + $0x48] sm:$0xff]
  %v5040 = vld [vmem:[%s14 + $0x50] sm:$0xff]
  %v5041 = vld [vmem:[%s14 + $0x58] sm:$0xff]
  %v5042 = vld [vmem:[%s14 + $0x60] sm:$0xff]
  %v5043 = vld [vmem:[%s14 + $0x68] sm:$0xff]
  %v5044 = vld [vmem:[%s14 + $0x70] sm:$0xff]
  %v5045 = vld [vmem:[%s14 + $0x78] sm:$0xff]
  %v5046 = vld [vmem:[%s14 + $0x80] sm:$0xff]
  %v5047 = vld [vmem:[%s14 + $0x88] sm:$0xff]
  %v5048 = vld [vmem:[%s14 + $0x90] sm:$0xff]
  %v5049 = vld [vmem:[%s14 + $0x98] sm:$0xff]
  %v5050 = vld [vmem:[%s14 + $0xa0] sm:$0xff]
  %v5051 = vld [vmem:[%s14 + $0xa8] sm:$0xff]
  %v5052 = vld [vmem:[%s14 + $0xb0] sm:$0xff]
  %v5053 = vld [vmem:[%s14 + $0xb8] sm:$0xff]
  %v5054 = vld [vmem:[%s14 + $0xc0] sm:$0xff]
  %v5055 = vld [vmem:[%s14 + $0xc8] sm:$0xff]
  %v5056 = vld [vmem:[%s14 + $0xd0] sm:$0xff]
  %v5057 = vld [vmem:[%s14 + $0xd8] sm:$0xff]
  %v5058 = vld [vmem:[%s14 + $0xe0] sm:$0xff]
  %v5059 = vld [vmem:[%s14 + $0xe8] sm:$0xff]
  %v5060 = vld [vmem:[%s14 + $0xf0] sm:$0xff]
  %v5061 = vld [vmem:[%s14 + $0xf8] sm:$0xff]
  %5063 = vset.pattern.permute.xlu0 0
  %5064 = vperm.xlu0 %5063, %v5030
  %v5065 = vpop.permute.xlu0 %5064
  %5068 = vset.pattern.permute.xlu0 0
  %5069 = vperm.xlu0 %5068, %v5031
  %v5070 = vpop.permute.xlu0 %5069
  %5073 = vset.pattern.permute.xlu0 0
  %5074 = vperm.xlu0 %5073, %v5032
  %v5075 = vpop.permute.xlu0 %5074
  %5078 = vset.pattern.permute.xlu0 0
  %5079 = vperm.xlu0 %5078, %v5033
  %v5080 = vpop.permute.xlu0 %5079
  %5083 = vset.pattern.permute.xlu0 0
  %5084 = vperm.xlu0 %5083, %v5034
  %v5085 = vpop.permute.xlu0 %5084
  %5088 = vset.pattern.permute.xlu0 0
  %5089 = vperm.xlu0 %5088, %v5035
  %v5090 = vpop.permute.xlu0 %5089
  %5093 = vset.pattern.permute.xlu0 0
  %5094 = vperm.xlu0 %5093, %v5036
  %v5095 = vpop.permute.xlu0 %5094
  %5098 = vset.pattern.permute.xlu0 0
  %5099 = vperm.xlu0 %5098, %v5037
  %v5100 = vpop.permute.xlu0 %5099
  %5103 = vset.pattern.permute.xlu0 0
  %5104 = vperm.xlu0 %5103, %v5038
  %v5105 = vpop.permute.xlu0 %5104
  %5108 = vset.pattern.permute.xlu0 0
  %5109 = vperm.xlu0 %5108, %v5039
  %v5110 = vpop.permute.xlu0 %5109
  %5113 = vset.pattern.permute.xlu0 0
  %5114 = vperm.xlu0 %5113, %v5040
  %v5115 = vpop.permute.xlu0 %5114
  %5118 = vset.pattern.permute.xlu0 0
  %5119 = vperm.xlu0 %5118, %v5041
  %v5120 = vpop.permute.xlu0 %5119
  %5123 = vset.pattern.permute.xlu0 0
  %5124 = vperm.xlu0 %5123, %v5042
  %v5125 = vpop.permute.xlu0 %5124
  %5128 = vset.pattern.permute.xlu0 0
  %5129 = vperm.xlu0 %5128, %v5043
  %v5130 = vpop.permute.xlu0 %5129
  %5133 = vset.pattern.permute.xlu0 0
  %5134 = vperm.xlu0 %5133, %v5044
  %v5135 = vpop.permute.xlu0 %5134
  %5138 = vset.pattern.permute.xlu0 0
  %5139 = vperm.xlu0 %5138, %v5045
  %v5140 = vpop.permute.xlu0 %5139
  %5143 = vset.pattern.permute.xlu0 0
  %5144 = vperm.xlu0 %5143, %v5046
  %v5145 = vpop.permute.xlu0 %5144
  %5148 = vset.pattern.permute.xlu0 0
  %5149 = vperm.xlu0 %5148, %v5047
  %v5150 = vpop.permute.xlu0 %5149
  %5153 = vset.pattern.permute.xlu0 0
  %5154 = vperm.xlu0 %5153, %v5048
  %v5155 = vpop.permute.xlu0 %5154
  %5158 = vset.pattern.permute.xlu0 0
  %5159 = vperm.xlu0 %5158, %v5049
  %v5160 = vpop.permute.xlu0 %5159
  %5163 = vset.pattern.permute.xlu0 0
  %5164 = vperm.xlu0 %5163, %v5050
  %v5165 = vpop.permute.xlu0 %5164
  %5168 = vset.pattern.permute.xlu0 0
  %5169 = vperm.xlu0 %5168, %v5051
  %v5170 = vpop.permute.xlu0 %5169
  %5173 = vset.pattern.permute.xlu0 0
  %5174 = vperm.xlu0 %5173, %v5052
  %v5175 = vpop.permute.xlu0 %5174
  %5178 = vset.pattern.permute.xlu0 0
  %5179 = vperm.xlu0 %5178, %v5053
  %v5180 = vpop.permute.xlu0 %5179
  %5183 = vset.pattern.permute.xlu0 0
  %5184 = vperm.xlu0 %5183, %v5054
  %v5185 = vpop.permute.xlu0 %5184
  %5188 = vset.pattern.permute.xlu0 0
  %5189 = vperm.xlu0 %5188, %v5055
  %v5190 = vpop.permute.xlu0 %5189
  %5193 = vset.pattern.permute.xlu0 0
  %5194 = vperm.xlu0 %5193, %v5056
  %v5195 = vpop.permute.xlu0 %5194
  %5198 = vset.pattern.permute.xlu0 0
  %5199 = vperm.xlu0 %5198, %v5057
  %v5200 = vpop.permute.xlu0 %5199
  %5203 = vset.pattern.permute.xlu0 0
  %5204 = vperm.xlu0 %5203, %v5058
  %v5205 = vpop.permute.xlu0 %5204
  %5208 = vset.pattern.permute.xlu0 0
  %5209 = vperm.xlu0 %5208, %v5059
  %v5210 = vpop.permute.xlu0 %5209
  %5213 = vset.pattern.permute.xlu0 0
  %5214 = vperm.xlu0 %5213, %v5060
  %v5215 = vpop.permute.xlu0 %5214
  %5218 = vset.pattern.permute.xlu0 0
  %5219 = vperm.xlu0 %5218, %v5061
  %v5220 = vpop.permute.xlu0 %5219
  %v5222 = vadd.f32 %v4998, %v5065
  %v5223 = vadd.f32 %v4999, %v5070
  %v5224 = vadd.f32 %v5000, %v5075
  %v5225 = vadd.f32 %v5001, %v5080
  %v5226 = vadd.f32 %v5002, %v5085
  %v5227 = vadd.f32 %v5003, %v5090
  %v5228 = vadd.f32 %v5004, %v5095
  %v5229 = vadd.f32 %v5005, %v5100
  %v5230 = vadd.f32 %v5006, %v5105
  %v5231 = vadd.f32 %v5007, %v5110
  %v5232 = vadd.f32 %v5008, %v5115
  %v5233 = vadd.f32 %v5009, %v5120
  %v5234 = vadd.f32 %v5010, %v5125
  %v5235 = vadd.f32 %v5011, %v5130
  %v5236 = vadd.f32 %v5012, %v5135
  %v5237 = vadd.f32 %v5013, %v5140
  %v5238 = vadd.f32 %v5014, %v5145
  %v5239 = vadd.f32 %v5015, %v5150
  %v5240 = vadd.f32 %v5016, %v5155
  %v5241 = vadd.f32 %v5017, %v5160
  %v5242 = vadd.f32 %v5018, %v5165
  %v5243 = vadd.f32 %v5019, %v5170
  %v5244 = vadd.f32 %v5020, %v5175
  %v5245 = vadd.f32 %v5021, %v5180
  %v5246 = vadd.f32 %v5022, %v5185
  %v5247 = vadd.f32 %v5023, %v5190
  %v5248 = vadd.f32 %v5024, %v5195
  %v5249 = vadd.f32 %v5025, %v5200
  %v5250 = vadd.f32 %v5026, %v5205
  %v5251 = vadd.f32 %v5027, %v5210
  %v5252 = vadd.f32 %v5028, %v5215
  %v5253 = vadd.f32 %v5029, %v5220
  %v5254 = vld [vmem:[%s15] sm:$0xff]
  %v5255 = vld [vmem:[%s15 + $0x8] sm:$0xff]
  %v5256 = vld [vmem:[%s15 + $0x10] sm:$0xff]
  %v5257 = vld [vmem:[%s15 + $0x18] sm:$0xff]
  %v5258 = vld [vmem:[%s15 + $0x20] sm:$0xff]
  %v5259 = vld [vmem:[%s15 + $0x28] sm:$0xff]
  %v5260 = vld [vmem:[%s15 + $0x30] sm:$0xff]
  %v5261 = vld [vmem:[%s15 + $0x38] sm:$0xff]
  %v5262 = vld [vmem:[%s15 + $0x40] sm:$0xff]
  %v5263 = vld [vmem:[%s15 + $0x48] sm:$0xff]
  %v5264 = vld [vmem:[%s15 + $0x50] sm:$0xff]
  %v5265 = vld [vmem:[%s15 + $0x58] sm:$0xff]
  %v5266 = vld [vmem:[%s15 + $0x60] sm:$0xff]
  %v5267 = vld [vmem:[%s15 + $0x68] sm:$0xff]
  %v5268 = vld [vmem:[%s15 + $0x70] sm:$0xff]
  %v5269 = vld [vmem:[%s15 + $0x78] sm:$0xff]
  %v5270 = vpack.c.bf16 %v5223, %v5222
  %v5271 = vpack.c.bf16 %v5225, %v5224
  %v5272 = vpack.c.bf16 %v5227, %v5226
  %v5273 = vpack.c.bf16 %v5229, %v5228
  %v5274 = vpack.c.bf16 %v5231, %v5230
  %v5275 = vpack.c.bf16 %v5233, %v5232
  %v5276 = vpack.c.bf16 %v5235, %v5234
  %v5277 = vpack.c.bf16 %v5237, %v5236
  %v5278 = vpack.c.bf16 %v5239, %v5238
  %v5279 = vpack.c.bf16 %v5241, %v5240
  %v5280 = vpack.c.bf16 %v5243, %v5242
  %v5281 = vpack.c.bf16 %v5245, %v5244
  %v5282 = vpack.c.bf16 %v5247, %v5246
  %v5283 = vpack.c.bf16 %v5249, %v5248
  %v5284 = vpack.c.bf16 %v5251, %v5250
  %v5285 = vpack.c.bf16 %v5253, %v5252
  %v5286 = vld [vmem:[%s16] sm:$0xff]
  %v5287 = vld [vmem:[%s16 + $0x8] sm:$0xff]
  %v5288 = vld [vmem:[%s16 + $0x10] sm:$0xff]
  %v5289 = vld [vmem:[%s16 + $0x18] sm:$0xff]
  %v5290 = vld [vmem:[%s16 + $0x20] sm:$0xff]
  %v5291 = vld [vmem:[%s16 + $0x28] sm:$0xff]
  %v5292 = vld [vmem:[%s16 + $0x30] sm:$0xff]
  %v5293 = vld [vmem:[%s16 + $0x38] sm:$0xff]
  %v5294 = vld [vmem:[%s16 + $0x40] sm:$0xff]
  %v5295 = vld [vmem:[%s16 + $0x48] sm:$0xff]
  %v5296 = vld [vmem:[%s16 + $0x50] sm:$0xff]
  %v5297 = vld [vmem:[%s16 + $0x58] sm:$0xff]
  %v5298 = vld [vmem:[%s16 + $0x60] sm:$0xff]
  %v5299 = vld [vmem:[%s16 + $0x68] sm:$0xff]
  %v5300 = vld [vmem:[%s16 + $0x70] sm:$0xff]
  %v5301 = vld [vmem:[%s16 + $0x78] sm:$0xff]
  %5303 = vset.pattern.permute.xlu0 0
  %5304 = vperm.xlu0 %5303, %v5286
  %v5305 = vpop.permute.xlu0 %5304
  %5308 = vset.pattern.permute.xlu0 0
  %5309 = vperm.xlu0 %5308, %v5287
  %v5310 = vpop.permute.xlu0 %5309
  %5313 = vset.pattern.permute.xlu0 0
  %5314 = vperm.xlu0 %5313, %v5288
  %v5315 = vpop.permute.xlu0 %5314
  %5318 = vset.pattern.permute.xlu0 0
  %5319 = vperm.xlu0 %5318, %v5289
  %v5320 = vpop.permute.xlu0 %5319
  %5323 = vset.pattern.permute.xlu0 0
  %5324 = vperm.xlu0 %5323, %v5290
  %v5325 = vpop.permute.xlu0 %5324
  %5328 = vset.pattern.permute.xlu0 0
  %5329 = vperm.xlu0 %5328, %v5291
  %v5330 = vpop.permute.xlu0 %5329
  %5333 = vset.pattern.permute.xlu0 0
  %5334 = vperm.xlu0 %5333, %v5292
  %v5335 = vpop.permute.xlu0 %5334
  %5338 = vset.pattern.permute.xlu0 0
  %5339 = vperm.xlu0 %5338, %v5293
  %v5340 = vpop.permute.xlu0 %5339
  %5343 = vset.pattern.permute.xlu0 0
  %5344 = vperm.xlu0 %5343, %v5294
  %v5345 = vpop.permute.xlu0 %5344
  %5348 = vset.pattern.permute.xlu0 0
  %5349 = vperm.xlu0 %5348, %v5295
  %v5350 = vpop.permute.xlu0 %5349
  %5353 = vset.pattern.permute.xlu0 0
  %5354 = vperm.xlu0 %5353, %v5296
  %v5355 = vpop.permute.xlu0 %5354
  %5358 = vset.pattern.permute.xlu0 0
  %5359 = vperm.xlu0 %5358, %v5297
  %v5360 = vpop.permute.xlu0 %5359
  %5363 = vset.pattern.permute.xlu0 0
  %5364 = vperm.xlu0 %5363, %v5298
  %v5365 = vpop.permute.xlu0 %5364
  %5368 = vset.pattern.permute.xlu0 0
  %5369 = vperm.xlu0 %5368, %v5299
  %v5370 = vpop.permute.xlu0 %5369
  %5373 = vset.pattern.permute.xlu0 0
  %5374 = vperm.xlu0 %5373, %v5300
  %v5375 = vpop.permute.xlu0 %5374
  %5378 = vset.pattern.permute.xlu0 0
  %5379 = vperm.xlu0 %5378, %v5301
  %v5380 = vpop.permute.xlu0 %5379
  %v5398 = vunpack.c.l.b16 %v5254
  %v5399 = vunpack.c.h.b16 %v5254
  %v5400 = vunpack.c.l.b16 %v5255
  %v5401 = vunpack.c.h.b16 %v5255
  %v5402 = vunpack.c.l.b16 %v5256
  %v5403 = vunpack.c.h.b16 %v5256
  %v5404 = vunpack.c.l.b16 %v5257
  %v5405 = vunpack.c.h.b16 %v5257
  %v5406 = vunpack.c.l.b16 %v5258
  %v5407 = vunpack.c.h.b16 %v5258
  %v5408 = vunpack.c.l.b16 %v5259
  %v5409 = vunpack.c.h.b16 %v5259
  %v5410 = vunpack.c.l.b16 %v5260
  %v5411 = vunpack.c.h.b16 %v5260
  %v5412 = vunpack.c.l.b16 %v5261
  %v5413 = vunpack.c.h.b16 %v5261
  %v5414 = vunpack.c.l.b16 %v5262
  %v5415 = vunpack.c.h.b16 %v5262
  %v5416 = vunpack.c.l.b16 %v5263
  %v5417 = vunpack.c.h.b16 %v5263
  %v5418 = vunpack.c.l.b16 %v5264
  %v5419 = vunpack.c.h.b16 %v5264
  %v5420 = vunpack.c.l.b16 %v5265
  %v5421 = vunpack.c.h.b16 %v5265
  %v5422 = vunpack.c.l.b16 %v5266
  %v5423 = vunpack.c.h.b16 %v5266
  %v5424 = vunpack.c.l.b16 %v5267
  %v5425 = vunpack.c.h.b16 %v5267
  %v5426 = vunpack.c.l.b16 %v5268
  %v5427 = vunpack.c.h.b16 %v5268
  %v5428 = vunpack.c.l.b16 %v5269
  %v5429 = vunpack.c.h.b16 %v5269
  %v5430 = vpack.c.b16 %v5400, %v5398
  %v5431 = vpack.c.b16 %v5401, %v5399
  %v5432 = vpack.c.b16 %v5404, %v5402
  %v5433 = vpack.c.b16 %v5405, %v5403
  %v5434 = vpack.c.b16 %v5408, %v5406
  %v5435 = vpack.c.b16 %v5409, %v5407
  %v5436 = vpack.c.b16 %v5412, %v5410
  %v5437 = vpack.c.b16 %v5413, %v5411
  %v5438 = vpack.c.b16 %v5416, %v5414
  %v5439 = vpack.c.b16 %v5417, %v5415
  %v5440 = vpack.c.b16 %v5420, %v5418
  %v5441 = vpack.c.b16 %v5421, %v5419
  %v5442 = vpack.c.b16 %v5424, %v5422
  %v5443 = vpack.c.b16 %v5425, %v5423
  %v5444 = vpack.c.b16 %v5428, %v5426
  %v5445 = vpack.c.b16 %v5429, %v5427
  %5462 = vmatprep.subr.bf16.mxu0 0
  %5463 = vmatpush1.bf16.msra.mxu0 %v5270
  %5464 = vmatprep.subr.bf16.mxu0 0
  %5465 = vmatpush1.bf16.msra.mxu0 %v5271
  %5466 = vmatprep.subr.bf16.mxu0 0
  %5467 = vmatpush1.bf16.msra.mxu0 %v5272
  %5468 = vmatprep.subr.bf16.mxu0 0
  %5469 = vmatpush1.bf16.msra.mxu0 %v5273
  %5470 = vmatprep.subr.bf16.mxu0 0
  %5471 = vmatpush1.bf16.msra.mxu0 %v5274
  %5472 = vmatprep.subr.bf16.mxu0 0
  %5473 = vmatpush1.bf16.msra.mxu0 %v5275
  %5474 = vmatprep.subr.bf16.mxu0 0
  %5475 = vmatpush1.bf16.msra.mxu0 %v5276
  %5476 = vmatprep.subr.bf16.mxu0 0
  %5477 = vmatpush1.bf16.msra.mxu0 %v5277
  %5478 = vmatprep.subr.bf16.mxu0 0
  %5479 = vmatpush1.bf16.msra.mxu0 %v5278
  %5480 = vmatprep.subr.bf16.mxu0 0
  %5481 = vmatpush1.bf16.msra.mxu0 %v5279
  %5482 = vmatprep.subr.bf16.mxu0 0
  %5483 = vmatpush1.bf16.msra.mxu0 %v5280
  %5484 = vmatprep.subr.bf16.mxu0 0
  %5485 = vmatpush1.bf16.msra.mxu0 %v5281
  %5486 = vmatprep.subr.bf16.mxu0 0
  %5487 = vmatpush1.bf16.msra.mxu0 %v5282
  %5488 = vmatprep.subr.bf16.mxu0 0
  %5489 = vmatpush1.bf16.msra.mxu0 %v5283
  %5490 = vmatprep.subr.bf16.mxu0 0
  %5491 = vmatpush1.bf16.msra.mxu0 %v5284
  %5492 = vmatprep.subr.bf16.mxu0 0
  %5493 = vmatpush1.bf16.msra.mxu0 %v5285
  %5494 = vmatprep.mubr.bf16.mxu0 %v5431
  %5495 = vmatmul.mubr.bf16.gmra.mrb[0].mxu0 %v5430
  %v5496 = vpop.f32.mrb[0].mxu0
  %v5497 = vadd.f32 %v5305, %v5496
  %v5498 = vpop.f32.mrb[0].mxu0
  %v5499 = vpop.f32.mrb[0].mxu0
  %v5500 = vadd.f32 %v5310, %v5499
  %v5501 = vpop.f32.mrb[0].mxu0
  %5502 = vmatprep.mubr.bf16.mxu0 %v5433
  %5503 = vmatmul.mubr.bf16.gmra.mrb[0].mxu0 %v5432
  %v5504 = vpop.f32.mrb[0].mxu0
  %v5505 = vadd.f32 %v5315, %v5504
  %v5506 = vpop.f32.mrb[0].mxu0
  %v5507 = vpop.f32.mrb[0].mxu0
  %v5508 = vadd.f32 %v5320, %v5507
  %v5509 = vpop.f32.mrb[0].mxu0
  %5510 = vmatprep.mubr.bf16.mxu0 %v5435
  %5511 = vmatmul.mubr.bf16.gmra.mrb[0].mxu0 %v5434
  %v5512 = vpop.f32.mrb[0].mxu0
  %v5513 = vadd.f32 %v5325, %v5512
  %v5514 = vpop.f32.mrb[0].mxu0
  %v5515 = vpop.f32.mrb[0].mxu0
  %v5516 = vadd.f32 %v5330, %v5515
  %v5517 = vpop.f32.mrb[0].mxu0
  %5518 = vmatprep.mubr.bf16.mxu0 %v5437
  %5519 = vmatmul.mubr.bf16.gmra.mrb[0].mxu0 %v5436
  %v5520 = vpop.f32.mrb[0].mxu0
  %v5521 = vadd.f32 %v5335, %v5520
  %v5522 = vpop.f32.mrb[0].mxu0
  %v5523 = vpop.f32.mrb[0].mxu0
  %v5524 = vadd.f32 %v5340, %v5523
  %v5525 = vpop.f32.mrb[0].mxu0
  %5526 = vmatprep.mubr.bf16.mxu0 %v5439
  %5527 = vmatmul.mubr.bf16.gmra.mrb[0].mxu0 %v5438
  %v5528 = vpop.f32.mrb[0].mxu0
  %v5529 = vadd.f32 %v5345, %v5528
  %v5530 = vpop.f32.mrb[0].mxu0
  %v5531 = vpop.f32.mrb[0].mxu0
  %v5532 = vadd.f32 %v5350, %v5531
  %v5533 = vpop.f32.mrb[0].mxu0
  %5534 = vmatprep.mubr.bf16.mxu0 %v5441
  %5535 = vmatmul.mubr.bf16.gmra.mrb[0].mxu0 %v5440
  %v5536 = vpop.f32.mrb[0].mxu0
  %v5537 = vadd.f32 %v5355, %v5536
  %v5538 = vpop.f32.mrb[0].mxu0
  %v5539 = vpop.f32.mrb[0].mxu0
  %v5540 = vadd.f32 %v5360, %v5539
  %v5541 = vpop.f32.mrb[0].mxu0
  %5542 = vmatprep.mubr.bf16.mxu0 %v5443
  %5543 = vmatmul.mubr.bf16.gmra.mrb[0].mxu0 %v5442
  %v5544 = vpop.f32.mrb[0].mxu0
  %v5545 = vadd.f32 %v5365, %v5544
  %v5546 = vpop.f32.mrb[0].mxu0
  %v5547 = vpop.f32.mrb[0].mxu0
  %v5548 = vadd.f32 %v5370, %v5547
  %v5549 = vpop.f32.mrb[0].mxu0
  %5550 = vmatprep.mubr.bf16.mxu0 %v5445
  %5551 = vmatmul.mubr.bf16.gmra.mrb[0].mxu0 %v5444
  %v5552 = vpop.f32.mrb[0].mxu0
  %v5553 = vadd.f32 %v5375, %v5552
  %v5554 = vpop.f32.mrb[0].mxu0
  %v5555 = vpop.f32.mrb[0].mxu0
  %v5556 = vadd.f32 %v5380, %v5555
  %v5557 = vpop.f32.mrb[0].mxu0
  %5558 = vdwg.mxu0
  %v5559 = vld [vmem:[%s6] sm:$0xf]
  %v5560 = vld [vmem:[%s6 + $0x4] sm:$0xf]
  %v5561 = vld [vmem:[%s6 + $0x8] sm:$0xf]
  %v5562 = vld [vmem:[%s6 + $0xc] sm:$0xf]
  %v5563 = vpack.c.bf16 %v5500, %v5497
  %v5564 = vpack.c.bf16 %v5508, %v5505
  %v5565 = vpack.c.bf16 %v5516, %v5513
  %v5566 = vpack.c.bf16 %v5524, %v5521
  %v5567 = vpack.c.bf16 %v5532, %v5529
  %v5568 = vpack.c.bf16 %v5540, %v5537
  %v5569 = vpack.c.bf16 %v5548, %v5545
  %v5570 = vpack.c.bf16 %v5556, %v5553
  %v5571 = vld [vmem:[%s2] sm:$0xff]
  %v5572 = vld [vmem:[%s2 + $0x8] sm:$0xff]
  %v5573 = vld [vmem:[%s2 + $0x10] sm:$0xff]
  %v5574 = vld [vmem:[%s2 + $0x18] sm:$0xff]
  %v5575 = vld [vmem:[%s2 + $0x20] sm:$0xff]
  %v5576 = vld [vmem:[%s2 + $0x28] sm:$0xff]
  %v5577 = vld [vmem:[%s2 + $0x30] sm:$0xff]
  %v5578 = vld [vmem:[%s2 + $0x38] sm:$0xff]
  %v5579 = vld [vmem:[%s2 + $0x40] sm:$0xff]
  %v5580 = vld [vmem:[%s2 + $0x48] sm:$0xff]
  %v5581 = vld [vmem:[%s2 + $0x50] sm:$0xff]
  %v5582 = vld [vmem:[%s2 + $0x58] sm:$0xff]
  %v5583 = vld [vmem:[%s2 + $0x60] sm:$0xff]
  %v5584 = vld [vmem:[%s2 + $0x68] sm:$0xff]
  %v5585 = vld [vmem:[%s2 + $0x70] sm:$0xff]
  %v5586 = vld [vmem:[%s2 + $0x78] sm:$0xff]
  %v5591 = vunpack.c.l.b16 %v5559
  %v5592 = vunpack.c.l.b16 %v5560
  %v5593 = vunpack.c.l.b16 %v5561
  %v5594 = vunpack.c.l.b16 %v5562
  %v5595 = vpack.c.b16 %v5592, %v5591
  %v5596 = vpack.c.b16 %v5594, %v5593
  %vm5599 = vcmask 261120
  %v5601 = vsel %vm5599, %v5563, 0
  %v5604 = vsel %vm5599, %v5564, 0
  %v5607 = vsel %vm5599, %v5565, 0
  %v5610 = vsel %vm5599, %v5566, 0
  %v5613 = vsel %vm5599, %v5567, 0
  %v5616 = vsel %vm5599, %v5568, 0
  %v5619 = vsel %vm5599, %v5569, 0
  %v5622 = vsel %vm5599, %v5570, 0
  %5624 = vmatprep.subr.bf16.mxu0 0
  %5625 = vmatpush1.bf16.msra.mxu0 %v5595
  %5626 = vmatprep.subr.bf16.mxu0 0
  %5627 = vmatpush1.bf16.msra.mxu0 %v5596
  %5628 = vmatprep.subr.bf16.mxu0 0
  %5629 = vmatpush1.bf16.msra.mxu0 0
  %5630 = vmatprep.subr.bf16.mxu0 0
  %5631 = vmatpush1.bf16.msra.mxu0 0
  %5632 = vmatprep.subr.bf16.mxu0 0
  %5633 = vmatpush1.bf16.msra.mxu0 0
  %5634 = vmatprep.subr.bf16.mxu0 0
  %5635 = vmatpush1.bf16.msra.mxu0 0
  %5636 = vmatprep.subr.bf16.mxu0 0
  %5637 = vmatpush1.bf16.msra.mxu0 0
  %5638 = vmatprep.subr.bf16.mxu0 0
  %5639 = vmatpush1.bf16.msra.mxu0 0
  %5640 = vmatprep.subr.bf16.mxu0 0
  %5641 = vmatpush1.bf16.msra.mxu0 0
  %5642 = vmatprep.subr.bf16.mxu0 0
  %5643 = vmatpush1.bf16.msra.mxu0 0
  %5644 = vmatprep.subr.bf16.mxu0 0
  %5645 = vmatpush1.bf16.msra.mxu0 0
  %5646 = vmatprep.subr.bf16.mxu0 0
  %5647 = vmatpush1.bf16.msra.mxu0 0
  %5648 = vmatprep.subr.bf16.mxu0 0
  %5649 = vmatpush1.bf16.msra.mxu0 0
  %5650 = vmatprep.subr.bf16.mxu0 0
  %5651 = vmatpush1.bf16.msra.mxu0 0
  %5652 = vmatprep.subr.bf16.mxu0 0
  %5653 = vmatpush1.bf16.msra.mxu0 0
  %5654 = vmatprep.subr.bf16.mxu0 0
  %5655 = vmatpush1.bf16.msra.mxu0 0
  %5656 = vmatprep.mubr.bf16.mxu0 0
  %5657 = vmatmul.mubr.bf16.gmra.mrb[0].mxu0 %v5601
  %v5658 = vpop.f32.mrb[0].mxu0
  %v5659 = vadd.f32 %v5571, %v5658
  %v5660 = vpop.f32.mrb[0].mxu0
  %v5661 = vpop.f32.mrb[0].mxu0
  %v5662 = vadd.f32 %v5572, %v5661
  %v5663 = vpop.f32.mrb[0].mxu0
  %5664 = vmatprep.mubr.bf16.mxu0 0
  %5665 = vmatmul.mubr.bf16.gmra.mrb[0].mxu0 %v5604
  %v5666 = vpop.f32.mrb[0].mxu0
  %v5667 = vadd.f32 %v5573, %v5666
  %v5668 = vpop.f32.mrb[0].mxu0
  %v5669 = vpop.f32.mrb[0].mxu0
  %v5670 = vadd.f32 %v5574, %v5669
  %v5671 = vpop.f32.mrb[0].mxu0
  %5672 = vmatprep.mubr.bf16.mxu0 0
  %5673 = vmatmul.mubr.bf16.gmra.mrb[0].mxu0 %v5607
  %v5674 = vpop.f32.mrb[0].mxu0
  %v5675 = vadd.f32 %v5575, %v5674
  %v5676 = vpop.f32.mrb[0].mxu0
  %v5677 = vpop.f32.mrb[0].mxu0
  %v5678 = vadd.f32 %v5576, %v5677
  %v5679 = vpop.f32.mrb[0].mxu0
  %5680 = vmatprep.mubr.bf16.mxu0 0
  %5681 = vmatmul.mubr.bf16.gmra.mrb[0].mxu0 %v5610
  %v5682 = vpop.f32.mrb[0].mxu0
  %v5683 = vadd.f32 %v5577, %v5682
  %v5684 = vpop.f32.mrb[0].mxu0
  %v5685 = vpop.f32.mrb[0].mxu0
  %v5686 = vadd.f32 %v5578, %v5685
  %v5687 = vpop.f32.mrb[0].mxu0
  %5688 = vmatprep.mubr.bf16.mxu0 0
  %5689 = vmatmul.mubr.bf16.gmra.mrb[0].mxu0 %v5613
  %v5690 = vpop.f32.mrb[0].mxu0
  %v5691 = vadd.f32 %v5579, %v5690
  %v5692 = vpop.f32.mrb[0].mxu0
  %v5693 = vpop.f32.mrb[0].mxu0
  %v5694 = vadd.f32 %v5580, %v5693
  %v5695 = vpop.f32.mrb[0].mxu0
  %5696 = vmatprep.mubr.bf16.mxu0 0
  %5697 = vmatmul.mubr.bf16.gmra.mrb[0].mxu0 %v5616
  %v5698 = vpop.f32.mrb[0].mxu0
  %v5699 = vadd.f32 %v5581, %v5698
  %v5700 = vpop.f32.mrb[0].mxu0
  %v5701 = vpop.f32.mrb[0].mxu0
  %v5702 = vadd.f32 %v5582, %v5701
  %v5703 = vpop.f32.mrb[0].mxu0
  %5704 = vmatprep.mubr.bf16.mxu0 0
  %5705 = vmatmul.mubr.bf16.gmra.mrb[0].mxu0 %v5619
  %v5706 = vpop.f32.mrb[0].mxu0
  %v5707 = vadd.f32 %v5583, %v5706
  %v5708 = vpop.f32.mrb[0].mxu0
  %v5709 = vpop.f32.mrb[0].mxu0
  %v5710 = vadd.f32 %v5584, %v5709
  %v5711 = vpop.f32.mrb[0].mxu0
  %5712 = vmatprep.mubr.bf16.mxu0 0
  %5713 = vmatmul.mubr.bf16.gmra.mrb[0].mxu0 %v5622
  %v5714 = vpop.f32.mrb[0].mxu0
  %v5715 = vadd.f32 %v5585, %v5714
  %v5716 = vpop.f32.mrb[0].mxu0
  %v5717 = vpop.f32.mrb[0].mxu0
  %v5718 = vadd.f32 %v5586, %v5717
  %v5719 = vpop.f32.mrb[0].mxu0
  %5720 = vdwg.mxu0
  %v5721 = vpack.c.bf16 %v5662, %v5659
  %v5722 = vpack.c.bf16 %v5670, %v5667
  %v5723 = vpack.c.bf16 %v5678, %v5675
  %v5724 = vpack.c.bf16 %v5686, %v5683
  %v5725 = vpack.c.bf16 %v5694, %v5691
  %v5726 = vpack.c.bf16 %v5702, %v5699
  %v5727 = vpack.c.bf16 %v5710, %v5707
  %v5728 = vpack.c.bf16 %v5718, %v5715
  %v5729 = vld [vmem:[%s9] sm:$0x1]
  %v5730 = vpack.c.bf16 %v5729, %v5729
  %v5731 = vld [vmem:[%s9 + $0x1] sm:$0x1]
  %v5732 = vpack.c.bf16 %v5731, %v5731
  %5741 = vrot.lane.b32.xlu0 %v5721, 1
  %v5742 = vpop.permute.xlu0 %5741
  %5743 = vrot.lane.b32.xlu0 %v5722, 1
  %v5744 = vpop.permute.xlu0 %5743
  %5745 = vrot.lane.b32.xlu0 %v5723, 1
  %v5746 = vpop.permute.xlu0 %5745
  %5747 = vrot.lane.b32.xlu0 %v5724, 1
  %v5748 = vpop.permute.xlu0 %5747
  %5749 = vrot.lane.b32.xlu0 %v5725, 1
  %v5750 = vpop.permute.xlu0 %5749
  %5751 = vrot.lane.b32.xlu0 %v5726, 1
  %v5752 = vpop.permute.xlu0 %5751
  %5753 = vrot.lane.b32.xlu0 %v5727, 1
  %v5754 = vpop.permute.xlu0 %5753
  %5755 = vrot.lane.b32.xlu0 %v5728, 1
  %v5756 = vpop.permute.xlu0 %5755
  %v5758 = vsel %vm1414, 0, %v5742
  %v5761 = vsel %vm1414, 0, %v5744
  %v5764 = vsel %vm1414, 0, %v5746
  %v5767 = vsel %vm1414, 0, %v5748
  %v5770 = vsel %vm1414, 0, %v5750
  %v5773 = vsel %vm1414, 0, %v5752
  %v5776 = vsel %vm1414, 0, %v5754
  %v5779 = vsel %vm1414, 0, %v5756
  %v5782 = vpack.i.b16 %v5730, %v5730
  %v5784 = vlaneseq
  %v5785 = vshrl.u32 %v5784, 7
  %v5786 = vsub.s32 0, %v5785
  %v5787 = vrot.slane %v5782, %v5786
  %v5788 = vmul.bf16 %v5758, %v5787
  %v5789 = vmul.bf16 %v5761, %v5787
  %v5790 = vmul.bf16 %v5764, %v5787
  %v5791 = vmul.bf16 %v5767, %v5787
  %v5792 = vmul.bf16 %v5770, %v5787
  %v5793 = vmul.bf16 %v5773, %v5787
  %v5794 = vmul.bf16 %v5776, %v5787
  %v5795 = vmul.bf16 %v5779, %v5787
  %5796 = vrot.lane.b32.xlu0 %v5721, 127
  %v5797 = vpop.permute.xlu0 %5796
  %5798 = vrot.lane.b32.xlu0 %v5722, 127
  %v5799 = vpop.permute.xlu0 %5798
  %5800 = vrot.lane.b32.xlu0 %v5723, 127
  %v5801 = vpop.permute.xlu0 %5800
  %5802 = vrot.lane.b32.xlu0 %v5724, 127
  %v5803 = vpop.permute.xlu0 %5802
  %5804 = vrot.lane.b32.xlu0 %v5725, 127
  %v5805 = vpop.permute.xlu0 %5804
  %5806 = vrot.lane.b32.xlu0 %v5726, 127
  %v5807 = vpop.permute.xlu0 %5806
  %5808 = vrot.lane.b32.xlu0 %v5727, 127
  %v5809 = vpop.permute.xlu0 %5808
  %5810 = vrot.lane.b32.xlu0 %v5728, 127
  %v5811 = vpop.permute.xlu0 %5810
  %vm5812 = vcmask 1039360
  %v5814 = vsel %vm5812, %v5797, 0
  %v5817 = vsel %vm5812, %v5799, 0
  %v5820 = vsel %vm5812, %v5801, 0
  %v5823 = vsel %vm5812, %v5803, 0
  %v5826 = vsel %vm5812, %v5805, 0
  %v5829 = vsel %vm5812, %v5807, 0
  %v5832 = vsel %vm5812, %v5809, 0
  %v5835 = vsel %vm5812, %v5811, 0
  %v5838 = vpack.i.b16 %v5732, %v5732
  %v5840 = vlaneseq
  %v5841 = vshrl.u32 %v5840, 7
  %v5842 = vsub.s32 0, %v5841
  %v5843 = vrot.slane %v5838, %v5842
  %v5844 = vmul.bf16 %v5814, %v5843
  %v5845 = vmul.bf16 %v5817, %v5843
  %v5846 = vmul.bf16 %v5820, %v5843
  %v5847 = vmul.bf16 %v5823, %v5843
  %v5848 = vmul.bf16 %v5826, %v5843
  %v5849 = vmul.bf16 %v5829, %v5843
  %v5850 = vmul.bf16 %v5832, %v5843
  %v5851 = vmul.bf16 %v5835, %v5843
  %v5852 = vld [vmem:[%s17] sm:$0xff]
  %v5853 = vld [vmem:[%s17 + $0x8] sm:$0xf]
  %v5854 = vld [vmem:[%s17 + $0xc] sm:$0xff]
  %v5855 = vld [vmem:[%s17 + $0x14] sm:$0xf]
  %v5856 = vld [vmem:[%s17 + $0x18] sm:$0xff]
  %v5857 = vld [vmem:[%s17 + $0x20] sm:$0xf]
  %v5858 = vld [vmem:[%s17 + $0x24] sm:$0xff]
  %v5859 = vld [vmem:[%s17 + $0x2c] sm:$0xf]
  %v5860 = vld [vmem:[%s17 + $0x30] sm:$0xff]
  %v5861 = vld [vmem:[%s17 + $0x38] sm:$0xf]
  %v5862 = vld [vmem:[%s17 + $0x3c] sm:$0xff]
  %v5863 = vld [vmem:[%s17 + $0x44] sm:$0xf]
  %v5864 = vld [vmem:[%s17 + $0x48] sm:$0xff]
  %v5865 = vld [vmem:[%s17 + $0x50] sm:$0xf]
  %v5866 = vld [vmem:[%s17 + $0x54] sm:$0xff]
  %v5867 = vld [vmem:[%s17 + $0x5c] sm:$0xf]
  %v5868 = vld [vmem:[%s17 + $0x60] sm:$0xff]
  %v5869 = vld [vmem:[%s17 + $0x68] sm:$0xf]
  %v5870 = vld [vmem:[%s17 + $0x6c] sm:$0xff]
  %v5871 = vld [vmem:[%s17 + $0x74] sm:$0xf]
  %v5872 = vld [vmem:[%s17 + $0x78] sm:$0xff]
  %v5873 = vld [vmem:[%s17 + $0x80] sm:$0xf]
  %v5874 = vld [vmem:[%s17 + $0x84] sm:$0xff]
  %v5875 = vld [vmem:[%s17 + $0x8c] sm:$0xf]
  %v5876 = vld [vmem:[%s17 + $0x90] sm:$0xff]
  %v5877 = vld [vmem:[%s17 + $0x98] sm:$0xf]
  %v5878 = vld [vmem:[%s17 + $0x9c] sm:$0xff]
  %v5879 = vld [vmem:[%s17 + $0xa4] sm:$0xf]
  %v5880 = vld [vmem:[%s17 + $0xa8] sm:$0xff]
  %v5881 = vld [vmem:[%s17 + $0xb0] sm:$0xf]
  %v5882 = vld [vmem:[%s17 + $0xb4] sm:$0xff]
  %v5883 = vld [vmem:[%s17 + $0xbc] sm:$0xf]
  %v5884 = vld [vmem:[%s17 + $0xc0] sm:$0xff]
  %v5885 = vld [vmem:[%s17 + $0xc8] sm:$0xf]
  %v5886 = vld [vmem:[%s17 + $0xcc] sm:$0xff]
  %v5887 = vld [vmem:[%s17 + $0xd4] sm:$0xf]
  %v5888 = vld [vmem:[%s17 + $0xd8] sm:$0xff]
  %v5889 = vld [vmem:[%s17 + $0xe0] sm:$0xf]
  %v5890 = vld [vmem:[%s17 + $0xe4] sm:$0xff]
  %v5891 = vld [vmem:[%s17 + $0xec] sm:$0xf]
  %v5892 = vld [vmem:[%s17 + $0xf0] sm:$0xff]
  %v5893 = vld [vmem:[%s17 + $0xf8] sm:$0xf]
  %v5894 = vld [vmem:[%s17 + $0xfc] sm:$0xff]
  %v5895 = vld [vmem:[%s17 + $0x104] sm:$0xf]
  %v5896 = vld [vmem:[%s17 + $0x108] sm:$0xff]
  %v5897 = vld [vmem:[%s17 + $0x110] sm:$0xf]
  %v5898 = vld [vmem:[%s17 + $0x114] sm:$0xff]
  %v5899 = vld [vmem:[%s17 + $0x11c] sm:$0xf]
  %v5900 = vld [vmem:[%s17 + $0x120] sm:$0xff]
  %v5901 = vld [vmem:[%s17 + $0x128] sm:$0xf]
  %v5902 = vld [vmem:[%s17 + $0x12c] sm:$0xff]
  %v5903 = vld [vmem:[%s17 + $0x134] sm:$0xf]
  %v5904 = vld [vmem:[%s17 + $0x138] sm:$0xff]
  %v5905 = vld [vmem:[%s17 + $0x140] sm:$0xf]
  %v5906 = vld [vmem:[%s17 + $0x144] sm:$0xff]
  %v5907 = vld [vmem:[%s17 + $0x14c] sm:$0xf]
  %v5908 = vld [vmem:[%s17 + $0x150] sm:$0xff]
  %v5909 = vld [vmem:[%s17 + $0x158] sm:$0xf]
  %v5910 = vld [vmem:[%s17 + $0x15c] sm:$0xff]
  %v5911 = vld [vmem:[%s17 + $0x164] sm:$0xf]
  %v5912 = vld [vmem:[%s17 + $0x168] sm:$0xff]
  %v5913 = vld [vmem:[%s17 + $0x170] sm:$0xf]
  %v5914 = vld [vmem:[%s17 + $0x174] sm:$0xff]
  %v5915 = vld [vmem:[%s17 + $0x17c] sm:$0xf]
  %v5916 = vld [vmem:[%s17 + $0x180] sm:$0xff]
  %v5917 = vld [vmem:[%s17 + $0x188] sm:$0xf]
  %v5918 = vld [vmem:[%s17 + $0x18c] sm:$0xff]
  %v5919 = vld [vmem:[%s17 + $0x194] sm:$0xf]
  %v5920 = vld [vmem:[%s17 + $0x198] sm:$0xff]
  %v5921 = vld [vmem:[%s17 + $0x1a0] sm:$0xf]
  %v5922 = vld [vmem:[%s17 + $0x1a4] sm:$0xff]
  %v5923 = vld [vmem:[%s17 + $0x1ac] sm:$0xf]
  %v5924 = vld [vmem:[%s17 + $0x1b0] sm:$0xff]
  %v5925 = vld [vmem:[%s17 + $0x1b8] sm:$0xf]
  %v5926 = vld [vmem:[%s17 + $0x1bc] sm:$0xff]
  %v5927 = vld [vmem:[%s17 + $0x1c4] sm:$0xf]
  %v5928 = vld [vmem:[%s17 + $0x1c8] sm:$0xff]
  %v5929 = vld [vmem:[%s17 + $0x1d0] sm:$0xf]
  %v5930 = vld [vmem:[%s17 + $0x1d4] sm:$0xff]
  %v5931 = vld [vmem:[%s17 + $0x1dc] sm:$0xf]
  %v5932 = vld [vmem:[%s17 + $0x1e0] sm:$0xff]
  %v5933 = vld [vmem:[%s17 + $0x1e8] sm:$0xf]
  %v5934 = vld [vmem:[%s17 + $0x1ec] sm:$0xff]
  %v5935 = vld [vmem:[%s17 + $0x1f4] sm:$0xf]
  %v5936 = vld [vmem:[%s17 + $0x1f8] sm:$0xff]
  %v5937 = vld [vmem:[%s17 + $0x200] sm:$0xf]
  %v5938 = vld [vmem:[%s17 + $0x204] sm:$0xff]
  %v5939 = vld [vmem:[%s17 + $0x20c] sm:$0xf]
  %v5940 = vld [vmem:[%s17 + $0x210] sm:$0xff]
  %v5941 = vld [vmem:[%s17 + $0x218] sm:$0xf]
  %v5942 = vld [vmem:[%s17 + $0x21c] sm:$0xff]
  %v5943 = vld [vmem:[%s17 + $0x224] sm:$0xf]
  %v5944 = vld [vmem:[%s17 + $0x228] sm:$0xff]
  %v5945 = vld [vmem:[%s17 + $0x230] sm:$0xf]
  %v5946 = vld [vmem:[%s17 + $0x234] sm:$0xff]
  %v5947 = vld [vmem:[%s17 + $0x23c] sm:$0xf]
  %v6044 = vunpack.c.l.b16 %v5852
  %v6045 = vunpack.c.h.b16 %v5852
  %v6046 = vunpack.c.l.b16 %v5853
  %v6047 = vunpack.c.l.b16 %v5854
  %v6048 = vunpack.c.h.b16 %v5854
  %v6049 = vunpack.c.l.b16 %v5855
  %v6050 = vunpack.c.l.b16 %v5856
  %v6051 = vunpack.c.h.b16 %v5856
  %v6052 = vunpack.c.l.b16 %v5857
  %v6053 = vunpack.c.l.b16 %v5858
  %v6054 = vunpack.c.h.b16 %v5858
  %v6055 = vunpack.c.l.b16 %v5859
  %v6056 = vunpack.c.l.b16 %v5860
  %v6057 = vunpack.c.h.b16 %v5860
  %v6058 = vunpack.c.l.b16 %v5861
  %v6059 = vunpack.c.l.b16 %v5862
  %v6060 = vunpack.c.h.b16 %v5862
  %v6061 = vunpack.c.l.b16 %v5863
  %v6062 = vunpack.c.l.b16 %v5864
  %v6063 = vunpack.c.h.b16 %v5864
  %v6064 = vunpack.c.l.b16 %v5865
  %v6065 = vunpack.c.l.b16 %v5866
  %v6066 = vunpack.c.h.b16 %v5866
  %v6067 = vunpack.c.l.b16 %v5867
  %v6068 = vunpack.c.l.b16 %v5868
  %v6069 = vunpack.c.h.b16 %v5868
  %v6070 = vunpack.c.l.b16 %v5869
  %v6071 = vunpack.c.l.b16 %v5870
  %v6072 = vunpack.c.h.b16 %v5870
  %v6073 = vunpack.c.l.b16 %v5871
  %v6074 = vunpack.c.l.b16 %v5872
  %v6075 = vunpack.c.h.b16 %v5872
  %v6076 = vunpack.c.l.b16 %v5873
  %v6077 = vunpack.c.l.b16 %v5874
  %v6078 = vunpack.c.h.b16 %v5874
  %v6079 = vunpack.c.l.b16 %v5875
  %v6080 = vunpack.c.l.b16 %v5876
  %v6081 = vunpack.c.h.b16 %v5876
  %v6082 = vunpack.c.l.b16 %v5877
  %v6083 = vunpack.c.l.b16 %v5878
  %v6084 = vunpack.c.h.b16 %v5878
  %v6085 = vunpack.c.l.b16 %v5879
  %v6086 = vunpack.c.l.b16 %v5880
  %v6087 = vunpack.c.h.b16 %v5880
  %v6088 = vunpack.c.l.b16 %v5881
  %v6089 = vunpack.c.l.b16 %v5882
  %v6090 = vunpack.c.h.b16 %v5882
  %v6091 = vunpack.c.l.b16 %v5883
  %v6092 = vunpack.c.l.b16 %v5884
  %v6093 = vunpack.c.h.b16 %v5884
  %v6094 = vunpack.c.l.b16 %v5885
  %v6095 = vunpack.c.l.b16 %v5886
  %v6096 = vunpack.c.h.b16 %v5886
  %v6097 = vunpack.c.l.b16 %v5887
  %v6098 = vunpack.c.l.b16 %v5888
  %v6099 = vunpack.c.h.b16 %v5888
  %v6100 = vunpack.c.l.b16 %v5889
  %v6101 = vunpack.c.l.b16 %v5890
  %v6102 = vunpack.c.h.b16 %v5890
  %v6103 = vunpack.c.l.b16 %v5891
  %v6104 = vunpack.c.l.b16 %v5892
  %v6105 = vunpack.c.h.b16 %v5892
  %v6106 = vunpack.c.l.b16 %v5893
  %v6107 = vunpack.c.l.b16 %v5894
  %v6108 = vunpack.c.h.b16 %v5894
  %v6109 = vunpack.c.l.b16 %v5895
  %v6110 = vunpack.c.l.b16 %v5896
  %v6111 = vunpack.c.h.b16 %v5896
  %v6112 = vunpack.c.l.b16 %v5897
  %v6113 = vunpack.c.l.b16 %v5898
  %v6114 = vunpack.c.h.b16 %v5898
  %v6115 = vunpack.c.l.b16 %v5899
  %v6116 = vunpack.c.l.b16 %v5900
  %v6117 = vunpack.c.h.b16 %v5900
  %v6118 = vunpack.c.l.b16 %v5901
  %v6119 = vunpack.c.l.b16 %v5902
  %v6120 = vunpack.c.h.b16 %v5902
  %v6121 = vunpack.c.l.b16 %v5903
  %v6122 = vunpack.c.l.b16 %v5904
  %v6123 = vunpack.c.h.b16 %v5904
  %v6124 = vunpack.c.l.b16 %v5905
  %v6125 = vunpack.c.l.b16 %v5906
  %v6126 = vunpack.c.h.b16 %v5906
  %v6127 = vunpack.c.l.b16 %v5907
  %v6128 = vunpack.c.l.b16 %v5908
  %v6129 = vunpack.c.h.b16 %v5908
  %v6130 = vunpack.c.l.b16 %v5909
  %v6131 = vunpack.c.l.b16 %v5910
  %v6132 = vunpack.c.h.b16 %v5910
  %v6133 = vunpack.c.l.b16 %v5911
  %v6134 = vunpack.c.l.b16 %v5912
  %v6135 = vunpack.c.h.b16 %v5912
  %v6136 = vunpack.c.l.b16 %v5913
  %v6137 = vunpack.c.l.b16 %v5914
  %v6138 = vunpack.c.h.b16 %v5914
  %v6139 = vunpack.c.l.b16 %v5915
  %v6140 = vunpack.c.l.b16 %v5916
  %v6141 = vunpack.c.h.b16 %v5916
  %v6142 = vunpack.c.l.b16 %v5917
  %v6143 = vunpack.c.l.b16 %v5918
  %v6144 = vunpack.c.h.b16 %v5918
  %v6145 = vunpack.c.l.b16 %v5919
  %v6146 = vunpack.c.l.b16 %v5920
  %v6147 = vunpack.c.h.b16 %v5920
  %v6148 = vunpack.c.l.b16 %v5921
  %v6149 = vunpack.c.l.b16 %v5922
  %v6150 = vunpack.c.h.b16 %v5922
  %v6151 = vunpack.c.l.b16 %v5923
  %v6152 = vunpack.c.l.b16 %v5924
  %v6153 = vunpack.c.h.b16 %v5924
  %v6154 = vunpack.c.l.b16 %v5925
  %v6155 = vunpack.c.l.b16 %v5926
  %v6156 = vunpack.c.h.b16 %v5926
  %v6157 = vunpack.c.l.b16 %v5927
  %v6158 = vunpack.c.l.b16 %v5928
  %v6159 = vunpack.c.h.b16 %v5928
  %v6160 = vunpack.c.l.b16 %v5929
  %v6161 = vunpack.c.l.b16 %v5930
  %v6162 = vunpack.c.h.b16 %v5930
  %v6163 = vunpack.c.l.b16 %v5931
  %v6164 = vunpack.c.l.b16 %v5932
  %v6165 = vunpack.c.h.b16 %v5932
  %v6166 = vunpack.c.l.b16 %v5933
  %v6167 = vunpack.c.l.b16 %v5934
  %v6168 = vunpack.c.h.b16 %v5934
  %v6169 = vunpack.c.l.b16 %v5935
  %v6170 = vunpack.c.l.b16 %v5936
  %v6171 = vunpack.c.h.b16 %v5936
  %v6172 = vunpack.c.l.b16 %v5937
  %v6173 = vunpack.c.l.b16 %v5938
  %v6174 = vunpack.c.h.b16 %v5938
  %v6175 = vunpack.c.l.b16 %v5939
  %v6176 = vunpack.c.l.b16 %v5940
  %v6177 = vunpack.c.h.b16 %v5940
  %v6178 = vunpack.c.l.b16 %v5941
  %v6179 = vunpack.c.l.b16 %v5942
  %v6180 = vunpack.c.h.b16 %v5942
  %v6181 = vunpack.c.l.b16 %v5943
  %v6182 = vunpack.c.l.b16 %v5944
  %v6183 = vunpack.c.h.b16 %v5944
  %v6184 = vunpack.c.l.b16 %v5945
  %v6185 = vunpack.c.l.b16 %v5946
  %v6186 = vunpack.c.h.b16 %v5946
  %v6187 = vunpack.c.l.b16 %v5947
  %v6188 = vpack.c.b16 %v6047, %v6044
  %v6189 = vpack.c.b16 %v6048, %v6045
  %v6190 = vpack.c.b16 %v6049, %v6046
  %v6191 = vpack.c.b16 %v6053, %v6050
  %v6192 = vpack.c.b16 %v6054, %v6051
  %v6193 = vpack.c.b16 %v6055, %v6052
  %v6194 = vpack.c.b16 %v6059, %v6056
  %v6195 = vpack.c.b16 %v6060, %v6057
  %v6196 = vpack.c.b16 %v6061, %v6058
  %v6197 = vpack.c.b16 %v6065, %v6062
  %v6198 = vpack.c.b16 %v6066, %v6063
  %v6199 = vpack.c.b16 %v6067, %v6064
  %v6200 = vpack.c.b16 %v6071, %v6068
  %v6201 = vpack.c.b16 %v6072, %v6069
  %v6202 = vpack.c.b16 %v6073, %v6070
  %v6203 = vpack.c.b16 %v6077, %v6074
  %v6204 = vpack.c.b16 %v6078, %v6075
  %v6205 = vpack.c.b16 %v6079, %v6076
  %v6206 = vpack.c.b16 %v6083, %v6080
  %v6207 = vpack.c.b16 %v6084, %v6081
  %v6208 = vpack.c.b16 %v6085, %v6082
  %v6209 = vpack.c.b16 %v6089, %v6086
  %v6210 = vpack.c.b16 %v6090, %v6087
  %v6211 = vpack.c.b16 %v6091, %v6088
  %v6212 = vpack.c.b16 %v6095, %v6092
  %v6213 = vpack.c.b16 %v6096, %v6093
  %v6214 = vpack.c.b16 %v6097, %v6094
  %v6215 = vpack.c.b16 %v6101, %v6098
  %v6216 = vpack.c.b16 %v6102, %v6099
  %v6217 = vpack.c.b16 %v6103, %v6100
  %v6218 = vpack.c.b16 %v6107, %v6104
  %v6219 = vpack.c.b16 %v6108, %v6105
  %v6220 = vpack.c.b16 %v6109, %v6106
  %v6221 = vpack.c.b16 %v6113, %v6110
  %v6222 = vpack.c.b16 %v6114, %v6111
  %v6223 = vpack.c.b16 %v6115, %v6112
  %v6224 = vpack.c.b16 %v6119, %v6116
  %v6225 = vpack.c.b16 %v6120, %v6117
  %v6226 = vpack.c.b16 %v6121, %v6118
  %v6227 = vpack.c.b16 %v6125, %v6122
  %v6228 = vpack.c.b16 %v6126, %v6123
  %v6229 = vpack.c.b16 %v6127, %v6124
  %v6230 = vpack.c.b16 %v6131, %v6128
  %v6231 = vpack.c.b16 %v6132, %v6129
  %v6232 = vpack.c.b16 %v6133, %v6130
  %v6233 = vpack.c.b16 %v6137, %v6134
  %v6234 = vpack.c.b16 %v6138, %v6135
  %v6235 = vpack.c.b16 %v6139, %v6136
  %v6236 = vpack.c.b16 %v6143, %v6140
  %v6237 = vpack.c.b16 %v6144, %v6141
  %v6238 = vpack.c.b16 %v6145, %v6142
  %v6239 = vpack.c.b16 %v6149, %v6146
  %v6240 = vpack.c.b16 %v6150, %v6147
  %v6241 = vpack.c.b16 %v6151, %v6148
  %v6242 = vpack.c.b16 %v6155, %v6152
  %v6243 = vpack.c.b16 %v6156, %v6153
  %v6244 = vpack.c.b16 %v6157, %v6154
  %v6245 = vpack.c.b16 %v6161, %v6158
  %v6246 = vpack.c.b16 %v6162, %v6159
  %v6247 = vpack.c.b16 %v6163, %v6160
  %v6248 = vpack.c.b16 %v6167, %v6164
  %v6249 = vpack.c.b16 %v6168, %v6165
  %v6250 = vpack.c.b16 %v6169, %v6166
  %v6251 = vpack.c.b16 %v6173, %v6170
  %v6252 = vpack.c.b16 %v6174, %v6171
  %v6253 = vpack.c.b16 %v6175, %v6172
  %v6254 = vpack.c.b16 %v6179, %v6176
  %v6255 = vpack.c.b16 %v6180, %v6177
  %v6256 = vpack.c.b16 %v6181, %v6178
  %v6257 = vpack.c.b16 %v6185, %v6182
  %v6258 = vpack.c.b16 %v6186, %v6183
  %v6259 = vpack.c.b16 %v6187, %v6184
  %6332 = vmatprep.subr.bf16.mxu0 0
  %6333 = vmatpush1.bf16.msra.mxu0 %v5788
  %6334 = vmatprep.subr.bf16.mxu0 0
  %6335 = vmatpush1.bf16.msra.mxu0 %v5789
  %6336 = vmatprep.subr.bf16.mxu0 0
  %6337 = vmatpush1.bf16.msra.mxu0 %v5790
  %6338 = vmatprep.subr.bf16.mxu0 0
  %6339 = vmatpush1.bf16.msra.mxu0 %v5791
  %6340 = vmatprep.subr.bf16.mxu0 0
  %6341 = vmatpush1.bf16.msra.mxu0 %v5792
  %6342 = vmatprep.subr.bf16.mxu0 0
  %6343 = vmatpush1.bf16.msra.mxu0 %v5793
  %6344 = vmatprep.subr.bf16.mxu0 0
  %6345 = vmatpush1.bf16.msra.mxu0 %v5794
  %6346 = vmatprep.subr.bf16.mxu0 0
  %6347 = vmatpush1.bf16.msra.mxu0 %v5795
  %6348 = vmatprep.subr.bf16.mxu0 0
  %6349 = vmatpush1.bf16.msra.mxu0 %v5721
  %6350 = vmatprep.subr.bf16.mxu0 0
  %6351 = vmatpush1.bf16.msra.mxu0 %v5722
  %6352 = vmatprep.subr.bf16.mxu0 0
  %6353 = vmatpush1.bf16.msra.mxu0 %v5723
  %6354 = vmatprep.subr.bf16.mxu0 0
  %6355 = vmatpush1.bf16.msra.mxu0 %v5724
  %6356 = vmatprep.subr.bf16.mxu0 0
  %6357 = vmatpush1.bf16.msra.mxu0 %v5725
  %6358 = vmatprep.subr.bf16.mxu0 0
  %6359 = vmatpush1.bf16.msra.mxu0 %v5726
  %6360 = vmatprep.subr.bf16.mxu0 0
  %6361 = vmatpush1.bf16.msra.mxu0 %v5727
  %6362 = vmatprep.subr.bf16.mxu0 0
  %6363 = vmatpush1.bf16.msra.mxu0 %v5728
  %6364 = vmatprep.mubr.bf16.mxu0 %v6189
  %6365 = vmatmul.mubr.bf16.gmra.mrb[0].mxu0 %v6188
  %v6366 = vpop.f32.mrb[0].mxu0
  %v6367 = vadd.f32 0.0, %v6366
  %v6368 = vpop.f32.mrb[0].mxu0
  %v6369 = vpop.f32.mrb[0].mxu0
  %v6370 = vadd.f32 0.0, %v6369
  %v6371 = vpop.f32.mrb[0].mxu0
  %6372 = vmatprep.mubr.bf16.mxu0 %v6192
  %6373 = vmatmul.mubr.bf16.gmra.mrb[0].mxu0 %v6191
  %v6374 = vpop.f32.mrb[0].mxu0
  %v6375 = vadd.f32 0.0, %v6374
  %v6376 = vpop.f32.mrb[0].mxu0
  %v6377 = vpop.f32.mrb[0].mxu0
  %v6378 = vadd.f32 0.0, %v6377
  %v6379 = vpop.f32.mrb[0].mxu0
  %6380 = vmatprep.mubr.bf16.mxu0 %v6195
  %6381 = vmatmul.mubr.bf16.gmra.mrb[0].mxu0 %v6194
  %v6382 = vpop.f32.mrb[0].mxu0
  %v6383 = vadd.f32 0.0, %v6382
  %v6384 = vpop.f32.mrb[0].mxu0
  %v6385 = vpop.f32.mrb[0].mxu0
  %v6386 = vadd.f32 0.0, %v6385
  %v6387 = vpop.f32.mrb[0].mxu0
  %6388 = vmatprep.mubr.bf16.mxu0 %v6198
  %6389 = vmatmul.mubr.bf16.gmra.mrb[0].mxu0 %v6197
  %v6390 = vpop.f32.mrb[0].mxu0
  %v6391 = vadd.f32 0.0, %v6390
  %v6392 = vpop.f32.mrb[0].mxu0
  %v6393 = vpop.f32.mrb[0].mxu0
  %v6394 = vadd.f32 0.0, %v6393
  %v6395 = vpop.f32.mrb[0].mxu0
  %6396 = vmatprep.mubr.bf16.mxu0 %v6201
  %6397 = vmatmul.mubr.bf16.gmra.mrb[0].mxu0 %v6200
  %v6398 = vpop.f32.mrb[0].mxu0
  %v6399 = vadd.f32 0.0, %v6398
  %v6400 = vpop.f32.mrb[0].mxu0
  %v6401 = vpop.f32.mrb[0].mxu0
  %v6402 = vadd.f32 0.0, %v6401
  %v6403 = vpop.f32.mrb[0].mxu0
  %6404 = vmatprep.mubr.bf16.mxu0 %v6204
  %6405 = vmatmul.mubr.bf16.gmra.mrb[0].mxu0 %v6203
  %v6406 = vpop.f32.mrb[0].mxu0
  %v6407 = vadd.f32 0.0, %v6406
  %v6408 = vpop.f32.mrb[0].mxu0
  %v6409 = vpop.f32.mrb[0].mxu0
  %v6410 = vadd.f32 0.0, %v6409
  %v6411 = vpop.f32.mrb[0].mxu0
  %6412 = vmatprep.mubr.bf16.mxu0 %v6207
  %6413 = vmatmul.mubr.bf16.gmra.mrb[0].mxu0 %v6206
  %v6414 = vpop.f32.mrb[0].mxu0
  %v6415 = vadd.f32 0.0, %v6414
  %v6416 = vpop.f32.mrb[0].mxu0
  %v6417 = vpop.f32.mrb[0].mxu0
  %v6418 = vadd.f32 0.0, %v6417
  %v6419 = vpop.f32.mrb[0].mxu0
  %6420 = vmatprep.mubr.bf16.mxu0 %v6210
  %6421 = vmatmul.mubr.bf16.gmra.mrb[0].mxu0 %v6209
  %v6422 = vpop.f32.mrb[0].mxu0
  %v6423 = vadd.f32 0.0, %v6422
  %v6424 = vpop.f32.mrb[0].mxu0
  %v6425 = vpop.f32.mrb[0].mxu0
  %v6426 = vadd.f32 0.0, %v6425
  %v6427 = vpop.f32.mrb[0].mxu0
  %6428 = vmatprep.mubr.bf16.mxu0 %v6213
  %6429 = vmatmul.mubr.bf16.gmra.mrb[0].mxu0 %v6212
  %v6430 = vpop.f32.mrb[0].mxu0
  %v6431 = vadd.f32 0.0, %v6430
  %v6432 = vpop.f32.mrb[0].mxu0
  %v6433 = vpop.f32.mrb[0].mxu0
  %v6434 = vadd.f32 0.0, %v6433
  %v6435 = vpop.f32.mrb[0].mxu0
  %6436 = vmatprep.mubr.bf16.mxu0 %v6216
  %6437 = vmatmul.mubr.bf16.gmra.mrb[0].mxu0 %v6215
  %v6438 = vpop.f32.mrb[0].mxu0
  %v6439 = vadd.f32 0.0, %v6438
  %v6440 = vpop.f32.mrb[0].mxu0
  %v6441 = vpop.f32.mrb[0].mxu0
  %v6442 = vadd.f32 0.0, %v6441
  %v6443 = vpop.f32.mrb[0].mxu0
  %6444 = vmatprep.mubr.bf16.mxu0 %v6219
  %6445 = vmatmul.mubr.bf16.gmra.mrb[0].mxu0 %v6218
  %v6446 = vpop.f32.mrb[0].mxu0
  %v6447 = vadd.f32 0.0, %v6446
  %v6448 = vpop.f32.mrb[0].mxu0
  %v6449 = vpop.f32.mrb[0].mxu0
  %v6450 = vadd.f32 0.0, %v6449
  %v6451 = vpop.f32.mrb[0].mxu0
  %6452 = vmatprep.mubr.bf16.mxu0 %v6222
  %6453 = vmatmul.mubr.bf16.gmra.mrb[0].mxu0 %v6221
  %v6454 = vpop.f32.mrb[0].mxu0
  %v6455 = vadd.f32 0.0, %v6454
  %v6456 = vpop.f32.mrb[0].mxu0
  %v6457 = vpop.f32.mrb[0].mxu0
  %v6458 = vadd.f32 0.0, %v6457
  %v6459 = vpop.f32.mrb[0].mxu0
  %6460 = vmatprep.mubr.bf16.mxu0 %v6225
  %6461 = vmatmul.mubr.bf16.gmra.mrb[0].mxu0 %v6224
  %v6462 = vpop.f32.mrb[0].mxu0
  %v6463 = vadd.f32 0.0, %v6462
  %v6464 = vpop.f32.mrb[0].mxu0
  %v6465 = vpop.f32.mrb[0].mxu0
  %v6466 = vadd.f32 0.0, %v6465
  %v6467 = vpop.f32.mrb[0].mxu0
  %6468 = vmatprep.mubr.bf16.mxu0 %v6228
  %6469 = vmatmul.mubr.bf16.gmra.mrb[0].mxu0 %v6227
  %v6470 = vpop.f32.mrb[0].mxu0
  %v6471 = vadd.f32 0.0, %v6470
  %v6472 = vpop.f32.mrb[0].mxu0
  %v6473 = vpop.f32.mrb[0].mxu0
  %v6474 = vadd.f32 0.0, %v6473
  %v6475 = vpop.f32.mrb[0].mxu0
  %6476 = vmatprep.mubr.bf16.mxu0 %v6231
  %6477 = vmatmul.mubr.bf16.gmra.mrb[0].mxu0 %v6230
  %v6478 = vpop.f32.mrb[0].mxu0
  %v6479 = vadd.f32 0.0, %v6478
  %v6480 = vpop.f32.mrb[0].mxu0
  %v6481 = vpop.f32.mrb[0].mxu0
  %v6482 = vadd.f32 0.0, %v6481
  %v6483 = vpop.f32.mrb[0].mxu0
  %6484 = vmatprep.mubr.bf16.mxu0 %v6234
  %6485 = vmatmul.mubr.bf16.gmra.mrb[0].mxu0 %v6233
  %v6486 = vpop.f32.mrb[0].mxu0
  %v6487 = vadd.f32 0.0, %v6486
  %v6488 = vpop.f32.mrb[0].mxu0
  %v6489 = vpop.f32.mrb[0].mxu0
  %v6490 = vadd.f32 0.0, %v6489
  %v6491 = vpop.f32.mrb[0].mxu0
  %6492 = vmatprep.mubr.bf16.mxu0 %v6237
  %6493 = vmatmul.mubr.bf16.gmra.mrb[0].mxu0 %v6236
  %v6494 = vpop.f32.mrb[0].mxu0
  %v6495 = vadd.f32 0.0, %v6494
  %v6496 = vpop.f32.mrb[0].mxu0
  %v6497 = vpop.f32.mrb[0].mxu0
  %v6498 = vadd.f32 0.0, %v6497
  %v6499 = vpop.f32.mrb[0].mxu0
  %6500 = vmatprep.mubr.bf16.mxu0 %v6240
  %6501 = vmatmul.mubr.bf16.gmra.mrb[0].mxu0 %v6239
  %v6502 = vpop.f32.mrb[0].mxu0
  %v6503 = vadd.f32 0.0, %v6502
  %v6504 = vpop.f32.mrb[0].mxu0
  %v6505 = vpop.f32.mrb[0].mxu0
  %v6506 = vadd.f32 0.0, %v6505
  %v6507 = vpop.f32.mrb[0].mxu0
  %6508 = vmatprep.mubr.bf16.mxu0 %v6243
  %6509 = vmatmul.mubr.bf16.gmra.mrb[0].mxu0 %v6242
  %v6510 = vpop.f32.mrb[0].mxu0
  %v6511 = vadd.f32 0.0, %v6510
  %v6512 = vpop.f32.mrb[0].mxu0
  %v6513 = vpop.f32.mrb[0].mxu0
  %v6514 = vadd.f32 0.0, %v6513
  %v6515 = vpop.f32.mrb[0].mxu0
  %6516 = vmatprep.mubr.bf16.mxu0 %v6246
  %6517 = vmatmul.mubr.bf16.gmra.mrb[0].mxu0 %v6245
  %v6518 = vpop.f32.mrb[0].mxu0
  %v6519 = vadd.f32 0.0, %v6518
  %v6520 = vpop.f32.mrb[0].mxu0
  %v6521 = vpop.f32.mrb[0].mxu0
  %v6522 = vadd.f32 0.0, %v6521
  %v6523 = vpop.f32.mrb[0].mxu0
  %6524 = vmatprep.mubr.bf16.mxu0 %v6249
  %6525 = vmatmul.mubr.bf16.gmra.mrb[0].mxu0 %v6248
  %v6526 = vpop.f32.mrb[0].mxu0
  %v6527 = vadd.f32 0.0, %v6526
  %v6528 = vpop.f32.mrb[0].mxu0
  %v6529 = vpop.f32.mrb[0].mxu0
  %v6530 = vadd.f32 0.0, %v6529
  %v6531 = vpop.f32.mrb[0].mxu0
  %6532 = vmatprep.mubr.bf16.mxu0 %v6252
  %6533 = vmatmul.mubr.bf16.gmra.mrb[0].mxu0 %v6251
  %v6534 = vpop.f32.mrb[0].mxu0
  %v6535 = vadd.f32 0.0, %v6534
  %v6536 = vpop.f32.mrb[0].mxu0
  %v6537 = vpop.f32.mrb[0].mxu0
  %v6538 = vadd.f32 0.0, %v6537
  %v6539 = vpop.f32.mrb[0].mxu0
  %6540 = vmatprep.mubr.bf16.mxu0 %v6255
  %6541 = vmatmul.mubr.bf16.gmra.mrb[0].mxu0 %v6254
  %v6542 = vpop.f32.mrb[0].mxu0
  %v6543 = vadd.f32 0.0, %v6542
  %v6544 = vpop.f32.mrb[0].mxu0
  %v6545 = vpop.f32.mrb[0].mxu0
  %v6546 = vadd.f32 0.0, %v6545
  %v6547 = vpop.f32.mrb[0].mxu0
  %6548 = vmatprep.mubr.bf16.mxu0 %v6258
  %6549 = vmatmul.mubr.bf16.gmra.mrb[0].mxu0 %v6257
  %v6550 = vpop.f32.mrb[0].mxu0
  %v6551 = vadd.f32 0.0, %v6550
  %v6552 = vpop.f32.mrb[0].mxu0
  %v6553 = vpop.f32.mrb[0].mxu0
  %v6554 = vadd.f32 0.0, %v6553
  %v6555 = vpop.f32.mrb[0].mxu0
  %6556 = vdwg.mxu0
  %6557 = vmatprep.subr.bf16.mxu0 0
  %6558 = vmatpush1.bf16.msra.mxu0 %v5844
  %6559 = vmatprep.subr.bf16.mxu0 0
  %6560 = vmatpush1.bf16.msra.mxu0 %v5845
  %6561 = vmatprep.subr.bf16.mxu0 0
  %6562 = vmatpush1.bf16.msra.mxu0 %v5846
  %6563 = vmatprep.subr.bf16.mxu0 0
  %6564 = vmatpush1.bf16.msra.mxu0 %v5847
  %6565 = vmatprep.subr.bf16.mxu0 0
  %6566 = vmatpush1.bf16.msra.mxu0 %v5848
  %6567 = vmatprep.subr.bf16.mxu0 0
  %6568 = vmatpush1.bf16.msra.mxu0 %v5849
  %6569 = vmatprep.subr.bf16.mxu0 0
  %6570 = vmatpush1.bf16.msra.mxu0 %v5850
  %6571 = vmatprep.subr.bf16.mxu0 0
  %6572 = vmatpush1.bf16.msra.mxu0 %v5851
  %6573 = vmatprep.subr.bf16.mxu0 0
  %6574 = vmatpush1.bf16.msra.mxu0 0
  %6575 = vmatprep.subr.bf16.mxu0 0
  %6576 = vmatpush1.bf16.msra.mxu0 0
  %6577 = vmatprep.subr.bf16.mxu0 0
  %6578 = vmatpush1.bf16.msra.mxu0 0
  %6579 = vmatprep.subr.bf16.mxu0 0
  %6580 = vmatpush1.bf16.msra.mxu0 0
  %6581 = vmatprep.subr.bf16.mxu0 0
  %6582 = vmatpush1.bf16.msra.mxu0 0
  %6583 = vmatprep.subr.bf16.mxu0 0
  %6584 = vmatpush1.bf16.msra.mxu0 0
  %6585 = vmatprep.subr.bf16.mxu0 0
  %6586 = vmatpush1.bf16.msra.mxu0 0
  %6587 = vmatprep.subr.bf16.mxu0 0
  %6588 = vmatpush1.bf16.msra.mxu0 0
  %6589 = vmatprep.mubr.bf16.mxu0 0
  %6590 = vmatmul.mubr.bf16.gmra.mrb[0].mxu0 %v6190
  %v6591 = vpop.f32.mrb[0].mxu0
  %v6592 = vadd.f32 %v6367, %v6591
  %v6593 = vpop.f32.mrb[0].mxu0
  %v6594 = vpop.f32.mrb[0].mxu0
  %v6595 = vadd.f32 %v6370, %v6594
  %v6596 = vpop.f32.mrb[0].mxu0
  %6597 = vmatprep.mubr.bf16.mxu0 0
  %6598 = vmatmul.mubr.bf16.gmra.mrb[0].mxu0 %v6193
  %v6599 = vpop.f32.mrb[0].mxu0
  %v6600 = vadd.f32 %v6375, %v6599
  %v6601 = vpop.f32.mrb[0].mxu0
  %v6602 = vpop.f32.mrb[0].mxu0
  %v6603 = vadd.f32 %v6378, %v6602
  %v6604 = vpop.f32.mrb[0].mxu0
  %6605 = vmatprep.mubr.bf16.mxu0 0
  %6606 = vmatmul.mubr.bf16.gmra.mrb[0].mxu0 %v6196
  %v6607 = vpop.f32.mrb[0].mxu0
  %v6608 = vadd.f32 %v6383, %v6607
  %v6609 = vpop.f32.mrb[0].mxu0
  %v6610 = vpop.f32.mrb[0].mxu0
  %v6611 = vadd.f32 %v6386, %v6610
  %v6612 = vpop.f32.mrb[0].mxu0
  %6613 = vmatprep.mubr.bf16.mxu0 0
  %6614 = vmatmul.mubr.bf16.gmra.mrb[0].mxu0 %v6199
  %v6615 = vpop.f32.mrb[0].mxu0
  %v6616 = vadd.f32 %v6391, %v6615
  %v6617 = vpop.f32.mrb[0].mxu0
  %v6618 = vpop.f32.mrb[0].mxu0
  %v6619 = vadd.f32 %v6394, %v6618
  %v6620 = vpop.f32.mrb[0].mxu0
  %6621 = vmatprep.mubr.bf16.mxu0 0
  %6622 = vmatmul.mubr.bf16.gmra.mrb[0].mxu0 %v6202
  %v6623 = vpop.f32.mrb[0].mxu0
  %v6624 = vadd.f32 %v6399, %v6623
  %v6625 = vpop.f32.mrb[0].mxu0
  %v6626 = vpop.f32.mrb[0].mxu0
  %v6627 = vadd.f32 %v6402, %v6626
  %v6628 = vpop.f32.mrb[0].mxu0
  %6629 = vmatprep.mubr.bf16.mxu0 0
  %6630 = vmatmul.mubr.bf16.gmra.mrb[0].mxu0 %v6205
  %v6631 = vpop.f32.mrb[0].mxu0
  %v6632 = vadd.f32 %v6407, %v6631
  %v6633 = vpop.f32.mrb[0].mxu0
  %v6634 = vpop.f32.mrb[0].mxu0
  %v6635 = vadd.f32 %v6410, %v6634
  %v6636 = vpop.f32.mrb[0].mxu0
  %6637 = vmatprep.mubr.bf16.mxu0 0
  %6638 = vmatmul.mubr.bf16.gmra.mrb[0].mxu0 %v6208
  %v6639 = vpop.f32.mrb[0].mxu0
  %v6640 = vadd.f32 %v6415, %v6639
  %v6641 = vpop.f32.mrb[0].mxu0
  %v6642 = vpop.f32.mrb[0].mxu0
  %v6643 = vadd.f32 %v6418, %v6642
  %v6644 = vpop.f32.mrb[0].mxu0
  %6645 = vmatprep.mubr.bf16.mxu0 0
  %6646 = vmatmul.mubr.bf16.gmra.mrb[0].mxu0 %v6211
  %v6647 = vpop.f32.mrb[0].mxu0
  %v6648 = vadd.f32 %v6423, %v6647
  %v6649 = vpop.f32.mrb[0].mxu0
  %v6650 = vpop.f32.mrb[0].mxu0
  %v6651 = vadd.f32 %v6426, %v6650
  %v6652 = vpop.f32.mrb[0].mxu0
  %6653 = vmatprep.mubr.bf16.mxu0 0
  %6654 = vmatmul.mubr.bf16.gmra.mrb[0].mxu0 %v6214
  %v6655 = vpop.f32.mrb[0].mxu0
  %v6656 = vadd.f32 %v6431, %v6655
  %v6657 = vpop.f32.mrb[0].mxu0
  %v6658 = vpop.f32.mrb[0].mxu0
  %v6659 = vadd.f32 %v6434, %v6658
  %v6660 = vpop.f32.mrb[0].mxu0
  %6661 = vmatprep.mubr.bf16.mxu0 0
  %6662 = vmatmul.mubr.bf16.gmra.mrb[0].mxu0 %v6217
  %v6663 = vpop.f32.mrb[0].mxu0
  %v6664 = vadd.f32 %v6439, %v6663
  %v6665 = vpop.f32.mrb[0].mxu0
  %v6666 = vpop.f32.mrb[0].mxu0
  %v6667 = vadd.f32 %v6442, %v6666
  %v6668 = vpop.f32.mrb[0].mxu0
  %6669 = vmatprep.mubr.bf16.mxu0 0
  %6670 = vmatmul.mubr.bf16.gmra.mrb[0].mxu0 %v6220
  %v6671 = vpop.f32.mrb[0].mxu0
  %v6672 = vadd.f32 %v6447, %v6671
  %v6673 = vpop.f32.mrb[0].mxu0
  %v6674 = vpop.f32.mrb[0].mxu0
  %v6675 = vadd.f32 %v6450, %v6674
  %v6676 = vpop.f32.mrb[0].mxu0
  %6677 = vmatprep.mubr.bf16.mxu0 0
  %6678 = vmatmul.mubr.bf16.gmra.mrb[0].mxu0 %v6223
  %v6679 = vpop.f32.mrb[0].mxu0
  %v6680 = vadd.f32 %v6455, %v6679
  %v6681 = vpop.f32.mrb[0].mxu0
  %v6682 = vpop.f32.mrb[0].mxu0
  %v6683 = vadd.f32 %v6458, %v6682
  %v6684 = vpop.f32.mrb[0].mxu0
  %6685 = vmatprep.mubr.bf16.mxu0 0
  %6686 = vmatmul.mubr.bf16.gmra.mrb[0].mxu0 %v6226
  %v6687 = vpop.f32.mrb[0].mxu0
  %v6688 = vadd.f32 %v6463, %v6687
  %v6689 = vpop.f32.mrb[0].mxu0
  %v6690 = vpop.f32.mrb[0].mxu0
  %v6691 = vadd.f32 %v6466, %v6690
  %v6692 = vpop.f32.mrb[0].mxu0
  %6693 = vmatprep.mubr.bf16.mxu0 0
  %6694 = vmatmul.mubr.bf16.gmra.mrb[0].mxu0 %v6229
  %v6695 = vpop.f32.mrb[0].mxu0
  %v6696 = vadd.f32 %v6471, %v6695
  %v6697 = vpop.f32.mrb[0].mxu0
  %v6698 = vpop.f32.mrb[0].mxu0
  %v6699 = vadd.f32 %v6474, %v6698
  %v6700 = vpop.f32.mrb[0].mxu0
  %6701 = vmatprep.mubr.bf16.mxu0 0
  %6702 = vmatmul.mubr.bf16.gmra.mrb[0].mxu0 %v6232
  %v6703 = vpop.f32.mrb[0].mxu0
  %v6704 = vadd.f32 %v6479, %v6703
  %v6705 = vpop.f32.mrb[0].mxu0
  %v6706 = vpop.f32.mrb[0].mxu0
  %v6707 = vadd.f32 %v6482, %v6706
  %v6708 = vpop.f32.mrb[0].mxu0
  %6709 = vmatprep.mubr.bf16.mxu0 0
  %6710 = vmatmul.mubr.bf16.gmra.mrb[0].mxu0 %v6235
  %v6711 = vpop.f32.mrb[0].mxu0
  %v6712 = vadd.f32 %v6487, %v6711
  %v6713 = vpop.f32.mrb[0].mxu0
  %v6714 = vpop.f32.mrb[0].mxu0
  %v6715 = vadd.f32 %v6490, %v6714
  %v6716 = vpop.f32.mrb[0].mxu0
  %6717 = vmatprep.mubr.bf16.mxu0 0
  %6718 = vmatmul.mubr.bf16.gmra.mrb[0].mxu0 %v6238
  %v6719 = vpop.f32.mrb[0].mxu0
  %v6720 = vadd.f32 %v6495, %v6719
  %v6721 = vpop.f32.mrb[0].mxu0
  %v6722 = vpop.f32.mrb[0].mxu0
  %v6723 = vadd.f32 %v6498, %v6722
  %v6724 = vpop.f32.mrb[0].mxu0
  %6725 = vmatprep.mubr.bf16.mxu0 0
  %6726 = vmatmul.mubr.bf16.gmra.mrb[0].mxu0 %v6241
  %v6727 = vpop.f32.mrb[0].mxu0
  %v6728 = vadd.f32 %v6503, %v6727
  %v6729 = vpop.f32.mrb[0].mxu0
  %v6730 = vpop.f32.mrb[0].mxu0
  %v6731 = vadd.f32 %v6506, %v6730
  %v6732 = vpop.f32.mrb[0].mxu0
  %6733 = vmatprep.mubr.bf16.mxu0 0
  %6734 = vmatmul.mubr.bf16.gmra.mrb[0].mxu0 %v6244
  %v6735 = vpop.f32.mrb[0].mxu0
  %v6736 = vadd.f32 %v6511, %v6735
  %v6737 = vpop.f32.mrb[0].mxu0
  %v6738 = vpop.f32.mrb[0].mxu0
  %v6739 = vadd.f32 %v6514, %v6738
  %v6740 = vpop.f32.mrb[0].mxu0
  %6741 = vmatprep.mubr.bf16.mxu0 0
  %6742 = vmatmul.mubr.bf16.gmra.mrb[0].mxu0 %v6247
  %v6743 = vpop.f32.mrb[0].mxu0
  %v6744 = vadd.f32 %v6519, %v6743
  %v6745 = vpop.f32.mrb[0].mxu0
  %v6746 = vpop.f32.mrb[0].mxu0
  %v6747 = vadd.f32 %v6522, %v6746
  %v6748 = vpop.f32.mrb[0].mxu0
  %6749 = vmatprep.mubr.bf16.mxu0 0
  %6750 = vmatmul.mubr.bf16.gmra.mrb[0].mxu0 %v6250
  %v6751 = vpop.f32.mrb[0].mxu0
  %v6752 = vadd.f32 %v6527, %v6751
  %v6753 = vpop.f32.mrb[0].mxu0
  %v6754 = vpop.f32.mrb[0].mxu0
  %v6755 = vadd.f32 %v6530, %v6754
  %v6756 = vpop.f32.mrb[0].mxu0
  %6757 = vmatprep.mubr.bf16.mxu0 0
  %6758 = vmatmul.mubr.bf16.gmra.mrb[0].mxu0 %v6253
  %v6759 = vpop.f32.mrb[0].mxu0
  %v6760 = vadd.f32 %v6535, %v6759
  %v6761 = vpop.f32.mrb[0].mxu0
  %v6762 = vpop.f32.mrb[0].mxu0
  %v6763 = vadd.f32 %v6538, %v6762
  %v6764 = vpop.f32.mrb[0].mxu0
  %6765 = vmatprep.mubr.bf16.mxu0 0
  %6766 = vmatmul.mubr.bf16.gmra.mrb[0].mxu0 %v6256
  %v6767 = vpop.f32.mrb[0].mxu0
  %v6768 = vadd.f32 %v6543, %v6767
  %v6769 = vpop.f32.mrb[0].mxu0
  %v6770 = vpop.f32.mrb[0].mxu0
  %v6771 = vadd.f32 %v6546, %v6770
  %v6772 = vpop.f32.mrb[0].mxu0
  %6773 = vmatprep.mubr.bf16.mxu0 0
  %6774 = vmatmul.mubr.bf16.gmra.mrb[0].mxu0 %v6259
  %v6775 = vpop.f32.mrb[0].mxu0
  %v6776 = vadd.f32 %v6551, %v6775
  %v6777 = vpop.f32.mrb[0].mxu0
  %v6778 = vpop.f32.mrb[0].mxu0
  %v6779 = vadd.f32 %v6554, %v6778
  %v6780 = vpop.f32.mrb[0].mxu0
  %6781 = vdwg.mxu0
  %6798 = vrot.lane.b32.xlu0 %v6592, 8
  %v6799 = vpop.permute.xlu0 %6798
  %6800 = vrot.lane.b32.xlu0 %v6595, 8
  %v6801 = vpop.permute.xlu0 %6800
  %6802 = vrot.lane.b32.xlu0 %v6600, 8
  %v6803 = vpop.permute.xlu0 %6802
  %6804 = vrot.lane.b32.xlu0 %v6603, 8
  %v6805 = vpop.permute.xlu0 %6804
  %6806 = vrot.lane.b32.xlu0 %v6608, 8
  %v6807 = vpop.permute.xlu0 %6806
  %6808 = vrot.lane.b32.xlu0 %v6611, 8
  %v6809 = vpop.permute.xlu0 %6808
  %6810 = vrot.lane.b32.xlu0 %v6616, 8
  %v6811 = vpop.permute.xlu0 %6810
  %6812 = vrot.lane.b32.xlu0 %v6619, 8
  %v6813 = vpop.permute.xlu0 %6812
  %6814 = vrot.lane.b32.xlu0 %v6624, 8
  %v6815 = vpop.permute.xlu0 %6814
  %6816 = vrot.lane.b32.xlu0 %v6627, 8
  %v6817 = vpop.permute.xlu0 %6816
  %6818 = vrot.lane.b32.xlu0 %v6632, 8
  %v6819 = vpop.permute.xlu0 %6818
  %6820 = vrot.lane.b32.xlu0 %v6635, 8
  %v6821 = vpop.permute.xlu0 %6820
  %6822 = vrot.lane.b32.xlu0 %v6640, 8
  %v6823 = vpop.permute.xlu0 %6822
  %6824 = vrot.lane.b32.xlu0 %v6643, 8
  %v6825 = vpop.permute.xlu0 %6824
  %6826 = vrot.lane.b32.xlu0 %v6648, 8
  %v6827 = vpop.permute.xlu0 %6826
  %6828 = vrot.lane.b32.xlu0 %v6651, 8
  %v6829 = vpop.permute.xlu0 %6828
  %v6846 = vsel %vm1132, 0.0, %v6799
  %v6847 = vsel %vm1132, 0.0, %v6801
  %v6848 = vsel %vm1132, 0.0, %v6803
  %v6849 = vsel %vm1132, 0.0, %v6805
  %v6850 = vsel %vm1132, 0.0, %v6807
  %v6851 = vsel %vm1132, 0.0, %v6809
  %v6852 = vsel %vm1132, 0.0, %v6811
  %v6853 = vsel %vm1132, 0.0, %v6813
  %v6854 = vsel %vm1132, 0.0, %v6815
  %v6855 = vsel %vm1132, 0.0, %v6817
  %v6856 = vsel %vm1132, 0.0, %v6819
  %v6857 = vsel %vm1132, 0.0, %v6821
  %v6858 = vsel %vm1132, 0.0, %v6823
  %v6859 = vsel %vm1132, 0.0, %v6825
  %v6860 = vsel %vm1132, 0.0, %v6827
  %v6861 = vsel %vm1132, 0.0, %v6829
  %v6862 = vld [vmem:[%s9 + $0x2] sm:$0x1]
  %v6863 = vlaneseq
  %v6864 = vshrl.u32 %v6863, 7
  %v6865 = vsub.s32 0, %v6864
  %v6866 = vrot.slane %v6862, %v6865
  %v6867 = vmul.f32 %v6846, %v6866
  %v6868 = vmul.f32 %v6847, %v6866
  %v6869 = vmul.f32 %v6848, %v6866
  %v6870 = vmul.f32 %v6849, %v6866
  %v6871 = vmul.f32 %v6850, %v6866
  %v6872 = vmul.f32 %v6851, %v6866
  %v6873 = vmul.f32 %v6852, %v6866
  %v6874 = vmul.f32 %v6853, %v6866
  %v6875 = vmul.f32 %v6854, %v6866
  %v6876 = vmul.f32 %v6855, %v6866
  %v6877 = vmul.f32 %v6856, %v6866
  %v6878 = vmul.f32 %v6857, %v6866
  %v6879 = vmul.f32 %v6858, %v6866
  %v6880 = vmul.f32 %v6859, %v6866
  %v6881 = vmul.f32 %v6860, %v6866
  %v6882 = vmul.f32 %v6861, %v6866
  %6899 = vrot.lane.b32.xlu0 %v6720, 120
  %v6900 = vpop.permute.xlu0 %6899
  %6901 = vrot.lane.b32.xlu0 %v6723, 120
  %v6902 = vpop.permute.xlu0 %6901
  %6903 = vrot.lane.b32.xlu0 %v6728, 120
  %v6904 = vpop.permute.xlu0 %6903
  %6905 = vrot.lane.b32.xlu0 %v6731, 120
  %v6906 = vpop.permute.xlu0 %6905
  %6907 = vrot.lane.b32.xlu0 %v6736, 120
  %v6908 = vpop.permute.xlu0 %6907
  %6909 = vrot.lane.b32.xlu0 %v6739, 120
  %v6910 = vpop.permute.xlu0 %6909
  %6911 = vrot.lane.b32.xlu0 %v6744, 120
  %v6912 = vpop.permute.xlu0 %6911
  %6913 = vrot.lane.b32.xlu0 %v6747, 120
  %v6914 = vpop.permute.xlu0 %6913
  %6915 = vrot.lane.b32.xlu0 %v6752, 120
  %v6916 = vpop.permute.xlu0 %6915
  %6917 = vrot.lane.b32.xlu0 %v6755, 120
  %v6918 = vpop.permute.xlu0 %6917
  %6919 = vrot.lane.b32.xlu0 %v6760, 120
  %v6920 = vpop.permute.xlu0 %6919
  %6921 = vrot.lane.b32.xlu0 %v6763, 120
  %v6922 = vpop.permute.xlu0 %6921
  %6923 = vrot.lane.b32.xlu0 %v6768, 120
  %v6924 = vpop.permute.xlu0 %6923
  %6925 = vrot.lane.b32.xlu0 %v6771, 120
  %v6926 = vpop.permute.xlu0 %6925
  %6927 = vrot.lane.b32.xlu0 %v6776, 120
  %v6928 = vpop.permute.xlu0 %6927
  %6929 = vrot.lane.b32.xlu0 %v6779, 120
  %v6930 = vpop.permute.xlu0 %6929
  %vm6947 = vcmask 982016
  %v6948 = vsel %vm6947, %v6900, 0.0
  %v6949 = vsel %vm6947, %v6902, 0.0
  %v6950 = vsel %vm6947, %v6904, 0.0
  %v6951 = vsel %vm6947, %v6906, 0.0
  %v6952 = vsel %vm6947, %v6908, 0.0
  %v6953 = vsel %vm6947, %v6910, 0.0
  %v6954 = vsel %vm6947, %v6912, 0.0
  %v6955 = vsel %vm6947, %v6914, 0.0
  %v6956 = vsel %vm6947, %v6916, 0.0
  %v6957 = vsel %vm6947, %v6918, 0.0
  %v6958 = vsel %vm6947, %v6920, 0.0
  %v6959 = vsel %vm6947, %v6922, 0.0
  %v6960 = vsel %vm6947, %v6924, 0.0
  %v6961 = vsel %vm6947, %v6926, 0.0
  %v6962 = vsel %vm6947, %v6928, 0.0
  %v6963 = vsel %vm6947, %v6930, 0.0
  %v6964 = vld [vmem:[%s9 + $0x3] sm:$0x1]
  %v6965 = vlaneseq
  %v6966 = vshrl.u32 %v6965, 7
  %v6967 = vsub.s32 0, %v6966
  %v6968 = vrot.slane %v6964, %v6967
  %v6969 = vmul.f32 %v6948, %v6968
  %v6970 = vmul.f32 %v6949, %v6968
  %v6971 = vmul.f32 %v6950, %v6968
  %v6972 = vmul.f32 %v6951, %v6968
  %v6973 = vmul.f32 %v6952, %v6968
  %v6974 = vmul.f32 %v6953, %v6968
  %v6975 = vmul.f32 %v6954, %v6968
  %v6976 = vmul.f32 %v6955, %v6968
  %v6977 = vmul.f32 %v6956, %v6968
  %v6978 = vmul.f32 %v6957, %v6968
  %v6979 = vmul.f32 %v6958, %v6968
  %v6980 = vmul.f32 %v6959, %v6968
  %v6981 = vmul.f32 %v6960, %v6968
  %v6982 = vmul.f32 %v6961, %v6968
  %v6983 = vmul.f32 %v6962, %v6968
  %v6984 = vmul.f32 %v6963, %v6968
  %v6985 = vadd.f32 %v6867, %v6656
  %v6986 = vadd.f32 %v6868, %v6659
  %v6987 = vadd.f32 %v6869, %v6664
  %v6988 = vadd.f32 %v6870, %v6667
  %v6989 = vadd.f32 %v6871, %v6672
  %v6990 = vadd.f32 %v6872, %v6675
  %v6991 = vadd.f32 %v6873, %v6680
  %v6992 = vadd.f32 %v6874, %v6683
  %v6993 = vadd.f32 %v6875, %v6688
  %v6994 = vadd.f32 %v6876, %v6691
  %v6995 = vadd.f32 %v6877, %v6696
  %v6996 = vadd.f32 %v6878, %v6699
  %v6997 = vadd.f32 %v6879, %v6704
  %v6998 = vadd.f32 %v6880, %v6707
  %v6999 = vadd.f32 %v6881, %v6712
  %v7000 = vadd.f32 %v6882, %v6715
  %v7001 = vadd.f32 %v6985, %v6969
  %v7002 = vadd.f32 %v6986, %v6970
  %v7003 = vadd.f32 %v6987, %v6971
  %v7004 = vadd.f32 %v6988, %v6972
  %v7005 = vadd.f32 %v6989, %v6973
  %v7006 = vadd.f32 %v6990, %v6974
  %v7007 = vadd.f32 %v6991, %v6975
  %v7008 = vadd.f32 %v6992, %v6976
  %v7009 = vadd.f32 %v6993, %v6977
  %v7010 = vadd.f32 %v6994, %v6978
  %v7011 = vadd.f32 %v6995, %v6979
  %v7012 = vadd.f32 %v6996, %v6980
  %v7013 = vadd.f32 %v6997, %v6981
  %v7014 = vadd.f32 %v6998, %v6982
  %v7015 = vadd.f32 %v6999, %v6983
  %v7016 = vadd.f32 %v7000, %v6984
  %v7017 = vld [vmem:[%s18] sm:$0xff]
  %v7018 = vld [vmem:[%s18 + $0x8] sm:$0xff]
  %v7019 = vld [vmem:[%s18 + $0x10] sm:$0xff]
  %v7020 = vld [vmem:[%s18 + $0x18] sm:$0xff]
  %v7021 = vld [vmem:[%s18 + $0x20] sm:$0xff]
  %v7022 = vld [vmem:[%s18 + $0x28] sm:$0xff]
  %v7023 = vld [vmem:[%s18 + $0x30] sm:$0xff]
  %v7024 = vld [vmem:[%s18 + $0x38] sm:$0xff]
  %v7025 = vld [vmem:[%s18 + $0x40] sm:$0xff]
  %v7026 = vld [vmem:[%s18 + $0x48] sm:$0xff]
  %v7027 = vld [vmem:[%s18 + $0x50] sm:$0xff]
  %v7028 = vld [vmem:[%s18 + $0x58] sm:$0xff]
  %v7029 = vld [vmem:[%s18 + $0x60] sm:$0xff]
  %v7030 = vld [vmem:[%s18 + $0x68] sm:$0xff]
  %v7031 = vld [vmem:[%s18 + $0x70] sm:$0xff]
  %v7032 = vld [vmem:[%s18 + $0x78] sm:$0xff]
  %7034 = vset.pattern.permute.xlu0 0
  %7035 = vperm.xlu0 %7034, %v7017
  %v7036 = vpop.permute.xlu0 %7035
  %7039 = vset.pattern.permute.xlu0 0
  %7040 = vperm.xlu0 %7039, %v7018
  %v7041 = vpop.permute.xlu0 %7040
  %7044 = vset.pattern.permute.xlu0 0
  %7045 = vperm.xlu0 %7044, %v7019
  %v7046 = vpop.permute.xlu0 %7045
  %7049 = vset.pattern.permute.xlu0 0
  %7050 = vperm.xlu0 %7049, %v7020
  %v7051 = vpop.permute.xlu0 %7050
  %7054 = vset.pattern.permute.xlu0 0
  %7055 = vperm.xlu0 %7054, %v7021
  %v7056 = vpop.permute.xlu0 %7055
  %7059 = vset.pattern.permute.xlu0 0
  %7060 = vperm.xlu0 %7059, %v7022
  %v7061 = vpop.permute.xlu0 %7060
  %7064 = vset.pattern.permute.xlu0 0
  %7065 = vperm.xlu0 %7064, %v7023
  %v7066 = vpop.permute.xlu0 %7065
  %7069 = vset.pattern.permute.xlu0 0
  %7070 = vperm.xlu0 %7069, %v7024
  %v7071 = vpop.permute.xlu0 %7070
  %7074 = vset.pattern.permute.xlu0 0
  %7075 = vperm.xlu0 %7074, %v7025
  %v7076 = vpop.permute.xlu0 %7075
  %7079 = vset.pattern.permute.xlu0 0
  %7080 = vperm.xlu0 %7079, %v7026
  %v7081 = vpop.permute.xlu0 %7080
  %7084 = vset.pattern.permute.xlu0 0
  %7085 = vperm.xlu0 %7084, %v7027
  %v7086 = vpop.permute.xlu0 %7085
  %7089 = vset.pattern.permute.xlu0 0
  %7090 = vperm.xlu0 %7089, %v7028
  %v7091 = vpop.permute.xlu0 %7090
  %7094 = vset.pattern.permute.xlu0 0
  %7095 = vperm.xlu0 %7094, %v7029
  %v7096 = vpop.permute.xlu0 %7095
  %7099 = vset.pattern.permute.xlu0 0
  %7100 = vperm.xlu0 %7099, %v7030
  %v7101 = vpop.permute.xlu0 %7100
  %7104 = vset.pattern.permute.xlu0 0
  %7105 = vperm.xlu0 %7104, %v7031
  %v7106 = vpop.permute.xlu0 %7105
  %7109 = vset.pattern.permute.xlu0 0
  %7110 = vperm.xlu0 %7109, %v7032
  %v7111 = vpop.permute.xlu0 %7110
  %v7113 = vadd.f32 %v7001, %v7036
  %v7114 = vadd.f32 %v7002, %v7041
  %v7115 = vadd.f32 %v7003, %v7046
  %v7116 = vadd.f32 %v7004, %v7051
  %v7117 = vadd.f32 %v7005, %v7056
  %v7118 = vadd.f32 %v7006, %v7061
  %v7119 = vadd.f32 %v7007, %v7066
  %v7120 = vadd.f32 %v7008, %v7071
  %v7121 = vadd.f32 %v7009, %v7076
  %v7122 = vadd.f32 %v7010, %v7081
  %v7123 = vadd.f32 %v7011, %v7086
  %v7124 = vadd.f32 %v7012, %v7091
  %v7125 = vadd.f32 %v7013, %v7096
  %v7126 = vadd.f32 %v7014, %v7101
  %v7127 = vadd.f32 %v7015, %v7106
  %v7128 = vadd.f32 %v7016, %v7111
  %v7129 = vld [vmem:[%s19] sm:$0xf]
  %v7130 = vld [vmem:[%s19 + $0x4] sm:$0xf]
  %v7131 = vld [vmem:[%s19 + $0x8] sm:$0xf]
  %v7132 = vld [vmem:[%s19 + $0xc] sm:$0xf]
  %v7133 = vld [vmem:[%s19 + $0x10] sm:$0xf]
  %v7134 = vld [vmem:[%s19 + $0x14] sm:$0xf]
  %v7135 = vld [vmem:[%s19 + $0x18] sm:$0xf]
  %v7136 = vld [vmem:[%s19 + $0x1c] sm:$0xf]
  %v7137 = vpack.c.bf16 %v7114, %v7113
  %v7138 = vpack.c.bf16 %v7116, %v7115
  %v7139 = vpack.c.bf16 %v7118, %v7117
  %v7140 = vpack.c.bf16 %v7120, %v7119
  %v7141 = vpack.c.bf16 %v7122, %v7121
  %v7142 = vpack.c.bf16 %v7124, %v7123
  %v7143 = vpack.c.bf16 %v7126, %v7125
  %v7144 = vpack.c.bf16 %v7128, %v7127
  %v7145 = vld [vmem:[%s20] sm:$0xff]
  %v7146 = vld [vmem:[%s20 + $0x8] sm:$0xff]
  %v7147 = vld [vmem:[%s20 + $0x10] sm:$0xff]
  %v7148 = vld [vmem:[%s20 + $0x18] sm:$0xff]
  %v7149 = vld [vmem:[%s20 + $0x20] sm:$0xff]
  %v7150 = vld [vmem:[%s20 + $0x28] sm:$0xff]
  %v7151 = vld [vmem:[%s20 + $0x30] sm:$0xff]
  %v7152 = vld [vmem:[%s20 + $0x38] sm:$0xff]
  %7154 = vset.pattern.permute.xlu0 0
  %7155 = vperm.xlu0 %7154, %v7145
  %v7156 = vpop.permute.xlu0 %7155
  %7159 = vset.pattern.permute.xlu0 0
  %7160 = vperm.xlu0 %7159, %v7146
  %v7161 = vpop.permute.xlu0 %7160
  %7164 = vset.pattern.permute.xlu0 0
  %7165 = vperm.xlu0 %7164, %v7147
  %v7166 = vpop.permute.xlu0 %7165
  %7169 = vset.pattern.permute.xlu0 0
  %7170 = vperm.xlu0 %7169, %v7148
  %v7171 = vpop.permute.xlu0 %7170
  %7174 = vset.pattern.permute.xlu0 0
  %7175 = vperm.xlu0 %7174, %v7149
  %v7176 = vpop.permute.xlu0 %7175
  %7179 = vset.pattern.permute.xlu0 0
  %7180 = vperm.xlu0 %7179, %v7150
  %v7181 = vpop.permute.xlu0 %7180
  %7184 = vset.pattern.permute.xlu0 0
  %7185 = vperm.xlu0 %7184, %v7151
  %v7186 = vpop.permute.xlu0 %7185
  %7189 = vset.pattern.permute.xlu0 0
  %7190 = vperm.xlu0 %7189, %v7152
  %v7191 = vpop.permute.xlu0 %7190
  %v7201 = vunpack.c.l.b16 %v7129
  %v7202 = vunpack.c.l.b16 %v7130
  %v7203 = vunpack.c.l.b16 %v7131
  %v7204 = vunpack.c.l.b16 %v7132
  %v7205 = vunpack.c.l.b16 %v7133
  %v7206 = vunpack.c.l.b16 %v7134
  %v7207 = vunpack.c.l.b16 %v7135
  %v7208 = vunpack.c.l.b16 %v7136
  %v7209 = vpack.c.b16 %v7202, %v7201
  %v7210 = vpack.c.b16 %v7204, %v7203
  %v7211 = vpack.c.b16 %v7206, %v7205
  %v7212 = vpack.c.b16 %v7208, %v7207
  %7217 = vmatprep.subr.bf16.mxu0 0
  %7218 = vmatpush1.bf16.msra.mxu0 %v7137
  %7219 = vmatprep.subr.bf16.mxu0 0
  %7220 = vmatpush1.bf16.msra.mxu0 %v7138
  %7221 = vmatprep.subr.bf16.mxu0 0
  %7222 = vmatpush1.bf16.msra.mxu0 %v7139
  %7223 = vmatprep.subr.bf16.mxu0 0
  %7224 = vmatpush1.bf16.msra.mxu0 %v7140
  %7225 = vmatprep.subr.bf16.mxu0 0
  %7226 = vmatpush1.bf16.msra.mxu0 %v7141
  %7227 = vmatprep.subr.bf16.mxu0 0
  %7228 = vmatpush1.bf16.msra.mxu0 %v7142
  %7229 = vmatprep.subr.bf16.mxu0 0
  %7230 = vmatpush1.bf16.msra.mxu0 %v7143
  %7231 = vmatprep.subr.bf16.mxu0 0
  %7232 = vmatpush1.bf16.msra.mxu0 %v7144
  %7233 = vmatprep.subr.bf16.mxu0 0
  %7234 = vmatpush1.bf16.msra.mxu0 0
  %7235 = vmatprep.subr.bf16.mxu0 0
  %7236 = vmatpush1.bf16.msra.mxu0 0
  %7237 = vmatprep.subr.bf16.mxu0 0
  %7238 = vmatpush1.bf16.msra.mxu0 0
  %7239 = vmatprep.subr.bf16.mxu0 0
  %7240 = vmatpush1.bf16.msra.mxu0 0
  %7241 = vmatprep.subr.bf16.mxu0 0
  %7242 = vmatpush1.bf16.msra.mxu0 0
  %7243 = vmatprep.subr.bf16.mxu0 0
  %7244 = vmatpush1.bf16.msra.mxu0 0
  %7245 = vmatprep.subr.bf16.mxu0 0
  %7246 = vmatpush1.bf16.msra.mxu0 0
  %7247 = vmatprep.subr.bf16.mxu0 0
  %7248 = vmatpush1.bf16.msra.mxu0 0
  %7249 = vmatprep.mubr.bf16.mxu0 0
  %7250 = vmatmul.mubr.bf16.gmra.mrb[0].mxu0 %v7209
  %v7251 = vpop.f32.mrb[0].mxu0
  %v7252 = vadd.f32 %v7156, %v7251
  %v7253 = vpop.f32.mrb[0].mxu0
  %v7254 = vpop.f32.mrb[0].mxu0
  %v7255 = vadd.f32 %v7161, %v7254
  %v7256 = vpop.f32.mrb[0].mxu0
  %7257 = vmatprep.mubr.bf16.mxu0 0
  %7258 = vmatmul.mubr.bf16.gmra.mrb[0].mxu0 %v7210
  %v7259 = vpop.f32.mrb[0].mxu0
  %v7260 = vadd.f32 %v7166, %v7259
  %v7261 = vpop.f32.mrb[0].mxu0
  %v7262 = vpop.f32.mrb[0].mxu0
  %v7263 = vadd.f32 %v7171, %v7262
  %v7264 = vpop.f32.mrb[0].mxu0
  %7265 = vmatprep.mubr.bf16.mxu0 0
  %7266 = vmatmul.mubr.bf16.gmra.mrb[0].mxu0 %v7211
  %v7267 = vpop.f32.mrb[0].mxu0
  %v7268 = vadd.f32 %v7176, %v7267
  %v7269 = vpop.f32.mrb[0].mxu0
  %v7270 = vpop.f32.mrb[0].mxu0
  %v7271 = vadd.f32 %v7181, %v7270
  %v7272 = vpop.f32.mrb[0].mxu0
  %7273 = vmatprep.mubr.bf16.mxu0 0
  %7274 = vmatmul.mubr.bf16.gmra.mrb[0].mxu0 %v7212
  %v7275 = vpop.f32.mrb[0].mxu0
  %v7276 = vadd.f32 %v7186, %v7275
  %v7277 = vpop.f32.mrb[0].mxu0
  %v7278 = vpop.f32.mrb[0].mxu0
  %v7279 = vadd.f32 %v7191, %v7278
  %v7280 = vpop.f32.mrb[0].mxu0
  %7281 = vdwg.mxu0
  %v7282 = vld [vmem:[%s7] sm:$0xff]
  %v7283 = vld [vmem:[%s7 + $0x8] sm:$0xff]
  %v7284 = vld [vmem:[%s7 + $0x10] sm:$0xff]
  %v7285 = vld [vmem:[%s7 + $0x18] sm:$0xff]
  %v7286 = vld [vmem:[%s7 + $0x20] sm:$0xff]
  %v7287 = vld [vmem:[%s7 + $0x28] sm:$0xff]
  %v7288 = vld [vmem:[%s7 + $0x30] sm:$0xff]
  %v7289 = vld [vmem:[%s7 + $0x38] sm:$0xff]
  %v7290 = vld [vmem:[%s7 + $0x40] sm:$0xff]
  %v7291 = vld [vmem:[%s7 + $0x48] sm:$0xff]
  %v7292 = vld [vmem:[%s7 + $0x50] sm:$0xff]
  %v7293 = vld [vmem:[%s7 + $0x58] sm:$0xff]
  %v7294 = vld [vmem:[%s7 + $0x60] sm:$0xff]
  %v7295 = vld [vmem:[%s7 + $0x68] sm:$0xff]
  %v7296 = vld [vmem:[%s7 + $0x70] sm:$0xff]
  %v7297 = vld [vmem:[%s7 + $0x78] sm:$0xff]
  %v7298 = vld [vmem:[%s7 + $0x80] sm:$0xff]
  %v7299 = vld [vmem:[%s7 + $0x88] sm:$0xff]
  %v7300 = vld [vmem:[%s7 + $0x90] sm:$0xff]
  %v7301 = vld [vmem:[%s7 + $0x98] sm:$0xff]
  %v7302 = vld [vmem:[%s7 + $0xa0] sm:$0xff]
  %v7303 = vld [vmem:[%s7 + $0xa8] sm:$0xff]
  %v7304 = vld [vmem:[%s7 + $0xb0] sm:$0xff]
  %v7305 = vld [vmem:[%s7 + $0xb8] sm:$0xff]
  %v7306 = vld [vmem:[%s7 + $0xc0] sm:$0xff]
  %v7307 = vld [vmem:[%s7 + $0xc8] sm:$0xff]
  %v7308 = vld [vmem:[%s7 + $0xd0] sm:$0xff]
  %v7309 = vld [vmem:[%s7 + $0xd8] sm:$0xff]
  %v7310 = vld [vmem:[%s7 + $0xe0] sm:$0xff]
  %v7311 = vld [vmem:[%s7 + $0xe8] sm:$0xff]
  %v7312 = vld [vmem:[%s7 + $0xf0] sm:$0xff]
  %v7313 = vld [vmem:[%s7 + $0xf8] sm:$0xff]
  %v7314 = vpack.c.bf16 %v7255, %v7252
  %v7315 = vpack.c.bf16 %v7263, %v7260
  %v7316 = vpack.c.bf16 %v7271, %v7268
  %v7317 = vpack.c.bf16 %v7279, %v7276
  %v7318 = vld [vmem:[%s1] sm:$0xff]
  %v7319 = vld [vmem:[%s1 + $0x8] sm:$0xff]
  %v7320 = vld [vmem:[%s1 + $0x10] sm:$0xff]
  %v7321 = vld [vmem:[%s1 + $0x18] sm:$0xff]
  %v7322 = vld [vmem:[%s1 + $0x20] sm:$0xff]
  %v7323 = vld [vmem:[%s1 + $0x28] sm:$0xff]
  %v7324 = vld [vmem:[%s1 + $0x30] sm:$0xff]
  %v7325 = vld [vmem:[%s1 + $0x38] sm:$0xff]
  %v7326 = vld [vmem:[%s1 + $0x40] sm:$0xff]
  %v7327 = vld [vmem:[%s1 + $0x48] sm:$0xff]
  %v7328 = vld [vmem:[%s1 + $0x50] sm:$0xff]
  %v7329 = vld [vmem:[%s1 + $0x58] sm:$0xff]
  %v7330 = vld [vmem:[%s1 + $0x60] sm:$0xff]
  %v7331 = vld [vmem:[%s1 + $0x68] sm:$0xff]
  %v7332 = vld [vmem:[%s1 + $0x70] sm:$0xff]
  %v7333 = vld [vmem:[%s1 + $0x78] sm:$0xff]
  %v7334 = vld [vmem:[%s1 + $0x80] sm:$0xff]
  %v7335 = vld [vmem:[%s1 + $0x88] sm:$0xff]
  %v7336 = vld [vmem:[%s1 + $0x90] sm:$0xff]
  %v7337 = vld [vmem:[%s1 + $0x98] sm:$0xff]
  %v7338 = vld [vmem:[%s1 + $0xa0] sm:$0xff]
  %v7339 = vld [vmem:[%s1 + $0xa8] sm:$0xff]
  %v7340 = vld [vmem:[%s1 + $0xb0] sm:$0xff]
  %v7341 = vld [vmem:[%s1 + $0xb8] sm:$0xff]
  %v7342 = vld [vmem:[%s1 + $0xc0] sm:$0xff]
  %v7343 = vld [vmem:[%s1 + $0xc8] sm:$0xff]
  %v7344 = vld [vmem:[%s1 + $0xd0] sm:$0xff]
  %v7345 = vld [vmem:[%s1 + $0xd8] sm:$0xff]
  %v7346 = vld [vmem:[%s1 + $0xe0] sm:$0xff]
  %v7347 = vld [vmem:[%s1 + $0xe8] sm:$0xff]
  %v7348 = vld [vmem:[%s1 + $0xf0] sm:$0xff]
  %v7349 = vld [vmem:[%s1 + $0xf8] sm:$0xff]
  %v7382 = vunpack.c.l.b16 %v7282
  %v7383 = vunpack.c.h.b16 %v7282
  %v7384 = vunpack.c.l.b16 %v7283
  %v7385 = vunpack.c.h.b16 %v7283
  %v7386 = vunpack.c.l.b16 %v7284
  %v7387 = vunpack.c.h.b16 %v7284
  %v7388 = vunpack.c.l.b16 %v7285
  %v7389 = vunpack.c.h.b16 %v7285
  %v7390 = vunpack.c.l.b16 %v7286
  %v7391 = vunpack.c.h.b16 %v7286
  %v7392 = vunpack.c.l.b16 %v7287
  %v7393 = vunpack.c.h.b16 %v7287
  %v7394 = vunpack.c.l.b16 %v7288
  %v7395 = vunpack.c.h.b16 %v7288
  %v7396 = vunpack.c.l.b16 %v7289
  %v7397 = vunpack.c.h.b16 %v7289
  %v7398 = vunpack.c.l.b16 %v7290
  %v7399 = vunpack.c.h.b16 %v7290
  %v7400 = vunpack.c.l.b16 %v7291
  %v7401 = vunpack.c.h.b16 %v7291
  %v7402 = vunpack.c.l.b16 %v7292
  %v7403 = vunpack.c.h.b16 %v7292
  %v7404 = vunpack.c.l.b16 %v7293
  %v7405 = vunpack.c.h.b16 %v7293
  %v7406 = vunpack.c.l.b16 %v7294
  %v7407 = vunpack.c.h.b16 %v7294
  %v7408 = vunpack.c.l.b16 %v7295
  %v7409 = vunpack.c.h.b16 %v7295
  %v7410 = vunpack.c.l.b16 %v7296
  %v7411 = vunpack.c.h.b16 %v7296
  %v7412 = vunpack.c.l.b16 %v7297
  %v7413 = vunpack.c.h.b16 %v7297
  %v7414 = vunpack.c.l.b16 %v7298
  %v7415 = vunpack.c.h.b16 %v7298
  %v7416 = vunpack.c.l.b16 %v7299
  %v7417 = vunpack.c.h.b16 %v7299
  %v7418 = vunpack.c.l.b16 %v7300
  %v7419 = vunpack.c.h.b16 %v7300
  %v7420 = vunpack.c.l.b16 %v7301
  %v7421 = vunpack.c.h.b16 %v7301
  %v7422 = vunpack.c.l.b16 %v7302
  %v7423 = vunpack.c.h.b16 %v7302
  %v7424 = vunpack.c.l.b16 %v7303
  %v7425 = vunpack.c.h.b16 %v7303
  %v7426 = vunpack.c.l.b16 %v7304
  %v7427 = vunpack.c.h.b16 %v7304
  %v7428 = vunpack.c.l.b16 %v7305
  %v7429 = vunpack.c.h.b16 %v7305
  %v7430 = vunpack.c.l.b16 %v7306
  %v7431 = vunpack.c.h.b16 %v7306
  %v7432 = vunpack.c.l.b16 %v7307
  %v7433 = vunpack.c.h.b16 %v7307
  %v7434 = vunpack.c.l.b16 %v7308
  %v7435 = vunpack.c.h.b16 %v7308
  %v7436 = vunpack.c.l.b16 %v7309
  %v7437 = vunpack.c.h.b16 %v7309
  %v7438 = vunpack.c.l.b16 %v7310
  %v7439 = vunpack.c.h.b16 %v7310
  %v7440 = vunpack.c.l.b16 %v7311
  %v7441 = vunpack.c.h.b16 %v7311
  %v7442 = vunpack.c.l.b16 %v7312
  %v7443 = vunpack.c.h.b16 %v7312
  %v7444 = vunpack.c.l.b16 %v7313
  %v7445 = vunpack.c.h.b16 %v7313
  %v7446 = vpack.c.b16 %v7386, %v7382
  %v7447 = vpack.c.b16 %v7387, %v7383
  %v7448 = vpack.c.b16 %v7388, %v7384
  %v7449 = vpack.c.b16 %v7389, %v7385
  %v7450 = vpack.c.b16 %v7394, %v7390
  %v7451 = vpack.c.b16 %v7395, %v7391
  %v7452 = vpack.c.b16 %v7396, %v7392
  %v7453 = vpack.c.b16 %v7397, %v7393
  %v7454 = vpack.c.b16 %v7402, %v7398
  %v7455 = vpack.c.b16 %v7403, %v7399
  %v7456 = vpack.c.b16 %v7404, %v7400
  %v7457 = vpack.c.b16 %v7405, %v7401
  %v7458 = vpack.c.b16 %v7410, %v7406
  %v7459 = vpack.c.b16 %v7411, %v7407
  %v7460 = vpack.c.b16 %v7412, %v7408
  %v7461 = vpack.c.b16 %v7413, %v7409
  %v7462 = vpack.c.b16 %v7418, %v7414
  %v7463 = vpack.c.b16 %v7419, %v7415
  %v7464 = vpack.c.b16 %v7420, %v7416
  %v7465 = vpack.c.b16 %v7421, %v7417
  %v7466 = vpack.c.b16 %v7426, %v7422
  %v7467 = vpack.c.b16 %v7427, %v7423
  %v7468 = vpack.c.b16 %v7428, %v7424
  %v7469 = vpack.c.b16 %v7429, %v7425
  %v7470 = vpack.c.b16 %v7434, %v7430
  %v7471 = vpack.c.b16 %v7435, %v7431
  %v7472 = vpack.c.b16 %v7436, %v7432
  %v7473 = vpack.c.b16 %v7437, %v7433
  %v7474 = vpack.c.b16 %v7442, %v7438
  %v7475 = vpack.c.b16 %v7443, %v7439
  %v7476 = vpack.c.b16 %v7444, %v7440
  %v7477 = vpack.c.b16 %v7445, %v7441
  %7510 = vmatprep.subr.bf16.mxu0 %v7447
  %7511 = vmatpush1.bf16.msra.mxu0 %v7446
  %7512 = vmatprep.subr.bf16.mxu0 %v7451
  %7513 = vmatpush1.bf16.msra.mxu0 %v7450
  %7514 = vmatprep.subr.bf16.mxu0 %v7455
  %7515 = vmatpush1.bf16.msra.mxu0 %v7454
  %7516 = vmatprep.subr.bf16.mxu0 %v7459
  %7517 = vmatpush1.bf16.msra.mxu0 %v7458
  %7518 = vmatprep.subr.bf16.mxu0 %v7463
  %7519 = vmatpush1.bf16.msra.mxu0 %v7462
  %7520 = vmatprep.subr.bf16.mxu0 %v7467
  %7521 = vmatpush1.bf16.msra.mxu0 %v7466
  %7522 = vmatprep.subr.bf16.mxu0 %v7471
  %7523 = vmatpush1.bf16.msra.mxu0 %v7470
  %7524 = vmatprep.subr.bf16.mxu0 %v7475
  %7525 = vmatpush1.bf16.msra.mxu0 %v7474
  %7526 = vmatprep.subr.bf16.mxu0 0
  %7527 = vmatpush1.bf16.msra.mxu0 0
  %7528 = vmatprep.subr.bf16.mxu0 0
  %7529 = vmatpush1.bf16.msra.mxu0 0
  %7530 = vmatprep.subr.bf16.mxu0 0
  %7531 = vmatpush1.bf16.msra.mxu0 0
  %7532 = vmatprep.subr.bf16.mxu0 0
  %7533 = vmatpush1.bf16.msra.mxu0 0
  %7534 = vmatprep.subr.bf16.mxu0 0
  %7535 = vmatpush1.bf16.msra.mxu0 0
  %7536 = vmatprep.subr.bf16.mxu0 0
  %7537 = vmatpush1.bf16.msra.mxu0 0
  %7538 = vmatprep.subr.bf16.mxu0 0
  %7539 = vmatpush1.bf16.msra.mxu0 0
  %7540 = vmatprep.subr.bf16.mxu0 0
  %7541 = vmatpush1.bf16.msra.mxu0 0
  %7542 = vmatprep.mubr.bf16.mxu0 0
  %7543 = vmatmul.mubr.bf16.gmra.mrb[0].mxu0 %v7314
  %v7544 = vpop.f32.mrb[0].mxu0
  %v7545 = vadd.f32 %v7318, %v7544
  %v7546 = vpop.f32.mrb[0].mxu0
  %v7547 = vadd.f32 %v7319, %v7546
  %v7548 = vpop.f32.mrb[0].mxu0
  %v7549 = vadd.f32 %v7322, %v7548
  %v7550 = vpop.f32.mrb[0].mxu0
  %v7551 = vadd.f32 %v7323, %v7550
  %7552 = vmatprep.mubr.bf16.mxu0 0
  %7553 = vmatmul.mubr.bf16.gmra.mrb[0].mxu0 %v7315
  %v7554 = vpop.f32.mrb[0].mxu0
  %v7555 = vadd.f32 %v7326, %v7554
  %v7556 = vpop.f32.mrb[0].mxu0
  %v7557 = vadd.f32 %v7327, %v7556
  %v7558 = vpop.f32.mrb[0].mxu0
  %v7559 = vadd.f32 %v7330, %v7558
  %v7560 = vpop.f32.mrb[0].mxu0
  %v7561 = vadd.f32 %v7331, %v7560
  %7562 = vmatprep.mubr.bf16.mxu0 0
  %7563 = vmatmul.mubr.bf16.gmra.mrb[0].mxu0 %v7316
  %v7564 = vpop.f32.mrb[0].mxu0
  %v7565 = vadd.f32 %v7334, %v7564
  %v7566 = vpop.f32.mrb[0].mxu0
  %v7567 = vadd.f32 %v7335, %v7566
  %v7568 = vpop.f32.mrb[0].mxu0
  %v7569 = vadd.f32 %v7338, %v7568
  %v7570 = vpop.f32.mrb[0].mxu0
  %v7571 = vadd.f32 %v7339, %v7570
  %7572 = vmatprep.mubr.bf16.mxu0 0
  %7573 = vmatmul.mubr.bf16.gmra.mrb[0].mxu0 %v7317
  %v7574 = vpop.f32.mrb[0].mxu0
  %v7575 = vadd.f32 %v7342, %v7574
  %v7576 = vpop.f32.mrb[0].mxu0
  %v7577 = vadd.f32 %v7343, %v7576
  %v7578 = vpop.f32.mrb[0].mxu0
  %v7579 = vadd.f32 %v7346, %v7578
  %v7580 = vpop.f32.mrb[0].mxu0
  %v7581 = vadd.f32 %v7347, %v7580
  %7582 = vdwg.mxu0
  %7583 = vmatprep.subr.bf16.mxu0 %v7449
  %7584 = vmatpush1.bf16.msra.mxu0 %v7448
  %7585 = vmatprep.subr.bf16.mxu0 %v7453
  %7586 = vmatpush1.bf16.msra.mxu0 %v7452
  %7587 = vmatprep.subr.bf16.mxu0 %v7457
  %7588 = vmatpush1.bf16.msra.mxu0 %v7456
  %7589 = vmatprep.subr.bf16.mxu0 %v7461
  %7590 = vmatpush1.bf16.msra.mxu0 %v7460
  %7591 = vmatprep.subr.bf16.mxu0 %v7465
  %7592 = vmatpush1.bf16.msra.mxu0 %v7464
  %7593 = vmatprep.subr.bf16.mxu0 %v7469
  %7594 = vmatpush1.bf16.msra.mxu0 %v7468
  %7595 = vmatprep.subr.bf16.mxu0 %v7473
  %7596 = vmatpush1.bf16.msra.mxu0 %v7472
  %7597 = vmatprep.subr.bf16.mxu0 %v7477
  %7598 = vmatpush1.bf16.msra.mxu0 %v7476
  %7599 = vmatprep.subr.bf16.mxu0 0
  %7600 = vmatpush1.bf16.msra.mxu0 0
  %7601 = vmatprep.subr.bf16.mxu0 0
  %7602 = vmatpush1.bf16.msra.mxu0 0
  %7603 = vmatprep.subr.bf16.mxu0 0
  %7604 = vmatpush1.bf16.msra.mxu0 0
  %7605 = vmatprep.subr.bf16.mxu0 0
  %7606 = vmatpush1.bf16.msra.mxu0 0
  %7607 = vmatprep.subr.bf16.mxu0 0
  %7608 = vmatpush1.bf16.msra.mxu0 0
  %7609 = vmatprep.subr.bf16.mxu0 0
  %7610 = vmatpush1.bf16.msra.mxu0 0
  %7611 = vmatprep.subr.bf16.mxu0 0
  %7612 = vmatpush1.bf16.msra.mxu0 0
  %7613 = vmatprep.subr.bf16.mxu0 0
  %7614 = vmatpush1.bf16.msra.mxu0 0
  %7615 = vmatprep.mubr.bf16.mxu0 0
  %7616 = vmatmul.mubr.bf16.gmra.mrb[0].mxu0 %v7314
  %v7617 = vpop.f32.mrb[0].mxu0
  %v7618 = vadd.f32 %v7320, %v7617
  %v7619 = vpop.f32.mrb[0].mxu0
  %v7620 = vadd.f32 %v7321, %v7619
  %v7621 = vpop.f32.mrb[0].mxu0
  %v7622 = vadd.f32 %v7324, %v7621
  %v7623 = vpop.f32.mrb[0].mxu0
  %v7624 = vadd.f32 %v7325, %v7623
  %7625 = vmatprep.mubr.bf16.mxu0 0
  %7626 = vmatmul.mubr.bf16.gmra.mrb[0].mxu0 %v7315
  %v7627 = vpop.f32.mrb[0].mxu0
  %v7628 = vadd.f32 %v7328, %v7627
  %v7629 = vpop.f32.mrb[0].mxu0
  %v7630 = vadd.f32 %v7329, %v7629
  %v7631 = vpop.f32.mrb[0].mxu0
  %v7632 = vadd.f32 %v7332, %v7631
  %v7633 = vpop.f32.mrb[0].mxu0
  %v7634 = vadd.f32 %v7333, %v7633
  %7635 = vmatprep.mubr.bf16.mxu0 0
  %7636 = vmatmul.mubr.bf16.gmra.mrb[0].mxu0 %v7316
  %v7637 = vpop.f32.mrb[0].mxu0
  %v7638 = vadd.f32 %v7336, %v7637
  %v7639 = vpop.f32.mrb[0].mxu0
  %v7640 = vadd.f32 %v7337, %v7639
  %v7641 = vpop.f32.mrb[0].mxu0
  %v7642 = vadd.f32 %v7340, %v7641
  %v7643 = vpop.f32.mrb[0].mxu0
  %v7644 = vadd.f32 %v7341, %v7643
  %7645 = vmatprep.mubr.bf16.mxu0 0
  %7646 = vmatmul.mubr.bf16.gmra.mrb[0].mxu0 %v7317
  %v7647 = vpop.f32.mrb[0].mxu0
  %v7648 = vadd.f32 %v7344, %v7647
  %v7649 = vpop.f32.mrb[0].mxu0
  %v7650 = vadd.f32 %v7345, %v7649
  %v7651 = vpop.f32.mrb[0].mxu0
  %v7652 = vadd.f32 %v7348, %v7651
  %v7653 = vpop.f32.mrb[0].mxu0
  %v7654 = vadd.f32 %v7349, %v7653
  %7655 = vdwg.mxu0
  %v7656 = vpack.c.bf16 %v7549, %v7545
  %v7657 = vpack.c.bf16 %v7551, %v7547
  %v7658 = vpack.c.bf16 %v7622, %v7618
  %v7659 = vpack.c.bf16 %v7624, %v7620
  %v7660 = vpack.c.bf16 %v7559, %v7555
  %v7661 = vpack.c.bf16 %v7561, %v7557
  %v7662 = vpack.c.bf16 %v7632, %v7628
  %v7663 = vpack.c.bf16 %v7634, %v7630
  %v7664 = vpack.c.bf16 %v7569, %v7565
  %v7665 = vpack.c.bf16 %v7571, %v7567
  %v7666 = vpack.c.bf16 %v7642, %v7638
  %v7667 = vpack.c.bf16 %v7644, %v7640
  %v7668 = vpack.c.bf16 %v7579, %v7575
  %v7669 = vpack.c.bf16 %v7581, %v7577
  %v7670 = vpack.c.bf16 %v7652, %v7648
  %v7671 = vpack.c.bf16 %v7654, %v7650
  %v7672 = vld [vmem:[%s10] ss:$4 sm:$0xf]
  %v7674 = vlaneseq
  %v7675 = vshrl.u32 %v7674, 7
  %v7676 = vsub.s32 0, %v7675
  %v7677 = vrot.slane %v7672, %v7676
  %v7678 = vlaneseq
  %v7679 = vshrl.u32 %v7678, 7
  %v7680 = vsub.s32 1, %v7679
  %v7681 = vrot.slane %v7672, %v7680
  %v7682 = vlaneseq
  %v7683 = vshrl.u32 %v7682, 7
  %v7684 = vsub.s32 2, %v7683
  %v7685 = vrot.slane %v7672, %v7684
  %v7686 = vlaneseq
  %v7687 = vshrl.u32 %v7686, 7
  %v7688 = vsub.s32 3, %v7687
  %v7689 = vrot.slane %v7672, %v7688
  %v7694 = vpack.c.bf16 %v7677, %v7677
  %v7695 = vpack.c.bf16 %v7681, %v7681
  %v7696 = vpack.c.bf16 %v7685, %v7685
  %v7697 = vpack.c.bf16 %v7689, %v7689
  %s7698 = scalar_lea.vmem %s10, 1
  %v7699 = vld [vmem:[%s7698] ss:$4 sm:$0xf]
  %v7701 = vlaneseq
  %v7702 = vshrl.u32 %v7701, 7
  %v7703 = vsub.s32 0, %v7702
  %v7704 = vrot.slane %v7699, %v7703
  %v7705 = vlaneseq
  %v7706 = vshrl.u32 %v7705, 7
  %v7707 = vsub.s32 1, %v7706
  %v7708 = vrot.slane %v7699, %v7707
  %v7709 = vlaneseq
  %v7710 = vshrl.u32 %v7709, 7
  %v7711 = vsub.s32 2, %v7710
  %v7712 = vrot.slane %v7699, %v7711
  %v7713 = vlaneseq
  %v7714 = vshrl.u32 %v7713, 7
  %v7715 = vsub.s32 3, %v7714
  %v7716 = vrot.slane %v7699, %v7715
  %v7721 = vpack.c.bf16 %v7704, %v7704
  %v7722 = vpack.c.bf16 %v7708, %v7708
  %v7723 = vpack.c.bf16 %v7712, %v7712
  %v7724 = vpack.c.bf16 %v7716, %v7716
  %7741 = vrot.lane.b32.xlu0 %v7656, 1
  %v7742 = vpop.permute.xlu0 %7741
  %7743 = vrot.lane.b32.xlu0 %v7657, 1
  %v7744 = vpop.permute.xlu0 %7743
  %7745 = vrot.lane.b32.xlu0 %v7658, 1
  %v7746 = vpop.permute.xlu0 %7745
  %7747 = vrot.lane.b32.xlu0 %v7659, 1
  %v7748 = vpop.permute.xlu0 %7747
  %7749 = vrot.lane.b32.xlu0 %v7660, 1
  %v7750 = vpop.permute.xlu0 %7749
  %7751 = vrot.lane.b32.xlu0 %v7661, 1
  %v7752 = vpop.permute.xlu0 %7751
  %7753 = vrot.lane.b32.xlu0 %v7662, 1
  %v7754 = vpop.permute.xlu0 %7753
  %7755 = vrot.lane.b32.xlu0 %v7663, 1
  %v7756 = vpop.permute.xlu0 %7755
  %7757 = vrot.lane.b32.xlu0 %v7664, 1
  %v7758 = vpop.permute.xlu0 %7757
  %7759 = vrot.lane.b32.xlu0 %v7665, 1
  %v7760 = vpop.permute.xlu0 %7759
  %7761 = vrot.lane.b32.xlu0 %v7666, 1
  %v7762 = vpop.permute.xlu0 %7761
  %7763 = vrot.lane.b32.xlu0 %v7667, 1
  %v7764 = vpop.permute.xlu0 %7763
  %7765 = vrot.lane.b32.xlu0 %v7668, 1
  %v7766 = vpop.permute.xlu0 %7765
  %7767 = vrot.lane.b32.xlu0 %v7669, 1
  %v7768 = vpop.permute.xlu0 %7767
  %7769 = vrot.lane.b32.xlu0 %v7670, 1
  %v7770 = vpop.permute.xlu0 %7769
  %7771 = vrot.lane.b32.xlu0 %v7671, 1
  %v7772 = vpop.permute.xlu0 %7771
  %vm7773 = vcmask 7168
  %v7774 = vsel %vm7773, %v7742, %v7744
  %v7775 = vsel %vm7773, %v7744, %v7746
  %v7776 = vsel %vm7773, %v7746, %v7748
  %v7777 = vsel %vm7773, %v7750, %v7752
  %v7778 = vsel %vm7773, %v7752, %v7754
  %v7779 = vsel %vm7773, %v7754, %v7756
  %v7780 = vsel %vm7773, %v7758, %v7760
  %v7781 = vsel %vm7773, %v7760, %v7762
  %v7782 = vsel %vm7773, %v7762, %v7764
  %v7783 = vsel %vm7773, %v7766, %v7768
  %v7784 = vsel %vm7773, %v7768, %v7770
  %v7785 = vsel %vm7773, %v7770, %v7772
  %v7799 = vsel %vm1414, 0, %v7742
  %v7802 = vsel %vm1414, 0, %v7750
  %v7805 = vsel %vm1414, 0, %v7758
  %v7808 = vsel %vm1414, 0, %v7766
  %v7811 = vpack.i.b16 %v7694, %v7694
  %v7813 = vlaneseq
  %v7814 = vshrl.u32 %v7813, 7
  %v7815 = vsub.s32 0, %v7814
  %v7816 = vrot.slane %v7811, %v7815
  %v7818 = vpack.i.b16 %v7695, %v7695
  %v7820 = vlaneseq
  %v7821 = vshrl.u32 %v7820, 7
  %v7822 = vsub.s32 0, %v7821
  %v7823 = vrot.slane %v7818, %v7822
  %v7825 = vpack.i.b16 %v7696, %v7696
  %v7827 = vlaneseq
  %v7828 = vshrl.u32 %v7827, 7
  %v7829 = vsub.s32 0, %v7828
  %v7830 = vrot.slane %v7825, %v7829
  %v7832 = vpack.i.b16 %v7697, %v7697
  %v7834 = vlaneseq
  %v7835 = vshrl.u32 %v7834, 7
  %v7836 = vsub.s32 0, %v7835
  %v7837 = vrot.slane %v7832, %v7836
  %v7838 = vmul.bf16 %v7799, %v7816
  %v7839 = vmul.bf16 %v7774, %v7823
  %v7840 = vmul.bf16 %v7775, %v7830
  %v7841 = vmul.bf16 %v7776, %v7837
  %v7842 = vmul.bf16 %v7802, %v7816
  %v7843 = vmul.bf16 %v7777, %v7823
  %v7844 = vmul.bf16 %v7778, %v7830
  %v7845 = vmul.bf16 %v7779, %v7837
  %v7846 = vmul.bf16 %v7805, %v7816
  %v7847 = vmul.bf16 %v7780, %v7823
  %v7848 = vmul.bf16 %v7781, %v7830
  %v7849 = vmul.bf16 %v7782, %v7837
  %v7850 = vmul.bf16 %v7808, %v7816
  %v7851 = vmul.bf16 %v7783, %v7823
  %v7852 = vmul.bf16 %v7784, %v7830
  %v7853 = vmul.bf16 %v7785, %v7837
  %7854 = vrot.lane.b32.xlu0 %v7656, 127
  %v7855 = vpop.permute.xlu0 %7854
  %7856 = vrot.lane.b32.xlu0 %v7657, 127
  %v7857 = vpop.permute.xlu0 %7856
  %7858 = vrot.lane.b32.xlu0 %v7658, 127
  %v7859 = vpop.permute.xlu0 %7858
  %7860 = vrot.lane.b32.xlu0 %v7659, 127
  %v7861 = vpop.permute.xlu0 %7860
  %7862 = vrot.lane.b32.xlu0 %v7660, 127
  %v7863 = vpop.permute.xlu0 %7862
  %7864 = vrot.lane.b32.xlu0 %v7661, 127
  %v7865 = vpop.permute.xlu0 %7864
  %7866 = vrot.lane.b32.xlu0 %v7662, 127
  %v7867 = vpop.permute.xlu0 %7866
  %7868 = vrot.lane.b32.xlu0 %v7663, 127
  %v7869 = vpop.permute.xlu0 %7868
  %7870 = vrot.lane.b32.xlu0 %v7664, 127
  %v7871 = vpop.permute.xlu0 %7870
  %7872 = vrot.lane.b32.xlu0 %v7665, 127
  %v7873 = vpop.permute.xlu0 %7872
  %7874 = vrot.lane.b32.xlu0 %v7666, 127
  %v7875 = vpop.permute.xlu0 %7874
  %7876 = vrot.lane.b32.xlu0 %v7667, 127
  %v7877 = vpop.permute.xlu0 %7876
  %7878 = vrot.lane.b32.xlu0 %v7668, 127
  %v7879 = vpop.permute.xlu0 %7878
  %7880 = vrot.lane.b32.xlu0 %v7669, 127
  %v7881 = vpop.permute.xlu0 %7880
  %7882 = vrot.lane.b32.xlu0 %v7670, 127
  %v7883 = vpop.permute.xlu0 %7882
  %7884 = vrot.lane.b32.xlu0 %v7671, 127
  %v7885 = vpop.permute.xlu0 %7884
  %vm7886 = vcmask 1039360
  %v7887 = vsel %vm7886, %v7855, %v7857
  %v7888 = vsel %vm7886, %v7857, %v7859
  %v7889 = vsel %vm7886, %v7859, %v7861
  %v7890 = vsel %vm7886, %v7863, %v7865
  %v7891 = vsel %vm7886, %v7865, %v7867
  %v7892 = vsel %vm7886, %v7867, %v7869
  %v7893 = vsel %vm7886, %v7871, %v7873
  %v7894 = vsel %vm7886, %v7873, %v7875
  %v7895 = vsel %vm7886, %v7875, %v7877
  %v7896 = vsel %vm7886, %v7879, %v7881
  %v7897 = vsel %vm7886, %v7881, %v7883
  %v7898 = vsel %vm7886, %v7883, %v7885
  %v7912 = vsel %vm5812, %v7861, 0
  %v7915 = vsel %vm5812, %v7869, 0
  %v7918 = vsel %vm5812, %v7877, 0
  %v7921 = vsel %vm5812, %v7885, 0
  %v7924 = vpack.i.b16 %v7721, %v7721
  %v7926 = vlaneseq
  %v7927 = vshrl.u32 %v7926, 7
  %v7928 = vsub.s32 0, %v7927
  %v7929 = vrot.slane %v7924, %v7928
  %v7931 = vpack.i.b16 %v7722, %v7722
  %v7933 = vlaneseq
  %v7934 = vshrl.u32 %v7933, 7
  %v7935 = vsub.s32 0, %v7934
  %v7936 = vrot.slane %v7931, %v7935
  %v7938 = vpack.i.b16 %v7723, %v7723
  %v7940 = vlaneseq
  %v7941 = vshrl.u32 %v7940, 7
  %v7942 = vsub.s32 0, %v7941
  %v7943 = vrot.slane %v7938, %v7942
  %v7945 = vpack.i.b16 %v7724, %v7724
  %v7947 = vlaneseq
  %v7948 = vshrl.u32 %v7947, 7
  %v7949 = vsub.s32 0, %v7948
  %v7950 = vrot.slane %v7945, %v7949
  %v7951 = vmul.bf16 %v7887, %v7929
  %v7952 = vmul.bf16 %v7888, %v7936
  %v7953 = vmul.bf16 %v7889, %v7943
  %v7954 = vmul.bf16 %v7912, %v7950
  %v7955 = vmul.bf16 %v7890, %v7929
  %v7956 = vmul.bf16 %v7891, %v7936
  %v7957 = vmul.bf16 %v7892, %v7943
  %v7958 = vmul.bf16 %v7915, %v7950
  %v7959 = vmul.bf16 %v7893, %v7929
  %v7960 = vmul.bf16 %v7894, %v7936
  %v7961 = vmul.bf16 %v7895, %v7943
  %v7962 = vmul.bf16 %v7918, %v7950
  %v7963 = vmul.bf16 %v7896, %v7929
  %v7964 = vmul.bf16 %v7897, %v7936
  %v7965 = vmul.bf16 %v7898, %v7943
  %v7966 = vmul.bf16 %v7921, %v7950
  %v7967 = vld [vmem:[%s21] sm:$0xff]
  %v7968 = vld [vmem:[%s21 + $0x8] sm:$0xff]
  %v7969 = vld [vmem:[%s21 + $0x10] sm:$0xff]
  %v7970 = vld [vmem:[%s21 + $0x18] sm:$0xff]
  %v7971 = vld [vmem:[%s21 + $0x20] sm:$0xff]
  %v7972 = vld [vmem:[%s21 + $0x28] sm:$0xff]
  %v7973 = vld [vmem:[%s21 + $0x30] sm:$0xff]
  %v7974 = vld [vmem:[%s21 + $0x38] sm:$0xff]
  %v7975 = vld [vmem:[%s21 + $0x40] sm:$0xff]
  %v7976 = vld [vmem:[%s21 + $0x48] sm:$0xff]
  %v7977 = vld [vmem:[%s21 + $0x50] sm:$0xff]
  %v7978 = vld [vmem:[%s21 + $0x58] sm:$0xff]
  %v7979 = vld [vmem:[%s21 + $0x60] sm:$0xff]
  %v7980 = vld [vmem:[%s21 + $0x68] sm:$0xff]
  %v7981 = vld [vmem:[%s21 + $0x70] sm:$0xff]
  %v7982 = vld [vmem:[%s21 + $0x78] sm:$0xff]
  %v7983 = vld [vmem:[%s21 + $0x80] sm:$0xff]
  %v7984 = vld [vmem:[%s21 + $0x88] sm:$0xff]
  %v7985 = vld [vmem:[%s21 + $0x90] sm:$0xff]
  %v7986 = vld [vmem:[%s21 + $0x98] sm:$0xff]
  %v7987 = vld [vmem:[%s21 + $0xa0] sm:$0xff]
  %v7988 = vld [vmem:[%s21 + $0xa8] sm:$0xff]
  %v7989 = vld [vmem:[%s21 + $0xb0] sm:$0xff]
  %v7990 = vld [vmem:[%s21 + $0xb8] sm:$0xff]
  %v8015 = vunpack.c.l.b16 %v7967
  %v8016 = vunpack.c.h.b16 %v7967
  %v8017 = vunpack.c.l.b16 %v7968
  %v8018 = vunpack.c.h.b16 %v7968
  %v8019 = vunpack.c.l.b16 %v7969
  %v8020 = vunpack.c.h.b16 %v7969
  %v8021 = vunpack.c.l.b16 %v7970
  %v8022 = vunpack.c.h.b16 %v7970
  %v8023 = vunpack.c.l.b16 %v7971
  %v8024 = vunpack.c.h.b16 %v7971
  %v8025 = vunpack.c.l.b16 %v7972
  %v8026 = vunpack.c.h.b16 %v7972
  %v8027 = vunpack.c.l.b16 %v7973
  %v8028 = vunpack.c.h.b16 %v7973
  %v8029 = vunpack.c.l.b16 %v7974
  %v8030 = vunpack.c.h.b16 %v7974
  %v8031 = vunpack.c.l.b16 %v7975
  %v8032 = vunpack.c.h.b16 %v7975
  %v8033 = vunpack.c.l.b16 %v7976
  %v8034 = vunpack.c.h.b16 %v7976
  %v8035 = vunpack.c.l.b16 %v7977
  %v8036 = vunpack.c.h.b16 %v7977
  %v8037 = vunpack.c.l.b16 %v7978
  %v8038 = vunpack.c.h.b16 %v7978
  %v8039 = vunpack.c.l.b16 %v7979
  %v8040 = vunpack.c.h.b16 %v7979
  %v8041 = vunpack.c.l.b16 %v7980
  %v8042 = vunpack.c.h.b16 %v7980
  %v8043 = vunpack.c.l.b16 %v7981
  %v8044 = vunpack.c.h.b16 %v7981
  %v8045 = vunpack.c.l.b16 %v7982
  %v8046 = vunpack.c.h.b16 %v7982
  %v8047 = vunpack.c.l.b16 %v7983
  %v8048 = vunpack.c.h.b16 %v7983
  %v8049 = vunpack.c.l.b16 %v7984
  %v8050 = vunpack.c.h.b16 %v7984
  %v8051 = vunpack.c.l.b16 %v7985
  %v8052 = vunpack.c.h.b16 %v7985
  %v8053 = vunpack.c.l.b16 %v7986
  %v8054 = vunpack.c.h.b16 %v7986
  %v8055 = vunpack.c.l.b16 %v7987
  %v8056 = vunpack.c.h.b16 %v7987
  %v8057 = vunpack.c.l.b16 %v7988
  %v8058 = vunpack.c.h.b16 %v7988
  %v8059 = vunpack.c.l.b16 %v7989
  %v8060 = vunpack.c.h.b16 %v7989
  %v8061 = vunpack.c.l.b16 %v7990
  %v8062 = vunpack.c.h.b16 %v7990
  %v8063 = vpack.c.b16 %v8017, %v8015
  %v8064 = vpack.c.b16 %v8018, %v8016
  %v8065 = vpack.c.b16 %v8021, %v8019
  %v8066 = vpack.c.b16 %v8022, %v8020
  %v8067 = vpack.c.b16 %v8025, %v8023
  %v8068 = vpack.c.b16 %v8026, %v8024
  %v8069 = vpack.c.b16 %v8029, %v8027
  %v8070 = vpack.c.b16 %v8030, %v8028
  %v8071 = vpack.c.b16 %v8033, %v8031
  %v8072 = vpack.c.b16 %v8034, %v8032
  %v8073 = vpack.c.b16 %v8037, %v8035
  %v8074 = vpack.c.b16 %v8038, %v8036
  %v8075 = vpack.c.b16 %v8041, %v8039
  %v8076 = vpack.c.b16 %v8042, %v8040
  %v8077 = vpack.c.b16 %v8045, %v8043
  %v8078 = vpack.c.b16 %v8046, %v8044
  %v8079 = vpack.c.b16 %v8049, %v8047
  %v8080 = vpack.c.b16 %v8050, %v8048
  %v8081 = vpack.c.b16 %v8053, %v8051
  %v8082 = vpack.c.b16 %v8054, %v8052
  %v8083 = vpack.c.b16 %v8057, %v8055
  %v8084 = vpack.c.b16 %v8058, %v8056
  %v8085 = vpack.c.b16 %v8061, %v8059
  %v8086 = vpack.c.b16 %v8062, %v8060
  %vm8099 = vcmask 523264
  %v8101 = vsel %vm8099, %v8064, 0
  %v8104 = vsel %vm8099, %v8066, 0
  %v8107 = vsel %vm8099, %v8068, 0
  %v8110 = vsel %vm8099, %v8070, 0
  %v8113 = vsel %vm8099, %v8072, 0
  %v8116 = vsel %vm8099, %v8074, 0
  %v8119 = vsel %vm8099, %v8076, 0
  %v8122 = vsel %vm8099, %v8078, 0
  %v8125 = vsel %vm8099, %v8080, 0
  %v8128 = vsel %vm8099, %v8082, 0
  %v8131 = vsel %vm8099, %v8084, 0
  %v8134 = vsel %vm8099, %v8086, 0
  %8136 = vmatprep.subr.bf16.mxu0 %v7839
  %8137 = vmatpush1.bf16.msra.mxu0 %v7838
  %8138 = vmatprep.subr.bf16.mxu0 %v7843
  %8139 = vmatpush1.bf16.msra.mxu0 %v7842
  %8140 = vmatprep.subr.bf16.mxu0 %v7847
  %8141 = vmatpush1.bf16.msra.mxu0 %v7846
  %8142 = vmatprep.subr.bf16.mxu0 %v7851
  %8143 = vmatpush1.bf16.msra.mxu0 %v7850
  %8144 = vmatprep.subr.bf16.mxu0 %v7657
  %8145 = vmatpush1.bf16.msra.mxu0 %v7656
  %8146 = vmatprep.subr.bf16.mxu0 %v7661
  %8147 = vmatpush1.bf16.msra.mxu0 %v7660
  %8148 = vmatprep.subr.bf16.mxu0 %v7665
  %8149 = vmatpush1.bf16.msra.mxu0 %v7664
  %8150 = vmatprep.subr.bf16.mxu0 %v7669
  %8151 = vmatpush1.bf16.msra.mxu0 %v7668
  %8152 = vmatprep.subr.bf16.mxu0 %v7952
  %8153 = vmatpush1.bf16.msra.mxu0 %v7951
  %8154 = vmatprep.subr.bf16.mxu0 %v7956
  %8155 = vmatpush1.bf16.msra.mxu0 %v7955
  %8156 = vmatprep.subr.bf16.mxu0 %v7960
  %8157 = vmatpush1.bf16.msra.mxu0 %v7959
  %8158 = vmatprep.subr.bf16.mxu0 %v7964
  %8159 = vmatpush1.bf16.msra.mxu0 %v7963
  %8160 = vmatprep.subr.bf16.mxu0 0
  %8161 = vmatpush1.bf16.msra.mxu0 0
  %8162 = vmatprep.subr.bf16.mxu0 0
  %8163 = vmatpush1.bf16.msra.mxu0 0
  %8164 = vmatprep.subr.bf16.mxu0 0
  %8165 = vmatpush1.bf16.msra.mxu0 0
  %8166 = vmatprep.subr.bf16.mxu0 0
  %8167 = vmatpush1.bf16.msra.mxu0 0
  %8168 = vmatprep.mubr.bf16.mxu0 %v8101
  %8169 = vmatmul.mubr.bf16.gmra.mrb[0].mxu0 %v8063
  %v8170 = vpop.f32.mrb[0].mxu0
  %v8171 = vadd.f32 0.0, %v8170
  %v8172 = vpop.f32.mrb[0].mxu0
  %v8173 = vadd.f32 0.0, %v8172
  %v8174 = vpop.f32.mrb[0].mxu0
  %v8175 = vadd.f32 0.0, %v8174
  %v8176 = vpop.f32.mrb[0].mxu0
  %v8177 = vadd.f32 0.0, %v8176
  %8178 = vmatprep.mubr.bf16.mxu0 %v8104
  %8179 = vmatmul.mubr.bf16.gmra.mrb[0].mxu0 %v8065
  %v8180 = vpop.f32.mrb[0].mxu0
  %v8181 = vadd.f32 0.0, %v8180
  %v8182 = vpop.f32.mrb[0].mxu0
  %v8183 = vadd.f32 0.0, %v8182
  %v8184 = vpop.f32.mrb[0].mxu0
  %v8185 = vadd.f32 0.0, %v8184
  %v8186 = vpop.f32.mrb[0].mxu0
  %v8187 = vadd.f32 0.0, %v8186
  %8188 = vmatprep.mubr.bf16.mxu0 %v8107
  %8189 = vmatmul.mubr.bf16.gmra.mrb[0].mxu0 %v8067
  %v8190 = vpop.f32.mrb[0].mxu0
  %v8191 = vadd.f32 0.0, %v8190
  %v8192 = vpop.f32.mrb[0].mxu0
  %v8193 = vadd.f32 0.0, %v8192
  %v8194 = vpop.f32.mrb[0].mxu0
  %v8195 = vadd.f32 0.0, %v8194
  %v8196 = vpop.f32.mrb[0].mxu0
  %v8197 = vadd.f32 0.0, %v8196
  %8198 = vmatprep.mubr.bf16.mxu0 %v8110
  %8199 = vmatmul.mubr.bf16.gmra.mrb[0].mxu0 %v8069
  %v8200 = vpop.f32.mrb[0].mxu0
  %v8201 = vadd.f32 0.0, %v8200
  %v8202 = vpop.f32.mrb[0].mxu0
  %v8203 = vadd.f32 0.0, %v8202
  %v8204 = vpop.f32.mrb[0].mxu0
  %v8205 = vadd.f32 0.0, %v8204
  %v8206 = vpop.f32.mrb[0].mxu0
  %v8207 = vadd.f32 0.0, %v8206
  %8208 = vmatprep.mubr.bf16.mxu0 %v8113
  %8209 = vmatmul.mubr.bf16.gmra.mrb[0].mxu0 %v8071
  %v8210 = vpop.f32.mrb[0].mxu0
  %v8211 = vadd.f32 0.0, %v8210
  %v8212 = vpop.f32.mrb[0].mxu0
  %v8213 = vadd.f32 0.0, %v8212
  %v8214 = vpop.f32.mrb[0].mxu0
  %v8215 = vadd.f32 0.0, %v8214
  %v8216 = vpop.f32.mrb[0].mxu0
  %v8217 = vadd.f32 0.0, %v8216
  %8218 = vmatprep.mubr.bf16.mxu0 %v8116
  %8219 = vmatmul.mubr.bf16.gmra.mrb[0].mxu0 %v8073
  %v8220 = vpop.f32.mrb[0].mxu0
  %v8221 = vadd.f32 0.0, %v8220
  %v8222 = vpop.f32.mrb[0].mxu0
  %v8223 = vadd.f32 0.0, %v8222
  %v8224 = vpop.f32.mrb[0].mxu0
  %v8225 = vadd.f32 0.0, %v8224
  %v8226 = vpop.f32.mrb[0].mxu0
  %v8227 = vadd.f32 0.0, %v8226
  %8228 = vmatprep.mubr.bf16.mxu0 %v8119
  %8229 = vmatmul.mubr.bf16.gmra.mrb[0].mxu0 %v8075
  %v8230 = vpop.f32.mrb[0].mxu0
  %v8231 = vadd.f32 0.0, %v8230
  %v8232 = vpop.f32.mrb[0].mxu0
  %v8233 = vadd.f32 0.0, %v8232
  %v8234 = vpop.f32.mrb[0].mxu0
  %v8235 = vadd.f32 0.0, %v8234
  %v8236 = vpop.f32.mrb[0].mxu0
  %v8237 = vadd.f32 0.0, %v8236
  %8238 = vmatprep.mubr.bf16.mxu0 %v8122
  %8239 = vmatmul.mubr.bf16.gmra.mrb[0].mxu0 %v8077
  %v8240 = vpop.f32.mrb[0].mxu0
  %v8241 = vadd.f32 0.0, %v8240
  %v8242 = vpop.f32.mrb[0].mxu0
  %v8243 = vadd.f32 0.0, %v8242
  %v8244 = vpop.f32.mrb[0].mxu0
  %v8245 = vadd.f32 0.0, %v8244
  %v8246 = vpop.f32.mrb[0].mxu0
  %v8247 = vadd.f32 0.0, %v8246
  %8248 = vmatprep.mubr.bf16.mxu0 %v8125
  %8249 = vmatmul.mubr.bf16.gmra.mrb[0].mxu0 %v8079
  %v8250 = vpop.f32.mrb[0].mxu0
  %v8251 = vadd.f32 0.0, %v8250
  %v8252 = vpop.f32.mrb[0].mxu0
  %v8253 = vadd.f32 0.0, %v8252
  %v8254 = vpop.f32.mrb[0].mxu0
  %v8255 = vadd.f32 0.0, %v8254
  %v8256 = vpop.f32.mrb[0].mxu0
  %v8257 = vadd.f32 0.0, %v8256
  %8258 = vmatprep.mubr.bf16.mxu0 %v8128
  %8259 = vmatmul.mubr.bf16.gmra.mrb[0].mxu0 %v8081
  %v8260 = vpop.f32.mrb[0].mxu0
  %v8261 = vadd.f32 0.0, %v8260
  %v8262 = vpop.f32.mrb[0].mxu0
  %v8263 = vadd.f32 0.0, %v8262
  %v8264 = vpop.f32.mrb[0].mxu0
  %v8265 = vadd.f32 0.0, %v8264
  %v8266 = vpop.f32.mrb[0].mxu0
  %v8267 = vadd.f32 0.0, %v8266
  %8268 = vmatprep.mubr.bf16.mxu0 %v8131
  %8269 = vmatmul.mubr.bf16.gmra.mrb[0].mxu0 %v8083
  %v8270 = vpop.f32.mrb[0].mxu0
  %v8271 = vadd.f32 0.0, %v8270
  %v8272 = vpop.f32.mrb[0].mxu0
  %v8273 = vadd.f32 0.0, %v8272
  %v8274 = vpop.f32.mrb[0].mxu0
  %v8275 = vadd.f32 0.0, %v8274
  %v8276 = vpop.f32.mrb[0].mxu0
  %v8277 = vadd.f32 0.0, %v8276
  %8278 = vmatprep.mubr.bf16.mxu0 %v8134
  %8279 = vmatmul.mubr.bf16.gmra.mrb[0].mxu0 %v8085
  %v8280 = vpop.f32.mrb[0].mxu0
  %v8281 = vadd.f32 0.0, %v8280
  %v8282 = vpop.f32.mrb[0].mxu0
  %v8283 = vadd.f32 0.0, %v8282
  %v8284 = vpop.f32.mrb[0].mxu0
  %v8285 = vadd.f32 0.0, %v8284
  %v8286 = vpop.f32.mrb[0].mxu0
  %v8287 = vadd.f32 0.0, %v8286
  %8288 = vdwg.mxu0
  %8289 = vmatprep.subr.bf16.mxu0 %v7841
  %8290 = vmatpush1.bf16.msra.mxu0 %v7840
  %8291 = vmatprep.subr.bf16.mxu0 %v7845
  %8292 = vmatpush1.bf16.msra.mxu0 %v7844
  %8293 = vmatprep.subr.bf16.mxu0 %v7849
  %8294 = vmatpush1.bf16.msra.mxu0 %v7848
  %8295 = vmatprep.subr.bf16.mxu0 %v7853
  %8296 = vmatpush1.bf16.msra.mxu0 %v7852
  %8297 = vmatprep.subr.bf16.mxu0 %v7659
  %8298 = vmatpush1.bf16.msra.mxu0 %v7658
  %8299 = vmatprep.subr.bf16.mxu0 %v7663
  %8300 = vmatpush1.bf16.msra.mxu0 %v7662
  %8301 = vmatprep.subr.bf16.mxu0 %v7667
  %8302 = vmatpush1.bf16.msra.mxu0 %v7666
  %8303 = vmatprep.subr.bf16.mxu0 %v7671
  %8304 = vmatpush1.bf16.msra.mxu0 %v7670
  %8305 = vmatprep.subr.bf16.mxu0 %v7954
  %8306 = vmatpush1.bf16.msra.mxu0 %v7953
  %8307 = vmatprep.subr.bf16.mxu0 %v7958
  %8308 = vmatpush1.bf16.msra.mxu0 %v7957
  %8309 = vmatprep.subr.bf16.mxu0 %v7962
  %8310 = vmatpush1.bf16.msra.mxu0 %v7961
  %8311 = vmatprep.subr.bf16.mxu0 %v7966
  %8312 = vmatpush1.bf16.msra.mxu0 %v7965
  %8313 = vmatprep.subr.bf16.mxu0 0
  %8314 = vmatpush1.bf16.msra.mxu0 0
  %8315 = vmatprep.subr.bf16.mxu0 0
  %8316 = vmatpush1.bf16.msra.mxu0 0
  %8317 = vmatprep.subr.bf16.mxu0 0
  %8318 = vmatpush1.bf16.msra.mxu0 0
  %8319 = vmatprep.subr.bf16.mxu0 0
  %8320 = vmatpush1.bf16.msra.mxu0 0
  %8321 = vmatprep.mubr.bf16.mxu0 %v8101
  %8322 = vmatmul.mubr.bf16.gmra.mrb[0].mxu0 %v8063
  %v8323 = vpop.f32.mrb[0].mxu0
  %v8324 = vadd.f32 0.0, %v8323
  %v8325 = vpop.f32.mrb[0].mxu0
  %v8326 = vadd.f32 0.0, %v8325
  %v8327 = vpop.f32.mrb[0].mxu0
  %v8328 = vadd.f32 0.0, %v8327
  %v8329 = vpop.f32.mrb[0].mxu0
  %v8330 = vadd.f32 0.0, %v8329
  %8331 = vmatprep.mubr.bf16.mxu0 %v8104
  %8332 = vmatmul.mubr.bf16.gmra.mrb[0].mxu0 %v8065
  %v8333 = vpop.f32.mrb[0].mxu0
  %v8334 = vadd.f32 0.0, %v8333
  %v8335 = vpop.f32.mrb[0].mxu0
  %v8336 = vadd.f32 0.0, %v8335
  %v8337 = vpop.f32.mrb[0].mxu0
  %v8338 = vadd.f32 0.0, %v8337
  %v8339 = vpop.f32.mrb[0].mxu0
  %v8340 = vadd.f32 0.0, %v8339
  %8341 = vmatprep.mubr.bf16.mxu0 %v8107
  %8342 = vmatmul.mubr.bf16.gmra.mrb[0].mxu0 %v8067
  %v8343 = vpop.f32.mrb[0].mxu0
  %v8344 = vadd.f32 0.0, %v8343
  %v8345 = vpop.f32.mrb[0].mxu0
  %v8346 = vadd.f32 0.0, %v8345
  %v8347 = vpop.f32.mrb[0].mxu0
  %v8348 = vadd.f32 0.0, %v8347
  %v8349 = vpop.f32.mrb[0].mxu0
  %v8350 = vadd.f32 0.0, %v8349
  %8351 = vmatprep.mubr.bf16.mxu0 %v8110
  %8352 = vmatmul.mubr.bf16.gmra.mrb[0].mxu0 %v8069
  %v8353 = vpop.f32.mrb[0].mxu0
  %v8354 = vadd.f32 0.0, %v8353
  %v8355 = vpop.f32.mrb[0].mxu0
  %v8356 = vadd.f32 0.0, %v8355
  %v8357 = vpop.f32.mrb[0].mxu0
  %v8358 = vadd.f32 0.0, %v8357
  %v8359 = vpop.f32.mrb[0].mxu0
  %v8360 = vadd.f32 0.0, %v8359
  %8361 = vmatprep.mubr.bf16.mxu0 %v8113
  %8362 = vmatmul.mubr.bf16.gmra.mrb[0].mxu0 %v8071
  %v8363 = vpop.f32.mrb[0].mxu0
  %v8364 = vadd.f32 0.0, %v8363
  %v8365 = vpop.f32.mrb[0].mxu0
  %v8366 = vadd.f32 0.0, %v8365
  %v8367 = vpop.f32.mrb[0].mxu0
  %v8368 = vadd.f32 0.0, %v8367
  %v8369 = vpop.f32.mrb[0].mxu0
  %v8370 = vadd.f32 0.0, %v8369
  %8371 = vmatprep.mubr.bf16.mxu0 %v8116
  %8372 = vmatmul.mubr.bf16.gmra.mrb[0].mxu0 %v8073
  %v8373 = vpop.f32.mrb[0].mxu0
  %v8374 = vadd.f32 0.0, %v8373
  %v8375 = vpop.f32.mrb[0].mxu0
  %v8376 = vadd.f32 0.0, %v8375
  %v8377 = vpop.f32.mrb[0].mxu0
  %v8378 = vadd.f32 0.0, %v8377
  %v8379 = vpop.f32.mrb[0].mxu0
  %v8380 = vadd.f32 0.0, %v8379
  %8381 = vmatprep.mubr.bf16.mxu0 %v8119
  %8382 = vmatmul.mubr.bf16.gmra.mrb[0].mxu0 %v8075
  %v8383 = vpop.f32.mrb[0].mxu0
  %v8384 = vadd.f32 0.0, %v8383
  %v8385 = vpop.f32.mrb[0].mxu0
  %v8386 = vadd.f32 0.0, %v8385
  %v8387 = vpop.f32.mrb[0].mxu0
  %v8388 = vadd.f32 0.0, %v8387
  %v8389 = vpop.f32.mrb[0].mxu0
  %v8390 = vadd.f32 0.0, %v8389
  %8391 = vmatprep.mubr.bf16.mxu0 %v8122
  %8392 = vmatmul.mubr.bf16.gmra.mrb[0].mxu0 %v8077
  %v8393 = vpop.f32.mrb[0].mxu0
  %v8394 = vadd.f32 0.0, %v8393
  %v8395 = vpop.f32.mrb[0].mxu0
  %v8396 = vadd.f32 0.0, %v8395
  %v8397 = vpop.f32.mrb[0].mxu0
  %v8398 = vadd.f32 0.0, %v8397
  %v8399 = vpop.f32.mrb[0].mxu0
  %v8400 = vadd.f32 0.0, %v8399
  %8401 = vmatprep.mubr.bf16.mxu0 %v8125
  %8402 = vmatmul.mubr.bf16.gmra.mrb[0].mxu0 %v8079
  %v8403 = vpop.f32.mrb[0].mxu0
  %v8404 = vadd.f32 0.0, %v8403
  %v8405 = vpop.f32.mrb[0].mxu0
  %v8406 = vadd.f32 0.0, %v8405
  %v8407 = vpop.f32.mrb[0].mxu0
  %v8408 = vadd.f32 0.0, %v8407
  %v8409 = vpop.f32.mrb[0].mxu0
  %v8410 = vadd.f32 0.0, %v8409
  %8411 = vmatprep.mubr.bf16.mxu0 %v8128
  %8412 = vmatmul.mubr.bf16.gmra.mrb[0].mxu0 %v8081
  %v8413 = vpop.f32.mrb[0].mxu0
  %v8414 = vadd.f32 0.0, %v8413
  %v8415 = vpop.f32.mrb[0].mxu0
  %v8416 = vadd.f32 0.0, %v8415
  %v8417 = vpop.f32.mrb[0].mxu0
  %v8418 = vadd.f32 0.0, %v8417
  %v8419 = vpop.f32.mrb[0].mxu0
  %v8420 = vadd.f32 0.0, %v8419
  %8421 = vmatprep.mubr.bf16.mxu0 %v8131
  %8422 = vmatmul.mubr.bf16.gmra.mrb[0].mxu0 %v8083
  %v8423 = vpop.f32.mrb[0].mxu0
  %v8424 = vadd.f32 0.0, %v8423
  %v8425 = vpop.f32.mrb[0].mxu0
  %v8426 = vadd.f32 0.0, %v8425
  %v8427 = vpop.f32.mrb[0].mxu0
  %v8428 = vadd.f32 0.0, %v8427
  %v8429 = vpop.f32.mrb[0].mxu0
  %v8430 = vadd.f32 0.0, %v8429
  %8431 = vmatprep.mubr.bf16.mxu0 %v8134
  %8432 = vmatmul.mubr.bf16.gmra.mrb[0].mxu0 %v8085
  %v8433 = vpop.f32.mrb[0].mxu0
  %v8434 = vadd.f32 0.0, %v8433
  %v8435 = vpop.f32.mrb[0].mxu0
  %v8436 = vadd.f32 0.0, %v8435
  %v8437 = vpop.f32.mrb[0].mxu0
  %v8438 = vadd.f32 0.0, %v8437
  %v8439 = vpop.f32.mrb[0].mxu0
  %v8440 = vadd.f32 0.0, %v8439
  %8441 = vdwg.mxu0
  %8474 = vrot.lane.b32.xlu0 %v8171, 16
  %v8475 = vpop.permute.xlu0 %8474
  %8476 = vrot.lane.b32.xlu0 %v8173, 16
  %v8477 = vpop.permute.xlu0 %8476
  %8478 = vrot.lane.b32.xlu0 %v8324, 16
  %v8479 = vpop.permute.xlu0 %8478
  %8480 = vrot.lane.b32.xlu0 %v8326, 16
  %v8481 = vpop.permute.xlu0 %8480
  %8482 = vrot.lane.b32.xlu0 %v8175, 16
  %v8483 = vpop.permute.xlu0 %8482
  %8484 = vrot.lane.b32.xlu0 %v8177, 16
  %v8485 = vpop.permute.xlu0 %8484
  %8486 = vrot.lane.b32.xlu0 %v8328, 16
  %v8487 = vpop.permute.xlu0 %8486
  %8488 = vrot.lane.b32.xlu0 %v8330, 16
  %v8489 = vpop.permute.xlu0 %8488
  %8490 = vrot.lane.b32.xlu0 %v8181, 16
  %v8491 = vpop.permute.xlu0 %8490
  %8492 = vrot.lane.b32.xlu0 %v8183, 16
  %v8493 = vpop.permute.xlu0 %8492
  %8494 = vrot.lane.b32.xlu0 %v8334, 16
  %v8495 = vpop.permute.xlu0 %8494
  %8496 = vrot.lane.b32.xlu0 %v8336, 16
  %v8497 = vpop.permute.xlu0 %8496
  %8498 = vrot.lane.b32.xlu0 %v8185, 16
  %v8499 = vpop.permute.xlu0 %8498
  %8500 = vrot.lane.b32.xlu0 %v8187, 16
  %v8501 = vpop.permute.xlu0 %8500
  %8502 = vrot.lane.b32.xlu0 %v8338, 16
  %v8503 = vpop.permute.xlu0 %8502
  %8504 = vrot.lane.b32.xlu0 %v8340, 16
  %v8505 = vpop.permute.xlu0 %8504
  %8506 = vrot.lane.b32.xlu0 %v8191, 16
  %v8507 = vpop.permute.xlu0 %8506
  %8508 = vrot.lane.b32.xlu0 %v8193, 16
  %v8509 = vpop.permute.xlu0 %8508
  %8510 = vrot.lane.b32.xlu0 %v8344, 16
  %v8511 = vpop.permute.xlu0 %8510
  %8512 = vrot.lane.b32.xlu0 %v8346, 16
  %v8513 = vpop.permute.xlu0 %8512
  %8514 = vrot.lane.b32.xlu0 %v8195, 16
  %v8515 = vpop.permute.xlu0 %8514
  %8516 = vrot.lane.b32.xlu0 %v8197, 16
  %v8517 = vpop.permute.xlu0 %8516
  %8518 = vrot.lane.b32.xlu0 %v8348, 16
  %v8519 = vpop.permute.xlu0 %8518
  %8520 = vrot.lane.b32.xlu0 %v8350, 16
  %v8521 = vpop.permute.xlu0 %8520
  %8522 = vrot.lane.b32.xlu0 %v8201, 16
  %v8523 = vpop.permute.xlu0 %8522
  %8524 = vrot.lane.b32.xlu0 %v8203, 16
  %v8525 = vpop.permute.xlu0 %8524
  %8526 = vrot.lane.b32.xlu0 %v8354, 16
  %v8527 = vpop.permute.xlu0 %8526
  %8528 = vrot.lane.b32.xlu0 %v8356, 16
  %v8529 = vpop.permute.xlu0 %8528
  %8530 = vrot.lane.b32.xlu0 %v8205, 16
  %v8531 = vpop.permute.xlu0 %8530
  %8532 = vrot.lane.b32.xlu0 %v8207, 16
  %v8533 = vpop.permute.xlu0 %8532
  %8534 = vrot.lane.b32.xlu0 %v8358, 16
  %v8535 = vpop.permute.xlu0 %8534
  %8536 = vrot.lane.b32.xlu0 %v8360, 16
  %v8537 = vpop.permute.xlu0 %8536
  %vm8538 = vcmask 130048
  %v8539 = vsel %vm8538, %v8475, %v8477
  %v8540 = vsel %vm8538, %v8477, %v8479
  %v8541 = vsel %vm8538, %v8479, %v8481
  %v8542 = vsel %vm8538, %v8483, %v8485
  %v8543 = vsel %vm8538, %v8485, %v8487
  %v8544 = vsel %vm8538, %v8487, %v8489
  %v8545 = vsel %vm8538, %v8491, %v8493
  %v8546 = vsel %vm8538, %v8493, %v8495
  %v8547 = vsel %vm8538, %v8495, %v8497
  %v8548 = vsel %vm8538, %v8499, %v8501
  %v8549 = vsel %vm8538, %v8501, %v8503
  %v8550 = vsel %vm8538, %v8503, %v8505
  %v8551 = vsel %vm8538, %v8507, %v8509
  %v8552 = vsel %vm8538, %v8509, %v8511
  %v8553 = vsel %vm8538, %v8511, %v8513
  %v8554 = vsel %vm8538, %v8515, %v8517
  %v8555 = vsel %vm8538, %v8517, %v8519
  %v8556 = vsel %vm8538, %v8519, %v8521
  %v8557 = vsel %vm8538, %v8523, %v8525
  %v8558 = vsel %vm8538, %v8525, %v8527
  %v8559 = vsel %vm8538, %v8527, %v8529
  %v8560 = vsel %vm8538, %v8531, %v8533
  %v8561 = vsel %vm8538, %v8533, %v8535
  %v8562 = vsel %vm8538, %v8535, %v8537
  %v8595 = vsel %vm8538, 0.0, %v8475
  %v8596 = vsel %vm8538, 0.0, %v8483
  %v8597 = vsel %vm8538, 0.0, %v8491
  %v8598 = vsel %vm8538, 0.0, %v8499
  %v8599 = vsel %vm8538, 0.0, %v8507
  %v8600 = vsel %vm8538, 0.0, %v8515
  %v8601 = vsel %vm8538, 0.0, %v8523
  %v8602 = vsel %vm8538, 0.0, %v8531
  %s8603 = scalar_lea.vmem %s10, 2
  %v8604 = vld [vmem:[%s8603] ss:$4 sm:$0xf]
  %v8606 = vlaneseq
  %v8607 = vshrl.u32 %v8606, 7
  %v8608 = vsub.s32 0, %v8607
  %v8609 = vrot.slane %v8604, %v8608
  %v8610 = vlaneseq
  %v8611 = vshrl.u32 %v8610, 7
  %v8612 = vsub.s32 1, %v8611
  %v8613 = vrot.slane %v8604, %v8612
  %v8614 = vlaneseq
  %v8615 = vshrl.u32 %v8614, 7
  %v8616 = vsub.s32 2, %v8615
  %v8617 = vrot.slane %v8604, %v8616
  %v8618 = vlaneseq
  %v8619 = vshrl.u32 %v8618, 7
  %v8620 = vsub.s32 3, %v8619
  %v8621 = vrot.slane %v8604, %v8620
  %v8626 = vmul.f32 %v8595, %v8609
  %v8627 = vmul.f32 %v8539, %v8613
  %v8628 = vmul.f32 %v8540, %v8617
  %v8629 = vmul.f32 %v8541, %v8621
  %v8630 = vmul.f32 %v8596, %v8609
  %v8631 = vmul.f32 %v8542, %v8613
  %v8632 = vmul.f32 %v8543, %v8617
  %v8633 = vmul.f32 %v8544, %v8621
  %v8634 = vmul.f32 %v8597, %v8609
  %v8635 = vmul.f32 %v8545, %v8613
  %v8636 = vmul.f32 %v8546, %v8617
  %v8637 = vmul.f32 %v8547, %v8621
  %v8638 = vmul.f32 %v8598, %v8609
  %v8639 = vmul.f32 %v8548, %v8613
  %v8640 = vmul.f32 %v8549, %v8617
  %v8641 = vmul.f32 %v8550, %v8621
  %v8642 = vmul.f32 %v8599, %v8609
  %v8643 = vmul.f32 %v8551, %v8613
  %v8644 = vmul.f32 %v8552, %v8617
  %v8645 = vmul.f32 %v8553, %v8621
  %v8646 = vmul.f32 %v8600, %v8609
  %v8647 = vmul.f32 %v8554, %v8613
  %v8648 = vmul.f32 %v8555, %v8617
  %v8649 = vmul.f32 %v8556, %v8621
  %v8650 = vmul.f32 %v8601, %v8609
  %v8651 = vmul.f32 %v8557, %v8613
  %v8652 = vmul.f32 %v8558, %v8617
  %v8653 = vmul.f32 %v8559, %v8621
  %v8654 = vmul.f32 %v8602, %v8609
  %v8655 = vmul.f32 %v8560, %v8613
  %v8656 = vmul.f32 %v8561, %v8617
  %v8657 = vmul.f32 %v8562, %v8621
  %8690 = vrot.lane.b32.xlu0 %v8251, 112
  %v8691 = vpop.permute.xlu0 %8690
  %8692 = vrot.lane.b32.xlu0 %v8253, 112
  %v8693 = vpop.permute.xlu0 %8692
  %8694 = vrot.lane.b32.xlu0 %v8404, 112
  %v8695 = vpop.permute.xlu0 %8694
  %8696 = vrot.lane.b32.xlu0 %v8406, 112
  %v8697 = vpop.permute.xlu0 %8696
  %8698 = vrot.lane.b32.xlu0 %v8255, 112
  %v8699 = vpop.permute.xlu0 %8698
  %8700 = vrot.lane.b32.xlu0 %v8257, 112
  %v8701 = vpop.permute.xlu0 %8700
  %8702 = vrot.lane.b32.xlu0 %v8408, 112
  %v8703 = vpop.permute.xlu0 %8702
  %8704 = vrot.lane.b32.xlu0 %v8410, 112
  %v8705 = vpop.permute.xlu0 %8704
  %8706 = vrot.lane.b32.xlu0 %v8261, 112
  %v8707 = vpop.permute.xlu0 %8706
  %8708 = vrot.lane.b32.xlu0 %v8263, 112
  %v8709 = vpop.permute.xlu0 %8708
  %8710 = vrot.lane.b32.xlu0 %v8414, 112
  %v8711 = vpop.permute.xlu0 %8710
  %8712 = vrot.lane.b32.xlu0 %v8416, 112
  %v8713 = vpop.permute.xlu0 %8712
  %8714 = vrot.lane.b32.xlu0 %v8265, 112
  %v8715 = vpop.permute.xlu0 %8714
  %8716 = vrot.lane.b32.xlu0 %v8267, 112
  %v8717 = vpop.permute.xlu0 %8716
  %8718 = vrot.lane.b32.xlu0 %v8418, 112
  %v8719 = vpop.permute.xlu0 %8718
  %8720 = vrot.lane.b32.xlu0 %v8420, 112
  %v8721 = vpop.permute.xlu0 %8720
  %8722 = vrot.lane.b32.xlu0 %v8271, 112
  %v8723 = vpop.permute.xlu0 %8722
  %8724 = vrot.lane.b32.xlu0 %v8273, 112
  %v8725 = vpop.permute.xlu0 %8724
  %8726 = vrot.lane.b32.xlu0 %v8424, 112
  %v8727 = vpop.permute.xlu0 %8726
  %8728 = vrot.lane.b32.xlu0 %v8426, 112
  %v8729 = vpop.permute.xlu0 %8728
  %8730 = vrot.lane.b32.xlu0 %v8275, 112
  %v8731 = vpop.permute.xlu0 %8730
  %8732 = vrot.lane.b32.xlu0 %v8277, 112
  %v8733 = vpop.permute.xlu0 %8732
  %8734 = vrot.lane.b32.xlu0 %v8428, 112
  %v8735 = vpop.permute.xlu0 %8734
  %8736 = vrot.lane.b32.xlu0 %v8430, 112
  %v8737 = vpop.permute.xlu0 %8736
  %8738 = vrot.lane.b32.xlu0 %v8281, 112
  %v8739 = vpop.permute.xlu0 %8738
  %8740 = vrot.lane.b32.xlu0 %v8283, 112
  %v8741 = vpop.permute.xlu0 %8740
  %8742 = vrot.lane.b32.xlu0 %v8434, 112
  %v8743 = vpop.permute.xlu0 %8742
  %8744 = vrot.lane.b32.xlu0 %v8436, 112
  %v8745 = vpop.permute.xlu0 %8744
  %8746 = vrot.lane.b32.xlu0 %v8285, 112
  %v8747 = vpop.permute.xlu0 %8746
  %8748 = vrot.lane.b32.xlu0 %v8287, 112
  %v8749 = vpop.permute.xlu0 %8748
  %8750 = vrot.lane.b32.xlu0 %v8438, 112
  %v8751 = vpop.permute.xlu0 %8750
  %8752 = vrot.lane.b32.xlu0 %v8440, 112
  %v8753 = vpop.permute.xlu0 %8752
  %vm8754 = vcmask 916480
  %v8755 = vsel %vm8754, %v8691, %v8693
  %v8756 = vsel %vm8754, %v8693, %v8695
  %v8757 = vsel %vm8754, %v8695, %v8697
  %v8758 = vsel %vm8754, %v8699, %v8701
  %v8759 = vsel %vm8754, %v8701, %v8703
  %v8760 = vsel %vm8754, %v8703, %v8705
  %v8761 = vsel %vm8754, %v8707, %v8709
  %v8762 = vsel %vm8754, %v8709, %v8711
  %v8763 = vsel %vm8754, %v8711, %v8713
  %v8764 = vsel %vm8754, %v8715, %v8717
  %v8765 = vsel %vm8754, %v8717, %v8719
  %v8766 = vsel %vm8754, %v8719, %v8721
  %v8767 = vsel %vm8754, %v8723, %v8725
  %v8768 = vsel %vm8754, %v8725, %v8727
  %v8769 = vsel %vm8754, %v8727, %v8729
  %v8770 = vsel %vm8754, %v8731, %v8733
  %v8771 = vsel %vm8754, %v8733, %v8735
  %v8772 = vsel %vm8754, %v8735, %v8737
  %v8773 = vsel %vm8754, %v8739, %v8741
  %v8774 = vsel %vm8754, %v8741, %v8743
  %v8775 = vsel %vm8754, %v8743, %v8745
  %v8776 = vsel %vm8754, %v8747, %v8749
  %v8777 = vsel %vm8754, %v8749, %v8751
  %v8778 = vsel %vm8754, %v8751, %v8753
  %v8811 = vsel %vm8754, %v8697, 0.0
  %v8812 = vsel %vm8754, %v8705, 0.0
  %v8813 = vsel %vm8754, %v8713, 0.0
  %v8814 = vsel %vm8754, %v8721, 0.0
  %v8815 = vsel %vm8754, %v8729, 0.0
  %v8816 = vsel %vm8754, %v8737, 0.0
  %v8817 = vsel %vm8754, %v8745, 0.0
  %v8818 = vsel %vm8754, %v8753, 0.0
  %s8819 = scalar_lea.vmem %s10, 3
  %v8820 = vld [vmem:[%s8819] ss:$4 sm:$0xf]
  %v8822 = vlaneseq
  %v8823 = vshrl.u32 %v8822, 7
  %v8824 = vsub.s32 0, %v8823
  %v8825 = vrot.slane %v8820, %v8824
  %v8826 = vlaneseq
  %v8827 = vshrl.u32 %v8826, 7
  %v8828 = vsub.s32 1, %v8827
  %v8829 = vrot.slane %v8820, %v8828
  %v8830 = vlaneseq
  %v8831 = vshrl.u32 %v8830, 7
  %v8832 = vsub.s32 2, %v8831
  %v8833 = vrot.slane %v8820, %v8832
  %v8834 = vlaneseq
  %v8835 = vshrl.u32 %v8834, 7
  %v8836 = vsub.s32 3, %v8835
  %v8837 = vrot.slane %v8820, %v8836
  %v8842 = vmul.f32 %v8755, %v8825
  %v8843 = vmul.f32 %v8756, %v8829
  %v8844 = vmul.f32 %v8757, %v8833
  %v8845 = vmul.f32 %v8811, %v8837
  %v8846 = vmul.f32 %v8758, %v8825
  %v8847 = vmul.f32 %v8759, %v8829
  %v8848 = vmul.f32 %v8760, %v8833
  %v8849 = vmul.f32 %v8812, %v8837
  %v8850 = vmul.f32 %v8761, %v8825
  %v8851 = vmul.f32 %v8762, %v8829
  %v8852 = vmul.f32 %v8763, %v8833
  %v8853 = vmul.f32 %v8813, %v8837
  %v8854 = vmul.f32 %v8764, %v8825
  %v8855 = vmul.f32 %v8765, %v8829
  %v8856 = vmul.f32 %v8766, %v8833
  %v8857 = vmul.f32 %v8814, %v8837
  %v8858 = vmul.f32 %v8767, %v8825
  %v8859 = vmul.f32 %v8768, %v8829
  %v8860 = vmul.f32 %v8769, %v8833
  %v8861 = vmul.f32 %v8815, %v8837
  %v8862 = vmul.f32 %v8770, %v8825
  %v8863 = vmul.f32 %v8771, %v8829
  %v8864 = vmul.f32 %v8772, %v8833
  %v8865 = vmul.f32 %v8816, %v8837
  %v8866 = vmul.f32 %v8773, %v8825
  %v8867 = vmul.f32 %v8774, %v8829
  %v8868 = vmul.f32 %v8775, %v8833
  %v8869 = vmul.f32 %v8817, %v8837
  %v8870 = vmul.f32 %v8776, %v8825
  %v8871 = vmul.f32 %v8777, %v8829
  %v8872 = vmul.f32 %v8778, %v8833
  %v8873 = vmul.f32 %v8818, %v8837
  %v8874 = vadd.f32 %v8626, %v8211
  %v8875 = vadd.f32 %v8627, %v8213
  %v8876 = vadd.f32 %v8628, %v8364
  %v8877 = vadd.f32 %v8629, %v8366
  %v8878 = vadd.f32 %v8630, %v8215
  %v8879 = vadd.f32 %v8631, %v8217
  %v8880 = vadd.f32 %v8632, %v8368
  %v8881 = vadd.f32 %v8633, %v8370
  %v8882 = vadd.f32 %v8634, %v8221
  %v8883 = vadd.f32 %v8635, %v8223
  %v8884 = vadd.f32 %v8636, %v8374
  %v8885 = vadd.f32 %v8637, %v8376
  %v8886 = vadd.f32 %v8638, %v8225
  %v8887 = vadd.f32 %v8639, %v8227
  %v8888 = vadd.f32 %v8640, %v8378
  %v8889 = vadd.f32 %v8641, %v8380
  %v8890 = vadd.f32 %v8642, %v8231
  %v8891 = vadd.f32 %v8643, %v8233
  %v8892 = vadd.f32 %v8644, %v8384
  %v8893 = vadd.f32 %v8645, %v8386
  %v8894 = vadd.f32 %v8646, %v8235
  %v8895 = vadd.f32 %v8647, %v8237
  %v8896 = vadd.f32 %v8648, %v8388
  %v8897 = vadd.f32 %v8649, %v8390
  %v8898 = vadd.f32 %v8650, %v8241
  %v8899 = vadd.f32 %v8651, %v8243
  %v8900 = vadd.f32 %v8652, %v8394
  %v8901 = vadd.f32 %v8653, %v8396
  %v8902 = vadd.f32 %v8654, %v8245
  %v8903 = vadd.f32 %v8655, %v8247
  %v8904 = vadd.f32 %v8656, %v8398
  %v8905 = vadd.f32 %v8657, %v8400
  %v8906 = vadd.f32 %v8874, %v8842
  %v8907 = vadd.f32 %v8875, %v8843
  %v8908 = vadd.f32 %v8876, %v8844
  %v8909 = vadd.f32 %v8877, %v8845
  %v8910 = vadd.f32 %v8878, %v8846
  %v8911 = vadd.f32 %v8879, %v8847
  %v8912 = vadd.f32 %v8880, %v8848
  %v8913 = vadd.f32 %v8881, %v8849
  %v8914 = vadd.f32 %v8882, %v8850
  %v8915 = vadd.f32 %v8883, %v8851
  %v8916 = vadd.f32 %v8884, %v8852
  %v8917 = vadd.f32 %v8885, %v8853
  %v8918 = vadd.f32 %v8886, %v8854
  %v8919 = vadd.f32 %v8887, %v8855
  %v8920 = vadd.f32 %v8888, %v8856
  %v8921 = vadd.f32 %v8889, %v8857
  %v8922 = vadd.f32 %v8890, %v8858
  %v8923 = vadd.f32 %v8891, %v8859
  %v8924 = vadd.f32 %v8892, %v8860
  %v8925 = vadd.f32 %v8893, %v8861
  %v8926 = vadd.f32 %v8894, %v8862
  %v8927 = vadd.f32 %v8895, %v8863
  %v8928 = vadd.f32 %v8896, %v8864
  %v8929 = vadd.f32 %v8897, %v8865
  %v8930 = vadd.f32 %v8898, %v8866
  %v8931 = vadd.f32 %v8899, %v8867
  %v8932 = vadd.f32 %v8900, %v8868
  %v8933 = vadd.f32 %v8901, %v8869
  %v8934 = vadd.f32 %v8902, %v8870
  %v8935 = vadd.f32 %v8903, %v8871
  %v8936 = vadd.f32 %v8904, %v8872
  %v8937 = vadd.f32 %v8905, %v8873
  %v8938 = vld [vmem:[%s22] sm:$0xff]
  %v8939 = vld [vmem:[%s22 + $0x8] sm:$0xff]
  %v8940 = vld [vmem:[%s22 + $0x10] sm:$0xff]
  %v8941 = vld [vmem:[%s22 + $0x18] sm:$0xff]
  %v8942 = vld [vmem:[%s22 + $0x20] sm:$0xff]
  %v8943 = vld [vmem:[%s22 + $0x28] sm:$0xff]
  %v8944 = vld [vmem:[%s22 + $0x30] sm:$0xff]
  %v8945 = vld [vmem:[%s22 + $0x38] sm:$0xff]
  %8947 = vset.pattern.permute.xlu0 0
  %8948 = vperm.xlu0 %8947, %v8938
  %v8949 = vpop.permute.xlu0 %8948
  %8952 = vset.pattern.permute.xlu0 0
  %8953 = vperm.xlu0 %8952, %v8939
  %v8954 = vpop.permute.xlu0 %8953
  %8957 = vset.pattern.permute.xlu0 0
  %8958 = vperm.xlu0 %8957, %v8940
  %v8959 = vpop.permute.xlu0 %8958
  %8962 = vset.pattern.permute.xlu0 0
  %8963 = vperm.xlu0 %8962, %v8941
  %v8964 = vpop.permute.xlu0 %8963
  %8967 = vset.pattern.permute.xlu0 0
  %8968 = vperm.xlu0 %8967, %v8942
  %v8969 = vpop.permute.xlu0 %8968
  %8972 = vset.pattern.permute.xlu0 0
  %8973 = vperm.xlu0 %8972, %v8943
  %v8974 = vpop.permute.xlu0 %8973
  %8977 = vset.pattern.permute.xlu0 0
  %8978 = vperm.xlu0 %8977, %v8944
  %v8979 = vpop.permute.xlu0 %8978
  %8982 = vset.pattern.permute.xlu0 0
  %8983 = vperm.xlu0 %8982, %v8945
  %v8984 = vpop.permute.xlu0 %8983
  %v8986 = vadd.f32 %v8906, %v8949
  %v8987 = vadd.f32 %v8907, %v8949
  %v8988 = vadd.f32 %v8908, %v8949
  %v8989 = vadd.f32 %v8909, %v8949
  %v8990 = vadd.f32 %v8910, %v8954
  %v8991 = vadd.f32 %v8911, %v8954
  %v8992 = vadd.f32 %v8912, %v8954
  %v8993 = vadd.f32 %v8913, %v8954
  %v8994 = vadd.f32 %v8914, %v8959
  %v8995 = vadd.f32 %v8915, %v8959
  %v8996 = vadd.f32 %v8916, %v8959
  %v8997 = vadd.f32 %v8917, %v8959
  %v8998 = vadd.f32 %v8918, %v8964
  %v8999 = vadd.f32 %v8919, %v8964
  %v9000 = vadd.f32 %v8920, %v8964
  %v9001 = vadd.f32 %v8921, %v8964
  %v9002 = vadd.f32 %v8922, %v8969
  %v9003 = vadd.f32 %v8923, %v8969
  %v9004 = vadd.f32 %v8924, %v8969
  %v9005 = vadd.f32 %v8925, %v8969
  %v9006 = vadd.f32 %v8926, %v8974
  %v9007 = vadd.f32 %v8927, %v8974
  %v9008 = vadd.f32 %v8928, %v8974
  %v9009 = vadd.f32 %v8929, %v8974
  %v9010 = vadd.f32 %v8930, %v8979
  %v9011 = vadd.f32 %v8931, %v8979
  %v9012 = vadd.f32 %v8932, %v8979
  %v9013 = vadd.f32 %v8933, %v8979
  %v9014 = vadd.f32 %v8934, %v8984
  %v9015 = vadd.f32 %v8935, %v8984
  %v9016 = vadd.f32 %v8936, %v8984
  %v9017 = vadd.f32 %v8937, %v8984
  %v9018 = vld [vmem:[%s23] sm:$0x3]
  %v9019 = vpack.c.bf16 %v8990, %v8986
  %v9020 = vpack.c.bf16 %v8991, %v8987
  %v9021 = vpack.c.bf16 %v8992, %v8988
  %v9022 = vpack.c.bf16 %v8993, %v8989
  %v9023 = vpack.c.bf16 %v8998, %v8994
  %v9024 = vpack.c.bf16 %v8999, %v8995
  %v9025 = vpack.c.bf16 %v9000, %v8996
  %v9026 = vpack.c.bf16 %v9001, %v8997
  %v9027 = vpack.c.bf16 %v9006, %v9002
  %v9028 = vpack.c.bf16 %v9007, %v9003
  %v9029 = vpack.c.bf16 %v9008, %v9004
  %v9030 = vpack.c.bf16 %v9009, %v9005
  %v9031 = vpack.c.bf16 %v9014, %v9010
  %v9032 = vpack.c.bf16 %v9015, %v9011
  %v9033 = vpack.c.bf16 %v9016, %v9012
  %v9034 = vpack.c.bf16 %v9017, %v9013
  %v9035 = vld [vmem:[%s24] sm:$0x7]
  %9037 = vset.pattern.permute.xlu0 0
  %9038 = vperm.xlu0 %9037, %v9035
  %v9039 = vpop.permute.xlu0 %9038
  %v9042 = vsel %vm8099, %v9018, 0
  %9044 = vmatprep.subr.bf16.mxu0 %v9020
  %9045 = vmatpush1.bf16.msra.mxu0 %v9019
  %9046 = vmatprep.subr.bf16.mxu0 %v9024
  %9047 = vmatpush1.bf16.msra.mxu0 %v9023
  %9048 = vmatprep.subr.bf16.mxu0 %v9028
  %9049 = vmatpush1.bf16.msra.mxu0 %v9027
  %9050 = vmatprep.subr.bf16.mxu0 %v9032
  %9051 = vmatpush1.bf16.msra.mxu0 %v9031
  %9052 = vmatprep.subr.bf16.mxu0 0
  %9053 = vmatpush1.bf16.msra.mxu0 0
  %9054 = vmatprep.subr.bf16.mxu0 0
  %9055 = vmatpush1.bf16.msra.mxu0 0
  %9056 = vmatprep.subr.bf16.mxu0 0
  %9057 = vmatpush1.bf16.msra.mxu0 0
  %9058 = vmatprep.subr.bf16.mxu0 0
  %9059 = vmatpush1.bf16.msra.mxu0 0
  %9060 = vmatprep.subr.bf16.mxu0 0
  %9061 = vmatpush1.bf16.msra.mxu0 0
  %9062 = vmatprep.subr.bf16.mxu0 0
  %9063 = vmatpush1.bf16.msra.mxu0 0
  %9064 = vmatprep.subr.bf16.mxu0 0
  %9065 = vmatpush1.bf16.msra.mxu0 0
  %9066 = vmatprep.subr.bf16.mxu0 0
  %9067 = vmatpush1.bf16.msra.mxu0 0
  %9068 = vmatprep.subr.bf16.mxu0 0
  %9069 = vmatpush1.bf16.msra.mxu0 0
  %9070 = vmatprep.subr.bf16.mxu0 0
  %9071 = vmatpush1.bf16.msra.mxu0 0
  %9072 = vmatprep.subr.bf16.mxu0 0
  %9073 = vmatpush1.bf16.msra.mxu0 0
  %9074 = vmatprep.subr.bf16.mxu0 0
  %9075 = vmatpush1.bf16.msra.mxu0 0
  %9076 = vmatprep.mubr.bf16.mxu0 0
  %9077 = vmatmul.mubr.bf16.gmra.mrb[0].mxu0 %v9042
  %v9078 = vpop.f32.mrb[0].mxu0
  %v9079 = vadd.f32 %v9039, %v9078
  %v9080 = vpop.f32.mrb[0].mxu0
  %v9081 = vadd.f32 %v9039, %v9080
  %v9082 = vpop.f32.mrb[0].mxu0
  %v9083 = vpop.f32.mrb[0].mxu0
  %9084 = vdwg.mxu0
  %9085 = vmatprep.subr.bf16.mxu0 %v9022
  %9086 = vmatpush1.bf16.msra.mxu0 %v9021
  %9087 = vmatprep.subr.bf16.mxu0 %v9026
  %9088 = vmatpush1.bf16.msra.mxu0 %v9025
  %9089 = vmatprep.subr.bf16.mxu0 %v9030
  %9090 = vmatpush1.bf16.msra.mxu0 %v9029
  %9091 = vmatprep.subr.bf16.mxu0 %v9034
  %9092 = vmatpush1.bf16.msra.mxu0 %v9033
  %9093 = vmatprep.subr.bf16.mxu0 0
  %9094 = vmatpush1.bf16.msra.mxu0 0
  %9095 = vmatprep.subr.bf16.mxu0 0
  %9096 = vmatpush1.bf16.msra.mxu0 0
  %9097 = vmatprep.subr.bf16.mxu0 0
  %9098 = vmatpush1.bf16.msra.mxu0 0
  %9099 = vmatprep.subr.bf16.mxu0 0
  %9100 = vmatpush1.bf16.msra.mxu0 0
  %9101 = vmatprep.subr.bf16.mxu0 0
  %9102 = vmatpush1.bf16.msra.mxu0 0
  %9103 = vmatprep.subr.bf16.mxu0 0
  %9104 = vmatpush1.bf16.msra.mxu0 0
  %9105 = vmatprep.subr.bf16.mxu0 0
  %9106 = vmatpush1.bf16.msra.mxu0 0
  %9107 = vmatprep.subr.bf16.mxu0 0
  %9108 = vmatpush1.bf16.msra.mxu0 0
  %9109 = vmatprep.subr.bf16.mxu0 0
  %9110 = vmatpush1.bf16.msra.mxu0 0
  %9111 = vmatprep.subr.bf16.mxu0 0
  %9112 = vmatpush1.bf16.msra.mxu0 0
  %9113 = vmatprep.subr.bf16.mxu0 0
  %9114 = vmatpush1.bf16.msra.mxu0 0
  %9115 = vmatprep.subr.bf16.mxu0 0
  %9116 = vmatpush1.bf16.msra.mxu0 0
  %9117 = vmatprep.mubr.bf16.mxu0 0
  %9118 = vmatmul.mubr.bf16.gmra.mrb[0].mxu0 %v9042
  %v9119 = vpop.f32.mrb[0].mxu0
  %v9120 = vadd.f32 %v9039, %v9119
  %v9121 = vpop.f32.mrb[0].mxu0
  %v9122 = vadd.f32 %v9039, %v9121
  %v9123 = vpop.f32.mrb[0].mxu0
  %v9124 = vpop.f32.mrb[0].mxu0
  %9125 = vdwg.mxu0
  %v9126 = vld [vmem:[%s0] sm:$0x77]
  %v9127 = vld [vmem:[%s0 + $0x8] sm:$0x77]
  %v9132 = vcombine.low %v9079, %v9081
  %v9133 = vcombine.low %v9120, %v9122
  %v9136 = vadd.f32 %v9126, %v9132
  %v9137 = vadd.f32 %v9127, %v9133
  %v9138 = vld [vmem:[%s25] sm:$0x7]
  %v9139 = vld [vmem:[%s26] sm:$0x7]
  %9141 = vset.pattern.permute.xlu0 0
  %9142 = vperm.xlu0 %9141, %v9138
  %v9143 = vpop.permute.xlu0 %9142
  %v9147 = vlaneseq
  %v9148 = vshrl.u32 %v9147, 7
  %v9149 = vsub.s32 0, %v9148
  %v9150 = vrot.slane %v9136, %v9149
  %v9151 = vlaneseq
  %v9152 = vshrl.u32 %v9151, 7
  %v9153 = vsub.s32 4, %v9152
  %v9154 = vrot.slane %v9136, %v9153
  %v9155 = vlaneseq
  %v9156 = vshrl.u32 %v9155, 7
  %v9157 = vsub.s32 0, %v9156
  %v9158 = vrot.slane %v9137, %v9157
  %v9159 = vlaneseq
  %v9160 = vshrl.u32 %v9159, 7
  %v9161 = vsub.s32 4, %v9160
  %v9162 = vrot.slane %v9137, %v9161
  %v9167 = vlaneseq
  %v9168 = vshrl.u32 %v9167, 7
  %v9169 = vsub.s32 0, %v9168
  %v9170 = vrot.slane %v9150, %v9169
  %v9171 = vlaneseq
  %v9172 = vshrl.u32 %v9171, 7
  %v9173 = vsub.s32 0, %v9172
  %v9174 = vrot.slane %v9154, %v9173
  %v9175 = vlaneseq
  %v9176 = vshrl.u32 %v9175, 7
  %v9177 = vsub.s32 0, %v9176
  %v9178 = vrot.slane %v9158, %v9177
  %v9179 = vlaneseq
  %v9180 = vshrl.u32 %v9179, 7
  %v9181 = vsub.s32 0, %v9180
  %v9182 = vrot.slane %v9162, %v9181
  %v9183 = vmul.f32 %v9143, %v9170
  %v9184 = vmul.f32 %v9143, %v9174
  %v9185 = vmul.f32 %v9143, %v9178
  %v9186 = vmul.f32 %v9143, %v9182
  %9188 = vset.pattern.permute.xlu0 0
  %9189 = vperm.xlu0 %9188, %v9139
  %v9190 = vpop.permute.xlu0 %9189
  %v9192 = vadd.f32 %v9190, %v9183
  %v9193 = vadd.f32 %v9190, %v9184
  %v9194 = vadd.f32 %v9190, %v9185
  %v9195 = vadd.f32 %v9190, %v9186
  %9196 = vset.pattern.permute.xlu0 1
  %9197 = vperm.xlu0 %9196, %v9138
  %v9198 = vpop.permute.xlu0 %9197
  %v9200 = vlaneseq
  %v9201 = vshrl.u32 %v9200, 7
  %v9202 = vsub.s32 1, %v9201
  %v9203 = vrot.slane %v9136, %v9202
  %v9204 = vlaneseq
  %v9205 = vshrl.u32 %v9204, 7
  %v9206 = vsub.s32 5, %v9205
  %v9207 = vrot.slane %v9136, %v9206
  %v9208 = vlaneseq
  %v9209 = vshrl.u32 %v9208, 7
  %v9210 = vsub.s32 1, %v9209
  %v9211 = vrot.slane %v9137, %v9210
  %v9212 = vlaneseq
  %v9213 = vshrl.u32 %v9212, 7
  %v9214 = vsub.s32 5, %v9213
  %v9215 = vrot.slane %v9137, %v9214
  %v9220 = vlaneseq
  %v9221 = vshrl.u32 %v9220, 7
  %v9222 = vsub.s32 1, %v9221
  %v9223 = vrot.slane %v9203, %v9222
  %v9224 = vlaneseq
  %v9225 = vshrl.u32 %v9224, 7
  %v9226 = vsub.s32 1, %v9225
  %v9227 = vrot.slane %v9207, %v9226
  %v9228 = vlaneseq
  %v9229 = vshrl.u32 %v9228, 7
  %v9230 = vsub.s32 1, %v9229
  %v9231 = vrot.slane %v9211, %v9230
  %v9232 = vlaneseq
  %v9233 = vshrl.u32 %v9232, 7
  %v9234 = vsub.s32 1, %v9233
  %v9235 = vrot.slane %v9215, %v9234
  %v9236 = vmul.f32 %v9198, %v9223
  %v9237 = vmul.f32 %v9198, %v9227
  %v9238 = vmul.f32 %v9198, %v9231
  %v9239 = vmul.f32 %v9198, %v9235
  %v9240 = vadd.f32 %v9192, %v9236
  %v9241 = vadd.f32 %v9193, %v9237
  %v9242 = vadd.f32 %v9194, %v9238
  %v9243 = vadd.f32 %v9195, %v9239
  %9244 = vset.pattern.permute.xlu0 2
  %9245 = vperm.xlu0 %9244, %v9138
  %v9246 = vpop.permute.xlu0 %9245
  %v9248 = vlaneseq
  %v9249 = vshrl.u32 %v9248, 7
  %v9250 = vsub.s32 2, %v9249
  %v9251 = vrot.slane %v9136, %v9250
  %v9252 = vlaneseq
  %v9253 = vshrl.u32 %v9252, 7
  %v9254 = vsub.s32 6, %v9253
  %v9255 = vrot.slane %v9136, %v9254
  %v9256 = vlaneseq
  %v9257 = vshrl.u32 %v9256, 7
  %v9258 = vsub.s32 2, %v9257
  %v9259 = vrot.slane %v9137, %v9258
  %v9260 = vlaneseq
  %v9261 = vshrl.u32 %v9260, 7
  %v9262 = vsub.s32 6, %v9261
  %v9263 = vrot.slane %v9137, %v9262
  %v9268 = vlaneseq
  %v9269 = vshrl.u32 %v9268, 7
  %v9270 = vsub.s32 2, %v9269
  %v9271 = vrot.slane %v9251, %v9270
  %v9272 = vlaneseq
  %v9273 = vshrl.u32 %v9272, 7
  %v9274 = vsub.s32 2, %v9273
  %v9275 = vrot.slane %v9255, %v9274
  %v9276 = vlaneseq
  %v9277 = vshrl.u32 %v9276, 7
  %v9278 = vsub.s32 2, %v9277
  %v9279 = vrot.slane %v9259, %v9278
  %v9280 = vlaneseq
  %v9281 = vshrl.u32 %v9280, 7
  %v9282 = vsub.s32 2, %v9281
  %v9283 = vrot.slane %v9263, %v9282
  %v9284 = vmul.f32 %v9246, %v9271
  %v9285 = vmul.f32 %v9246, %v9275
  %v9286 = vmul.f32 %v9246, %v9279
  %v9287 = vmul.f32 %v9246, %v9283
  %v9288 = vadd.f32 %v9240, %v9284
  %v9289 = vadd.f32 %v9241, %v9285
  %v9290 = vadd.f32 %v9242, %v9286
  %v9291 = vadd.f32 %v9243, %v9287
  %v9292 = vtanh.pop %v9288
  %v9293 = vtanh.pop %v9289
  %v9294 = vtanh.pop %v9290
  %v9295 = vtanh.pop %v9291
  %v9300 = vcombine.low %v9292, %v9293
  %v9301 = vcombine.low %v9294, %v9295
  %9304 = vst [vmem:[%s27] sm:$0x77] %v9300
  %9305 = vst [vmem:[%s27 + $0x8] sm:$0x77] %v9301
  %9306 = vst [vmem:[%s28] sm:$0x77] %v9132
  %9307 = vst [vmem:[%s28 + $0x8] sm:$0x77] %v9133
  // Predicated region
  $region110: #{feature_decoder_full.1} parent=0 // pred_check
    _
  $region111: #{feature_decoder_full.1} parent=0 // pred_check_branch
    %9309 = sbr.rel (0) target = $region113
  $region112: #{feature_decoder_full.1} parent=0 // pred_region
    _
  $region113: #{feature_decoder_full.1} parent=0 // pred_fallthru
    _
  // Predicated region
  $region114: #{feature_decoder_full.1} parent=0 // pred_check
    _
  $region115: #{feature_decoder_full.1} parent=0 // pred_check_branch
    %9311 = sbr.rel (0) target = $region117
  $region116: #{feature_decoder_full.1} parent=0 // pred_region
    _
  $region117: #{feature_decoder_full.1} parent=0 // pred_fallthru
    _
  // Predicated region
  $region118: #{feature_decoder_full.1} parent=0 // pred_check
    _
  $region119: #{feature_decoder_full.1} parent=0 // pred_check_branch
    %9313 = sbr.rel (0) target = $region121
  $region120: #{feature_decoder_full.1} parent=0 // pred_region
    _
  $region121: #{feature_decoder_full.1} parent=0 // pred_fallthru
    _
  // Predicated region
  $region122: #{feature_decoder_full.1} parent=0 // pred_check
    _
  $region123: #{feature_decoder_full.1} parent=0 // pred_check_branch
    %9315 = sbr.rel (0) target = $region125
  $region124: #{feature_decoder_full.1} parent=0 // pred_region
    _
  $region125: #{feature_decoder_full.1} parent=0 // pred_fallthru
    _

</llo_original>
